<compile_context>
chip_gen: v7x
topology: tpu7x:2x2x1
jax: 0.10.0
libtpu: 0.0.40
codegen_flags: <defaults>
</compile_context>

<pallas_src>
import functools

import jax
import jax.numpy as jnp
from jax.experimental import pallas as pl
from jax.experimental.pallas import tpu as pltpu


# ---------------------------------------------------------------------------
# Pallas kernel: tiled  out = leaky_relu( (A @ W) + bias )
#   A: bf16 [M, K], W: bf16 [K, N], bias: f32 [1, N]; f32 accumulation.
#   grid = (M/tm, N/tn, K/tk), K innermost ("arbitrary"), M/N "parallel".
# ---------------------------------------------------------------------------
def _matmul_bias_act_kernel(a_ref, w_ref, b_ref, o_ref, acc_ref, *, has_act):
    k = pl.program_id(2)

    @pl.when(k == 0)
    def _init():
        acc_ref[...] = jnp.zeros_like(acc_ref)

    acc_ref[...] += jnp.dot(a_ref[...], w_ref[...],
                            preferred_element_type=jnp.float32)

    @pl.when(k == pl.num_programs(2) - 1)
    def _finalize():
        out = acc_ref[...] + b_ref[...]
        if has_act:
            out = jnp.where(out > 0, out, 0.1 * out)        # LeakyReLU(0.1)
        o_ref[...] = out.astype(o_ref.dtype)


def _round_up(x, m):
    return ((x + m - 1) // m) * m


def matmul_bias_act(a, w, bias, *, has_act, out_dtype=jnp.float32):
    """out = act(a @ w + bias);  a: [M, K], w: [K, N], bias: [N]."""
    M, K = a.shape
    Kw, N = w.shape
    assert K == Kw

    # ---- tile selection ---------------------------------------------------
    tm = min(256, _round_up(M, 8))
    k_pad = _round_up(K, 128)              # pad K (e.g. conv1's K=27 -> 128)
    if k_pad <= 512:
        tk = k_pad
    else:
        tk = next(t for t in (512, 384, 256, 128) if k_pad % t == 0)
    if N > 256 and N % 256 == 0:
        tn = 256                           # lane-dense output tiles
    else:
        tn = N                             # small Cout: keep full width

    m_pad = _round_up(M, tm)

    # ---- operand prep: zero-pad + bf16 cast (f32 accumulation on MXU) -----
    a_p = jnp.pad(a.astype(jnp.bfloat16), ((0, m_pad - M), (0, k_pad - K)))
    w_p = jnp.pad(w.astype(jnp.bfloat16), ((0, k_pad - K), (0, 0)))
    b_p = bias.reshape(1, N).astype(jnp.float32)

    grid = (m_pad // tm, N // tn, k_pad // tk)

    # VMEM bound derived from actual tiles (2x for double buffering),
    # capped well below v7x's 64 MiB physical VMEM.
    tile_bytes = (2 * (tm * tk * 2 + tk * tn * 2 + tm * tn * 4)
                  + tm * tn * 4 + 2 * tn * 4)
    vmem_limit = min(max(2 * tile_bytes, 16 * 1024 * 1024), 48 * 1024 * 1024)

    kernel = functools.partial(_matmul_bias_act_kernel, has_act=has_act)
    out = pl.pallas_call(
        kernel,
        out_shape=jax.ShapeDtypeStruct((m_pad, N), out_dtype),
        grid=grid,
        in_specs=[
            pl.BlockSpec((tm, tk), lambda i, j, k: (i, k)),
            pl.BlockSpec((tk, tn), lambda i, j, k: (k, j)),
            pl.BlockSpec((1, tn), lambda i, j, k: (0, j)),
        ],
        out_specs=pl.BlockSpec((tm, tn), lambda i, j, k: (i, j)),
        scratch_shapes=[pltpu.VMEM((tm, tn), jnp.float32)],
        compiler_params=pltpu.CompilerParams(
            dimension_semantics=("parallel", "parallel", "arbitrary"),
            vmem_limit_bytes=vmem_limit),
    )(a_p, w_p, b_p)
    return out[:M]


# ---------------------------------------------------------------------------
# Glue: im2col, conv-block wrapper, pooling
# ---------------------------------------------------------------------------
def im2col(x_nhwc, kh, kw, stride, pad):
    if pad > 0:
        x_nhwc = jnp.pad(x_nhwc, ((0, 0), (pad, pad), (pad, pad), (0, 0)))
    n, hp, wp, c = x_nhwc.shape
    ho = (hp - kh) // stride + 1
    wo = (wp - kw) // stride + 1
    cols = []
    for i in range(kh):
        for j in range(kw):
            cols.append(x_nhwc[:, i:i + stride * ho:stride,
                               j:j + stride * wo:stride, :])   # [n, ho, wo, c]
    patches = jnp.concatenate(cols, axis=-1) if len(cols) > 1 else cols[0]
    return patches.reshape(n * ho * wo, kh * kw * c), (n, ho, wo)


def conv_bn_act(x_nhwc, p, stride, pad, has_act=True):
    kh, kw, cin, cout = p["w"].shape
    a, (n, ho, wo) = im2col(x_nhwc.astype(jnp.bfloat16), kh, kw, stride, pad)
    # Fold the (inference) BN scale into the weights at trace time.
    w2d = p["w"].reshape(kh * kw * cin, cout) * p["scale"][None, :]
    out = matmul_bias_act(a, w2d, p["bias"], has_act=has_act,
                          out_dtype=jnp.bfloat16)
    return out.reshape(n, ho, wo, cout)


def maxpool2(x_nhwc):
    n, h, w, c = x_nhwc.shape
    x = x_nhwc.reshape(n, h // 2, 2, w // 2, 2, c)
    return x.max(axis=(2, 4))


# ---------------------------------------------------------------------------
# Network definition
# ---------------------------------------------------------------------------
def tiny_block(x, params, planes):
    x1 = conv_bn_act(x, params["conv1"], stride=1, pad=1)
    xs = x1[..., planes // 2:]                         # torch.split(..., dim=1)[1]
    x2 = conv_bn_act(xs, params["conv2"], stride=1, pad=1)
    xc = conv_bn_act(x2, params["conv3"], stride=1, pad=1)
    xcat = jnp.concatenate([xc, x2], axis=-1)          # cat on channel axis
    x3 = conv_bn_act(xcat, params["conv4"], stride=1, pad=0)
    x = jnp.concatenate([x1, x3], axis=-1)
    x = maxpool2(x)
    return x, x3


def cspdarknet_tiny_forward(x_nchw, params):
    x = jnp.transpose(x_nchw, (0, 2, 3, 1))            # NCHW -> NHWC
    x = conv_bn_act(x, params["conv1"], stride=2, pad=1)
    x = conv_bn_act(x, params["conv2"], stride=2, pad=1)
    x, _ = tiny_block(x, params["block1"], 64)
    x, _ = tiny_block(x, params["block2"], 128)
    x, _ = tiny_block(x, params["block3"], 256)
    x = conv_bn_act(x, params["conv3"], stride=1, pad=1)
    x = jnp.mean(x.astype(jnp.float32), axis=(1, 2))   # AdaptiveAvgPool2d((1,1)) -> [N, 512]
    fc = params["fc"]
    logits = matmul_bias_act(x, fc["w"] * fc["scale"][None, :], fc["bias"],
                             has_act=False, out_dtype=jnp.float32)
    return logits                                      # [N, 1000]


# ---------------------------------------------------------------------------
# Deterministic parameter init (matches module's __init__ shapes).
# Weights are stored HWIO (KH, KW, Cin, Cout); loading real PyTorch OIHW
# weights would require transposing (2, 3, 1, 0).
# ---------------------------------------------------------------------------
def make_conv_params(key, cin, cout, k):
    fan_out = cout * k * k
    std = (2.0 / ((1.0 + 0.1 ** 2) * fan_out)) ** 0.5   # kaiming fan_out, leaky_relu
    w = jax.random.normal(key, (k, k, cin, cout), jnp.float32) * std
    gamma = jnp.ones((cout,), jnp.float32)
    beta = jnp.zeros((cout,), jnp.float32)
    running_mean = jnp.zeros((cout,), jnp.float32)
    running_var = jnp.ones((cout,), jnp.float32)
    eps = 1e-5
    scale = gamma / jnp.sqrt(running_var + eps)
    bias = beta - running_mean * scale
    return {"w": w, "scale": scale, "bias": bias}


def make_block_params(key, inplanes, planes):
    k1, k2, k3, k4 = jax.random.split(key, 4)
    return {
        "conv1": make_conv_params(k1, inplanes, planes, 3),
        "conv2": make_conv_params(k2, planes // 2, planes // 2, 3),
        "conv3": make_conv_params(k3, planes // 2, planes // 2, 3),
        "conv4": make_conv_params(k4, planes, planes, 1),
    }


def init_params(key, planes=(64, 128, 256, 512), num_classes=1000):
    keys = jax.random.split(key, 8)
    bound = 1.0 / (planes[3] ** 0.5)
    fc_w = jax.random.uniform(keys[6], (planes[3], num_classes), jnp.float32,
                              minval=-bound, maxval=bound)
    fc_b = jax.random.uniform(keys[7], (num_classes,), jnp.float32,
                              minval=-bound, maxval=bound)
    return {
        "conv1": make_conv_params(keys[0], 3, 32, 3),
        "conv2": make_conv_params(keys[1], 32, planes[0], 3),
        "block1": make_block_params(keys[2], planes[0], planes[0]),
        "block2": make_block_params(keys[3], planes[1], planes[1]),
        "block3": make_block_params(keys[4], planes[2], planes[2]),
        "conv3": make_conv_params(keys[5], planes[3], planes[3], 3),
        "fc": {"w": fc_w, "scale": jnp.ones((num_classes,), jnp.float32), "bias": fc_b},
    }


# ---------------------------------------------------------------------------
if __name__ == "__main__":
    root = jax.random.PRNGKey(0)
    pkey, xkey = jax.random.split(root)
    params = init_params(pkey)
    # Minimum spatial size that survives 5 /2 downsamplings is 32.
    x = jax.random.normal(xkey, (2, 3, 32, 32), jnp.float32)

    fwd = jax.jit(cspdarknet_tiny_forward)
    out = jax.block_until_ready(fwd(x, params))

    assert out.shape == (2, 1000), out.shape
    assert bool(jnp.all(jnp.isfinite(out)))
    print("KERNEL_OK")
</pallas_src>

<mosaic_0001>
module attributes {stable_mosaic.version = 11 : i64} {
  func.func @_matmul_bias_act_kernel(%arg0: i32, %arg1: i32, %arg2: i32, %arg3: memref<256x128xbf16, #tpu.memory_space<vmem>>, %arg4: memref<128x32xbf16, #tpu.memory_space<vmem>>, %arg5: memref<1x32xf32, #tpu.memory_space<vmem>>, %arg6: memref<256x32xbf16, #tpu.memory_space<vmem>>, %arg7: memref<256x32xf32, #tpu.memory_space<vmem>>) attributes {dimension_semantics = [#tpu.dimension_semantics<parallel>, #tpu.dimension_semantics<parallel>, #tpu.dimension_semantics<arbitrary>], iteration_bounds = array<i64: 2, 1, 1>, scalar_prefetch = 0 : i64, scratch_operands = 1 : i64, tpu.core_type = #tpu.core_type<tc>, window_params = [{transform_indices = @transform_0, window_bounds = array<i64: 256, 128>}, {transform_indices = @transform_1, window_bounds = array<i64: 128, 32>}, {transform_indices = @transform_2, window_bounds = array<i64: 1, 32>}, {transform_indices = @transform_3, window_bounds = array<i64: 256, 32>}]} {
    %c0_i32 = arith.constant 0 : i32
    %0 = arith.cmpi eq, %arg2, %c0_i32 : i32
    %1 = arith.extui %0 : i1 to i32
    %c0_i32_0 = arith.constant 0 : i32
    %2 = arith.cmpi ne, %1, %c0_i32_0 : i32
    scf.if %2 {
      %cst_10 = arith.constant 0.000000e+00 : f32
      %12 = vector.broadcast %cst_10 : f32 to vector<256x32xf32>
      %c0_11 = arith.constant 0 : index
      %c0_12 = arith.constant 0 : index
      %13 = vector.load %arg7[%c0_11, %c0_12] : memref<256x32xf32, #tpu.memory_space<vmem>>, vector<256x32xf32>
      tpu.vector_store %arg7[%c0_11, %c0_12], %12 {strides = array<i32>} : memref<256x32xf32, #tpu.memory_space<vmem>>, vector<256x32xf32>,
    } else {
    }
    %c0 = arith.constant 0 : index
    %c0_1 = arith.constant 0 : index
    %3 = vector.load %arg7[%c0, %c0_1] : memref<256x32xf32, #tpu.memory_space<vmem>>, vector<256x32xf32>
    %c0_2 = arith.constant 0 : index
    %c0_3 = arith.constant 0 : index
    %4 = vector.load %arg3[%c0_2, %c0_3] : memref<256x128xbf16, #tpu.memory_space<vmem>>, vector<256x128xbf16>
    %c0_4 = arith.constant 0 : index
    %c0_5 = arith.constant 0 : index
    %5 = vector.load %arg4[%c0_4, %c0_5] : memref<128x32xbf16, #tpu.memory_space<vmem>>, vector<128x32xbf16>
    %cst = arith.constant dense<0.000000e+00> : vector<256x32xf32>
    %6 = tpu.matmul %4, %5, %cst {dimension_numbers = #tpu.dot_dimension_numbers<[1], [0], [0], [1], [0, 0, 1, 1], [], []>} : vector<256x128xbf16>, vector<128x32xbf16>, vector<256x32xf32> -> vector<256x32xf32>
    %7 = arith.addf %3, %6 : vector<256x32xf32>
    %c0_6 = arith.constant 0 : index
    %c0_7 = arith.constant 0 : index
    %8 = vector.load %arg7[%c0_6, %c0_7] : memref<256x32xf32, #tpu.memory_space<vmem>>, vector<256x32xf32>
    tpu.vector_store %arg7[%c0_6, %c0_7], %7 {strides = array<i32>} : memref<256x32xf32, #tpu.memory_space<vmem>>, vector<256x32xf32>,
    %c0_i32_8 = arith.constant 0 : i32
    %9 = arith.cmpi eq, %arg2, %c0_i32_8 : i32
    %10 = arith.extui %9 : i1 to i32
    %c0_i32_9 = arith.constant 0 : i32
    %11 = arith.cmpi ne, %10, %c0_i32_9 : i32
    scf.if %11 {
      %c0_10 = arith.constant 0 : index
      %c0_11 = arith.constant 0 : index
      %12 = vector.load %arg7[%c0_10, %c0_11] : memref<256x32xf32, #tpu.memory_space<vmem>>, vector<256x32xf32>
      %c0_12 = arith.constant 0 : index
      %c0_13 = arith.constant 0 : index
      %13 = vector.load %arg5[%c0_12, %c0_13] : memref<1x32xf32, #tpu.memory_space<vmem>>, vector<1x32xf32>
      %14 = vector.broadcast %13 : vector<1x32xf32> to vector<256x32xf32>
      %15 = arith.addf %12, %14 : vector<256x32xf32>
      %cst_14 = arith.constant 0.000000e+00 : f32
      %16 = vector.broadcast %cst_14 : f32 to vector<256x32xf32>
      %17 = arith.cmpf ogt, %15, %16 : vector<256x32xf32>
      %cst_15 = arith.constant 1.000000e-01 : f32
      %18 = vector.broadcast %cst_15 : f32 to vector<256x32xf32>
      %19 = arith.mulf %18, %15 : vector<256x32xf32>
      %20 = arith.select %17, %15, %19 : vector<256x32xi1>, vector<256x32xf32>
      %21 = arith.truncf %20 : vector<256x32xf32> to vector<256x32xbf16>
      %c0_16 = arith.constant 0 : index
      %c0_17 = arith.constant 0 : index
      %22 = vector.load %arg6[%c0_16, %c0_17] : memref<256x32xbf16, #tpu.memory_space<vmem>>, vector<256x32xbf16>
      tpu.vector_store %arg6[%c0_16, %c0_17], %21 {strides = array<i32>} : memref<256x32xbf16, #tpu.memory_space<vmem>>, vector<256x32xbf16>,
    } else {
    }
    return
  }
  func.func @transform_0(%arg0: i32, %arg1: i32, %arg2: i32) -> (i32, i32) {
    %c0_i32 = arith.constant 0 : i32
    return %arg0, %arg2 : i32, i32
  }
  func.func @transform_1(%arg0: i32, %arg1: i32, %arg2: i32) -> (i32, i32) {
    %c0_i32 = arith.constant 0 : i32
    return %arg2, %arg1 : i32, i32
  }
  func.func @transform_2(%arg0: i32, %arg1: i32, %arg2: i32) -> (i32, i32) {
    %c0_i32 = arith.constant 0 : i32
    %c0_i32_0 = arith.constant 0 : i32
    return %c0_i32, %arg1 : i32, i32
  }
  func.func @transform_3(%arg0: i32, %arg1: i32, %arg2: i32) -> (i32, i32) {
    %c0_i32 = arith.constant 0 : i32
    return %arg0, %arg1 : i32, i32
  }
}

module attributes {stable_mosaic.version = 11 : i64} {
  func.func @_matmul_bias_act_kernel(%arg0: i32, %arg1: i32, %arg2: i32, %arg3: memref<128x384xbf16, #tpu.memory_space<vmem>>, %arg4: memref<384x64xbf16, #tpu.memory_space<vmem>>, %arg5: memref<1x64xf32, #tpu.memory_space<vmem>>, %arg6: memref<128x64xbf16, #tpu.memory_space<vmem>>, %arg7: memref<128x64xf32, #tpu.memory_space<vmem>>) attributes {dimension_semantics = [#tpu.dimension_semantics<parallel>, #tpu.dimension_semantics<parallel>, #tpu.dimension_semantics<arbitrary>], iteration_bounds = array<i64: 1, 1, 1>, scalar_prefetch = 0 : i64, scratch_operands = 1 : i64, tpu.core_type = #tpu.core_type<tc>, window_params = [{transform_indices = @transform_0, window_bounds = array<i64: 128, 384>}, {transform_indices = @transform_1, window_bounds = array<i64: 384, 64>}, {transform_indices = @transform_2, window_bounds = array<i64: 1, 64>}, {transform_indices = @transform_3, window_bounds = array<i64: 128, 64>}]} {
    %c0_i32 = arith.constant 0 : i32
    %0 = arith.cmpi eq, %arg2, %c0_i32 : i32
    %1 = arith.extui %0 : i1 to i32
    %c0_i32_0 = arith.constant 0 : i32
    %2 = arith.cmpi ne, %1, %c0_i32_0 : i32
    scf.if %2 {
      %cst_10 = arith.constant 0.000000e+00 : f32
      %12 = vector.broadcast %cst_10 : f32 to vector<128x64xf32>
      %c0_11 = arith.constant 0 : index
      %c0_12 = arith.constant 0 : index
      %13 = vector.load %arg7[%c0_11, %c0_12] : memref<128x64xf32, #tpu.memory_space<vmem>>, vector<128x64xf32>
      tpu.vector_store %arg7[%c0_11, %c0_12], %12 {strides = array<i32>} : memref<128x64xf32, #tpu.memory_space<vmem>>, vector<128x64xf32>,
    } else {
    }
    %c0 = arith.constant 0 : index
    %c0_1 = arith.constant 0 : index
    %3 = vector.load %arg7[%c0, %c0_1] : memref<128x64xf32, #tpu.memory_space<vmem>>, vector<128x64xf32>
    %c0_2 = arith.constant 0 : index
    %c0_3 = arith.constant 0 : index
    %4 = vector.load %arg3[%c0_2, %c0_3] : memref<128x384xbf16, #tpu.memory_space<vmem>>, vector<128x384xbf16>
    %c0_4 = arith.constant 0 : index
    %c0_5 = arith.constant 0 : index
    %5 = vector.load %arg4[%c0_4, %c0_5] : memref<384x64xbf16, #tpu.memory_space<vmem>>, vector<384x64xbf16>
    %cst = arith.constant dense<0.000000e+00> : vector<128x64xf32>
    %6 = tpu.matmul %4, %5, %cst {dimension_numbers = #tpu.dot_dimension_numbers<[1], [0], [0], [1], [0, 0, 1, 1], [], []>} : vector<128x384xbf16>, vector<384x64xbf16>, vector<128x64xf32> -> vector<128x64xf32>
    %7 = arith.addf %3, %6 : vector<128x64xf32>
    %c0_6 = arith.constant 0 : index
    %c0_7 = arith.constant 0 : index
    %8 = vector.load %arg7[%c0_6, %c0_7] : memref<128x64xf32, #tpu.memory_space<vmem>>, vector<128x64xf32>
    tpu.vector_store %arg7[%c0_6, %c0_7], %7 {strides = array<i32>} : memref<128x64xf32, #tpu.memory_space<vmem>>, vector<128x64xf32>,
    %c0_i32_8 = arith.constant 0 : i32
    %9 = arith.cmpi eq, %arg2, %c0_i32_8 : i32
    %10 = arith.extui %9 : i1 to i32
    %c0_i32_9 = arith.constant 0 : i32
    %11 = arith.cmpi ne, %10, %c0_i32_9 : i32
    scf.if %11 {
      %c0_10 = arith.constant 0 : index
      %c0_11 = arith.constant 0 : index
      %12 = vector.load %arg7[%c0_10, %c0_11] : memref<128x64xf32, #tpu.memory_space<vmem>>, vector<128x64xf32>
      %c0_12 = arith.constant 0 : index
      %c0_13 = arith.constant 0 : index
      %13 = vector.load %arg5[%c0_12, %c0_13] : memref<1x64xf32, #tpu.memory_space<vmem>>, vector<1x64xf32>
      %14 = vector.broadcast %13 : vector<1x64xf32> to vector<128x64xf32>
      %15 = arith.addf %12, %14 : vector<128x64xf32>
      %cst_14 = arith.constant 0.000000e+00 : f32
      %16 = vector.broadcast %cst_14 : f32 to vector<128x64xf32>
      %17 = arith.cmpf ogt, %15, %16 : vector<128x64xf32>
      %cst_15 = arith.constant 1.000000e-01 : f32
      %18 = vector.broadcast %cst_15 : f32 to vector<128x64xf32>
      %19 = arith.mulf %18, %15 : vector<128x64xf32>
      %20 = arith.select %17, %15, %19 : vector<128x64xi1>, vector<128x64xf32>
      %21 = arith.truncf %20 : vector<128x64xf32> to vector<128x64xbf16>
      %c0_16 = arith.constant 0 : index
      %c0_17 = arith.constant 0 : index
      %22 = vector.load %arg6[%c0_16, %c0_17] : memref<128x64xbf16, #tpu.memory_space<vmem>>, vector<128x64xbf16>
      tpu.vector_store %arg6[%c0_16, %c0_17], %21 {strides = array<i32>} : memref<128x64xbf16, #tpu.memory_space<vmem>>, vector<128x64xbf16>,
    } else {
    }
    return
  }
  func.func @transform_0(%arg0: i32, %arg1: i32, %arg2: i32) -> (i32, i32) {
    %c0_i32 = arith.constant 0 : i32
    return %arg0, %arg2 : i32, i32
  }
  func.func @transform_1(%arg0: i32, %arg1: i32, %arg2: i32) -> (i32, i32) {
    %c0_i32 = arith.constant 0 : i32
    return %arg2, %arg1 : i32, i32
  }
  func.func @transform_2(%arg0: i32, %arg1: i32, %arg2: i32) -> (i32, i32) {
    %c0_i32 = arith.constant 0 : i32
    %c0_i32_0 = arith.constant 0 : i32
    return %c0_i32, %arg1 : i32, i32
  }
  func.func @transform_3(%arg0: i32, %arg1: i32, %arg2: i32) -> (i32, i32) {
    %c0_i32 = arith.constant 0 : i32
    return %arg0, %arg1 : i32, i32
  }
}

module attributes {stable_mosaic.version = 11 : i64} {
  func.func @_matmul_bias_act_kernel(%arg0: i32, %arg1: i32, %arg2: i32, %arg3: memref<128x128xbf16, #tpu.memory_space<vmem>>, %arg4: memref<128x64xbf16, #tpu.memory_space<vmem>>, %arg5: memref<1x64xf32, #tpu.memory_space<vmem>>, %arg6: memref<128x64xbf16, #tpu.memory_space<vmem>>, %arg7: memref<128x64xf32, #tpu.memory_space<vmem>>) attributes {dimension_semantics = [#tpu.dimension_semantics<parallel>, #tpu.dimension_semantics<parallel>, #tpu.dimension_semantics<arbitrary>], iteration_bounds = array<i64: 1, 1, 5>, scalar_prefetch = 0 : i64, scratch_operands = 1 : i64, tpu.core_type = #tpu.core_type<tc>, window_params = [{transform_indices = @transform_0, window_bounds = array<i64: 128, 128>}, {transform_indices = @transform_1, window_bounds = array<i64: 128, 64>}, {transform_indices = @transform_2, window_bounds = array<i64: 1, 64>}, {transform_indices = @transform_3, window_bounds = array<i64: 128, 64>}]} {
    %c0_i32 = arith.constant 0 : i32
    %0 = arith.cmpi eq, %arg2, %c0_i32 : i32
    %1 = arith.extui %0 : i1 to i32
    %c0_i32_0 = arith.constant 0 : i32
    %2 = arith.cmpi ne, %1, %c0_i32_0 : i32
    scf.if %2 {
      %cst_9 = arith.constant 0.000000e+00 : f32
      %12 = vector.broadcast %cst_9 : f32 to vector<128x64xf32>
      %c0_10 = arith.constant 0 : index
      %c0_11 = arith.constant 0 : index
      %13 = vector.load %arg7[%c0_10, %c0_11] : memref<128x64xf32, #tpu.memory_space<vmem>>, vector<128x64xf32>
      tpu.vector_store %arg7[%c0_10, %c0_11], %12 {strides = array<i32>} : memref<128x64xf32, #tpu.memory_space<vmem>>, vector<128x64xf32>,
    } else {
    }
    %c0 = arith.constant 0 : index
    %c0_1 = arith.constant 0 : index
    %3 = vector.load %arg7[%c0, %c0_1] : memref<128x64xf32, #tpu.memory_space<vmem>>, vector<128x64xf32>
    %c0_2 = arith.constant 0 : index
    %c0_3 = arith.constant 0 : index
    %4 = vector.load %arg3[%c0_2, %c0_3] : memref<128x128xbf16, #tpu.memory_space<vmem>>, vector<128x128xbf16>
    %c0_4 = arith.constant 0 : index
    %c0_5 = arith.constant 0 : index
    %5 = vector.load %arg4[%c0_4, %c0_5] : memref<128x64xbf16, #tpu.memory_space<vmem>>, vector<128x64xbf16>
    %cst = arith.constant dense<0.000000e+00> : vector<128x64xf32>
    %6 = tpu.matmul %4, %5, %cst {dimension_numbers = #tpu.dot_dimension_numbers<[1], [0], [0], [1], [0, 0, 1, 1], [], []>} : vector<128x128xbf16>, vector<128x64xbf16>, vector<128x64xf32> -> vector<128x64xf32>
    %7 = arith.addf %3, %6 : vector<128x64xf32>
    %c0_6 = arith.constant 0 : index
    %c0_7 = arith.constant 0 : index
    %8 = vector.load %arg7[%c0_6, %c0_7] : memref<128x64xf32, #tpu.memory_space<vmem>>, vector<128x64xf32>
    tpu.vector_store %arg7[%c0_6, %c0_7], %7 {strides = array<i32>} : memref<128x64xf32, #tpu.memory_space<vmem>>, vector<128x64xf32>,
    %c4_i32 = arith.constant 4 : i32
    %9 = arith.cmpi eq, %arg2, %c4_i32 : i32
    %10 = arith.extui %9 : i1 to i32
    %c0_i32_8 = arith.constant 0 : i32
    %11 = arith.cmpi ne, %10, %c0_i32_8 : i32
    scf.if %11 {
      %c0_9 = arith.constant 0 : index
      %c0_10 = arith.constant 0 : index
      %12 = vector.load %arg7[%c0_9, %c0_10] : memref<128x64xf32, #tpu.memory_space<vmem>>, vector<128x64xf32>
      %c0_11 = arith.constant 0 : index
      %c0_12 = arith.constant 0 : index
      %13 = vector.load %arg5[%c0_11, %c0_12] : memref<1x64xf32, #tpu.memory_space<vmem>>, vector<1x64xf32>
      %14 = vector.broadcast %13 : vector<1x64xf32> to vector<128x64xf32>
      %15 = arith.addf %12, %14 : vector<128x64xf32>
      %cst_13 = arith.constant 0.000000e+00 : f32
      %16 = vector.broadcast %cst_13 : f32 to vector<128x64xf32>
      %17 = arith.cmpf ogt, %15, %16 : vector<128x64xf32>
      %cst_14 = arith.constant 1.000000e-01 : f32
      %18 = vector.broadcast %cst_14 : f32 to vector<128x64xf32>
      %19 = arith.mulf %18, %15 : vector<128x64xf32>
      %20 = arith.select %17, %15, %19 : vector<128x64xi1>, vector<128x64xf32>
      %21 = arith.truncf %20 : vector<128x64xf32> to vector<128x64xbf16>
      %c0_15 = arith.constant 0 : index
      %c0_16 = arith.constant 0 : index
      %22 = vector.load %arg6[%c0_15, %c0_16] : memref<128x64xbf16, #tpu.memory_space<vmem>>, vector<128x64xbf16>
      tpu.vector_store %arg6[%c0_15, %c0_16], %21 {strides = array<i32>} : memref<128x64xbf16, #tpu.memory_space<vmem>>, vector<128x64xbf16>,
    } else {
    }
    return
  }
  func.func @transform_0(%arg0: i32, %arg1: i32, %arg2: i32) -> (i32, i32) {
    %c0_i32 = arith.constant 0 : i32
    return %arg0, %arg2 : i32, i32
  }
  func.func @transform_1(%arg0: i32, %arg1: i32, %arg2: i32) -> (i32, i32) {
    %c0_i32 = arith.constant 0 : i32
    return %arg2, %arg1 : i32, i32
  }
  func.func @transform_2(%arg0: i32, %arg1: i32, %arg2: i32) -> (i32, i32) {
    %c0_i32 = arith.constant 0 : i32
    %c0_i32_0 = arith.constant 0 : i32
    return %c0_i32, %arg1 : i32, i32
  }
  func.func @transform_3(%arg0: i32, %arg1: i32, %arg2: i32) -> (i32, i32) {
    %c0_i32 = arith.constant 0 : i32
    return %arg0, %arg1 : i32, i32
  }
}

module attributes {stable_mosaic.version = 11 : i64} {
  func.func @_matmul_bias_act_kernel(%arg0: i32, %arg1: i32, %arg2: i32, %arg3: memref<128x384xbf16, #tpu.memory_space<vmem>>, %arg4: memref<384x32xbf16, #tpu.memory_space<vmem>>, %arg5: memref<1x32xf32, #tpu.memory_space<vmem>>, %arg6: memref<128x32xbf16, #tpu.memory_space<vmem>>, %arg7: memref<128x32xf32, #tpu.memory_space<vmem>>) attributes {dimension_semantics = [#tpu.dimension_semantics<parallel>, #tpu.dimension_semantics<parallel>, #tpu.dimension_semantics<arbitrary>], iteration_bounds = array<i64: 1, 1, 1>, scalar_prefetch = 0 : i64, scratch_operands = 1 : i64, tpu.core_type = #tpu.core_type<tc>, window_params = [{transform_indices = @transform_0, window_bounds = array<i64: 128, 384>}, {transform_indices = @transform_1, window_bounds = array<i64: 384, 32>}, {transform_indices = @transform_2, window_bounds = array<i64: 1, 32>}, {transform_indices = @transform_3, window_bounds = array<i64: 128, 32>}]} {
    %c0_i32 = arith.constant 0 : i32
    %0 = arith.cmpi eq, %arg2, %c0_i32 : i32
    %1 = arith.extui %0 : i1 to i32
    %c0_i32_0 = arith.constant 0 : i32
    %2 = arith.cmpi ne, %1, %c0_i32_0 : i32
    scf.if %2 {
      %cst_10 = arith.constant 0.000000e+00 : f32
      %12 = vector.broadcast %cst_10 : f32 to vector<128x32xf32>
      %c0_11 = arith.constant 0 : index
      %c0_12 = arith.constant 0 : index
      %13 = vector.load %arg7[%c0_11, %c0_12] : memref<128x32xf32, #tpu.memory_space<vmem>>, vector<128x32xf32>
      tpu.vector_store %arg7[%c0_11, %c0_12], %12 {strides = array<i32>} : memref<128x32xf32, #tpu.memory_space<vmem>>, vector<128x32xf32>,
    } else {
    }
    %c0 = arith.constant 0 : index
    %c0_1 = arith.constant 0 : index
    %3 = vector.load %arg7[%c0, %c0_1] : memref<128x32xf32, #tpu.memory_space<vmem>>, vector<128x32xf32>
    %c0_2 = arith.constant 0 : index
    %c0_3 = arith.constant 0 : index
    %4 = vector.load %arg3[%c0_2, %c0_3] : memref<128x384xbf16, #tpu.memory_space<vmem>>, vector<128x384xbf16>
    %c0_4 = arith.constant 0 : index
    %c0_5 = arith.constant 0 : index
    %5 = vector.load %arg4[%c0_4, %c0_5] : memref<384x32xbf16, #tpu.memory_space<vmem>>, vector<384x32xbf16>
    %cst = arith.constant dense<0.000000e+00> : vector<128x32xf32>
    %6 = tpu.matmul %4, %5, %cst {dimension_numbers = #tpu.dot_dimension_numbers<[1], [0], [0], [1], [0, 0, 1, 1], [], []>} : vector<128x384xbf16>, vector<384x32xbf16>, vector<128x32xf32> -> vector<128x32xf32>
    %7 = arith.addf %3, %6 : vector<128x32xf32>
    %c0_6 = arith.constant 0 : index
    %c0_7 = arith.constant 0 : index
    %8 = vector.load %arg7[%c0_6, %c0_7] : memref<128x32xf32, #tpu.memory_space<vmem>>, vector<128x32xf32>
    tpu.vector_store %arg7[%c0_6, %c0_7], %7 {strides = array<i32>} : memref<128x32xf32, #tpu.memory_space<vmem>>, vector<128x32xf32>,
    %c0_i32_8 = arith.constant 0 : i32
    %9 = arith.cmpi eq, %arg2, %c0_i32_8 : i32
    %10 = arith.extui %9 : i1 to i32
    %c0_i32_9 = arith.constant 0 : i32
    %11 = arith.cmpi ne, %10, %c0_i32_9 : i32
    scf.if %11 {
      %c0_10 = arith.constant 0 : index
      %c0_11 = arith.constant 0 : index
      %12 = vector.load %arg7[%c0_10, %c0_11] : memref<128x32xf32, #tpu.memory_space<vmem>>, vector<128x32xf32>
      %c0_12 = arith.constant 0 : index
      %c0_13 = arith.constant 0 : index
      %13 = vector.load %arg5[%c0_12, %c0_13] : memref<1x32xf32, #tpu.memory_space<vmem>>, vector<1x32xf32>
      %14 = vector.broadcast %13 : vector<1x32xf32> to vector<128x32xf32>
      %15 = arith.addf %12, %14 : vector<128x32xf32>
      %cst_14 = arith.constant 0.000000e+00 : f32
      %16 = vector.broadcast %cst_14 : f32 to vector<128x32xf32>
      %17 = arith.cmpf ogt, %15, %16 : vector<128x32xf32>
      %cst_15 = arith.constant 1.000000e-01 : f32
      %18 = vector.broadcast %cst_15 : f32 to vector<128x32xf32>
      %19 = arith.mulf %18, %15 : vector<128x32xf32>
      %20 = arith.select %17, %15, %19 : vector<128x32xi1>, vector<128x32xf32>
      %21 = arith.truncf %20 : vector<128x32xf32> to vector<128x32xbf16>
      %c0_16 = arith.constant 0 : index
      %c0_17 = arith.constant 0 : index
      %22 = vector.load %arg6[%c0_16, %c0_17] : memref<128x32xbf16, #tpu.memory_space<vmem>>, vector<128x32xbf16>
      tpu.vector_store %arg6[%c0_16, %c0_17], %21 {strides = array<i32>} : memref<128x32xbf16, #tpu.memory_space<vmem>>, vector<128x32xbf16>,
    } else {
    }
    return
  }
  func.func @transform_0(%arg0: i32, %arg1: i32, %arg2: i32) -> (i32, i32) {
    %c0_i32 = arith.constant 0 : i32
    return %arg0, %arg2 : i32, i32
  }
  func.func @transform_1(%arg0: i32, %arg1: i32, %arg2: i32) -> (i32, i32) {
    %c0_i32 = arith.constant 0 : i32
    return %arg2, %arg1 : i32, i32
  }
  func.func @transform_2(%arg0: i32, %arg1: i32, %arg2: i32) -> (i32, i32) {
    %c0_i32 = arith.constant 0 : i32
    %c0_i32_0 = arith.constant 0 : i32
    return %c0_i32, %arg1 : i32, i32
  }
  func.func @transform_3(%arg0: i32, %arg1: i32, %arg2: i32) -> (i32, i32) {
    %c0_i32 = arith.constant 0 : i32
    return %arg0, %arg1 : i32, i32
  }
}

module attributes {stable_mosaic.version = 11 : i64} {
  func.func @_matmul_bias_act_kernel(%arg0: i32, %arg1: i32, %arg2: i32, %arg3: memref<128x128xbf16, #tpu.memory_space<vmem>>, %arg4: memref<128x64xbf16, #tpu.memory_space<vmem>>, %arg5: memref<1x64xf32, #tpu.memory_space<vmem>>, %arg6: memref<128x64xbf16, #tpu.memory_space<vmem>>, %arg7: memref<128x64xf32, #tpu.memory_space<vmem>>) attributes {dimension_semantics = [#tpu.dimension_semantics<parallel>, #tpu.dimension_semantics<parallel>, #tpu.dimension_semantics<arbitrary>], iteration_bounds = array<i64: 1, 1, 1>, scalar_prefetch = 0 : i64, scratch_operands = 1 : i64, tpu.core_type = #tpu.core_type<tc>, window_params = [{transform_indices = @transform_0, window_bounds = array<i64: 128, 128>}, {transform_indices = @transform_1, window_bounds = array<i64: 128, 64>}, {transform_indices = @transform_2, window_bounds = array<i64: 1, 64>}, {transform_indices = @transform_3, window_bounds = array<i64: 128, 64>}]} {
    %c0_i32 = arith.constant 0 : i32
    %0 = arith.cmpi eq, %arg2, %c0_i32 : i32
    %1 = arith.extui %0 : i1 to i32
    %c0_i32_0 = arith.constant 0 : i32
    %2 = arith.cmpi ne, %1, %c0_i32_0 : i32
    scf.if %2 {
      %cst_10 = arith.constant 0.000000e+00 : f32
      %12 = vector.broadcast %cst_10 : f32 to vector<128x64xf32>
      %c0_11 = arith.constant 0 : index
      %c0_12 = arith.constant 0 : index
      %13 = vector.load %arg7[%c0_11, %c0_12] : memref<128x64xf32, #tpu.memory_space<vmem>>, vector<128x64xf32>
      tpu.vector_store %arg7[%c0_11, %c0_12], %12 {strides = array<i32>} : memref<128x64xf32, #tpu.memory_space<vmem>>, vector<128x64xf32>,
    } else {
    }
    %c0 = arith.constant 0 : index
    %c0_1 = arith.constant 0 : index
    %3 = vector.load %arg7[%c0, %c0_1] : memref<128x64xf32, #tpu.memory_space<vmem>>, vector<128x64xf32>
    %c0_2 = arith.constant 0 : index
    %c0_3 = arith.constant 0 : index
    %4 = vector.load %arg3[%c0_2, %c0_3] : memref<128x128xbf16, #tpu.memory_space<vmem>>, vector<128x128xbf16>
    %c0_4 = arith.constant 0 : index
    %c0_5 = arith.constant 0 : index
    %5 = vector.load %arg4[%c0_4, %c0_5] : memref<128x64xbf16, #tpu.memory_space<vmem>>, vector<128x64xbf16>
    %cst = arith.constant dense<0.000000e+00> : vector<128x64xf32>
    %6 = tpu.matmul %4, %5, %cst {dimension_numbers = #tpu.dot_dimension_numbers<[1], [0], [0], [1], [0, 0, 1, 1], [], []>} : vector<128x128xbf16>, vector<128x64xbf16>, vector<128x64xf32> -> vector<128x64xf32>
    %7 = arith.addf %3, %6 : vector<128x64xf32>
    %c0_6 = arith.constant 0 : index
    %c0_7 = arith.constant 0 : index
    %8 = vector.load %arg7[%c0_6, %c0_7] : memref<128x64xf32, #tpu.memory_space<vmem>>, vector<128x64xf32>
    tpu.vector_store %arg7[%c0_6, %c0_7], %7 {strides = array<i32>} : memref<128x64xf32, #tpu.memory_space<vmem>>, vector<128x64xf32>,
    %c0_i32_8 = arith.constant 0 : i32
    %9 = arith.cmpi eq, %arg2, %c0_i32_8 : i32
    %10 = arith.extui %9 : i1 to i32
    %c0_i32_9 = arith.constant 0 : i32
    %11 = arith.cmpi ne, %10, %c0_i32_9 : i32
    scf.if %11 {
      %c0_10 = arith.constant 0 : index
      %c0_11 = arith.constant 0 : index
      %12 = vector.load %arg7[%c0_10, %c0_11] : memref<128x64xf32, #tpu.memory_space<vmem>>, vector<128x64xf32>
      %c0_12 = arith.constant 0 : index
      %c0_13 = arith.constant 0 : index
      %13 = vector.load %arg5[%c0_12, %c0_13] : memref<1x64xf32, #tpu.memory_space<vmem>>, vector<1x64xf32>
      %14 = vector.broadcast %13 : vector<1x64xf32> to vector<128x64xf32>
      %15 = arith.addf %12, %14 : vector<128x64xf32>
      %cst_14 = arith.constant 0.000000e+00 : f32
      %16 = vector.broadcast %cst_14 : f32 to vector<128x64xf32>
      %17 = arith.cmpf ogt, %15, %16 : vector<128x64xf32>
      %cst_15 = arith.constant 1.000000e-01 : f32
      %18 = vector.broadcast %cst_15 : f32 to vector<128x64xf32>
      %19 = arith.mulf %18, %15 : vector<128x64xf32>
      %20 = arith.select %17, %15, %19 : vector<128x64xi1>, vector<128x64xf32>
      %21 = arith.truncf %20 : vector<128x64xf32> to vector<128x64xbf16>
      %c0_16 = arith.constant 0 : index
      %c0_17 = arith.constant 0 : index
      %22 = vector.load %arg6[%c0_16, %c0_17] : memref<128x64xbf16, #tpu.memory_space<vmem>>, vector<128x64xbf16>
      tpu.vector_store %arg6[%c0_16, %c0_17], %21 {strides = array<i32>} : memref<128x64xbf16, #tpu.memory_space<vmem>>, vector<128x64xbf16>,
    } else {
    }
    return
  }
  func.func @transform_0(%arg0: i32, %arg1: i32, %arg2: i32) -> (i32, i32) {
    %c0_i32 = arith.constant 0 : i32
    return %arg0, %arg2 : i32, i32
  }
  func.func @transform_1(%arg0: i32, %arg1: i32, %arg2: i32) -> (i32, i32) {
    %c0_i32 = arith.constant 0 : i32
    return %arg2, %arg1 : i32, i32
  }
  func.func @transform_2(%arg0: i32, %arg1: i32, %arg2: i32) -> (i32, i32) {
    %c0_i32 = arith.constant 0 : i32
    %c0_i32_0 = arith.constant 0 : i32
    return %c0_i32, %arg1 : i32, i32
  }
  func.func @transform_3(%arg0: i32, %arg1: i32, %arg2: i32) -> (i32, i32) {
    %c0_i32 = arith.constant 0 : i32
    return %arg0, %arg1 : i32, i32
  }
}

module attributes {stable_mosaic.version = 11 : i64} {
  func.func @_matmul_bias_act_kernel(%arg0: i32, %arg1: i32, %arg2: i32, %arg3: memref<32x384xbf16, #tpu.memory_space<vmem>>, %arg4: memref<384x128xbf16, #tpu.memory_space<vmem>>, %arg5: memref<1x128xf32, #tpu.memory_space<vmem>>, %arg6: memref<32x128xbf16, #tpu.memory_space<vmem>>, %arg7: memref<32x128xf32, #tpu.memory_space<vmem>>) attributes {dimension_semantics = [#tpu.dimension_semantics<parallel>, #tpu.dimension_semantics<parallel>, #tpu.dimension_semantics<arbitrary>], iteration_bounds = array<i64: 1, 1, 3>, scalar_prefetch = 0 : i64, scratch_operands = 1 : i64, tpu.core_type = #tpu.core_type<tc>, window_params = [{transform_indices = @transform_0, window_bounds = array<i64: 32, 384>}, {transform_indices = @transform_1, window_bounds = array<i64: 384, 128>}, {transform_indices = @transform_2, window_bounds = array<i64: 1, 128>}, {transform_indices = @transform_3, window_bounds = array<i64: 32, 128>}]} {
    %c0_i32 = arith.constant 0 : i32
    %0 = arith.cmpi eq, %arg2, %c0_i32 : i32
    %1 = arith.extui %0 : i1 to i32
    %c0_i32_0 = arith.constant 0 : i32
    %2 = arith.cmpi ne, %1, %c0_i32_0 : i32
    scf.if %2 {
      %cst_9 = arith.constant 0.000000e+00 : f32
      %12 = vector.broadcast %cst_9 : f32 to vector<32x128xf32>
      %c0_10 = arith.constant 0 : index
      %c0_11 = arith.constant 0 : index
      %13 = vector.load %arg7[%c0_10, %c0_11] : memref<32x128xf32, #tpu.memory_space<vmem>>, vector<32x128xf32>
      tpu.vector_store %arg7[%c0_10, %c0_11], %12 {strides = array<i32>} : memref<32x128xf32, #tpu.memory_space<vmem>>, vector<32x128xf32>,
    } else {
    }
    %c0 = arith.constant 0 : index
    %c0_1 = arith.constant 0 : index
    %3 = vector.load %arg7[%c0, %c0_1] : memref<32x128xf32, #tpu.memory_space<vmem>>, vector<32x128xf32>
    %c0_2 = arith.constant 0 : index
    %c0_3 = arith.constant 0 : index
    %4 = vector.load %arg3[%c0_2, %c0_3] : memref<32x384xbf16, #tpu.memory_space<vmem>>, vector<32x384xbf16>
    %c0_4 = arith.constant 0 : index
    %c0_5 = arith.constant 0 : index
    %5 = vector.load %arg4[%c0_4, %c0_5] : memref<384x128xbf16, #tpu.memory_space<vmem>>, vector<384x128xbf16>
    %cst = arith.constant dense<0.000000e+00> : vector<32x128xf32>
    %6 = tpu.matmul %4, %5, %cst {dimension_numbers = #tpu.dot_dimension_numbers<[1], [0], [0], [1], [0, 0, 1, 1], [], []>} : vector<32x384xbf16>, vector<384x128xbf16>, vector<32x128xf32> -> vector<32x128xf32>
    %7 = arith.addf %3, %6 : vector<32x128xf32>
    %c0_6 = arith.constant 0 : index
    %c0_7 = arith.constant 0 : index
    %8 = vector.load %arg7[%c0_6, %c0_7] : memref<32x128xf32, #tpu.memory_space<vmem>>, vector<32x128xf32>
    tpu.vector_store %arg7[%c0_6, %c0_7], %7 {strides = array<i32>} : memref<32x128xf32, #tpu.memory_space<vmem>>, vector<32x128xf32>,
    %c2_i32 = arith.constant 2 : i32
    %9 = arith.cmpi eq, %arg2, %c2_i32 : i32
    %10 = arith.extui %9 : i1 to i32
    %c0_i32_8 = arith.constant 0 : i32
    %11 = arith.cmpi ne, %10, %c0_i32_8 : i32
    scf.if %11 {
      %c0_9 = arith.constant 0 : index
      %c0_10 = arith.constant 0 : index
      %12 = vector.load %arg7[%c0_9, %c0_10] : memref<32x128xf32, #tpu.memory_space<vmem>>, vector<32x128xf32>
      %c0_11 = arith.constant 0 : index
      %c0_12 = arith.constant 0 : index
      %13 = vector.load %arg5[%c0_11, %c0_12] : memref<1x128xf32, #tpu.memory_space<vmem>>, vector<1x128xf32>
      %14 = vector.broadcast %13 : vector<1x128xf32> to vector<32x128xf32>
      %15 = arith.addf %12, %14 : vector<32x128xf32>
      %cst_13 = arith.constant 0.000000e+00 : f32
      %16 = vector.broadcast %cst_13 : f32 to vector<32x128xf32>
      %17 = arith.cmpf ogt, %15, %16 : vector<32x128xf32>
      %cst_14 = arith.constant 1.000000e-01 : f32
      %18 = vector.broadcast %cst_14 : f32 to vector<32x128xf32>
      %19 = arith.mulf %18, %15 : vector<32x128xf32>
      %20 = arith.select %17, %15, %19 : vector<32x128xi1>, vector<32x128xf32>
      %21 = arith.truncf %20 : vector<32x128xf32> to vector<32x128xbf16>
      %c0_15 = arith.constant 0 : index
      %c0_16 = arith.constant 0 : index
      %22 = vector.load %arg6[%c0_15, %c0_16] : memref<32x128xbf16, #tpu.memory_space<vmem>>, vector<32x128xbf16>
      tpu.vector_store %arg6[%c0_15, %c0_16], %21 {strides = array<i32>} : memref<32x128xbf16, #tpu.memory_space<vmem>>, vector<32x128xbf16>,
    } else {
    }
    return
  }
  func.func @transform_0(%arg0: i32, %arg1: i32, %arg2: i32) -> (i32, i32) {
    %c0_i32 = arith.constant 0 : i32
    return %arg0, %arg2 : i32, i32
  }
  func.func @transform_1(%arg0: i32, %arg1: i32, %arg2: i32) -> (i32, i32) {
    %c0_i32 = arith.constant 0 : i32
    return %arg2, %arg1 : i32, i32
  }
  func.func @transform_2(%arg0: i32, %arg1: i32, %arg2: i32) -> (i32, i32) {
    %c0_i32 = arith.constant 0 : i32
    %c0_i32_0 = arith.constant 0 : i32
    return %c0_i32, %arg1 : i32, i32
  }
  func.func @transform_3(%arg0: i32, %arg1: i32, %arg2: i32) -> (i32, i32) {
    %c0_i32 = arith.constant 0 : i32
    return %arg0, %arg1 : i32, i32
  }
}

module attributes {stable_mosaic.version = 11 : i64} {
  func.func @_matmul_bias_act_kernel(%arg0: i32, %arg1: i32, %arg2: i32, %arg3: memref<32x128xbf16, #tpu.memory_space<vmem>>, %arg4: memref<128x128xbf16, #tpu.memory_space<vmem>>, %arg5: memref<1x128xf32, #tpu.memory_space<vmem>>, %arg6: memref<32x128xbf16, #tpu.memory_space<vmem>>, %arg7: memref<32x128xf32, #tpu.memory_space<vmem>>) attributes {dimension_semantics = [#tpu.dimension_semantics<parallel>, #tpu.dimension_semantics<parallel>, #tpu.dimension_semantics<arbitrary>], iteration_bounds = array<i64: 1, 1, 1>, scalar_prefetch = 0 : i64, scratch_operands = 1 : i64, tpu.core_type = #tpu.core_type<tc>, window_params = [{transform_indices = @transform_0, window_bounds = array<i64: 32, 128>}, {transform_indices = @transform_1, window_bounds = array<i64: 128, 128>}, {transform_indices = @transform_2, window_bounds = array<i64: 1, 128>}, {transform_indices = @transform_3, window_bounds = array<i64: 32, 128>}]} {
    %c0_i32 = arith.constant 0 : i32
    %0 = arith.cmpi eq, %arg2, %c0_i32 : i32
    %1 = arith.extui %0 : i1 to i32
    %c0_i32_0 = arith.constant 0 : i32
    %2 = arith.cmpi ne, %1, %c0_i32_0 : i32
    scf.if %2 {
      %cst_10 = arith.constant 0.000000e+00 : f32
      %12 = vector.broadcast %cst_10 : f32 to vector<32x128xf32>
      %c0_11 = arith.constant 0 : index
      %c0_12 = arith.constant 0 : index
      %13 = vector.load %arg7[%c0_11, %c0_12] : memref<32x128xf32, #tpu.memory_space<vmem>>, vector<32x128xf32>
      tpu.vector_store %arg7[%c0_11, %c0_12], %12 {strides = array<i32>} : memref<32x128xf32, #tpu.memory_space<vmem>>, vector<32x128xf32>,
    } else {
    }
    %c0 = arith.constant 0 : index
    %c0_1 = arith.constant 0 : index
    %3 = vector.load %arg7[%c0, %c0_1] : memref<32x128xf32, #tpu.memory_space<vmem>>, vector<32x128xf32>
    %c0_2 = arith.constant 0 : index
    %c0_3 = arith.constant 0 : index
    %4 = vector.load %arg3[%c0_2, %c0_3] : memref<32x128xbf16, #tpu.memory_space<vmem>>, vector<32x128xbf16>
    %c0_4 = arith.constant 0 : index
    %c0_5 = arith.constant 0 : index
    %5 = vector.load %arg4[%c0_4, %c0_5] : memref<128x128xbf16, #tpu.memory_space<vmem>>, vector<128x128xbf16>
    %cst = arith.constant dense<0.000000e+00> : vector<32x128xf32>
    %6 = tpu.matmul %4, %5, %cst {dimension_numbers = #tpu.dot_dimension_numbers<[1], [0], [0], [1], [0, 0, 1, 1], [], []>} : vector<32x128xbf16>, vector<128x128xbf16>, vector<32x128xf32> -> vector<32x128xf32>
    %7 = arith.addf %3, %6 : vector<32x128xf32>
    %c0_6 = arith.constant 0 : index
    %c0_7 = arith.constant 0 : index
    %8 = vector.load %arg7[%c0_6, %c0_7] : memref<32x128xf32, #tpu.memory_space<vmem>>, vector<32x128xf32>
    tpu.vector_store %arg7[%c0_6, %c0_7], %7 {strides = array<i32>} : memref<32x128xf32, #tpu.memory_space<vmem>>, vector<32x128xf32>,
    %c0_i32_8 = arith.constant 0 : i32
    %9 = arith.cmpi eq, %arg2, %c0_i32_8 : i32
    %10 = arith.extui %9 : i1 to i32
    %c0_i32_9 = arith.constant 0 : i32
    %11 = arith.cmpi ne, %10, %c0_i32_9 : i32
    scf.if %11 {
      %c0_10 = arith.constant 0 : index
      %c0_11 = arith.constant 0 : index
      %12 = vector.load %arg7[%c0_10, %c0_11] : memref<32x128xf32, #tpu.memory_space<vmem>>, vector<32x128xf32>
      %c0_12 = arith.constant 0 : index
      %c0_13 = arith.constant 0 : index
      %13 = vector.load %arg5[%c0_12, %c0_13] : memref<1x128xf32, #tpu.memory_space<vmem>>, vector<1x128xf32>
      %14 = vector.broadcast %13 : vector<1x128xf32> to vector<32x128xf32>
      %15 = arith.addf %12, %14 : vector<32x128xf32>
      %cst_14 = arith.constant 0.000000e+00 : f32
      %16 = vector.broadcast %cst_14 : f32 to vector<32x128xf32>
      %17 = arith.cmpf ogt, %15, %16 : vector<32x128xf32>
      %cst_15 = arith.constant 1.000000e-01 : f32
      %18 = vector.broadcast %cst_15 : f32 to vector<32x128xf32>
      %19 = arith.mulf %18, %15 : vector<32x128xf32>
      %20 = arith.select %17, %15, %19 : vector<32x128xi1>, vector<32x128xf32>
      %21 = arith.truncf %20 : vector<32x128xf32> to vector<32x128xbf16>
      %c0_16 = arith.constant 0 : index
      %c0_17 = arith.constant 0 : index
      %22 = vector.load %arg6[%c0_16, %c0_17] : memref<32x128xbf16, #tpu.memory_space<vmem>>, vector<32x128xbf16>
      tpu.vector_store %arg6[%c0_16, %c0_17], %21 {strides = array<i32>} : memref<32x128xbf16, #tpu.memory_space<vmem>>, vector<32x128xbf16>,
    } else {
    }
    return
  }
  func.func @transform_0(%arg0: i32, %arg1: i32, %arg2: i32) -> (i32, i32) {
    %c0_i32 = arith.constant 0 : i32
    return %arg0, %arg2 : i32, i32
  }
  func.func @transform_1(%arg0: i32, %arg1: i32, %arg2: i32) -> (i32, i32) {
    %c0_i32 = arith.constant 0 : i32
    return %arg2, %arg1 : i32, i32
  }
  func.func @transform_2(%arg0: i32, %arg1: i32, %arg2: i32) -> (i32, i32) {
    %c0_i32 = arith.constant 0 : i32
    %c0_i32_0 = arith.constant 0 : i32
    return %c0_i32, %arg1 : i32, i32
  }
  func.func @transform_3(%arg0: i32, %arg1: i32, %arg2: i32) -> (i32, i32) {
    %c0_i32 = arith.constant 0 : i32
    return %arg0, %arg1 : i32, i32
  }
}

module attributes {stable_mosaic.version = 11 : i64} {
  func.func @_matmul_bias_act_kernel(%arg0: i32, %arg1: i32, %arg2: i32, %arg3: memref<32x128xbf16, #tpu.memory_space<vmem>>, %arg4: memref<128x64xbf16, #tpu.memory_space<vmem>>, %arg5: memref<1x64xf32, #tpu.memory_space<vmem>>, %arg6: memref<32x64xbf16, #tpu.memory_space<vmem>>, %arg7: memref<32x64xf32, #tpu.memory_space<vmem>>) attributes {dimension_semantics = [#tpu.dimension_semantics<parallel>, #tpu.dimension_semantics<parallel>, #tpu.dimension_semantics<arbitrary>], iteration_bounds = array<i64: 1, 1, 5>, scalar_prefetch = 0 : i64, scratch_operands = 1 : i64, tpu.core_type = #tpu.core_type<tc>, window_params = [{transform_indices = @transform_0, window_bounds = array<i64: 32, 128>}, {transform_indices = @transform_1, window_bounds = array<i64: 128, 64>}, {transform_indices = @transform_2, window_bounds = array<i64: 1, 64>}, {transform_indices = @transform_3, window_bounds = array<i64: 32, 64>}]} {
    %c0_i32 = arith.constant 0 : i32
    %0 = arith.cmpi eq, %arg2, %c0_i32 : i32
    %1 = arith.extui %0 : i1 to i32
    %c0_i32_0 = arith.constant 0 : i32
    %2 = arith.cmpi ne, %1, %c0_i32_0 : i32
    scf.if %2 {
      %cst_9 = arith.constant 0.000000e+00 : f32
      %12 = vector.broadcast %cst_9 : f32 to vector<32x64xf32>
      %c0_10 = arith.constant 0 : index
      %c0_11 = arith.constant 0 : index
      %13 = vector.load %arg7[%c0_10, %c0_11] : memref<32x64xf32, #tpu.memory_space<vmem>>, vector<32x64xf32>
      tpu.vector_store %arg7[%c0_10, %c0_11], %12 {strides = array<i32>} : memref<32x64xf32, #tpu.memory_space<vmem>>, vector<32x64xf32>,
    } else {
    }
    %c0 = arith.constant 0 : index
    %c0_1 = arith.constant 0 : index
    %3 = vector.load %arg7[%c0, %c0_1] : memref<32x64xf32, #tpu.memory_space<vmem>>, vector<32x64xf32>
    %c0_2 = arith.constant 0 : index
    %c0_3 = arith.constant 0 : index
    %4 = vector.load %arg3[%c0_2, %c0_3] : memref<32x128xbf16, #tpu.memory_space<vmem>>, vector<32x128xbf16>
    %c0_4 = arith.constant 0 : index
    %c0_5 = arith.constant 0 : index
    %5 = vector.load %arg4[%c0_4, %c0_5] : memref<128x64xbf16, #tpu.memory_space<vmem>>, vector<128x64xbf16>
    %cst = arith.constant dense<0.000000e+00> : vector<32x64xf32>
    %6 = tpu.matmul %4, %5, %cst {dimension_numbers = #tpu.dot_dimension_numbers<[1], [0], [0], [1], [0, 0, 1, 1], [], []>} : vector<32x128xbf16>, vector<128x64xbf16>, vector<32x64xf32> -> vector<32x64xf32>
    %7 = arith.addf %3, %6 : vector<32x64xf32>
    %c0_6 = arith.constant 0 : index
    %c0_7 = arith.constant 0 : index
    %8 = vector.load %arg7[%c0_6, %c0_7] : memref<32x64xf32, #tpu.memory_space<vmem>>, vector<32x64xf32>
    tpu.vector_store %arg7[%c0_6, %c0_7], %7 {strides = array<i32>} : memref<32x64xf32, #tpu.memory_space<vmem>>, vector<32x64xf32>,
    %c4_i32 = arith.constant 4 : i32
    %9 = arith.cmpi eq, %arg2, %c4_i32 : i32
    %10 = arith.extui %9 : i1 to i32
    %c0_i32_8 = arith.constant 0 : i32
    %11 = arith.cmpi ne, %10, %c0_i32_8 : i32
    scf.if %11 {
      %c0_9 = arith.constant 0 : index
      %c0_10 = arith.constant 0 : index
      %12 = vector.load %arg7[%c0_9, %c0_10] : memref<32x64xf32, #tpu.memory_space<vmem>>, vector<32x64xf32>
      %c0_11 = arith.constant 0 : index
      %c0_12 = arith.constant 0 : index
      %13 = vector.load %arg5[%c0_11, %c0_12] : memref<1x64xf32, #tpu.memory_space<vmem>>, vector<1x64xf32>
      %14 = vector.broadcast %13 : vector<1x64xf32> to vector<32x64xf32>
      %15 = arith.addf %12, %14 : vector<32x64xf32>
      %cst_13 = arith.constant 0.000000e+00 : f32
      %16 = vector.broadcast %cst_13 : f32 to vector<32x64xf32>
      %17 = arith.cmpf ogt, %15, %16 : vector<32x64xf32>
      %cst_14 = arith.constant 1.000000e-01 : f32
      %18 = vector.broadcast %cst_14 : f32 to vector<32x64xf32>
      %19 = arith.mulf %18, %15 : vector<32x64xf32>
      %20 = arith.select %17, %15, %19 : vector<32x64xi1>, vector<32x64xf32>
      %21 = arith.truncf %20 : vector<32x64xf32> to vector<32x64xbf16>
      %c0_15 = arith.constant 0 : index
      %c0_16 = arith.constant 0 : index
      %22 = vector.load %arg6[%c0_15, %c0_16] : memref<32x64xbf16, #tpu.memory_space<vmem>>, vector<32x64xbf16>
      tpu.vector_store %arg6[%c0_15, %c0_16], %21 {strides = array<i32>} : memref<32x64xbf16, #tpu.memory_space<vmem>>, vector<32x64xbf16>,
    } else {
    }
    return
  }
  func.func @transform_0(%arg0: i32, %arg1: i32, %arg2: i32) -> (i32, i32) {
    %c0_i32 = arith.constant 0 : i32
    return %arg0, %arg2 : i32, i32
  }
  func.func @transform_1(%arg0: i32, %arg1: i32, %arg2: i32) -> (i32, i32) {
    %c0_i32 = arith.constant 0 : i32
    return %arg2, %arg1 : i32, i32
  }
  func.func @transform_2(%arg0: i32, %arg1: i32, %arg2: i32) -> (i32, i32) {
    %c0_i32 = arith.constant 0 : i32
    %c0_i32_0 = arith.constant 0 : i32
    return %c0_i32, %arg1 : i32, i32
  }
  func.func @transform_3(%arg0: i32, %arg1: i32, %arg2: i32) -> (i32, i32) {
    %c0_i32 = arith.constant 0 : i32
    return %arg0, %arg1 : i32, i32
  }
}

module attributes {stable_mosaic.version = 11 : i64} {
  func.func @_matmul_bias_act_kernel(%arg0: i32, %arg1: i32, %arg2: i32, %arg3: memref<8x384xbf16, #tpu.memory_space<vmem>>, %arg4: memref<384x256xbf16, #tpu.memory_space<vmem>>, %arg5: memref<1x256xf32, #tpu.memory_space<vmem>>, %arg6: memref<8x256xbf16, #tpu.memory_space<vmem>>, %arg7: memref<8x256xf32, #tpu.memory_space<vmem>>) attributes {dimension_semantics = [#tpu.dimension_semantics<parallel>, #tpu.dimension_semantics<parallel>, #tpu.dimension_semantics<arbitrary>], iteration_bounds = array<i64: 1, 1, 6>, scalar_prefetch = 0 : i64, scratch_operands = 1 : i64, tpu.core_type = #tpu.core_type<tc>, window_params = [{transform_indices = @transform_0, window_bounds = array<i64: 8, 384>}, {transform_indices = @transform_1, window_bounds = array<i64: 384, 256>}, {transform_indices = @transform_2, window_bounds = array<i64: 1, 256>}, {transform_indices = @transform_3, window_bounds = array<i64: 8, 256>}]} {
    %c0_i32 = arith.constant 0 : i32
    %0 = arith.cmpi eq, %arg2, %c0_i32 : i32
    %1 = arith.extui %0 : i1 to i32
    %c0_i32_0 = arith.constant 0 : i32
    %2 = arith.cmpi ne, %1, %c0_i32_0 : i32
    scf.if %2 {
      %cst_9 = arith.constant 0.000000e+00 : f32
      %12 = vector.broadcast %cst_9 : f32 to vector<8x256xf32>
      %c0_10 = arith.constant 0 : index
      %c0_11 = arith.constant 0 : index
      %13 = vector.load %arg7[%c0_10, %c0_11] : memref<8x256xf32, #tpu.memory_space<vmem>>, vector<8x256xf32>
      tpu.vector_store %arg7[%c0_10, %c0_11], %12 {strides = array<i32>} : memref<8x256xf32, #tpu.memory_space<vmem>>, vector<8x256xf32>,
    } else {
    }
    %c0 = arith.constant 0 : index
    %c0_1 = arith.constant 0 : index
    %3 = vector.load %arg7[%c0, %c0_1] : memref<8x256xf32, #tpu.memory_space<vmem>>, vector<8x256xf32>
    %c0_2 = arith.constant 0 : index
    %c0_3 = arith.constant 0 : index
    %4 = vector.load %arg3[%c0_2, %c0_3] : memref<8x384xbf16, #tpu.memory_space<vmem>>, vector<8x384xbf16>
    %c0_4 = arith.constant 0 : index
    %c0_5 = arith.constant 0 : index
    %5 = vector.load %arg4[%c0_4, %c0_5] : memref<384x256xbf16, #tpu.memory_space<vmem>>, vector<384x256xbf16>
    %cst = arith.constant dense<0.000000e+00> : vector<8x256xf32>
    %6 = tpu.matmul %4, %5, %cst {dimension_numbers = #tpu.dot_dimension_numbers<[1], [0], [0], [1], [0, 0, 1, 1], [], []>} : vector<8x384xbf16>, vector<384x256xbf16>, vector<8x256xf32> -> vector<8x256xf32>
    %7 = arith.addf %3, %6 : vector<8x256xf32>
    %c0_6 = arith.constant 0 : index
    %c0_7 = arith.constant 0 : index
    %8 = vector.load %arg7[%c0_6, %c0_7] : memref<8x256xf32, #tpu.memory_space<vmem>>, vector<8x256xf32>
    tpu.vector_store %arg7[%c0_6, %c0_7], %7 {strides = array<i32>} : memref<8x256xf32, #tpu.memory_space<vmem>>, vector<8x256xf32>,
    %c5_i32 = arith.constant 5 : i32
    %9 = arith.cmpi eq, %arg2, %c5_i32 : i32
    %10 = arith.extui %9 : i1 to i32
    %c0_i32_8 = arith.constant 0 : i32
    %11 = arith.cmpi ne, %10, %c0_i32_8 : i32
    scf.if %11 {
      %c0_9 = arith.constant 0 : index
      %c0_10 = arith.constant 0 : index
      %12 = vector.load %arg7[%c0_9, %c0_10] : memref<8x256xf32, #tpu.memory_space<vmem>>, vector<8x256xf32>
      %c0_11 = arith.constant 0 : index
      %c0_12 = arith.constant 0 : index
      %13 = vector.load %arg5[%c0_11, %c0_12] : memref<1x256xf32, #tpu.memory_space<vmem>>, vector<1x256xf32>
      %14 = vector.broadcast %13 : vector<1x256xf32> to vector<8x256xf32>
      %15 = arith.addf %12, %14 : vector<8x256xf32>
      %cst_13 = arith.constant 0.000000e+00 : f32
      %16 = vector.broadcast %cst_13 : f32 to vector<8x256xf32>
      %17 = arith.cmpf ogt, %15, %16 : vector<8x256xf32>
      %cst_14 = arith.constant 1.000000e-01 : f32
      %18 = vector.broadcast %cst_14 : f32 to vector<8x256xf32>
      %19 = arith.mulf %18, %15 : vector<8x256xf32>
      %20 = arith.select %17, %15, %19 : vector<8x256xi1>, vector<8x256xf32>
      %21 = arith.truncf %20 : vector<8x256xf32> to vector<8x256xbf16>
      %c0_15 = arith.constant 0 : index
      %c0_16 = arith.constant 0 : index
      %22 = vector.load %arg6[%c0_15, %c0_16] : memref<8x256xbf16, #tpu.memory_space<vmem>>, vector<8x256xbf16>
      tpu.vector_store %arg6[%c0_15, %c0_16], %21 {strides = array<i32>} : memref<8x256xbf16, #tpu.memory_space<vmem>>, vector<8x256xbf16>,
    } else {
    }
    return
  }
  func.func @transform_0(%arg0: i32, %arg1: i32, %arg2: i32) -> (i32, i32) {
    %c0_i32 = arith.constant 0 : i32
    return %arg0, %arg2 : i32, i32
  }
  func.func @transform_1(%arg0: i32, %arg1: i32, %arg2: i32) -> (i32, i32) {
    %c0_i32 = arith.constant 0 : i32
    return %arg2, %arg1 : i32, i32
  }
  func.func @transform_2(%arg0: i32, %arg1: i32, %arg2: i32) -> (i32, i32) {
    %c0_i32 = arith.constant 0 : i32
    %c0_i32_0 = arith.constant 0 : i32
    return %c0_i32, %arg1 : i32, i32
  }
  func.func @transform_3(%arg0: i32, %arg1: i32, %arg2: i32) -> (i32, i32) {
    %c0_i32 = arith.constant 0 : i32
    return %arg0, %arg1 : i32, i32
  }
}

module attributes {stable_mosaic.version = 11 : i64} {
  func.func @_matmul_bias_act_kernel(%arg0: i32, %arg1: i32, %arg2: i32, %arg3: memref<8x384xbf16, #tpu.memory_space<vmem>>, %arg4: memref<384x128xbf16, #tpu.memory_space<vmem>>, %arg5: memref<1x128xf32, #tpu.memory_space<vmem>>, %arg6: memref<8x128xbf16, #tpu.memory_space<vmem>>, %arg7: memref<8x128xf32, #tpu.memory_space<vmem>>) attributes {dimension_semantics = [#tpu.dimension_semantics<parallel>, #tpu.dimension_semantics<parallel>, #tpu.dimension_semantics<arbitrary>], iteration_bounds = array<i64: 1, 1, 3>, scalar_prefetch = 0 : i64, scratch_operands = 1 : i64, tpu.core_type = #tpu.core_type<tc>, window_params = [{transform_indices = @transform_0, window_bounds = array<i64: 8, 384>}, {transform_indices = @transform_1, window_bounds = array<i64: 384, 128>}, {transform_indices = @transform_2, window_bounds = array<i64: 1, 128>}, {transform_indices = @transform_3, window_bounds = array<i64: 8, 128>}]} {
    %c0_i32 = arith.constant 0 : i32
    %0 = arith.cmpi eq, %arg2, %c0_i32 : i32
    %1 = arith.extui %0 : i1 to i32
    %c0_i32_0 = arith.constant 0 : i32
    %2 = arith.cmpi ne, %1, %c0_i32_0 : i32
    scf.if %2 {
      %cst_9 = arith.constant 0.000000e+00 : f32
      %12 = vector.broadcast %cst_9 : f32 to vector<8x128xf32>
      %c0_10 = arith.constant 0 : index
      %c0_11 = arith.constant 0 : index
      %13 = vector.load %arg7[%c0_10, %c0_11] : memref<8x128xf32, #tpu.memory_space<vmem>>, vector<8x128xf32>
      tpu.vector_store %arg7[%c0_10, %c0_11], %12 {strides = array<i32>} : memref<8x128xf32, #tpu.memory_space<vmem>>, vector<8x128xf32>,
    } else {
    }
    %c0 = arith.constant 0 : index
    %c0_1 = arith.constant 0 : index
    %3 = vector.load %arg7[%c0, %c0_1] : memref<8x128xf32, #tpu.memory_space<vmem>>, vector<8x128xf32>
    %c0_2 = arith.constant 0 : index
    %c0_3 = arith.constant 0 : index
    %4 = vector.load %arg3[%c0_2, %c0_3] : memref<8x384xbf16, #tpu.memory_space<vmem>>, vector<8x384xbf16>
    %c0_4 = arith.constant 0 : index
    %c0_5 = arith.constant 0 : index
    %5 = vector.load %arg4[%c0_4, %c0_5] : memref<384x128xbf16, #tpu.memory_space<vmem>>, vector<384x128xbf16>
    %cst = arith.constant dense<0.000000e+00> : vector<8x128xf32>
    %6 = tpu.matmul %4, %5, %cst {dimension_numbers = #tpu.dot_dimension_numbers<[1], [0], [0], [1], [0, 0, 1, 1], [], []>} : vector<8x384xbf16>, vector<384x128xbf16>, vector<8x128xf32> -> vector<8x128xf32>
    %7 = arith.addf %3, %6 : vector<8x128xf32>
    %c0_6 = arith.constant 0 : index
    %c0_7 = arith.constant 0 : index
    %8 = vector.load %arg7[%c0_6, %c0_7] : memref<8x128xf32, #tpu.memory_space<vmem>>, vector<8x128xf32>
    tpu.vector_store %arg7[%c0_6, %c0_7], %7 {strides = array<i32>} : memref<8x128xf32, #tpu.memory_space<vmem>>, vector<8x128xf32>,
    %c2_i32 = arith.constant 2 : i32
    %9 = arith.cmpi eq, %arg2, %c2_i32 : i32
    %10 = arith.extui %9 : i1 to i32
    %c0_i32_8 = arith.constant 0 : i32
    %11 = arith.cmpi ne, %10, %c0_i32_8 : i32
    scf.if %11 {
      %c0_9 = arith.constant 0 : index
      %c0_10 = arith.constant 0 : index
      %12 = vector.load %arg7[%c0_9, %c0_10] : memref<8x128xf32, #tpu.memory_space<vmem>>, vector<8x128xf32>
      %c0_11 = arith.constant 0 : index
      %c0_12 = arith.constant 0 : index
      %13 = vector.load %arg5[%c0_11, %c0_12] : memref<1x128xf32, #tpu.memory_space<vmem>>, vector<1x128xf32>
      %14 = vector.broadcast %13 : vector<1x128xf32> to vector<8x128xf32>
      %15 = arith.addf %12, %14 : vector<8x128xf32>
      %cst_13 = arith.constant 0.000000e+00 : f32
      %16 = vector.broadcast %cst_13 : f32 to vector<8x128xf32>
      %17 = arith.cmpf ogt, %15, %16 : vector<8x128xf32>
      %cst_14 = arith.constant 1.000000e-01 : f32
      %18 = vector.broadcast %cst_14 : f32 to vector<8x128xf32>
      %19 = arith.mulf %18, %15 : vector<8x128xf32>
      %20 = arith.select %17, %15, %19 : vector<8x128xi1>, vector<8x128xf32>
      %21 = arith.truncf %20 : vector<8x128xf32> to vector<8x128xbf16>
      %c0_15 = arith.constant 0 : index
      %c0_16 = arith.constant 0 : index
      %22 = vector.load %arg6[%c0_15, %c0_16] : memref<8x128xbf16, #tpu.memory_space<vmem>>, vector<8x128xbf16>
      tpu.vector_store %arg6[%c0_15, %c0_16], %21 {strides = array<i32>} : memref<8x128xbf16, #tpu.memory_space<vmem>>, vector<8x128xbf16>,
    } else {
    }
    return
  }
  func.func @transform_0(%arg0: i32, %arg1: i32, %arg2: i32) -> (i32, i32) {
    %c0_i32 = arith.constant 0 : i32
    return %arg0, %arg2 : i32, i32
  }
  func.func @transform_1(%arg0: i32, %arg1: i32, %arg2: i32) -> (i32, i32) {
    %c0_i32 = arith.constant 0 : i32
    return %arg2, %arg1 : i32, i32
  }
  func.func @transform_2(%arg0: i32, %arg1: i32, %arg2: i32) -> (i32, i32) {
    %c0_i32 = arith.constant 0 : i32
    %c0_i32_0 = arith.constant 0 : i32
    return %c0_i32, %arg1 : i32, i32
  }
  func.func @transform_3(%arg0: i32, %arg1: i32, %arg2: i32) -> (i32, i32) {
    %c0_i32 = arith.constant 0 : i32
    return %arg0, %arg1 : i32, i32
  }
}

module attributes {stable_mosaic.version = 11 : i64} {
  func.func @_matmul_bias_act_kernel(%arg0: i32, %arg1: i32, %arg2: i32, %arg3: memref<8x256xbf16, #tpu.memory_space<vmem>>, %arg4: memref<256x256xbf16, #tpu.memory_space<vmem>>, %arg5: memref<1x256xf32, #tpu.memory_space<vmem>>, %arg6: memref<8x256xbf16, #tpu.memory_space<vmem>>, %arg7: memref<8x256xf32, #tpu.memory_space<vmem>>) attributes {dimension_semantics = [#tpu.dimension_semantics<parallel>, #tpu.dimension_semantics<parallel>, #tpu.dimension_semantics<arbitrary>], iteration_bounds = array<i64: 1, 1, 1>, scalar_prefetch = 0 : i64, scratch_operands = 1 : i64, tpu.core_type = #tpu.core_type<tc>, window_params = [{transform_indices = @transform_0, window_bounds = array<i64: 8, 256>}, {transform_indices = @transform_1, window_bounds = array<i64: 256, 256>}, {transform_indices = @transform_2, window_bounds = array<i64: 1, 256>}, {transform_indices = @transform_3, window_bounds = array<i64: 8, 256>}]} {
    %c0_i32 = arith.constant 0 : i32
    %0 = arith.cmpi eq, %arg2, %c0_i32 : i32
    %1 = arith.extui %0 : i1 to i32
    %c0_i32_0 = arith.constant 0 : i32
    %2 = arith.cmpi ne, %1, %c0_i32_0 : i32
    scf.if %2 {
      %cst_10 = arith.constant 0.000000e+00 : f32
      %12 = vector.broadcast %cst_10 : f32 to vector<8x256xf32>
      %c0_11 = arith.constant 0 : index
      %c0_12 = arith.constant 0 : index
      %13 = vector.load %arg7[%c0_11, %c0_12] : memref<8x256xf32, #tpu.memory_space<vmem>>, vector<8x256xf32>
      tpu.vector_store %arg7[%c0_11, %c0_12], %12 {strides = array<i32>} : memref<8x256xf32, #tpu.memory_space<vmem>>, vector<8x256xf32>,
    } else {
    }
    %c0 = arith.constant 0 : index
    %c0_1 = arith.constant 0 : index
    %3 = vector.load %arg7[%c0, %c0_1] : memref<8x256xf32, #tpu.memory_space<vmem>>, vector<8x256xf32>
    %c0_2 = arith.constant 0 : index
    %c0_3 = arith.constant 0 : index
    %4 = vector.load %arg3[%c0_2, %c0_3] : memref<8x256xbf16, #tpu.memory_space<vmem>>, vector<8x256xbf16>
    %c0_4 = arith.constant 0 : index
    %c0_5 = arith.constant 0 : index
    %5 = vector.load %arg4[%c0_4, %c0_5] : memref<256x256xbf16, #tpu.memory_space<vmem>>, vector<256x256xbf16>
    %cst = arith.constant dense<0.000000e+00> : vector<8x256xf32>
    %6 = tpu.matmul %4, %5, %cst {dimension_numbers = #tpu.dot_dimension_numbers<[1], [0], [0], [1], [0, 0, 1, 1], [], []>} : vector<8x256xbf16>, vector<256x256xbf16>, vector<8x256xf32> -> vector<8x256xf32>
    %7 = arith.addf %3, %6 : vector<8x256xf32>
    %c0_6 = arith.constant 0 : index
    %c0_7 = arith.constant 0 : index
    %8 = vector.load %arg7[%c0_6, %c0_7] : memref<8x256xf32, #tpu.memory_space<vmem>>, vector<8x256xf32>
    tpu.vector_store %arg7[%c0_6, %c0_7], %7 {strides = array<i32>} : memref<8x256xf32, #tpu.memory_space<vmem>>, vector<8x256xf32>,
    %c0_i32_8 = arith.constant 0 : i32
    %9 = arith.cmpi eq, %arg2, %c0_i32_8 : i32
    %10 = arith.extui %9 : i1 to i32
    %c0_i32_9 = arith.constant 0 : i32
    %11 = arith.cmpi ne, %10, %c0_i32_9 : i32
    scf.if %11 {
      %c0_10 = arith.constant 0 : index
      %c0_11 = arith.constant 0 : index
      %12 = vector.load %arg7[%c0_10, %c0_11] : memref<8x256xf32, #tpu.memory_space<vmem>>, vector<8x256xf32>
      %c0_12 = arith.constant 0 : index
      %c0_13 = arith.constant 0 : index
      %13 = vector.load %arg5[%c0_12, %c0_13] : memref<1x256xf32, #tpu.memory_space<vmem>>, vector<1x256xf32>
      %14 = vector.broadcast %13 : vector<1x256xf32> to vector<8x256xf32>
      %15 = arith.addf %12, %14 : vector<8x256xf32>
      %cst_14 = arith.constant 0.000000e+00 : f32
      %16 = vector.broadcast %cst_14 : f32 to vector<8x256xf32>
      %17 = arith.cmpf ogt, %15, %16 : vector<8x256xf32>
      %cst_15 = arith.constant 1.000000e-01 : f32
      %18 = vector.broadcast %cst_15 : f32 to vector<8x256xf32>
      %19 = arith.mulf %18, %15 : vector<8x256xf32>
      %20 = arith.select %17, %15, %19 : vector<8x256xi1>, vector<8x256xf32>
      %21 = arith.truncf %20 : vector<8x256xf32> to vector<8x256xbf16>
      %c0_16 = arith.constant 0 : index
      %c0_17 = arith.constant 0 : index
      %22 = vector.load %arg6[%c0_16, %c0_17] : memref<8x256xbf16, #tpu.memory_space<vmem>>, vector<8x256xbf16>
      tpu.vector_store %arg6[%c0_16, %c0_17], %21 {strides = array<i32>} : memref<8x256xbf16, #tpu.memory_space<vmem>>, vector<8x256xbf16>,
    } else {
    }
    return
  }
  func.func @transform_0(%arg0: i32, %arg1: i32, %arg2: i32) -> (i32, i32) {
    %c0_i32 = arith.constant 0 : i32
    return %arg0, %arg2 : i32, i32
  }
  func.func @transform_1(%arg0: i32, %arg1: i32, %arg2: i32) -> (i32, i32) {
    %c0_i32 = arith.constant 0 : i32
    return %arg2, %arg1 : i32, i32
  }
  func.func @transform_2(%arg0: i32, %arg1: i32, %arg2: i32) -> (i32, i32) {
    %c0_i32 = arith.constant 0 : i32
    %c0_i32_0 = arith.constant 0 : i32
    return %c0_i32, %arg1 : i32, i32
  }
  func.func @transform_3(%arg0: i32, %arg1: i32, %arg2: i32) -> (i32, i32) {
    %c0_i32 = arith.constant 0 : i32
    return %arg0, %arg1 : i32, i32
  }
}

module attributes {stable_mosaic.version = 11 : i64} {
  func.func @_matmul_bias_act_kernel(%arg0: i32, %arg1: i32, %arg2: i32, %arg3: memref<8x512xbf16, #tpu.memory_space<vmem>>, %arg4: memref<512x256xbf16, #tpu.memory_space<vmem>>, %arg5: memref<1x256xf32, #tpu.memory_space<vmem>>, %arg6: memref<8x256xbf16, #tpu.memory_space<vmem>>, %arg7: memref<8x256xf32, #tpu.memory_space<vmem>>) attributes {dimension_semantics = [#tpu.dimension_semantics<parallel>, #tpu.dimension_semantics<parallel>, #tpu.dimension_semantics<arbitrary>], iteration_bounds = array<i64: 1, 2, 9>, scalar_prefetch = 0 : i64, scratch_operands = 1 : i64, tpu.core_type = #tpu.core_type<tc>, window_params = [{transform_indices = @transform_0, window_bounds = array<i64: 8, 512>}, {transform_indices = @transform_1, window_bounds = array<i64: 512, 256>}, {transform_indices = @transform_2, window_bounds = array<i64: 1, 256>}, {transform_indices = @transform_3, window_bounds = array<i64: 8, 256>}]} {
    %c0_i32 = arith.constant 0 : i32
    %0 = arith.cmpi eq, %arg2, %c0_i32 : i32
    %1 = arith.extui %0 : i1 to i32
    %c0_i32_0 = arith.constant 0 : i32
    %2 = arith.cmpi ne, %1, %c0_i32_0 : i32
    scf.if %2 {
      %cst_9 = arith.constant 0.000000e+00 : f32
      %12 = vector.broadcast %cst_9 : f32 to vector<8x256xf32>
      %c0_10 = arith.constant 0 : index
      %c0_11 = arith.constant 0 : index
      %13 = vector.load %arg7[%c0_10, %c0_11] : memref<8x256xf32, #tpu.memory_space<vmem>>, vector<8x256xf32>
      tpu.vector_store %arg7[%c0_10, %c0_11], %12 {strides = array<i32>} : memref<8x256xf32, #tpu.memory_space<vmem>>, vector<8x256xf32>,
    } else {
    }
    %c0 = arith.constant 0 : index
    %c0_1 = arith.constant 0 : index
    %3 = vector.load %arg7[%c0, %c0_1] : memref<8x256xf32, #tpu.memory_space<vmem>>, vector<8x256xf32>
    %c0_2 = arith.constant 0 : index
    %c0_3 = arith.constant 0 : index
    %4 = vector.load %arg3[%c0_2, %c0_3] : memref<8x512xbf16, #tpu.memory_space<vmem>>, vector<8x512xbf16>
    %c0_4 = arith.constant 0 : index
    %c0_5 = arith.constant 0 : index
    %5 = vector.load %arg4[%c0_4, %c0_5] : memref<512x256xbf16, #tpu.memory_space<vmem>>, vector<512x256xbf16>
    %cst = arith.constant dense<0.000000e+00> : vector<8x256xf32>
    %6 = tpu.matmul %4, %5, %cst {dimension_numbers = #tpu.dot_dimension_numbers<[1], [0], [0], [1], [0, 0, 1, 1], [], []>} : vector<8x512xbf16>, vector<512x256xbf16>, vector<8x256xf32> -> vector<8x256xf32>
    %7 = arith.addf %3, %6 : vector<8x256xf32>
    %c0_6 = arith.constant 0 : index
    %c0_7 = arith.constant 0 : index
    %8 = vector.load %arg7[%c0_6, %c0_7] : memref<8x256xf32, #tpu.memory_space<vmem>>, vector<8x256xf32>
    tpu.vector_store %arg7[%c0_6, %c0_7], %7 {strides = array<i32>} : memref<8x256xf32, #tpu.memory_space<vmem>>, vector<8x256xf32>,
    %c8_i32 = arith.constant 8 : i32
    %9 = arith.cmpi eq, %arg2, %c8_i32 : i32
    %10 = arith.extui %9 : i1 to i32
    %c0_i32_8 = arith.constant 0 : i32
    %11 = arith.cmpi ne, %10, %c0_i32_8 : i32
    scf.if %11 {
      %c0_9 = arith.constant 0 : index
      %c0_10 = arith.constant 0 : index
      %12 = vector.load %arg7[%c0_9, %c0_10] : memref<8x256xf32, #tpu.memory_space<vmem>>, vector<8x256xf32>
      %c0_11 = arith.constant 0 : index
      %c0_12 = arith.constant 0 : index
      %13 = vector.load %arg5[%c0_11, %c0_12] : memref<1x256xf32, #tpu.memory_space<vmem>>, vector<1x256xf32>
      %14 = vector.broadcast %13 : vector<1x256xf32> to vector<8x256xf32>
      %15 = arith.addf %12, %14 : vector<8x256xf32>
      %cst_13 = arith.constant 0.000000e+00 : f32
      %16 = vector.broadcast %cst_13 : f32 to vector<8x256xf32>
      %17 = arith.cmpf ogt, %15, %16 : vector<8x256xf32>
      %cst_14 = arith.constant 1.000000e-01 : f32
      %18 = vector.broadcast %cst_14 : f32 to vector<8x256xf32>
      %19 = arith.mulf %18, %15 : vector<8x256xf32>
      %20 = arith.select %17, %15, %19 : vector<8x256xi1>, vector<8x256xf32>
      %21 = arith.truncf %20 : vector<8x256xf32> to vector<8x256xbf16>
      %c0_15 = arith.constant 0 : index
      %c0_16 = arith.constant 0 : index
      %22 = vector.load %arg6[%c0_15, %c0_16] : memref<8x256xbf16, #tpu.memory_space<vmem>>, vector<8x256xbf16>
      tpu.vector_store %arg6[%c0_15, %c0_16], %21 {strides = array<i32>} : memref<8x256xbf16, #tpu.memory_space<vmem>>, vector<8x256xbf16>,
    } else {
    }
    return
  }
  func.func @transform_0(%arg0: i32, %arg1: i32, %arg2: i32) -> (i32, i32) {
    %c0_i32 = arith.constant 0 : i32
    return %arg0, %arg2 : i32, i32
  }
  func.func @transform_1(%arg0: i32, %arg1: i32, %arg2: i32) -> (i32, i32) {
    %c0_i32 = arith.constant 0 : i32
    return %arg2, %arg1 : i32, i32
  }
  func.func @transform_2(%arg0: i32, %arg1: i32, %arg2: i32) -> (i32, i32) {
    %c0_i32 = arith.constant 0 : i32
    %c0_i32_0 = arith.constant 0 : i32
    return %c0_i32, %arg1 : i32, i32
  }
  func.func @transform_3(%arg0: i32, %arg1: i32, %arg2: i32) -> (i32, i32) {
    %c0_i32 = arith.constant 0 : i32
    return %arg0, %arg1 : i32, i32
  }
}

module attributes {stable_mosaic.version = 11 : i64} {
  func.func @_matmul_bias_act_kernel(%arg0: i32, %arg1: i32, %arg2: i32, %arg3: memref<8x512xbf16, #tpu.memory_space<vmem>>, %arg4: memref<512x1000xbf16, #tpu.memory_space<vmem>>, %arg5: memref<1x1000xf32, #tpu.memory_space<vmem>>, %arg6: memref<8x1000xf32, #tpu.memory_space<vmem>>, %arg7: memref<8x1000xf32, #tpu.memory_space<vmem>>) attributes {dimension_semantics = [#tpu.dimension_semantics<parallel>, #tpu.dimension_semantics<parallel>, #tpu.dimension_semantics<arbitrary>], iteration_bounds = array<i64: 1, 1, 1>, scalar_prefetch = 0 : i64, scratch_operands = 1 : i64, tpu.core_type = #tpu.core_type<tc>, window_params = [{transform_indices = @transform_0, window_bounds = array<i64: 8, 512>}, {transform_indices = @transform_1, window_bounds = array<i64: 512, 1000>}, {transform_indices = @transform_2, window_bounds = array<i64: 1, 1000>}, {transform_indices = @transform_3, window_bounds = array<i64: 8, 1000>}]} {
    %c0_i32 = arith.constant 0 : i32
    %0 = arith.cmpi eq, %arg2, %c0_i32 : i32
    %1 = arith.extui %0 : i1 to i32
    %c0_i32_0 = arith.constant 0 : i32
    %2 = arith.cmpi ne, %1, %c0_i32_0 : i32
    scf.if %2 {
      %cst_10 = arith.constant 0.000000e+00 : f32
      %12 = vector.broadcast %cst_10 : f32 to vector<8x1000xf32>
      %c0_11 = arith.constant 0 : index
      %c0_12 = arith.constant 0 : index
      %13 = vector.load %arg7[%c0_11, %c0_12] : memref<8x1000xf32, #tpu.memory_space<vmem>>, vector<8x1000xf32>
      tpu.vector_store %arg7[%c0_11, %c0_12], %12 {strides = array<i32>} : memref<8x1000xf32, #tpu.memory_space<vmem>>, vector<8x1000xf32>,
    } else {
    }
    %c0 = arith.constant 0 : index
    %c0_1 = arith.constant 0 : index
    %3 = vector.load %arg7[%c0, %c0_1] : memref<8x1000xf32, #tpu.memory_space<vmem>>, vector<8x1000xf32>
    %c0_2 = arith.constant 0 : index
    %c0_3 = arith.constant 0 : index
    %4 = vector.load %arg3[%c0_2, %c0_3] : memref<8x512xbf16, #tpu.memory_space<vmem>>, vector<8x512xbf16>
    %c0_4 = arith.constant 0 : index
    %c0_5 = arith.constant 0 : index
    %5 = vector.load %arg4[%c0_4, %c0_5] : memref<512x1000xbf16, #tpu.memory_space<vmem>>, vector<512x1000xbf16>
    %cst = arith.constant dense<0.000000e+00> : vector<8x1000xf32>
    %6 = tpu.matmul %4, %5, %cst {dimension_numbers = #tpu.dot_dimension_numbers<[1], [0], [0], [1], [0, 0, 1, 1], [], []>} : vector<8x512xbf16>, vector<512x1000xbf16>, vector<8x1000xf32> -> vector<8x1000xf32>
    %7 = arith.addf %3, %6 : vector<8x1000xf32>
    %c0_6 = arith.constant 0 : index
    %c0_7 = arith.constant 0 : index
    %8 = vector.load %arg7[%c0_6, %c0_7] : memref<8x1000xf32, #tpu.memory_space<vmem>>, vector<8x1000xf32>
    tpu.vector_store %arg7[%c0_6, %c0_7], %7 {strides = array<i32>} : memref<8x1000xf32, #tpu.memory_space<vmem>>, vector<8x1000xf32>,
    %c0_i32_8 = arith.constant 0 : i32
    %9 = arith.cmpi eq, %arg2, %c0_i32_8 : i32
    %10 = arith.extui %9 : i1 to i32
    %c0_i32_9 = arith.constant 0 : i32
    %11 = arith.cmpi ne, %10, %c0_i32_9 : i32
    scf.if %11 {
      %c0_10 = arith.constant 0 : index
      %c0_11 = arith.constant 0 : index
      %12 = vector.load %arg7[%c0_10, %c0_11] : memref<8x1000xf32, #tpu.memory_space<vmem>>, vector<8x1000xf32>
      %c0_12 = arith.constant 0 : index
      %c0_13 = arith.constant 0 : index
      %13 = vector.load %arg5[%c0_12, %c0_13] : memref<1x1000xf32, #tpu.memory_space<vmem>>, vector<1x1000xf32>
      %14 = vector.broadcast %13 : vector<1x1000xf32> to vector<8x1000xf32>
      %15 = arith.addf %12, %14 : vector<8x1000xf32>
      %c0_14 = arith.constant 0 : index
      %c0_15 = arith.constant 0 : index
      %16 = vector.load %arg6[%c0_14, %c0_15] : memref<8x1000xf32, #tpu.memory_space<vmem>>, vector<8x1000xf32>
      tpu.vector_store %arg6[%c0_14, %c0_15], %15 {strides = array<i32>} : memref<8x1000xf32, #tpu.memory_space<vmem>>, vector<8x1000xf32>,
    } else {
    }
    return
  }
  func.func @transform_0(%arg0: i32, %arg1: i32, %arg2: i32) -> (i32, i32) {
    %c0_i32 = arith.constant 0 : i32
    return %arg0, %arg2 : i32, i32
  }
  func.func @transform_1(%arg0: i32, %arg1: i32, %arg2: i32) -> (i32, i32) {
    %c0_i32 = arith.constant 0 : i32
    return %arg2, %arg1 : i32, i32
  }
  func.func @transform_2(%arg0: i32, %arg1: i32, %arg2: i32) -> (i32, i32) {
    %c0_i32 = arith.constant 0 : i32
    %c0_i32_0 = arith.constant 0 : i32
    return %c0_i32, %arg1 : i32, i32
  }
  func.func @transform_3(%arg0: i32, %arg1: i32, %arg2: i32) -> (i32, i32) {
    %c0_i32 = arith.constant 0 : i32
    return %arg0, %arg1 : i32, i32
  }
}

</mosaic_0001>

<llo_original>
// kernel: cspdarknet_tiny_forward.16
$region0: #{cspdarknet_tiny_forward.16}
  #allocation0 [shape = 'u32[]', space=smem, size = 0x4, offset = 0x4, fixed_abs, tag = 'smem constant byte address 0x4 - core index']
  #allocation1 [shape = 'u32[144,128]{1,0:T(1,128)}', space=vmem, size = 0x12000, scoped, tag = 'internal scratch']
  #allocation2 [shape = 'f32[256,32]{1,0:T(8,128)}', space=vmem, size = 0x20000, scoped, tag = 'scratch operand']
  %s0 = inlined_call_operand.vmem [shape: bf16[512,128], index: 0, kind: input, shape index: {}]
  %s1 = inlined_call_operand.vmem [shape: bf16[128,32], index: 1, kind: input, shape index: {}]
  %s2 = inlined_call_operand.hbm [shape: f32[1,32], index: 2, kind: input, shape index: {}]
  %s3 = inlined_call_operand.vmem [shape: bf16[512,32], index: 3, kind: output, shape index: {}]
  %s4 = sld [smem:[#allocation0]]
  $region57: #{cspdarknet_tiny_forward.16} parent=0
    _
  %s6 = ssub.s32 1, %s4
  %s7 = scalar_select 0, %s6, %s4
  $region1: #{cspdarknet_tiny_forward.16} parent=0
    #allocation3 [shape = 'u8[512]{0}', space=vmem, size = 0x400, scoped, tag = 'input window, operand 2, single buffered']
    #allocation4 [shape = 's32[2]{0}', space=sflag, size = 0x8, scoped, tag = 'scoped memory for cspdarknet_tiny_forward.16']
    %8 = vsyncpa [#allocation4], 0
    loop: start=0, step=1, limit=4
    $region2: #{cspdarknet_tiny_forward.16} parent=1 // loop_pre_header
      _
    $region3: #{cspdarknet_tiny_forward.16} parent=1 // loop_header
      %s10 = sphi 0, %s14
      %p11 = scmp.ge.s32.totalorder %s10, 4
      %s17 = sphi 0, %s36
      %s18 = sphi 0, %s32
      %s19 = sphi 0, %s28
      %s20 = sphi 0, %s17
      %s21 = sphi 0, %s18
      %s22 = sphi 0, %s19
      %s23 = sphi 0, %s20
      %s24 = sphi 0, %s21
      %s25 = sphi 0, %s22
      %s41 = sphi 0, %s43
      %s44 = sphi 0, %s41
      %s45 = sphi 0, %s44
      %s61 = sphi 0, %s45
      %s69 = sphi 0, %s71
      %s72 = sphi 0, %s69
      %s73 = sphi 0, %s72
      %s89 = sphi 0, %s73
      %s95 = sphi 0, %s97
      %s98 = sphi 0, %s95
      %s99 = sphi 0, %s98
      %s115 = sphi 0, %s99
      %s123 = sphi 0, %s125
      %s126 = sphi 0, %s123
      %s127 = sphi 0, %s126
      %s143 = sphi 0, %s127
    $region4: #{cspdarknet_tiny_forward.16} parent=1 // loop_header_branch
      %13 = sbr.rel (%p11) target = $region8
    $region5: #{cspdarknet_tiny_forward.16} parent=1 // loop_body
      %s15 = ssub.s32 %s10, 1
      %s16 = ssub.s32 %s10, 2
      %s26 = sadd.s32 1, %s19
      %p27 = scmp.ge.s32.totalorder %s26, 1
      %s28 = scalar_select %p27, 0, %s26
      %s29 = sadd.s32 1, %s18
      %s30 = scalar_select %p27, %s29, %s18
      %p31 = scmp.ge.s32.totalorder %s30, 1
      %s32 = scalar_select %p31, 0, %s30
      %s33 = sadd.s32 1, %s17
      %s34 = scalar_select %p31, %s33, %s17
      %p35 = scmp.ge.s32.totalorder %s34, 2
      %s36 = scalar_select %p35, 0, %s34
      %s37 = ssub.s32 %s17, %s36
      %s38 = ssub.s32 %s19, %s28
      %s39 = sor.u32 %s37, %s38
      %p40 = scmp.eq.s32.totalorder %s39, 0
      %s42 = sadd.s32 %s41, 1
      %s43 = scalar_select %p40, %s41, %s42
      %p46 = pneg %p40
      %p47 = scmp.eq.s32.totalorder %s10, 1
      %p48 = por %p46, %p47
      %p49 = scmp.ne.s32.totalorder %s41, %s44
      %p50 = scmp.eq.s32.totalorder %s10, 0
      %p51 = por %p49, %p50
      %p52 = scmp.ne.s32.totalorder %s41, %s44
      %p53 = scmp.eq.s32.totalorder %s15, 1
      %p54 = por %p52, %p53
      %p55 = scmp.ne.s32.totalorder %s44, %s45
      %p56 = scmp.eq.s32.totalorder %s15, 0
      %p57 = por %p55, %p56
      %p58 = scmp.ne.s32.totalorder %s44, %s45
      %p59 = scmp.eq.s32.totalorder %s16, 1
      %p60 = por %p58, %p59
      %p62 = scmp.ne.s32.totalorder %s45, %s61
      %p63 = scmp.eq.s32.totalorder %s16, 0
      %p64 = por %p62, %p63
      %s65 = ssub.s32 %s19, %s28
      %s66 = ssub.s32 %s18, %s32
      %s67 = sor.u32 %s65, %s66
      %p68 = scmp.eq.s32.totalorder %s67, 0
      %s70 = sadd.s32 %s69, 1
      %s71 = scalar_select %p68, %s69, %s70
      %p74 = pneg %p68
      %p75 = scmp.eq.s32.totalorder %s10, 1
      %p76 = por %p74, %p75
      %p77 = scmp.ne.s32.totalorder %s69, %s72
      %p78 = scmp.eq.s32.totalorder %s10, 0
      %p79 = por %p77, %p78
      %p80 = scmp.ne.s32.totalorder %s69, %s72
      %p81 = scmp.eq.s32.totalorder %s15, 1
      %p82 = por %p80, %p81
      %p83 = scmp.ne.s32.totalorder %s72, %s73
      %p84 = scmp.eq.s32.totalorder %s15, 0
      %p85 = por %p83, %p84
      %p86 = scmp.ne.s32.totalorder %s72, %s73
      %p87 = scmp.eq.s32.totalorder %s16, 1
      %p88 = por %p86, %p87
      %p90 = scmp.ne.s32.totalorder %s73, %s89
      %p91 = scmp.eq.s32.totalorder %s16, 0
      %p92 = por %p90, %p91
      %s93 = ssub.s32 %s18, %s32
      %p94 = scmp.eq.s32.totalorder %s93, 0
      %s96 = sadd.s32 %s95, 1
      %s97 = scalar_select %p94, %s95, %s96
      %p100 = pneg %p94
      %p101 = scmp.eq.s32.totalorder %s10, 1
      %p102 = por %p100, %p101
      %p103 = scmp.ne.s32.totalorder %s95, %s98
      %p104 = scmp.eq.s32.totalorder %s10, 0
      %p105 = por %p103, %p104
      %p106 = scmp.ne.s32.totalorder %s95, %s98
      %p107 = scmp.eq.s32.totalorder %s15, 1
      %p108 = por %p106, %p107
      %p109 = scmp.ne.s32.totalorder %s98, %s99
      %p110 = scmp.eq.s32.totalorder %s15, 0
      %p111 = por %p109, %p110
      %p112 = scmp.ne.s32.totalorder %s98, %s99
      %p113 = scmp.eq.s32.totalorder %s16, 1
      %p114 = por %p112, %p113
      %p116 = scmp.ne.s32.totalorder %s99, %s115
      %p117 = scmp.eq.s32.totalorder %s16, 0
      %p118 = por %p116, %p117
      %s119 = ssub.s32 %s17, %s36
      %s120 = ssub.s32 %s18, %s32
      %s121 = sor.u32 %s119, %s120
      %p122 = scmp.eq.s32.totalorder %s121, 0
      %s124 = sadd.s32 %s123, 1
      %s125 = scalar_select %p122, %s123, %s124
      %p128 = pneg %p122
      %p129 = scmp.eq.s32.totalorder %s10, 1
      %p130 = por %p128, %p129
      %p131 = scmp.ne.s32.totalorder %s123, %s126
      %p132 = scmp.eq.s32.totalorder %s10, 0
      %p133 = por %p131, %p132
      %p134 = scmp.ne.s32.totalorder %s123, %s126
      %p135 = scmp.eq.s32.totalorder %s15, 1
      %p136 = por %p134, %p135
      %p137 = scmp.ne.s32.totalorder %s126, %s127
      %p138 = scmp.eq.s32.totalorder %s15, 0
      %p139 = por %p137, %p138
      %p140 = scmp.ne.s32.totalorder %s126, %s127
      %p141 = scmp.eq.s32.totalorder %s16, 1
      %p142 = por %p140, %p141
      %p144 = scmp.ne.s32.totalorder %s127, %s143
      %p145 = scmp.eq.s32.totalorder %s16, 0
      %p146 = por %p144, %p145
      %p147 = scmp.le.s32.totalorder 1, %s10
      %p148 = scmp.lt.s32.totalorder %s10, 3
      %p149 = pnand %p147, %p148
      %p150 = pneg %p149
      // Predicated region
      $region9: #{cspdarknet_tiny_forward.16} parent=5 // pred_check
        _
      $region10: #{cspdarknet_tiny_forward.16} parent=5 // pred_check_branch
        %152 = sbr.rel (%p149) target = $region12
      $region11: #{cspdarknet_tiny_forward.16} parent=5 // pred_region
        %s153 = ssub.s32 %s10, 1
        // Predicated region
        $region13: #{cspdarknet_tiny_forward.16} parent=11 // pred_check
          %p154 = pneg %p85
        $region14: #{cspdarknet_tiny_forward.16} parent=11 // pred_check_branch
          %156 = sbr.rel (%p154) target = $region16
        $region15: #{cspdarknet_tiny_forward.16} parent=11 // pred_region
          %s157 = smul.u32 16, %s22
          %p158 = scmp.lt.s32.totalorder %s157, 15
          %s159 = scalar_select %p158, %s157, 15
          %p160 = scmp.lt.s32.totalorder %s21, 0
          %s161 = scalar_select %p160, %s21, 0
          %s162 = sadd.s32 %s161, %s159
          %s163 = smul.addr %s162, 4
          %s164 = scalar_lea.vmem %s1, %s163
          %s165 = smul.u32 16, %s22
        $region16: #{cspdarknet_tiny_forward.16} parent=11 // pred_fallthru
          _
        // Predicated region
        $region17: #{cspdarknet_tiny_forward.16} parent=11 // pred_check
          %p166 = pneg %p111
        $region18: #{cspdarknet_tiny_forward.16} parent=11 // pred_check_branch
          %168 = sbr.rel (%p166) target = $region20
        $region19: #{cspdarknet_tiny_forward.16} parent=11 // pred_region
          %s170 = ssub.s32 16, 16
          %171 = vsyncadd [#allocation4], %s170
          %s172 = smul.addr %s21, 16
          %s173 = scalar_lea.hbm %s2, %s172
          %s175 = sshll.u32 [#allocation3], 4
          %s176 = int_to_ptr.vmem [resolvable:$true] %s175
          %178 = dma.hbm_to_vmem [thread:$0]  %s173, 16, %s176, [#allocation4]
        $region20: #{cspdarknet_tiny_forward.16} parent=11 // pred_fallthru
          _
      $region12: #{cspdarknet_tiny_forward.16} parent=5 // pred_fallthru
        _
      %p179 = scmp.lt.s32.totalorder %s10, 2
      // Predicated region
      $region21: #{cspdarknet_tiny_forward.16} parent=5 // pred_check
        %p180 = pneg %p179
      $region22: #{cspdarknet_tiny_forward.16} parent=5 // pred_check_branch
        %182 = sbr.rel (%p180) target = $region24
      $region23: #{cspdarknet_tiny_forward.16} parent=5 // pred_region
        // Predicated region
        $region25: #{cspdarknet_tiny_forward.16} parent=23 // pred_check
          %p183 = pneg %p51
        $region26: #{cspdarknet_tiny_forward.16} parent=23 // pred_check_branch
          %185 = sbr.rel (%p183) target = $region28
        $region27: #{cspdarknet_tiny_forward.16} parent=23 // pred_region
          %s186 = smul.u32 32, %s17
          %p187 = scmp.lt.s32.totalorder %s186, 63
          %s188 = scalar_select %p187, %s186, 63
          %p189 = scmp.lt.s32.totalorder %s19, 0
          %s190 = scalar_select %p189, %s19, 0
          %s191 = sadd.s32 %s190, %s188
          %s192 = smul.addr %s191, 4
          %s193 = scalar_lea.vmem %s0, %s192
          %s194 = smul.u32 32, %s17
        $region28: #{cspdarknet_tiny_forward.16} parent=23 // pred_fallthru
          _
      $region24: #{cspdarknet_tiny_forward.16} parent=5 // pred_fallthru
        _
      %p195 = scmp.le.s32.totalorder 1, %s10
      %p196 = scmp.lt.s32.totalorder %s10, 3
      %p197 = pnand %p195, %p196
      %p198 = pneg %p197
      // Predicated region
      $region29: #{cspdarknet_tiny_forward.16} parent=5 // pred_check
        _
      $region30: #{cspdarknet_tiny_forward.16} parent=5 // pred_check_branch
        %200 = sbr.rel (%p197) target = $region32
      $region31: #{cspdarknet_tiny_forward.16} parent=5 // pred_region
        %s201 = ssub.s32 %s10, 1
        // Predicated region
        $region33: #{cspdarknet_tiny_forward.16} parent=31 // pred_check
          %p202 = pneg %p111
        $region34: #{cspdarknet_tiny_forward.16} parent=31 // pred_check_branch
          %204 = sbr.rel (%p202) target = $region36
        $region35: #{cspdarknet_tiny_forward.16} parent=31 // pred_region
          %205 = dma.done [#allocation4], 16
        $region36: #{cspdarknet_tiny_forward.16} parent=31 // pred_fallthru
          _
        %s206 = smul.u32 32, %s20
        %p207 = scmp.lt.s32.totalorder %s206, 63
        %s208 = scalar_select %p207, %s206, 63
        %p209 = scmp.lt.s32.totalorder %s22, 0
        %s210 = scalar_select %p209, %s22, 0
        %s211 = sadd.s32 %s210, %s208
        %s212 = smul.addr %s211, 4
        %s213 = scalar_lea.vmem %s0, %s212
        %p214 = pneg %p57
        %p215 = pneg %p54
        %s216 = smul.u32 16, %s22
        %p217 = scmp.lt.s32.totalorder %s216, 15
        %s218 = scalar_select %p217, %s216, 15
        %p219 = scmp.lt.s32.totalorder %s21, 0
        %s220 = scalar_select %p219, %s21, 0
        %s221 = sadd.s32 %s220, %s218
        %s222 = smul.addr %s221, 4
        %s223 = scalar_lea.vmem %s1, %s222
        %p224 = pneg %p85
        %p225 = pneg %p82
        %p226 = pneg %p111
        %p227 = pneg %p108
        %p228 = pneg %p139
        %p229 = pneg %p136
        %s230 = smul.u32 32, %s20
        %p231 = scmp.lt.s32.totalorder %s230, 63
        %s232 = scalar_select %p231, %s230, 63
        %p233 = scmp.lt.s32.totalorder %s21, 0
        %s234 = scalar_select %p233, %s21, 0
        %s235 = sadd.s32 %s234, %s232
        %s236 = smul.addr %s235, 4
        %s237 = scalar_lea.vmem %s3, %s236
        %s238 = smul.u32 32, %s20
        %p239 = scmp.lt.s32.totalorder %s238, 63
        %s240 = scalar_select %p239, %s238, 63
        %p241 = scmp.lt.s32.totalorder %s22, 0
        %s242 = scalar_select %p241, %s22, 0
        %s243 = sadd.s32 %s242, %s240
        %s244 = smul.addr %s243, 4
        %s245 = scalar_lea.vmem %s0, %s244
        %s246 = smul.u32 32, %s20
        %s247 = smul.u32 16, %s22
        %p248 = scmp.lt.s32.totalorder %s247, 15
        %s249 = scalar_select %p248, %s247, 15
        %p250 = scmp.lt.s32.totalorder %s21, 0
        %s251 = scalar_select %p250, %s21, 0
        %s252 = sadd.s32 %s251, %s249
        %s253 = smul.addr %s252, 4
        %s254 = scalar_lea.vmem %s1, %s253
        %s255 = smul.u32 16, %s22
        %s256 = smul.u32 32, %s20
        %p257 = scmp.lt.s32.totalorder %s256, 63
        %s258 = scalar_select %p257, %s256, 63
        %p259 = scmp.lt.s32.totalorder %s21, 0
        %s260 = scalar_select %p259, %s21, 0
        %s261 = sadd.s32 %s260, %s258
        %s262 = smul.addr %s261, 4
        %s263 = scalar_lea.vmem %s3, %s262
        %s264 = smul.u32 32, %s20
        %p266 = scmp.eq.s32.totalorder %s22, 0
        // Predicated region
        $region37: #{cspdarknet_tiny_forward.16} parent=31 // pred_check
          %p267 = pneg %p266
        $region38: #{cspdarknet_tiny_forward.16} parent=31 // pred_check_branch
          %269 = sbr.rel (%p267) target = $region40
        $region39: #{cspdarknet_tiny_forward.16} parent=31 // pred_region
          %vm270 = vcmask 261120
          %271 = vst.msk [vmem:[#allocation2] sm:$0xff] %vm270, 0.0
          %272 = vst.msk [vmem:[#allocation2 + $0x8] sm:$0xff] %vm270, 0.0
          %273 = vst.msk [vmem:[#allocation2 + $0x10] sm:$0xff] %vm270, 0.0
          %274 = vst.msk [vmem:[#allocation2 + $0x18] sm:$0xff] %vm270, 0.0
          %275 = vst.msk [vmem:[#allocation2 + $0x20] sm:$0xff] %vm270, 0.0
          %276 = vst.msk [vmem:[#allocation2 + $0x28] sm:$0xff] %vm270, 0.0
          %277 = vst.msk [vmem:[#allocation2 + $0x30] sm:$0xff] %vm270, 0.0
          %278 = vst.msk [vmem:[#allocation2 + $0x38] sm:$0xff] %vm270, 0.0
          %279 = vst.msk [vmem:[#allocation2 + $0x40] sm:$0xff] %vm270, 0.0
          %280 = vst.msk [vmem:[#allocation2 + $0x48] sm:$0xff] %vm270, 0.0
          %281 = vst.msk [vmem:[#allocation2 + $0x50] sm:$0xff] %vm270, 0.0
          %282 = vst.msk [vmem:[#allocation2 + $0x58] sm:$0xff] %vm270, 0.0
          %283 = vst.msk [vmem:[#allocation2 + $0x60] sm:$0xff] %vm270, 0.0
          %284 = vst.msk [vmem:[#allocation2 + $0x68] sm:$0xff] %vm270, 0.0
          %285 = vst.msk [vmem:[#allocation2 + $0x70] sm:$0xff] %vm270, 0.0
          %286 = vst.msk [vmem:[#allocation2 + $0x78] sm:$0xff] %vm270, 0.0
          %287 = vst.msk [vmem:[#allocation2 + $0x80] sm:$0xff] %vm270, 0.0
          %288 = vst.msk [vmem:[#allocation2 + $0x88] sm:$0xff] %vm270, 0.0
          %289 = vst.msk [vmem:[#allocation2 + $0x90] sm:$0xff] %vm270, 0.0
          %290 = vst.msk [vmem:[#allocation2 + $0x98] sm:$0xff] %vm270, 0.0
          %291 = vst.msk [vmem:[#allocation2 + $0xa0] sm:$0xff] %vm270, 0.0
          %292 = vst.msk [vmem:[#allocation2 + $0xa8] sm:$0xff] %vm270, 0.0
          %293 = vst.msk [vmem:[#allocation2 + $0xb0] sm:$0xff] %vm270, 0.0
          %294 = vst.msk [vmem:[#allocation2 + $0xb8] sm:$0xff] %vm270, 0.0
          %295 = vst.msk [vmem:[#allocation2 + $0xc0] sm:$0xff] %vm270, 0.0
          %296 = vst.msk [vmem:[#allocation2 + $0xc8] sm:$0xff] %vm270, 0.0
          %297 = vst.msk [vmem:[#allocation2 + $0xd0] sm:$0xff] %vm270, 0.0
          %298 = vst.msk [vmem:[#allocation2 + $0xd8] sm:$0xff] %vm270, 0.0
          %299 = vst.msk [vmem:[#allocation2 + $0xe0] sm:$0xff] %vm270, 0.0
          %300 = vst.msk [vmem:[#allocation2 + $0xe8] sm:$0xff] %vm270, 0.0
          %301 = vst.msk [vmem:[#allocation2 + $0xf0] sm:$0xff] %vm270, 0.0
          %302 = vst.msk [vmem:[#allocation2 + $0xf8] sm:$0xff] %vm270, 0.0
        $region40: #{cspdarknet_tiny_forward.16} parent=31 // pred_fallthru
          _
        %v303 = vld [vmem:[#allocation2] sm:$0xff]
        %v304 = vld [vmem:[#allocation2 + $0x8] sm:$0xff]
        %v305 = vld [vmem:[#allocation2 + $0x10] sm:$0xff]
        %v306 = vld [vmem:[#allocation2 + $0x18] sm:$0xff]
        %v307 = vld [vmem:[#allocation2 + $0x20] sm:$0xff]
        %v308 = vld [vmem:[#allocation2 + $0x28] sm:$0xff]
        %v309 = vld [vmem:[#allocation2 + $0x30] sm:$0xff]
        %v310 = vld [vmem:[#allocation2 + $0x38] sm:$0xff]
        %v311 = vld [vmem:[#allocation2 + $0x40] sm:$0xff]
        %v312 = vld [vmem:[#allocation2 + $0x48] sm:$0xff]
        %v313 = vld [vmem:[#allocation2 + $0x50] sm:$0xff]
        %v314 = vld [vmem:[#allocation2 + $0x58] sm:$0xff]
        %v315 = vld [vmem:[#allocation2 + $0x60] sm:$0xff]
        %v316 = vld [vmem:[#allocation2 + $0x68] sm:$0xff]
        %v317 = vld [vmem:[#allocation2 + $0x70] sm:$0xff]
        %v318 = vld [vmem:[#allocation2 + $0x78] sm:$0xff]
        %v319 = vld [vmem:[#allocation2 + $0x80] sm:$0xff]
        %v320 = vld [vmem:[#allocation2 + $0x88] sm:$0xff]
        %v321 = vld [vmem:[#allocation2 + $0x90] sm:$0xff]
        %v322 = vld [vmem:[#allocation2 + $0x98] sm:$0xff]
        %v323 = vld [vmem:[#allocation2 + $0xa0] sm:$0xff]
        %v324 = vld [vmem:[#allocation2 + $0xa8] sm:$0xff]
        %v325 = vld [vmem:[#allocation2 + $0xb0] sm:$0xff]
        %v326 = vld [vmem:[#allocation2 + $0xb8] sm:$0xff]
        %v327 = vld [vmem:[#allocation2 + $0xc0] sm:$0xff]
        %v328 = vld [vmem:[#allocation2 + $0xc8] sm:$0xff]
        %v329 = vld [vmem:[#allocation2 + $0xd0] sm:$0xff]
        %v330 = vld [vmem:[#allocation2 + $0xd8] sm:$0xff]
        %v331 = vld [vmem:[#allocation2 + $0xe0] sm:$0xff]
        %v332 = vld [vmem:[#allocation2 + $0xe8] sm:$0xff]
        %v333 = vld [vmem:[#allocation2 + $0xf0] sm:$0xff]
        %v334 = vld [vmem:[#allocation2 + $0xf8] sm:$0xff]
        %v335 = vld [vmem:[%s245] sm:$0xf]
        %v336 = vld [vmem:[%s245 + $0x4] sm:$0xf]
        %v337 = vld [vmem:[%s245 + $0x8] sm:$0xf]
        %v338 = vld [vmem:[%s245 + $0xc] sm:$0xf]
        %v339 = vld [vmem:[%s245 + $0x10] sm:$0xf]
        %v340 = vld [vmem:[%s245 + $0x14] sm:$0xf]
        %v341 = vld [vmem:[%s245 + $0x18] sm:$0xf]
        %v342 = vld [vmem:[%s245 + $0x1c] sm:$0xf]
        %v343 = vld [vmem:[%s245 + $0x20] sm:$0xf]
        %v344 = vld [vmem:[%s245 + $0x24] sm:$0xf]
        %v345 = vld [vmem:[%s245 + $0x28] sm:$0xf]
        %v346 = vld [vmem:[%s245 + $0x2c] sm:$0xf]
        %v347 = vld [vmem:[%s245 + $0x30] sm:$0xf]
        %v348 = vld [vmem:[%s245 + $0x34] sm:$0xf]
        %v349 = vld [vmem:[%s245 + $0x38] sm:$0xf]
        %v350 = vld [vmem:[%s245 + $0x3c] sm:$0xf]
        %v351 = vld [vmem:[%s245 + $0x40] sm:$0xf]
        %v352 = vld [vmem:[%s245 + $0x44] sm:$0xf]
        %v353 = vld [vmem:[%s245 + $0x48] sm:$0xf]
        %v354 = vld [vmem:[%s245 + $0x4c] sm:$0xf]
        %v355 = vld [vmem:[%s245 + $0x50] sm:$0xf]
        %v356 = vld [vmem:[%s245 + $0x54] sm:$0xf]
        %v357 = vld [vmem:[%s245 + $0x58] sm:$0xf]
        %v358 = vld [vmem:[%s245 + $0x5c] sm:$0xf]
        %v359 = vld [vmem:[%s245 + $0x60] sm:$0xf]
        %v360 = vld [vmem:[%s245 + $0x64] sm:$0xf]
        %v361 = vld [vmem:[%s245 + $0x68] sm:$0xf]
        %v362 = vld [vmem:[%s245 + $0x6c] sm:$0xf]
        %v363 = vld [vmem:[%s245 + $0x70] sm:$0xf]
        %v364 = vld [vmem:[%s245 + $0x74] sm:$0xf]
        %v365 = vld [vmem:[%s245 + $0x78] sm:$0xf]
        %v366 = vld [vmem:[%s245 + $0x7c] sm:$0xf]
        %v367 = vld [vmem:[%s254] sm:$0xf]
        %v368 = vld [vmem:[%s254 + $0x4] sm:$0xf]
        %v369 = vld [vmem:[%s254 + $0x8] sm:$0xf]
        %v370 = vld [vmem:[%s254 + $0xc] sm:$0xf]
        %v371 = vld [vmem:[%s254 + $0x10] sm:$0xf]
        %v372 = vld [vmem:[%s254 + $0x14] sm:$0xf]
        %v373 = vld [vmem:[%s254 + $0x18] sm:$0xf]
        %v374 = vld [vmem:[%s254 + $0x1c] sm:$0xf]
        %v375 = vld [vmem:[%s254 + $0x20] sm:$0xf]
        %v376 = vld [vmem:[%s254 + $0x24] sm:$0xf]
        %v377 = vld [vmem:[%s254 + $0x28] sm:$0xf]
        %v378 = vld [vmem:[%s254 + $0x2c] sm:$0xf]
        %v379 = vld [vmem:[%s254 + $0x30] sm:$0xf]
        %v380 = vld [vmem:[%s254 + $0x34] sm:$0xf]
        %v381 = vld [vmem:[%s254 + $0x38] sm:$0xf]
        %v382 = vld [vmem:[%s254 + $0x3c] sm:$0xf]
        %v415 = vunpack.c.l.b16 %v335
        %v416 = vunpack.c.l.b16 %v336
        %v417 = vunpack.c.l.b16 %v337
        %v418 = vunpack.c.l.b16 %v338
        %v419 = vunpack.c.l.b16 %v339
        %v420 = vunpack.c.l.b16 %v340
        %v421 = vunpack.c.l.b16 %v341
        %v422 = vunpack.c.l.b16 %v342
        %v423 = vunpack.c.l.b16 %v343
        %v424 = vunpack.c.l.b16 %v344
        %v425 = vunpack.c.l.b16 %v345
        %v426 = vunpack.c.l.b16 %v346
        %v427 = vunpack.c.l.b16 %v347
        %v428 = vunpack.c.l.b16 %v348
        %v429 = vunpack.c.l.b16 %v349
        %v430 = vunpack.c.l.b16 %v350
        %v431 = vunpack.c.l.b16 %v351
        %v432 = vunpack.c.l.b16 %v352
        %v433 = vunpack.c.l.b16 %v353
        %v434 = vunpack.c.l.b16 %v354
        %v435 = vunpack.c.l.b16 %v355
        %v436 = vunpack.c.l.b16 %v356
        %v437 = vunpack.c.l.b16 %v357
        %v438 = vunpack.c.l.b16 %v358
        %v439 = vunpack.c.l.b16 %v359
        %v440 = vunpack.c.l.b16 %v360
        %v441 = vunpack.c.l.b16 %v361
        %v442 = vunpack.c.l.b16 %v362
        %v443 = vunpack.c.l.b16 %v363
        %v444 = vunpack.c.l.b16 %v364
        %v445 = vunpack.c.l.b16 %v365
        %v446 = vunpack.c.l.b16 %v366
        %v447 = vpack.c.b16 %v416, %v415
        %v448 = vpack.c.b16 %v418, %v417
        %v449 = vpack.c.b16 %v420, %v419
        %v450 = vpack.c.b16 %v422, %v421
        %v451 = vpack.c.b16 %v424, %v423
        %v452 = vpack.c.b16 %v426, %v425
        %v453 = vpack.c.b16 %v428, %v427
        %v454 = vpack.c.b16 %v430, %v429
        %v455 = vpack.c.b16 %v432, %v431
        %v456 = vpack.c.b16 %v434, %v433
        %v457 = vpack.c.b16 %v436, %v435
        %v458 = vpack.c.b16 %v438, %v437
        %v459 = vpack.c.b16 %v440, %v439
        %v460 = vpack.c.b16 %v442, %v441
        %v461 = vpack.c.b16 %v444, %v443
        %v462 = vpack.c.b16 %v446, %v445
        %v495 = vunpack.c.l.b16 %v367
        %v496 = vunpack.c.l.b16 %v368
        %v497 = vunpack.c.l.b16 %v369
        %v498 = vunpack.c.l.b16 %v370
        %v499 = vunpack.c.l.b16 %v371
        %v500 = vunpack.c.l.b16 %v372
        %v501 = vunpack.c.l.b16 %v373
        %v502 = vunpack.c.l.b16 %v374
        %v503 = vunpack.c.l.b16 %v375
        %v504 = vunpack.c.l.b16 %v376
        %v505 = vunpack.c.l.b16 %v377
        %v506 = vunpack.c.l.b16 %v378
        %v507 = vunpack.c.l.b16 %v379
        %v508 = vunpack.c.l.b16 %v380
        %v509 = vunpack.c.l.b16 %v381
        %v510 = vunpack.c.l.b16 %v382
        %v511 = vpack.c.b16 %v496, %v495
        %v512 = vpack.c.b16 %v498, %v497
        %v513 = vpack.c.b16 %v500, %v499
        %v514 = vpack.c.b16 %v502, %v501
        %v515 = vpack.c.b16 %v504, %v503
        %v516 = vpack.c.b16 %v506, %v505
        %v517 = vpack.c.b16 %v508, %v507
        %v518 = vpack.c.b16 %v510, %v509
        %527 = vmatprep.subr.bf16.mxu0 0
        %528 = vmatpush1.bf16.msra.mxu0 %v511
        %529 = vmatprep.subr.bf16.mxu0 0
        %530 = vmatpush1.bf16.msra.mxu0 %v512
        %531 = vmatprep.subr.bf16.mxu0 0
        %532 = vmatpush1.bf16.msra.mxu0 %v513
        %533 = vmatprep.subr.bf16.mxu0 0
        %534 = vmatpush1.bf16.msra.mxu0 %v514
        %535 = vmatprep.subr.bf16.mxu0 0
        %536 = vmatpush1.bf16.msra.mxu0 %v515
        %537 = vmatprep.subr.bf16.mxu0 0
        %538 = vmatpush1.bf16.msra.mxu0 %v516
        %539 = vmatprep.subr.bf16.mxu0 0
        %540 = vmatpush1.bf16.msra.mxu0 %v517
        %541 = vmatprep.subr.bf16.mxu0 0
        %542 = vmatpush1.bf16.msra.mxu0 %v518
        %543 = vmatprep.subr.bf16.mxu0 0
        %544 = vmatpush1.bf16.msra.mxu0 0
        %545 = vmatprep.subr.bf16.mxu0 0
        %546 = vmatpush1.bf16.msra.mxu0 0
        %547 = vmatprep.subr.bf16.mxu0 0
        %548 = vmatpush1.bf16.msra.mxu0 0
        %549 = vmatprep.subr.bf16.mxu0 0
        %550 = vmatpush1.bf16.msra.mxu0 0
        %551 = vmatprep.subr.bf16.mxu0 0
        %552 = vmatpush1.bf16.msra.mxu0 0
        %553 = vmatprep.subr.bf16.mxu0 0
        %554 = vmatpush1.bf16.msra.mxu0 0
        %555 = vmatprep.subr.bf16.mxu0 0
        %556 = vmatpush1.bf16.msra.mxu0 0
        %557 = vmatprep.subr.bf16.mxu0 0
        %558 = vmatpush1.bf16.msra.mxu0 0
        %559 = vmatprep.mubr.bf16.mxu0 0
        %560 = vmatmul.mubr.bf16.gmra.mrb[0].mxu0 %v447
        %v561 = vpop.f32.mrb[0].mxu0
        %v562 = vadd.f32 0.0, %v561
        %v563 = vpop.f32.mrb[0].mxu0
        %v564 = vpop.f32.mrb[0].mxu0
        %v565 = vadd.f32 0.0, %v564
        %v566 = vpop.f32.mrb[0].mxu0
        %567 = vmatprep.mubr.bf16.mxu0 0
        %568 = vmatmul.mubr.bf16.gmra.mrb[0].mxu0 %v448
        %v569 = vpop.f32.mrb[0].mxu0
        %v570 = vadd.f32 0.0, %v569
        %v571 = vpop.f32.mrb[0].mxu0
        %v572 = vpop.f32.mrb[0].mxu0
        %v573 = vadd.f32 0.0, %v572
        %v574 = vpop.f32.mrb[0].mxu0
        %575 = vmatprep.mubr.bf16.mxu0 0
        %576 = vmatmul.mubr.bf16.gmra.mrb[0].mxu0 %v449
        %v577 = vpop.f32.mrb[0].mxu0
        %v578 = vadd.f32 0.0, %v577
        %v579 = vpop.f32.mrb[0].mxu0
        %v580 = vpop.f32.mrb[0].mxu0
        %v581 = vadd.f32 0.0, %v580
        %v582 = vpop.f32.mrb[0].mxu0
        %583 = vmatprep.mubr.bf16.mxu0 0
        %584 = vmatmul.mubr.bf16.gmra.mrb[0].mxu0 %v450
        %v585 = vpop.f32.mrb[0].mxu0
        %v586 = vadd.f32 0.0, %v585
        %v587 = vpop.f32.mrb[0].mxu0
        %v588 = vpop.f32.mrb[0].mxu0
        %v589 = vadd.f32 0.0, %v588
        %v590 = vpop.f32.mrb[0].mxu0
        %591 = vmatprep.mubr.bf16.mxu0 0
        %592 = vmatmul.mubr.bf16.gmra.mrb[0].mxu0 %v451
        %v593 = vpop.f32.mrb[0].mxu0
        %v594 = vadd.f32 0.0, %v593
        %v595 = vpop.f32.mrb[0].mxu0
        %v596 = vpop.f32.mrb[0].mxu0
        %v597 = vadd.f32 0.0, %v596
        %v598 = vpop.f32.mrb[0].mxu0
        %599 = vmatprep.mubr.bf16.mxu0 0
        %600 = vmatmul.mubr.bf16.gmra.mrb[0].mxu0 %v452
        %v601 = vpop.f32.mrb[0].mxu0
        %v602 = vadd.f32 0.0, %v601
        %v603 = vpop.f32.mrb[0].mxu0
        %v604 = vpop.f32.mrb[0].mxu0
        %v605 = vadd.f32 0.0, %v604
        %v606 = vpop.f32.mrb[0].mxu0
        %607 = vmatprep.mubr.bf16.mxu0 0
        %608 = vmatmul.mubr.bf16.gmra.mrb[0].mxu0 %v453
        %v609 = vpop.f32.mrb[0].mxu0
        %v610 = vadd.f32 0.0, %v609
        %v611 = vpop.f32.mrb[0].mxu0
        %v612 = vpop.f32.mrb[0].mxu0
        %v613 = vadd.f32 0.0, %v612
        %v614 = vpop.f32.mrb[0].mxu0
        %615 = vmatprep.mubr.bf16.mxu0 0
        %616 = vmatmul.mubr.bf16.gmra.mrb[0].mxu0 %v454
        %v617 = vpop.f32.mrb[0].mxu0
        %v618 = vadd.f32 0.0, %v617
        %v619 = vpop.f32.mrb[0].mxu0
        %v620 = vpop.f32.mrb[0].mxu0
        %v621 = vadd.f32 0.0, %v620
        %v622 = vpop.f32.mrb[0].mxu0
        %623 = vmatprep.mubr.bf16.mxu0 0
        %624 = vmatmul.mubr.bf16.gmra.mrb[0].mxu0 %v455
        %v625 = vpop.f32.mrb[0].mxu0
        %v626 = vadd.f32 0.0, %v625
        %v627 = vpop.f32.mrb[0].mxu0
        %v628 = vpop.f32.mrb[0].mxu0
        %v629 = vadd.f32 0.0, %v628
        %v630 = vpop.f32.mrb[0].mxu0
        %631 = vmatprep.mubr.bf16.mxu0 0
        %632 = vmatmul.mubr.bf16.gmra.mrb[0].mxu0 %v456
        %v633 = vpop.f32.mrb[0].mxu0
        %v634 = vadd.f32 0.0, %v633
        %v635 = vpop.f32.mrb[0].mxu0
        %v636 = vpop.f32.mrb[0].mxu0
        %v637 = vadd.f32 0.0, %v636
        %v638 = vpop.f32.mrb[0].mxu0
        %639 = vmatprep.mubr.bf16.mxu0 0
        %640 = vmatmul.mubr.bf16.gmra.mrb[0].mxu0 %v457
        %v641 = vpop.f32.mrb[0].mxu0
        %v642 = vadd.f32 0.0, %v641
        %v643 = vpop.f32.mrb[0].mxu0
        %v644 = vpop.f32.mrb[0].mxu0
        %v645 = vadd.f32 0.0, %v644
        %v646 = vpop.f32.mrb[0].mxu0
        %647 = vmatprep.mubr.bf16.mxu0 0
        %648 = vmatmul.mubr.bf16.gmra.mrb[0].mxu0 %v458
        %v649 = vpop.f32.mrb[0].mxu0
        %v650 = vadd.f32 0.0, %v649
        %v651 = vpop.f32.mrb[0].mxu0
        %v652 = vpop.f32.mrb[0].mxu0
        %v653 = vadd.f32 0.0, %v652
        %v654 = vpop.f32.mrb[0].mxu0
        %655 = vmatprep.mubr.bf16.mxu0 0
        %656 = vmatmul.mubr.bf16.gmra.mrb[0].mxu0 %v459
        %v657 = vpop.f32.mrb[0].mxu0
        %v658 = vadd.f32 0.0, %v657
        %v659 = vpop.f32.mrb[0].mxu0
        %v660 = vpop.f32.mrb[0].mxu0
        %v661 = vadd.f32 0.0, %v660
        %v662 = vpop.f32.mrb[0].mxu0
        %663 = vmatprep.mubr.bf16.mxu0 0
        %664 = vmatmul.mubr.bf16.gmra.mrb[0].mxu0 %v460
        %v665 = vpop.f32.mrb[0].mxu0
        %v666 = vadd.f32 0.0, %v665
        %v667 = vpop.f32.mrb[0].mxu0
        %v668 = vpop.f32.mrb[0].mxu0
        %v669 = vadd.f32 0.0, %v668
        %v670 = vpop.f32.mrb[0].mxu0
        %671 = vmatprep.mubr.bf16.mxu0 0
        %672 = vmatmul.mubr.bf16.gmra.mrb[0].mxu0 %v461
        %v673 = vpop.f32.mrb[0].mxu0
        %v674 = vadd.f32 0.0, %v673
        %v675 = vpop.f32.mrb[0].mxu0
        %v676 = vpop.f32.mrb[0].mxu0
        %v677 = vadd.f32 0.0, %v676
        %v678 = vpop.f32.mrb[0].mxu0
        %679 = vmatprep.mubr.bf16.mxu0 0
        %680 = vmatmul.mubr.bf16.gmra.mrb[0].mxu0 %v462
        %v681 = vpop.f32.mrb[0].mxu0
        %v682 = vadd.f32 0.0, %v681
        %v683 = vpop.f32.mrb[0].mxu0
        %v684 = vpop.f32.mrb[0].mxu0
        %v685 = vadd.f32 0.0, %v684
        %v686 = vpop.f32.mrb[0].mxu0
        %687 = vdwg.mxu0
        %v688 = vadd.f32 %v303, %v562
        %v689 = vadd.f32 %v304, %v565
        %v690 = vadd.f32 %v305, %v570
        %v691 = vadd.f32 %v306, %v573
        %v692 = vadd.f32 %v307, %v578
        %v693 = vadd.f32 %v308, %v581
        %v694 = vadd.f32 %v309, %v586
        %v695 = vadd.f32 %v310, %v589
        %v696 = vadd.f32 %v311, %v594
        %v697 = vadd.f32 %v312, %v597
        %v698 = vadd.f32 %v313, %v602
        %v699 = vadd.f32 %v314, %v605
        %v700 = vadd.f32 %v315, %v610
        %v701 = vadd.f32 %v316, %v613
        %v702 = vadd.f32 %v317, %v618
        %v703 = vadd.f32 %v318, %v621
        %v704 = vadd.f32 %v319, %v626
        %v705 = vadd.f32 %v320, %v629
        %v706 = vadd.f32 %v321, %v634
        %v707 = vadd.f32 %v322, %v637
        %v708 = vadd.f32 %v323, %v642
        %v709 = vadd.f32 %v324, %v645
        %v710 = vadd.f32 %v325, %v650
        %v711 = vadd.f32 %v326, %v653
        %v712 = vadd.f32 %v327, %v658
        %v713 = vadd.f32 %v328, %v661
        %v714 = vadd.f32 %v329, %v666
        %v715 = vadd.f32 %v330, %v669
        %v716 = vadd.f32 %v331, %v674
        %v717 = vadd.f32 %v332, %v677
        %v718 = vadd.f32 %v333, %v682
        %v719 = vadd.f32 %v334, %v685
        %vm720 = vcmask 261120
        %721 = vst.msk [vmem:[#allocation2] sm:$0xff] %vm720, %v688
        %722 = vst.msk [vmem:[#allocation2 + $0x8] sm:$0xff] %vm720, %v689
        %723 = vst.msk [vmem:[#allocation2 + $0x10] sm:$0xff] %vm720, %v690
        %724 = vst.msk [vmem:[#allocation2 + $0x18] sm:$0xff] %vm720, %v691
        %725 = vst.msk [vmem:[#allocation2 + $0x20] sm:$0xff] %vm720, %v692
        %726 = vst.msk [vmem:[#allocation2 + $0x28] sm:$0xff] %vm720, %v693
        %727 = vst.msk [vmem:[#allocation2 + $0x30] sm:$0xff] %vm720, %v694
        %728 = vst.msk [vmem:[#allocation2 + $0x38] sm:$0xff] %vm720, %v695
        %729 = vst.msk [vmem:[#allocation2 + $0x40] sm:$0xff] %vm720, %v696
        %730 = vst.msk [vmem:[#allocation2 + $0x48] sm:$0xff] %vm720, %v697
        %731 = vst.msk [vmem:[#allocation2 + $0x50] sm:$0xff] %vm720, %v698
        %732 = vst.msk [vmem:[#allocation2 + $0x58] sm:$0xff] %vm720, %v699
        %733 = vst.msk [vmem:[#allocation2 + $0x60] sm:$0xff] %vm720, %v700
        %734 = vst.msk [vmem:[#allocation2 + $0x68] sm:$0xff] %vm720, %v701
        %735 = vst.msk [vmem:[#allocation2 + $0x70] sm:$0xff] %vm720, %v702
        %736 = vst.msk [vmem:[#allocation2 + $0x78] sm:$0xff] %vm720, %v703
        %737 = vst.msk [vmem:[#allocation2 + $0x80] sm:$0xff] %vm720, %v704
        %738 = vst.msk [vmem:[#allocation2 + $0x88] sm:$0xff] %vm720, %v705
        %739 = vst.msk [vmem:[#allocation2 + $0x90] sm:$0xff] %vm720, %v706
        %740 = vst.msk [vmem:[#allocation2 + $0x98] sm:$0xff] %vm720, %v707
        %741 = vst.msk [vmem:[#allocation2 + $0xa0] sm:$0xff] %vm720, %v708
        %742 = vst.msk [vmem:[#allocation2 + $0xa8] sm:$0xff] %vm720, %v709
        %743 = vst.msk [vmem:[#allocation2 + $0xb0] sm:$0xff] %vm720, %v710
        %744 = vst.msk [vmem:[#allocation2 + $0xb8] sm:$0xff] %vm720, %v711
        %745 = vst.msk [vmem:[#allocation2 + $0xc0] sm:$0xff] %vm720, %v712
        %746 = vst.msk [vmem:[#allocation2 + $0xc8] sm:$0xff] %vm720, %v713
        %747 = vst.msk [vmem:[#allocation2 + $0xd0] sm:$0xff] %vm720, %v714
        %748 = vst.msk [vmem:[#allocation2 + $0xd8] sm:$0xff] %vm720, %v715
        %749 = vst.msk [vmem:[#allocation2 + $0xe0] sm:$0xff] %vm720, %v716
        %750 = vst.msk [vmem:[#allocation2 + $0xe8] sm:$0xff] %vm720, %v717
        %751 = vst.msk [vmem:[#allocation2 + $0xf0] sm:$0xff] %vm720, %v718
        %752 = vst.msk [vmem:[#allocation2 + $0xf8] sm:$0xff] %vm720, %v719
        // Predicated region
        $region41: #{cspdarknet_tiny_forward.16} parent=31 // pred_check
          %p753 = pneg %p266
        $region42: #{cspdarknet_tiny_forward.16} parent=31 // pred_check_branch
          %755 = sbr.rel (%p753) target = $region44
        $region43: #{cspdarknet_tiny_forward.16} parent=31 // pred_region
          %v756 = vld [vmem:[#allocation2] sm:$0xff]
          %v757 = vld [vmem:[#allocation2 + $0x8] sm:$0xff]
          %v758 = vld [vmem:[#allocation2 + $0x10] sm:$0xff]
          %v759 = vld [vmem:[#allocation2 + $0x18] sm:$0xff]
          %v760 = vld [vmem:[#allocation2 + $0x20] sm:$0xff]
          %v761 = vld [vmem:[#allocation2 + $0x28] sm:$0xff]
          %v762 = vld [vmem:[#allocation2 + $0x30] sm:$0xff]
          %v763 = vld [vmem:[#allocation2 + $0x38] sm:$0xff]
          %v764 = vld [vmem:[#allocation2 + $0x40] sm:$0xff]
          %v765 = vld [vmem:[#allocation2 + $0x48] sm:$0xff]
          %v766 = vld [vmem:[#allocation2 + $0x50] sm:$0xff]
          %v767 = vld [vmem:[#allocation2 + $0x58] sm:$0xff]
          %v768 = vld [vmem:[#allocation2 + $0x60] sm:$0xff]
          %v769 = vld [vmem:[#allocation2 + $0x68] sm:$0xff]
          %v770 = vld [vmem:[#allocation2 + $0x70] sm:$0xff]
          %v771 = vld [vmem:[#allocation2 + $0x78] sm:$0xff]
          %v772 = vld [vmem:[#allocation2 + $0x80] sm:$0xff]
          %v773 = vld [vmem:[#allocation2 + $0x88] sm:$0xff]
          %v774 = vld [vmem:[#allocation2 + $0x90] sm:$0xff]
          %v775 = vld [vmem:[#allocation2 + $0x98] sm:$0xff]
          %v776 = vld [vmem:[#allocation2 + $0xa0] sm:$0xff]
          %v777 = vld [vmem:[#allocation2 + $0xa8] sm:$0xff]
          %v778 = vld [vmem:[#allocation2 + $0xb0] sm:$0xff]
          %v779 = vld [vmem:[#allocation2 + $0xb8] sm:$0xff]
          %v780 = vld [vmem:[#allocation2 + $0xc0] sm:$0xff]
          %v781 = vld [vmem:[#allocation2 + $0xc8] sm:$0xff]
          %v782 = vld [vmem:[#allocation2 + $0xd0] sm:$0xff]
          %v783 = vld [vmem:[#allocation2 + $0xd8] sm:$0xff]
          %v784 = vld [vmem:[#allocation2 + $0xe0] sm:$0xff]
          %v785 = vld [vmem:[#allocation2 + $0xe8] sm:$0xff]
          %v786 = vld [vmem:[#allocation2 + $0xf0] sm:$0xff]
          %v787 = vld [vmem:[#allocation2 + $0xf8] sm:$0xff]
          %v788 = vld [vmem:[#allocation3] sm:$0x1]
          %v790 = vlaneseq
          %v791 = vshrl.u32 %v790, 7
          %v792 = vsub.s32 0, %v791
          %v793 = vrot.slane %v788, %v792
          %v795 = vadd.f32 %v756, %v793
          %v796 = vadd.f32 %v757, %v793
          %v797 = vadd.f32 %v758, %v793
          %v798 = vadd.f32 %v759, %v793
          %v799 = vadd.f32 %v760, %v793
          %v800 = vadd.f32 %v761, %v793
          %v801 = vadd.f32 %v762, %v793
          %v802 = vadd.f32 %v763, %v793
          %v803 = vadd.f32 %v764, %v793
          %v804 = vadd.f32 %v765, %v793
          %v805 = vadd.f32 %v766, %v793
          %v806 = vadd.f32 %v767, %v793
          %v807 = vadd.f32 %v768, %v793
          %v808 = vadd.f32 %v769, %v793
          %v809 = vadd.f32 %v770, %v793
          %v810 = vadd.f32 %v771, %v793
          %v811 = vadd.f32 %v772, %v793
          %v812 = vadd.f32 %v773, %v793
          %v813 = vadd.f32 %v774, %v793
          %v814 = vadd.f32 %v775, %v793
          %v815 = vadd.f32 %v776, %v793
          %v816 = vadd.f32 %v777, %v793
          %v817 = vadd.f32 %v778, %v793
          %v818 = vadd.f32 %v779, %v793
          %v819 = vadd.f32 %v780, %v793
          %v820 = vadd.f32 %v781, %v793
          %v821 = vadd.f32 %v782, %v793
          %v822 = vadd.f32 %v783, %v793
          %v823 = vadd.f32 %v784, %v793
          %v824 = vadd.f32 %v785, %v793
          %v825 = vadd.f32 %v786, %v793
          %v826 = vadd.f32 %v787, %v793
          %vm827 = vcmp.gt.f32.partialorder %v795, 0.0
          %vm828 = vcmp.gt.f32.partialorder %v796, 0.0
          %vm829 = vcmp.gt.f32.partialorder %v797, 0.0
          %vm830 = vcmp.gt.f32.partialorder %v798, 0.0
          %vm831 = vcmp.gt.f32.partialorder %v799, 0.0
          %vm832 = vcmp.gt.f32.partialorder %v800, 0.0
          %vm833 = vcmp.gt.f32.partialorder %v801, 0.0
          %vm834 = vcmp.gt.f32.partialorder %v802, 0.0
          %vm835 = vcmp.gt.f32.partialorder %v803, 0.0
          %vm836 = vcmp.gt.f32.partialorder %v804, 0.0
          %vm837 = vcmp.gt.f32.partialorder %v805, 0.0
          %vm838 = vcmp.gt.f32.partialorder %v806, 0.0
          %vm839 = vcmp.gt.f32.partialorder %v807, 0.0
          %vm840 = vcmp.gt.f32.partialorder %v808, 0.0
          %vm841 = vcmp.gt.f32.partialorder %v809, 0.0
          %vm842 = vcmp.gt.f32.partialorder %v810, 0.0
          %vm843 = vcmp.gt.f32.partialorder %v811, 0.0
          %vm844 = vcmp.gt.f32.partialorder %v812, 0.0
          %vm845 = vcmp.gt.f32.partialorder %v813, 0.0
          %vm846 = vcmp.gt.f32.partialorder %v814, 0.0
          %vm847 = vcmp.gt.f32.partialorder %v815, 0.0
          %vm848 = vcmp.gt.f32.partialorder %v816, 0.0
          %vm849 = vcmp.gt.f32.partialorder %v817, 0.0
          %vm850 = vcmp.gt.f32.partialorder %v818, 0.0
          %vm851 = vcmp.gt.f32.partialorder %v819, 0.0
          %vm852 = vcmp.gt.f32.partialorder %v820, 0.0
          %vm853 = vcmp.gt.f32.partialorder %v821, 0.0
          %vm854 = vcmp.gt.f32.partialorder %v822, 0.0
          %vm855 = vcmp.gt.f32.partialorder %v823, 0.0
          %vm856 = vcmp.gt.f32.partialorder %v824, 0.0
          %vm857 = vcmp.gt.f32.partialorder %v825, 0.0
          %vm858 = vcmp.gt.f32.partialorder %v826, 0.0
          %v859 = vmul.f32 %v795, 0.1
          %v860 = vmul.f32 %v796, 0.1
          %v861 = vmul.f32 %v797, 0.1
          %v862 = vmul.f32 %v798, 0.1
          %v863 = vmul.f32 %v799, 0.1
          %v864 = vmul.f32 %v800, 0.1
          %v865 = vmul.f32 %v801, 0.1
          %v866 = vmul.f32 %v802, 0.1
          %v867 = vmul.f32 %v803, 0.1
          %v868 = vmul.f32 %v804, 0.1
          %v869 = vmul.f32 %v805, 0.1
          %v870 = vmul.f32 %v806, 0.1
          %v871 = vmul.f32 %v807, 0.1
          %v872 = vmul.f32 %v808, 0.1
          %v873 = vmul.f32 %v809, 0.1
          %v874 = vmul.f32 %v810, 0.1
          %v875 = vmul.f32 %v811, 0.1
          %v876 = vmul.f32 %v812, 0.1
          %v877 = vmul.f32 %v813, 0.1
          %v878 = vmul.f32 %v814, 0.1
          %v879 = vmul.f32 %v815, 0.1
          %v880 = vmul.f32 %v816, 0.1
          %v881 = vmul.f32 %v817, 0.1
          %v882 = vmul.f32 %v818, 0.1
          %v883 = vmul.f32 %v819, 0.1
          %v884 = vmul.f32 %v820, 0.1
          %v885 = vmul.f32 %v821, 0.1
          %v886 = vmul.f32 %v822, 0.1
          %v887 = vmul.f32 %v823, 0.1
          %v888 = vmul.f32 %v824, 0.1
          %v889 = vmul.f32 %v825, 0.1
          %v890 = vmul.f32 %v826, 0.1
          %v891 = vsel %vm827, %v795, %v859
          %v892 = vsel %vm828, %v796, %v860
          %v893 = vsel %vm829, %v797, %v861
          %v894 = vsel %vm830, %v798, %v862
          %v895 = vsel %vm831, %v799, %v863
          %v896 = vsel %vm832, %v800, %v864
          %v897 = vsel %vm833, %v801, %v865
          %v898 = vsel %vm834, %v802, %v866
          %v899 = vsel %vm835, %v803, %v867
          %v900 = vsel %vm836, %v804, %v868
          %v901 = vsel %vm837, %v805, %v869
          %v902 = vsel %vm838, %v806, %v870
          %v903 = vsel %vm839, %v807, %v871
          %v904 = vsel %vm840, %v808, %v872
          %v905 = vsel %vm841, %v809, %v873
          %v906 = vsel %vm842, %v810, %v874
          %v907 = vsel %vm843, %v811, %v875
          %v908 = vsel %vm844, %v812, %v876
          %v909 = vsel %vm845, %v813, %v877
          %v910 = vsel %vm846, %v814, %v878
          %v911 = vsel %vm847, %v815, %v879
          %v912 = vsel %vm848, %v816, %v880
          %v913 = vsel %vm849, %v817, %v881
          %v914 = vsel %vm850, %v818, %v882
          %v915 = vsel %vm851, %v819, %v883
          %v916 = vsel %vm852, %v820, %v884
          %v917 = vsel %vm853, %v821, %v885
          %v918 = vsel %vm854, %v822, %v886
          %v919 = vsel %vm855, %v823, %v887
          %v920 = vsel %vm856, %v824, %v888
          %v921 = vsel %vm857, %v825, %v889
          %v922 = vsel %vm858, %v826, %v890
          %v923 = vpack.c.bf16 %v892, %v891
          %v924 = vpack.c.bf16 %v894, %v893
          %v925 = vpack.c.bf16 %v896, %v895
          %v926 = vpack.c.bf16 %v898, %v897
          %v927 = vpack.c.bf16 %v900, %v899
          %v928 = vpack.c.bf16 %v902, %v901
          %v929 = vpack.c.bf16 %v904, %v903
          %v930 = vpack.c.bf16 %v906, %v905
          %v931 = vpack.c.bf16 %v908, %v907
          %v932 = vpack.c.bf16 %v910, %v909
          %v933 = vpack.c.bf16 %v912, %v911
          %v934 = vpack.c.bf16 %v914, %v913
          %v935 = vpack.c.bf16 %v916, %v915
          %v936 = vpack.c.bf16 %v918, %v917
          %v937 = vpack.c.bf16 %v920, %v919
          %v938 = vpack.c.bf16 %v922, %v921
          %v955 = vunpack.c.l.b16 %v923
          %v956 = vunpack.c.h.b16 %v923
          %v957 = vunpack.c.l.b16 %v924
          %v958 = vunpack.c.h.b16 %v924
          %v959 = vunpack.c.l.b16 %v925
          %v960 = vunpack.c.h.b16 %v925
          %v961 = vunpack.c.l.b16 %v926
          %v962 = vunpack.c.h.b16 %v926
          %v963 = vunpack.c.l.b16 %v927
          %v964 = vunpack.c.h.b16 %v927
          %v965 = vunpack.c.l.b16 %v928
          %v966 = vunpack.c.h.b16 %v928
          %v967 = vunpack.c.l.b16 %v929
          %v968 = vunpack.c.h.b16 %v929
          %v969 = vunpack.c.l.b16 %v930
          %v970 = vunpack.c.h.b16 %v930
          %v971 = vunpack.c.l.b16 %v931
          %v972 = vunpack.c.h.b16 %v931
          %v973 = vunpack.c.l.b16 %v932
          %v974 = vunpack.c.h.b16 %v932
          %v975 = vunpack.c.l.b16 %v933
          %v976 = vunpack.c.h.b16 %v933
          %v977 = vunpack.c.l.b16 %v934
          %v978 = vunpack.c.h.b16 %v934
          %v979 = vunpack.c.l.b16 %v935
          %v980 = vunpack.c.h.b16 %v935
          %v981 = vunpack.c.l.b16 %v936
          %v982 = vunpack.c.h.b16 %v936
          %v983 = vunpack.c.l.b16 %v937
          %v984 = vunpack.c.h.b16 %v937
          %v985 = vunpack.c.l.b16 %v938
          %v986 = vunpack.c.h.b16 %v938
          %v987 = vpack.c.b16 %v955, %v955
          %v988 = vpack.c.b16 %v956, %v956
          %v989 = vpack.c.b16 %v957, %v957
          %v990 = vpack.c.b16 %v958, %v958
          %v991 = vpack.c.b16 %v959, %v959
          %v992 = vpack.c.b16 %v960, %v960
          %v993 = vpack.c.b16 %v961, %v961
          %v994 = vpack.c.b16 %v962, %v962
          %v995 = vpack.c.b16 %v963, %v963
          %v996 = vpack.c.b16 %v964, %v964
          %v997 = vpack.c.b16 %v965, %v965
          %v998 = vpack.c.b16 %v966, %v966
          %v999 = vpack.c.b16 %v967, %v967
          %v1000 = vpack.c.b16 %v968, %v968
          %v1001 = vpack.c.b16 %v969, %v969
          %v1002 = vpack.c.b16 %v970, %v970
          %v1003 = vpack.c.b16 %v971, %v971
          %v1004 = vpack.c.b16 %v972, %v972
          %v1005 = vpack.c.b16 %v973, %v973
          %v1006 = vpack.c.b16 %v974, %v974
          %v1007 = vpack.c.b16 %v975, %v975
          %v1008 = vpack.c.b16 %v976, %v976
          %v1009 = vpack.c.b16 %v977, %v977
          %v1010 = vpack.c.b16 %v978, %v978
          %v1011 = vpack.c.b16 %v979, %v979
          %v1012 = vpack.c.b16 %v980, %v980
          %v1013 = vpack.c.b16 %v981, %v981
          %v1014 = vpack.c.b16 %v982, %v982
          %v1015 = vpack.c.b16 %v983, %v983
          %v1016 = vpack.c.b16 %v984, %v984
          %v1017 = vpack.c.b16 %v985, %v985
          %v1018 = vpack.c.b16 %v986, %v986
          %vm1051 = vcmask 257024
          %1052 = vst.msk [vmem:[%s263] sm:$0xf] %vm1051, %v987
          %1053 = vst.msk [vmem:[%s263 + $0x4] sm:$0xf] %vm1051, %v988
          %1054 = vst.msk [vmem:[%s263 + $0x8] sm:$0xf] %vm1051, %v989
          %1055 = vst.msk [vmem:[%s263 + $0xc] sm:$0xf] %vm1051, %v990
          %1056 = vst.msk [vmem:[%s263 + $0x10] sm:$0xf] %vm1051, %v991
          %1057 = vst.msk [vmem:[%s263 + $0x14] sm:$0xf] %vm1051, %v992
          %1058 = vst.msk [vmem:[%s263 + $0x18] sm:$0xf] %vm1051, %v993
          %1059 = vst.msk [vmem:[%s263 + $0x1c] sm:$0xf] %vm1051, %v994
          %1060 = vst.msk [vmem:[%s263 + $0x20] sm:$0xf] %vm1051, %v995
          %1061 = vst.msk [vmem:[%s263 + $0x24] sm:$0xf] %vm1051, %v996
          %1062 = vst.msk [vmem:[%s263 + $0x28] sm:$0xf] %vm1051, %v997
          %1063 = vst.msk [vmem:[%s263 + $0x2c] sm:$0xf] %vm1051, %v998
          %1064 = vst.msk [vmem:[%s263 + $0x30] sm:$0xf] %vm1051, %v999
          %1065 = vst.msk [vmem:[%s263 + $0x34] sm:$0xf] %vm1051, %v1000
          %1066 = vst.msk [vmem:[%s263 + $0x38] sm:$0xf] %vm1051, %v1001
          %1067 = vst.msk [vmem:[%s263 + $0x3c] sm:$0xf] %vm1051, %v1002
          %1068 = vst.msk [vmem:[%s263 + $0x40] sm:$0xf] %vm1051, %v1003
          %1069 = vst.msk [vmem:[%s263 + $0x44] sm:$0xf] %vm1051, %v1004
          %1070 = vst.msk [vmem:[%s263 + $0x48] sm:$0xf] %vm1051, %v1005
          %1071 = vst.msk [vmem:[%s263 + $0x4c] sm:$0xf] %vm1051, %v1006
          %1072 = vst.msk [vmem:[%s263 + $0x50] sm:$0xf] %vm1051, %v1007
          %1073 = vst.msk [vmem:[%s263 + $0x54] sm:$0xf] %vm1051, %v1008
          %1074 = vst.msk [vmem:[%s263 + $0x58] sm:$0xf] %vm1051, %v1009
          %1075 = vst.msk [vmem:[%s263 + $0x5c] sm:$0xf] %vm1051, %v1010
          %1076 = vst.msk [vmem:[%s263 + $0x60] sm:$0xf] %vm1051, %v1011
          %1077 = vst.msk [vmem:[%s263 + $0x64] sm:$0xf] %vm1051, %v1012
          %1078 = vst.msk [vmem:[%s263 + $0x68] sm:$0xf] %vm1051, %v1013
          %1079 = vst.msk [vmem:[%s263 + $0x6c] sm:$0xf] %vm1051, %v1014
          %1080 = vst.msk [vmem:[%s263 + $0x70] sm:$0xf] %vm1051, %v1015
          %1081 = vst.msk [vmem:[%s263 + $0x74] sm:$0xf] %vm1051, %v1016
          %1082 = vst.msk [vmem:[%s263 + $0x78] sm:$0xf] %vm1051, %v1017
          %1083 = vst.msk [vmem:[%s263 + $0x7c] sm:$0xf] %vm1051, %v1018
        $region44: #{cspdarknet_tiny_forward.16} parent=31 // pred_fallthru
          _
        %s1084 = smul.u32 32, %s20
        %p1085 = scmp.lt.s32.totalorder %s1084, 63
        %s1086 = scalar_select %p1085, %s1084, 63
        %p1087 = scmp.lt.s32.totalorder %s21, 0
        %s1088 = scalar_select %p1087, %s21, 0
        %s1089 = sadd.s32 %s1088, %s1086
        %s1090 = smul.addr %s1089, 4
        %s1091 = scalar_lea.vmem %s3, %s1090
        // Predicated region
        $region45: #{cspdarknet_tiny_forward.16} parent=31 // pred_check
          %p1092 = pneg %p136
        $region46: #{cspdarknet_tiny_forward.16} parent=31 // pred_check_branch
          %1094 = sbr.rel (%p1092) target = $region48
        $region47: #{cspdarknet_tiny_forward.16} parent=31 // pred_region
          %s1095 = smul.u32 32, %s20
        $region48: #{cspdarknet_tiny_forward.16} parent=31 // pred_fallthru
          _
      $region32: #{cspdarknet_tiny_forward.16} parent=5 // pred_fallthru
        _
      %p1096 = scmp.le.s32.totalorder 2, %s10
      // Predicated region
      $region49: #{cspdarknet_tiny_forward.16} parent=5 // pred_check
        %p1097 = pneg %p1096
      $region50: #{cspdarknet_tiny_forward.16} parent=5 // pred_check_branch
        %1099 = sbr.rel (%p1097) target = $region52
      $region51: #{cspdarknet_tiny_forward.16} parent=5 // pred_region
        %s1100 = ssub.s32 %s10, 2
        // Predicated region
        $region53: #{cspdarknet_tiny_forward.16} parent=51 // pred_check
          %p1101 = pneg %p142
        $region54: #{cspdarknet_tiny_forward.16} parent=51 // pred_check_branch
          %1103 = sbr.rel (%p1101) target = $region56
        $region55: #{cspdarknet_tiny_forward.16} parent=51 // pred_region
          %s1104 = smul.u32 32, %s23
          %p1105 = scmp.lt.s32.totalorder %s1104, 63
          %s1106 = scalar_select %p1105, %s1104, 63
          %p1107 = scmp.lt.s32.totalorder %s24, 0
          %s1108 = scalar_select %p1107, %s24, 0
          %s1109 = sadd.s32 %s1108, %s1106
          %s1110 = smul.addr %s1109, 4
          %s1111 = scalar_lea.vmem %s3, %s1110
        $region56: #{cspdarknet_tiny_forward.16} parent=51 // pred_fallthru
          _
      $region52: #{cspdarknet_tiny_forward.16} parent=5 // pred_fallthru
        _
    $region6: #{cspdarknet_tiny_forward.16} parent=1 // loop_footer
      %s14 = sadd.s32 1, %s10
    $region7: #{cspdarknet_tiny_forward.16} parent=1 // loop_footer_branch
      %9 = sbr.rel target = $region3
    $region8: #{cspdarknet_tiny_forward.16} parent=1 // loop_exit
      _
    %1112 = vsyncpa [#allocation4], 1
    %s1113 = scalar_lea.sflag [#allocation4], 1
    %1114 = vsyncpa %s1113, 1

// kernel: cspdarknet_tiny_forward.17
$region0: #{cspdarknet_tiny_forward.17}
  #allocation0 [shape = 'u32[]', space=smem, size = 0x4, offset = 0x4, fixed_abs, tag = 'smem constant byte address 0x4 - core index']
  #allocation1 [shape = 'u32[144,128]{1,0:T(1,128)}', space=vmem, size = 0x12000, scoped, tag = 'internal scratch']
  #allocation2 [shape = 'f32[128,64]{1,0:T(8,128)}', space=vmem, size = 0x10000, scoped, tag = 'scratch operand']
  %s0 = inlined_call_operand.vmem [shape: bf16[128,384], index: 0, kind: input, shape index: {}]
  %s1 = inlined_call_operand.vmem [shape: bf16[384,64], index: 1, kind: input, shape index: {}]
  %s2 = inlined_call_operand.vmem [shape: f32[1,64], index: 2, kind: input, shape index: {}]
  %s3 = inlined_call_operand.vmem [shape: bf16[128,64], index: 3, kind: output, shape index: {}]
  %s4 = sld [smem:[#allocation0]]
  $region30: #{cspdarknet_tiny_forward.17} parent=0
    _
  %s6 = ssub.s32 1, %s4
  %s7 = scalar_select 0, %s6, %s4
  // Predicated region
  $region2: #{cspdarknet_tiny_forward.17} parent=0 // pred_check
    _
  $region3: #{cspdarknet_tiny_forward.17} parent=0 // pred_check_branch
    %9 = sbr.rel (0) target = $region5
  $region4: #{cspdarknet_tiny_forward.17} parent=0 // pred_region
    _
  $region5: #{cspdarknet_tiny_forward.17} parent=0 // pred_fallthru
    _
  // Predicated region
  $region6: #{cspdarknet_tiny_forward.17} parent=0 // pred_check
    _
  $region7: #{cspdarknet_tiny_forward.17} parent=0 // pred_check_branch
    %11 = sbr.rel (0) target = $region9
  $region8: #{cspdarknet_tiny_forward.17} parent=0 // pred_region
    _
  $region9: #{cspdarknet_tiny_forward.17} parent=0 // pred_fallthru
    _
  // Predicated region
  $region10: #{cspdarknet_tiny_forward.17} parent=0 // pred_check
    _
  $region11: #{cspdarknet_tiny_forward.17} parent=0 // pred_check_branch
    %13 = sbr.rel (0) target = $region13
  $region12: #{cspdarknet_tiny_forward.17} parent=0 // pred_region
    _
  $region13: #{cspdarknet_tiny_forward.17} parent=0 // pred_fallthru
    _
  %p15 = scmp.eq.s32.totalorder 0, 0
  // Predicated region
  $region14: #{cspdarknet_tiny_forward.17} parent=0 // pred_check
    %p16 = pneg %p15
  $region15: #{cspdarknet_tiny_forward.17} parent=0 // pred_check_branch
    %18 = sbr.rel (%p16) target = $region17
  $region16: #{cspdarknet_tiny_forward.17} parent=0 // pred_region
    %vm19 = vcmask 523264
    %20 = vst.msk [vmem:[#allocation2] sm:$0xff] %vm19, 0.0
    %21 = vst.msk [vmem:[#allocation2 + $0x8] sm:$0xff] %vm19, 0.0
    %22 = vst.msk [vmem:[#allocation2 + $0x10] sm:$0xff] %vm19, 0.0
    %23 = vst.msk [vmem:[#allocation2 + $0x18] sm:$0xff] %vm19, 0.0
    %24 = vst.msk [vmem:[#allocation2 + $0x20] sm:$0xff] %vm19, 0.0
    %25 = vst.msk [vmem:[#allocation2 + $0x28] sm:$0xff] %vm19, 0.0
    %26 = vst.msk [vmem:[#allocation2 + $0x30] sm:$0xff] %vm19, 0.0
    %27 = vst.msk [vmem:[#allocation2 + $0x38] sm:$0xff] %vm19, 0.0
    %28 = vst.msk [vmem:[#allocation2 + $0x40] sm:$0xff] %vm19, 0.0
    %29 = vst.msk [vmem:[#allocation2 + $0x48] sm:$0xff] %vm19, 0.0
    %30 = vst.msk [vmem:[#allocation2 + $0x50] sm:$0xff] %vm19, 0.0
    %31 = vst.msk [vmem:[#allocation2 + $0x58] sm:$0xff] %vm19, 0.0
    %32 = vst.msk [vmem:[#allocation2 + $0x60] sm:$0xff] %vm19, 0.0
    %33 = vst.msk [vmem:[#allocation2 + $0x68] sm:$0xff] %vm19, 0.0
    %34 = vst.msk [vmem:[#allocation2 + $0x70] sm:$0xff] %vm19, 0.0
    %35 = vst.msk [vmem:[#allocation2 + $0x78] sm:$0xff] %vm19, 0.0
  $region17: #{cspdarknet_tiny_forward.17} parent=0 // pred_fallthru
    _
  %v36 = vld [vmem:[#allocation2] sm:$0xff]
  %v37 = vld [vmem:[#allocation2 + $0x8] sm:$0xff]
  %v38 = vld [vmem:[#allocation2 + $0x10] sm:$0xff]
  %v39 = vld [vmem:[#allocation2 + $0x18] sm:$0xff]
  %v40 = vld [vmem:[#allocation2 + $0x20] sm:$0xff]
  %v41 = vld [vmem:[#allocation2 + $0x28] sm:$0xff]
  %v42 = vld [vmem:[#allocation2 + $0x30] sm:$0xff]
  %v43 = vld [vmem:[#allocation2 + $0x38] sm:$0xff]
  %v44 = vld [vmem:[#allocation2 + $0x40] sm:$0xff]
  %v45 = vld [vmem:[#allocation2 + $0x48] sm:$0xff]
  %v46 = vld [vmem:[#allocation2 + $0x50] sm:$0xff]
  %v47 = vld [vmem:[#allocation2 + $0x58] sm:$0xff]
  %v48 = vld [vmem:[#allocation2 + $0x60] sm:$0xff]
  %v49 = vld [vmem:[#allocation2 + $0x68] sm:$0xff]
  %v50 = vld [vmem:[#allocation2 + $0x70] sm:$0xff]
  %v51 = vld [vmem:[#allocation2 + $0x78] sm:$0xff]
  %v52 = vld [vmem:[%s0] sm:$0xff]
  %v53 = vld [vmem:[%s0 + $0x8] sm:$0xf]
  %v54 = vld [vmem:[%s0 + $0xc] sm:$0xff]
  %v55 = vld [vmem:[%s0 + $0x14] sm:$0xf]
  %v56 = vld [vmem:[%s0 + $0x18] sm:$0xff]
  %v57 = vld [vmem:[%s0 + $0x20] sm:$0xf]
  %v58 = vld [vmem:[%s0 + $0x24] sm:$0xff]
  %v59 = vld [vmem:[%s0 + $0x2c] sm:$0xf]
  %v60 = vld [vmem:[%s0 + $0x30] sm:$0xff]
  %v61 = vld [vmem:[%s0 + $0x38] sm:$0xf]
  %v62 = vld [vmem:[%s0 + $0x3c] sm:$0xff]
  %v63 = vld [vmem:[%s0 + $0x44] sm:$0xf]
  %v64 = vld [vmem:[%s0 + $0x48] sm:$0xff]
  %v65 = vld [vmem:[%s0 + $0x50] sm:$0xf]
  %v66 = vld [vmem:[%s0 + $0x54] sm:$0xff]
  %v67 = vld [vmem:[%s0 + $0x5c] sm:$0xf]
  %v68 = vld [vmem:[%s0 + $0x60] sm:$0xff]
  %v69 = vld [vmem:[%s0 + $0x68] sm:$0xf]
  %v70 = vld [vmem:[%s0 + $0x6c] sm:$0xff]
  %v71 = vld [vmem:[%s0 + $0x74] sm:$0xf]
  %v72 = vld [vmem:[%s0 + $0x78] sm:$0xff]
  %v73 = vld [vmem:[%s0 + $0x80] sm:$0xf]
  %v74 = vld [vmem:[%s0 + $0x84] sm:$0xff]
  %v75 = vld [vmem:[%s0 + $0x8c] sm:$0xf]
  %v76 = vld [vmem:[%s0 + $0x90] sm:$0xff]
  %v77 = vld [vmem:[%s0 + $0x98] sm:$0xf]
  %v78 = vld [vmem:[%s0 + $0x9c] sm:$0xff]
  %v79 = vld [vmem:[%s0 + $0xa4] sm:$0xf]
  %v80 = vld [vmem:[%s0 + $0xa8] sm:$0xff]
  %v81 = vld [vmem:[%s0 + $0xb0] sm:$0xf]
  %v82 = vld [vmem:[%s0 + $0xb4] sm:$0xff]
  %v83 = vld [vmem:[%s0 + $0xbc] sm:$0xf]
  %v84 = vld [vmem:[%s1] sm:$0xf]
  %v85 = vld [vmem:[%s1 + $0x4] sm:$0xf]
  %v86 = vld [vmem:[%s1 + $0x8] sm:$0xf]
  %v87 = vld [vmem:[%s1 + $0xc] sm:$0xf]
  %v88 = vld [vmem:[%s1 + $0x10] sm:$0xf]
  %v89 = vld [vmem:[%s1 + $0x14] sm:$0xf]
  %v90 = vld [vmem:[%s1 + $0x18] sm:$0xf]
  %v91 = vld [vmem:[%s1 + $0x1c] sm:$0xf]
  %v92 = vld [vmem:[%s1 + $0x20] sm:$0xf]
  %v93 = vld [vmem:[%s1 + $0x24] sm:$0xf]
  %v94 = vld [vmem:[%s1 + $0x28] sm:$0xf]
  %v95 = vld [vmem:[%s1 + $0x2c] sm:$0xf]
  %v96 = vld [vmem:[%s1 + $0x30] sm:$0xf]
  %v97 = vld [vmem:[%s1 + $0x34] sm:$0xf]
  %v98 = vld [vmem:[%s1 + $0x38] sm:$0xf]
  %v99 = vld [vmem:[%s1 + $0x3c] sm:$0xf]
  %v100 = vld [vmem:[%s1 + $0x40] sm:$0xf]
  %v101 = vld [vmem:[%s1 + $0x44] sm:$0xf]
  %v102 = vld [vmem:[%s1 + $0x48] sm:$0xf]
  %v103 = vld [vmem:[%s1 + $0x4c] sm:$0xf]
  %v104 = vld [vmem:[%s1 + $0x50] sm:$0xf]
  %v105 = vld [vmem:[%s1 + $0x54] sm:$0xf]
  %v106 = vld [vmem:[%s1 + $0x58] sm:$0xf]
  %v107 = vld [vmem:[%s1 + $0x5c] sm:$0xf]
  %v108 = vld [vmem:[%s1 + $0x60] sm:$0xf]
  %v109 = vld [vmem:[%s1 + $0x64] sm:$0xf]
  %v110 = vld [vmem:[%s1 + $0x68] sm:$0xf]
  %v111 = vld [vmem:[%s1 + $0x6c] sm:$0xf]
  %v112 = vld [vmem:[%s1 + $0x70] sm:$0xf]
  %v113 = vld [vmem:[%s1 + $0x74] sm:$0xf]
  %v114 = vld [vmem:[%s1 + $0x78] sm:$0xf]
  %v115 = vld [vmem:[%s1 + $0x7c] sm:$0xf]
  %v116 = vld [vmem:[%s1 + $0x80] sm:$0xf]
  %v117 = vld [vmem:[%s1 + $0x84] sm:$0xf]
  %v118 = vld [vmem:[%s1 + $0x88] sm:$0xf]
  %v119 = vld [vmem:[%s1 + $0x8c] sm:$0xf]
  %v120 = vld [vmem:[%s1 + $0x90] sm:$0xf]
  %v121 = vld [vmem:[%s1 + $0x94] sm:$0xf]
  %v122 = vld [vmem:[%s1 + $0x98] sm:$0xf]
  %v123 = vld [vmem:[%s1 + $0x9c] sm:$0xf]
  %v124 = vld [vmem:[%s1 + $0xa0] sm:$0xf]
  %v125 = vld [vmem:[%s1 + $0xa4] sm:$0xf]
  %v126 = vld [vmem:[%s1 + $0xa8] sm:$0xf]
  %v127 = vld [vmem:[%s1 + $0xac] sm:$0xf]
  %v128 = vld [vmem:[%s1 + $0xb0] sm:$0xf]
  %v129 = vld [vmem:[%s1 + $0xb4] sm:$0xf]
  %v130 = vld [vmem:[%s1 + $0xb8] sm:$0xf]
  %v131 = vld [vmem:[%s1 + $0xbc] sm:$0xf]
  %v164 = vunpack.c.l.b16 %v52
  %v165 = vunpack.c.h.b16 %v52
  %v166 = vunpack.c.l.b16 %v53
  %v167 = vunpack.c.l.b16 %v54
  %v168 = vunpack.c.h.b16 %v54
  %v169 = vunpack.c.l.b16 %v55
  %v170 = vunpack.c.l.b16 %v56
  %v171 = vunpack.c.h.b16 %v56
  %v172 = vunpack.c.l.b16 %v57
  %v173 = vunpack.c.l.b16 %v58
  %v174 = vunpack.c.h.b16 %v58
  %v175 = vunpack.c.l.b16 %v59
  %v176 = vunpack.c.l.b16 %v60
  %v177 = vunpack.c.h.b16 %v60
  %v178 = vunpack.c.l.b16 %v61
  %v179 = vunpack.c.l.b16 %v62
  %v180 = vunpack.c.h.b16 %v62
  %v181 = vunpack.c.l.b16 %v63
  %v182 = vunpack.c.l.b16 %v64
  %v183 = vunpack.c.h.b16 %v64
  %v184 = vunpack.c.l.b16 %v65
  %v185 = vunpack.c.l.b16 %v66
  %v186 = vunpack.c.h.b16 %v66
  %v187 = vunpack.c.l.b16 %v67
  %v188 = vunpack.c.l.b16 %v68
  %v189 = vunpack.c.h.b16 %v68
  %v190 = vunpack.c.l.b16 %v69
  %v191 = vunpack.c.l.b16 %v70
  %v192 = vunpack.c.h.b16 %v70
  %v193 = vunpack.c.l.b16 %v71
  %v194 = vunpack.c.l.b16 %v72
  %v195 = vunpack.c.h.b16 %v72
  %v196 = vunpack.c.l.b16 %v73
  %v197 = vunpack.c.l.b16 %v74
  %v198 = vunpack.c.h.b16 %v74
  %v199 = vunpack.c.l.b16 %v75
  %v200 = vunpack.c.l.b16 %v76
  %v201 = vunpack.c.h.b16 %v76
  %v202 = vunpack.c.l.b16 %v77
  %v203 = vunpack.c.l.b16 %v78
  %v204 = vunpack.c.h.b16 %v78
  %v205 = vunpack.c.l.b16 %v79
  %v206 = vunpack.c.l.b16 %v80
  %v207 = vunpack.c.h.b16 %v80
  %v208 = vunpack.c.l.b16 %v81
  %v209 = vunpack.c.l.b16 %v82
  %v210 = vunpack.c.h.b16 %v82
  %v211 = vunpack.c.l.b16 %v83
  %v212 = vpack.c.b16 %v167, %v164
  %v213 = vpack.c.b16 %v168, %v165
  %v214 = vpack.c.b16 %v169, %v166
  %v215 = vpack.c.b16 %v173, %v170
  %v216 = vpack.c.b16 %v174, %v171
  %v217 = vpack.c.b16 %v175, %v172
  %v218 = vpack.c.b16 %v179, %v176
  %v219 = vpack.c.b16 %v180, %v177
  %v220 = vpack.c.b16 %v181, %v178
  %v221 = vpack.c.b16 %v185, %v182
  %v222 = vpack.c.b16 %v186, %v183
  %v223 = vpack.c.b16 %v187, %v184
  %v224 = vpack.c.b16 %v191, %v188
  %v225 = vpack.c.b16 %v192, %v189
  %v226 = vpack.c.b16 %v193, %v190
  %v227 = vpack.c.b16 %v197, %v194
  %v228 = vpack.c.b16 %v198, %v195
  %v229 = vpack.c.b16 %v199, %v196
  %v230 = vpack.c.b16 %v203, %v200
  %v231 = vpack.c.b16 %v204, %v201
  %v232 = vpack.c.b16 %v205, %v202
  %v233 = vpack.c.b16 %v209, %v206
  %v234 = vpack.c.b16 %v210, %v207
  %v235 = vpack.c.b16 %v211, %v208
  %v308 = vunpack.c.l.b16 %v84
  %v309 = vunpack.c.l.b16 %v85
  %v310 = vunpack.c.l.b16 %v86
  %v311 = vunpack.c.l.b16 %v87
  %v312 = vunpack.c.l.b16 %v88
  %v313 = vunpack.c.l.b16 %v89
  %v314 = vunpack.c.l.b16 %v90
  %v315 = vunpack.c.l.b16 %v91
  %v316 = vunpack.c.l.b16 %v92
  %v317 = vunpack.c.l.b16 %v93
  %v318 = vunpack.c.l.b16 %v94
  %v319 = vunpack.c.l.b16 %v95
  %v320 = vunpack.c.l.b16 %v96
  %v321 = vunpack.c.l.b16 %v97
  %v322 = vunpack.c.l.b16 %v98
  %v323 = vunpack.c.l.b16 %v99
  %v324 = vunpack.c.l.b16 %v100
  %v325 = vunpack.c.l.b16 %v101
  %v326 = vunpack.c.l.b16 %v102
  %v327 = vunpack.c.l.b16 %v103
  %v328 = vunpack.c.l.b16 %v104
  %v329 = vunpack.c.l.b16 %v105
  %v330 = vunpack.c.l.b16 %v106
  %v331 = vunpack.c.l.b16 %v107
  %v332 = vunpack.c.l.b16 %v108
  %v333 = vunpack.c.l.b16 %v109
  %v334 = vunpack.c.l.b16 %v110
  %v335 = vunpack.c.l.b16 %v111
  %v336 = vunpack.c.l.b16 %v112
  %v337 = vunpack.c.l.b16 %v113
  %v338 = vunpack.c.l.b16 %v114
  %v339 = vunpack.c.l.b16 %v115
  %v340 = vunpack.c.l.b16 %v116
  %v341 = vunpack.c.l.b16 %v117
  %v342 = vunpack.c.l.b16 %v118
  %v343 = vunpack.c.l.b16 %v119
  %v344 = vunpack.c.l.b16 %v120
  %v345 = vunpack.c.l.b16 %v121
  %v346 = vunpack.c.l.b16 %v122
  %v347 = vunpack.c.l.b16 %v123
  %v348 = vunpack.c.l.b16 %v124
  %v349 = vunpack.c.l.b16 %v125
  %v350 = vunpack.c.l.b16 %v126
  %v351 = vunpack.c.l.b16 %v127
  %v352 = vunpack.c.l.b16 %v128
  %v353 = vunpack.c.l.b16 %v129
  %v354 = vunpack.c.l.b16 %v130
  %v355 = vunpack.c.l.b16 %v131
  %v356 = vpack.c.b16 %v309, %v308
  %v357 = vpack.c.b16 %v311, %v310
  %v358 = vpack.c.b16 %v313, %v312
  %v359 = vpack.c.b16 %v315, %v314
  %v360 = vpack.c.b16 %v317, %v316
  %v361 = vpack.c.b16 %v319, %v318
  %v362 = vpack.c.b16 %v321, %v320
  %v363 = vpack.c.b16 %v323, %v322
  %v364 = vpack.c.b16 %v325, %v324
  %v365 = vpack.c.b16 %v327, %v326
  %v366 = vpack.c.b16 %v329, %v328
  %v367 = vpack.c.b16 %v331, %v330
  %v368 = vpack.c.b16 %v333, %v332
  %v369 = vpack.c.b16 %v335, %v334
  %v370 = vpack.c.b16 %v337, %v336
  %v371 = vpack.c.b16 %v339, %v338
  %v372 = vpack.c.b16 %v341, %v340
  %v373 = vpack.c.b16 %v343, %v342
  %v374 = vpack.c.b16 %v345, %v344
  %v375 = vpack.c.b16 %v347, %v346
  %v376 = vpack.c.b16 %v349, %v348
  %v377 = vpack.c.b16 %v351, %v350
  %v378 = vpack.c.b16 %v353, %v352
  %v379 = vpack.c.b16 %v355, %v354
  %404 = vmatprep.subr.bf16.mxu0 0
  %405 = vmatpush1.bf16.msra.mxu0 %v356
  %406 = vmatprep.subr.bf16.mxu0 0
  %407 = vmatpush1.bf16.msra.mxu0 %v357
  %408 = vmatprep.subr.bf16.mxu0 0
  %409 = vmatpush1.bf16.msra.mxu0 %v358
  %410 = vmatprep.subr.bf16.mxu0 0
  %411 = vmatpush1.bf16.msra.mxu0 %v359
  %412 = vmatprep.subr.bf16.mxu0 0
  %413 = vmatpush1.bf16.msra.mxu0 %v360
  %414 = vmatprep.subr.bf16.mxu0 0
  %415 = vmatpush1.bf16.msra.mxu0 %v361
  %416 = vmatprep.subr.bf16.mxu0 0
  %417 = vmatpush1.bf16.msra.mxu0 %v362
  %418 = vmatprep.subr.bf16.mxu0 0
  %419 = vmatpush1.bf16.msra.mxu0 %v363
  %420 = vmatprep.subr.bf16.mxu0 0
  %421 = vmatpush1.bf16.msra.mxu0 %v364
  %422 = vmatprep.subr.bf16.mxu0 0
  %423 = vmatpush1.bf16.msra.mxu0 %v365
  %424 = vmatprep.subr.bf16.mxu0 0
  %425 = vmatpush1.bf16.msra.mxu0 %v366
  %426 = vmatprep.subr.bf16.mxu0 0
  %427 = vmatpush1.bf16.msra.mxu0 %v367
  %428 = vmatprep.subr.bf16.mxu0 0
  %429 = vmatpush1.bf16.msra.mxu0 %v368
  %430 = vmatprep.subr.bf16.mxu0 0
  %431 = vmatpush1.bf16.msra.mxu0 %v369
  %432 = vmatprep.subr.bf16.mxu0 0
  %433 = vmatpush1.bf16.msra.mxu0 %v370
  %434 = vmatprep.subr.bf16.mxu0 0
  %435 = vmatpush1.bf16.msra.mxu0 %v371
  %436 = vmatprep.mubr.bf16.mxu0 %v213
  %437 = vmatmul.mubr.bf16.gmra.mrb[0].mxu0 %v212
  %v438 = vpop.f32.mrb[0].mxu0
  %v439 = vadd.f32 0.0, %v438
  %v440 = vpop.f32.mrb[0].mxu0
  %v441 = vpop.f32.mrb[0].mxu0
  %v442 = vadd.f32 0.0, %v441
  %v443 = vpop.f32.mrb[0].mxu0
  %444 = vmatprep.mubr.bf16.mxu0 %v216
  %445 = vmatmul.mubr.bf16.gmra.mrb[0].mxu0 %v215
  %v446 = vpop.f32.mrb[0].mxu0
  %v447 = vadd.f32 0.0, %v446
  %v448 = vpop.f32.mrb[0].mxu0
  %v449 = vpop.f32.mrb[0].mxu0
  %v450 = vadd.f32 0.0, %v449
  %v451 = vpop.f32.mrb[0].mxu0
  %452 = vmatprep.mubr.bf16.mxu0 %v219
  %453 = vmatmul.mubr.bf16.gmra.mrb[0].mxu0 %v218
  %v454 = vpop.f32.mrb[0].mxu0
  %v455 = vadd.f32 0.0, %v454
  %v456 = vpop.f32.mrb[0].mxu0
  %v457 = vpop.f32.mrb[0].mxu0
  %v458 = vadd.f32 0.0, %v457
  %v459 = vpop.f32.mrb[0].mxu0
  %460 = vmatprep.mubr.bf16.mxu0 %v222
  %461 = vmatmul.mubr.bf16.gmra.mrb[0].mxu0 %v221
  %v462 = vpop.f32.mrb[0].mxu0
  %v463 = vadd.f32 0.0, %v462
  %v464 = vpop.f32.mrb[0].mxu0
  %v465 = vpop.f32.mrb[0].mxu0
  %v466 = vadd.f32 0.0, %v465
  %v467 = vpop.f32.mrb[0].mxu0
  %468 = vmatprep.mubr.bf16.mxu0 %v225
  %469 = vmatmul.mubr.bf16.gmra.mrb[0].mxu0 %v224
  %v470 = vpop.f32.mrb[0].mxu0
  %v471 = vadd.f32 0.0, %v470
  %v472 = vpop.f32.mrb[0].mxu0
  %v473 = vpop.f32.mrb[0].mxu0
  %v474 = vadd.f32 0.0, %v473
  %v475 = vpop.f32.mrb[0].mxu0
  %476 = vmatprep.mubr.bf16.mxu0 %v228
  %477 = vmatmul.mubr.bf16.gmra.mrb[0].mxu0 %v227
  %v478 = vpop.f32.mrb[0].mxu0
  %v479 = vadd.f32 0.0, %v478
  %v480 = vpop.f32.mrb[0].mxu0
  %v481 = vpop.f32.mrb[0].mxu0
  %v482 = vadd.f32 0.0, %v481
  %v483 = vpop.f32.mrb[0].mxu0
  %484 = vmatprep.mubr.bf16.mxu0 %v231
  %485 = vmatmul.mubr.bf16.gmra.mrb[0].mxu0 %v230
  %v486 = vpop.f32.mrb[0].mxu0
  %v487 = vadd.f32 0.0, %v486
  %v488 = vpop.f32.mrb[0].mxu0
  %v489 = vpop.f32.mrb[0].mxu0
  %v490 = vadd.f32 0.0, %v489
  %v491 = vpop.f32.mrb[0].mxu0
  %492 = vmatprep.mubr.bf16.mxu0 %v234
  %493 = vmatmul.mubr.bf16.gmra.mrb[0].mxu0 %v233
  %v494 = vpop.f32.mrb[0].mxu0
  %v495 = vadd.f32 0.0, %v494
  %v496 = vpop.f32.mrb[0].mxu0
  %v497 = vpop.f32.mrb[0].mxu0
  %v498 = vadd.f32 0.0, %v497
  %v499 = vpop.f32.mrb[0].mxu0
  %500 = vdwg.mxu0
  %501 = vmatprep.subr.bf16.mxu0 0
  %502 = vmatpush1.bf16.msra.mxu0 %v372
  %503 = vmatprep.subr.bf16.mxu0 0
  %504 = vmatpush1.bf16.msra.mxu0 %v373
  %505 = vmatprep.subr.bf16.mxu0 0
  %506 = vmatpush1.bf16.msra.mxu0 %v374
  %507 = vmatprep.subr.bf16.mxu0 0
  %508 = vmatpush1.bf16.msra.mxu0 %v375
  %509 = vmatprep.subr.bf16.mxu0 0
  %510 = vmatpush1.bf16.msra.mxu0 %v376
  %511 = vmatprep.subr.bf16.mxu0 0
  %512 = vmatpush1.bf16.msra.mxu0 %v377
  %513 = vmatprep.subr.bf16.mxu0 0
  %514 = vmatpush1.bf16.msra.mxu0 %v378
  %515 = vmatprep.subr.bf16.mxu0 0
  %516 = vmatpush1.bf16.msra.mxu0 %v379
  %517 = vmatprep.subr.bf16.mxu0 0
  %518 = vmatpush1.bf16.msra.mxu0 0
  %519 = vmatprep.subr.bf16.mxu0 0
  %520 = vmatpush1.bf16.msra.mxu0 0
  %521 = vmatprep.subr.bf16.mxu0 0
  %522 = vmatpush1.bf16.msra.mxu0 0
  %523 = vmatprep.subr.bf16.mxu0 0
  %524 = vmatpush1.bf16.msra.mxu0 0
  %525 = vmatprep.subr.bf16.mxu0 0
  %526 = vmatpush1.bf16.msra.mxu0 0
  %527 = vmatprep.subr.bf16.mxu0 0
  %528 = vmatpush1.bf16.msra.mxu0 0
  %529 = vmatprep.subr.bf16.mxu0 0
  %530 = vmatpush1.bf16.msra.mxu0 0
  %531 = vmatprep.subr.bf16.mxu0 0
  %532 = vmatpush1.bf16.msra.mxu0 0
  %533 = vmatprep.mubr.bf16.mxu0 0
  %534 = vmatmul.mubr.bf16.gmra.mrb[0].mxu0 %v214
  %v535 = vpop.f32.mrb[0].mxu0
  %v536 = vadd.f32 %v439, %v535
  %v537 = vpop.f32.mrb[0].mxu0
  %v538 = vpop.f32.mrb[0].mxu0
  %v539 = vadd.f32 %v442, %v538
  %v540 = vpop.f32.mrb[0].mxu0
  %541 = vmatprep.mubr.bf16.mxu0 0
  %542 = vmatmul.mubr.bf16.gmra.mrb[0].mxu0 %v217
  %v543 = vpop.f32.mrb[0].mxu0
  %v544 = vadd.f32 %v447, %v543
  %v545 = vpop.f32.mrb[0].mxu0
  %v546 = vpop.f32.mrb[0].mxu0
  %v547 = vadd.f32 %v450, %v546
  %v548 = vpop.f32.mrb[0].mxu0
  %549 = vmatprep.mubr.bf16.mxu0 0
  %550 = vmatmul.mubr.bf16.gmra.mrb[0].mxu0 %v220
  %v551 = vpop.f32.mrb[0].mxu0
  %v552 = vadd.f32 %v455, %v551
  %v553 = vpop.f32.mrb[0].mxu0
  %v554 = vpop.f32.mrb[0].mxu0
  %v555 = vadd.f32 %v458, %v554
  %v556 = vpop.f32.mrb[0].mxu0
  %557 = vmatprep.mubr.bf16.mxu0 0
  %558 = vmatmul.mubr.bf16.gmra.mrb[0].mxu0 %v223
  %v559 = vpop.f32.mrb[0].mxu0
  %v560 = vadd.f32 %v463, %v559
  %v561 = vpop.f32.mrb[0].mxu0
  %v562 = vpop.f32.mrb[0].mxu0
  %v563 = vadd.f32 %v466, %v562
  %v564 = vpop.f32.mrb[0].mxu0
  %565 = vmatprep.mubr.bf16.mxu0 0
  %566 = vmatmul.mubr.bf16.gmra.mrb[0].mxu0 %v226
  %v567 = vpop.f32.mrb[0].mxu0
  %v568 = vadd.f32 %v471, %v567
  %v569 = vpop.f32.mrb[0].mxu0
  %v570 = vpop.f32.mrb[0].mxu0
  %v571 = vadd.f32 %v474, %v570
  %v572 = vpop.f32.mrb[0].mxu0
  %573 = vmatprep.mubr.bf16.mxu0 0
  %574 = vmatmul.mubr.bf16.gmra.mrb[0].mxu0 %v229
  %v575 = vpop.f32.mrb[0].mxu0
  %v576 = vadd.f32 %v479, %v575
  %v577 = vpop.f32.mrb[0].mxu0
  %v578 = vpop.f32.mrb[0].mxu0
  %v579 = vadd.f32 %v482, %v578
  %v580 = vpop.f32.mrb[0].mxu0
  %581 = vmatprep.mubr.bf16.mxu0 0
  %582 = vmatmul.mubr.bf16.gmra.mrb[0].mxu0 %v232
  %v583 = vpop.f32.mrb[0].mxu0
  %v584 = vadd.f32 %v487, %v583
  %v585 = vpop.f32.mrb[0].mxu0
  %v586 = vpop.f32.mrb[0].mxu0
  %v587 = vadd.f32 %v490, %v586
  %v588 = vpop.f32.mrb[0].mxu0
  %589 = vmatprep.mubr.bf16.mxu0 0
  %590 = vmatmul.mubr.bf16.gmra.mrb[0].mxu0 %v235
  %v591 = vpop.f32.mrb[0].mxu0
  %v592 = vadd.f32 %v495, %v591
  %v593 = vpop.f32.mrb[0].mxu0
  %v594 = vpop.f32.mrb[0].mxu0
  %v595 = vadd.f32 %v498, %v594
  %v596 = vpop.f32.mrb[0].mxu0
  %597 = vdwg.mxu0
  %v598 = vadd.f32 %v36, %v536
  %v599 = vadd.f32 %v37, %v539
  %v600 = vadd.f32 %v38, %v544
  %v601 = vadd.f32 %v39, %v547
  %v602 = vadd.f32 %v40, %v552
  %v603 = vadd.f32 %v41, %v555
  %v604 = vadd.f32 %v42, %v560
  %v605 = vadd.f32 %v43, %v563
  %v606 = vadd.f32 %v44, %v568
  %v607 = vadd.f32 %v45, %v571
  %v608 = vadd.f32 %v46, %v576
  %v609 = vadd.f32 %v47, %v579
  %v610 = vadd.f32 %v48, %v584
  %v611 = vadd.f32 %v49, %v587
  %v612 = vadd.f32 %v50, %v592
  %v613 = vadd.f32 %v51, %v595
  %vm614 = vcmask 523264
  %615 = vst.msk [vmem:[#allocation2] sm:$0xff] %vm614, %v598
  %616 = vst.msk [vmem:[#allocation2 + $0x8] sm:$0xff] %vm614, %v599
  %617 = vst.msk [vmem:[#allocation2 + $0x10] sm:$0xff] %vm614, %v600
  %618 = vst.msk [vmem:[#allocation2 + $0x18] sm:$0xff] %vm614, %v601
  %619 = vst.msk [vmem:[#allocation2 + $0x20] sm:$0xff] %vm614, %v602
  %620 = vst.msk [vmem:[#allocation2 + $0x28] sm:$0xff] %vm614, %v603
  %621 = vst.msk [vmem:[#allocation2 + $0x30] sm:$0xff] %vm614, %v604
  %622 = vst.msk [vmem:[#allocation2 + $0x38] sm:$0xff] %vm614, %v605
  %623 = vst.msk [vmem:[#allocation2 + $0x40] sm:$0xff] %vm614, %v606
  %624 = vst.msk [vmem:[#allocation2 + $0x48] sm:$0xff] %vm614, %v607
  %625 = vst.msk [vmem:[#allocation2 + $0x50] sm:$0xff] %vm614, %v608
  %626 = vst.msk [vmem:[#allocation2 + $0x58] sm:$0xff] %vm614, %v609
  %627 = vst.msk [vmem:[#allocation2 + $0x60] sm:$0xff] %vm614, %v610
  %628 = vst.msk [vmem:[#allocation2 + $0x68] sm:$0xff] %vm614, %v611
  %629 = vst.msk [vmem:[#allocation2 + $0x70] sm:$0xff] %vm614, %v612
  %630 = vst.msk [vmem:[#allocation2 + $0x78] sm:$0xff] %vm614, %v613
  // Predicated region
  $region18: #{cspdarknet_tiny_forward.17} parent=0 // pred_check
    %p631 = pneg %p15
  $region19: #{cspdarknet_tiny_forward.17} parent=0 // pred_check_branch
    %633 = sbr.rel (%p631) target = $region21
  $region20: #{cspdarknet_tiny_forward.17} parent=0 // pred_region
    %v634 = vld [vmem:[#allocation2] sm:$0xff]
    %v635 = vld [vmem:[#allocation2 + $0x8] sm:$0xff]
    %v636 = vld [vmem:[#allocation2 + $0x10] sm:$0xff]
    %v637 = vld [vmem:[#allocation2 + $0x18] sm:$0xff]
    %v638 = vld [vmem:[#allocation2 + $0x20] sm:$0xff]
    %v639 = vld [vmem:[#allocation2 + $0x28] sm:$0xff]
    %v640 = vld [vmem:[#allocation2 + $0x30] sm:$0xff]
    %v641 = vld [vmem:[#allocation2 + $0x38] sm:$0xff]
    %v642 = vld [vmem:[#allocation2 + $0x40] sm:$0xff]
    %v643 = vld [vmem:[#allocation2 + $0x48] sm:$0xff]
    %v644 = vld [vmem:[#allocation2 + $0x50] sm:$0xff]
    %v645 = vld [vmem:[#allocation2 + $0x58] sm:$0xff]
    %v646 = vld [vmem:[#allocation2 + $0x60] sm:$0xff]
    %v647 = vld [vmem:[#allocation2 + $0x68] sm:$0xff]
    %v648 = vld [vmem:[#allocation2 + $0x70] sm:$0xff]
    %v649 = vld [vmem:[#allocation2 + $0x78] sm:$0xff]
    %v650 = vld [vmem:[%s2] sm:$0x1]
    %v652 = vlaneseq
    %v653 = vshrl.u32 %v652, 7
    %v654 = vsub.s32 0, %v653
    %v655 = vrot.slane %v650, %v654
    %v657 = vadd.f32 %v634, %v655
    %v658 = vadd.f32 %v635, %v655
    %v659 = vadd.f32 %v636, %v655
    %v660 = vadd.f32 %v637, %v655
    %v661 = vadd.f32 %v638, %v655
    %v662 = vadd.f32 %v639, %v655
    %v663 = vadd.f32 %v640, %v655
    %v664 = vadd.f32 %v641, %v655
    %v665 = vadd.f32 %v642, %v655
    %v666 = vadd.f32 %v643, %v655
    %v667 = vadd.f32 %v644, %v655
    %v668 = vadd.f32 %v645, %v655
    %v669 = vadd.f32 %v646, %v655
    %v670 = vadd.f32 %v647, %v655
    %v671 = vadd.f32 %v648, %v655
    %v672 = vadd.f32 %v649, %v655
    %vm673 = vcmp.gt.f32.partialorder %v657, 0.0
    %vm674 = vcmp.gt.f32.partialorder %v658, 0.0
    %vm675 = vcmp.gt.f32.partialorder %v659, 0.0
    %vm676 = vcmp.gt.f32.partialorder %v660, 0.0
    %vm677 = vcmp.gt.f32.partialorder %v661, 0.0
    %vm678 = vcmp.gt.f32.partialorder %v662, 0.0
    %vm679 = vcmp.gt.f32.partialorder %v663, 0.0
    %vm680 = vcmp.gt.f32.partialorder %v664, 0.0
    %vm681 = vcmp.gt.f32.partialorder %v665, 0.0
    %vm682 = vcmp.gt.f32.partialorder %v666, 0.0
    %vm683 = vcmp.gt.f32.partialorder %v667, 0.0
    %vm684 = vcmp.gt.f32.partialorder %v668, 0.0
    %vm685 = vcmp.gt.f32.partialorder %v669, 0.0
    %vm686 = vcmp.gt.f32.partialorder %v670, 0.0
    %vm687 = vcmp.gt.f32.partialorder %v671, 0.0
    %vm688 = vcmp.gt.f32.partialorder %v672, 0.0
    %v689 = vmul.f32 %v657, 0.1
    %v690 = vmul.f32 %v658, 0.1
    %v691 = vmul.f32 %v659, 0.1
    %v692 = vmul.f32 %v660, 0.1
    %v693 = vmul.f32 %v661, 0.1
    %v694 = vmul.f32 %v662, 0.1
    %v695 = vmul.f32 %v663, 0.1
    %v696 = vmul.f32 %v664, 0.1
    %v697 = vmul.f32 %v665, 0.1
    %v698 = vmul.f32 %v666, 0.1
    %v699 = vmul.f32 %v667, 0.1
    %v700 = vmul.f32 %v668, 0.1
    %v701 = vmul.f32 %v669, 0.1
    %v702 = vmul.f32 %v670, 0.1
    %v703 = vmul.f32 %v671, 0.1
    %v704 = vmul.f32 %v672, 0.1
    %v705 = vsel %vm673, %v657, %v689
    %v706 = vsel %vm674, %v658, %v690
    %v707 = vsel %vm675, %v659, %v691
    %v708 = vsel %vm676, %v660, %v692
    %v709 = vsel %vm677, %v661, %v693
    %v710 = vsel %vm678, %v662, %v694
    %v711 = vsel %vm679, %v663, %v695
    %v712 = vsel %vm680, %v664, %v696
    %v713 = vsel %vm681, %v665, %v697
    %v714 = vsel %vm682, %v666, %v698
    %v715 = vsel %vm683, %v667, %v699
    %v716 = vsel %vm684, %v668, %v700
    %v717 = vsel %vm685, %v669, %v701
    %v718 = vsel %vm686, %v670, %v702
    %v719 = vsel %vm687, %v671, %v703
    %v720 = vsel %vm688, %v672, %v704
    %v721 = vpack.c.bf16 %v706, %v705
    %v722 = vpack.c.bf16 %v708, %v707
    %v723 = vpack.c.bf16 %v710, %v709
    %v724 = vpack.c.bf16 %v712, %v711
    %v725 = vpack.c.bf16 %v714, %v713
    %v726 = vpack.c.bf16 %v716, %v715
    %v727 = vpack.c.bf16 %v718, %v717
    %v728 = vpack.c.bf16 %v720, %v719
    %v737 = vunpack.c.l.b16 %v721
    %v738 = vunpack.c.h.b16 %v721
    %v739 = vunpack.c.l.b16 %v722
    %v740 = vunpack.c.h.b16 %v722
    %v741 = vunpack.c.l.b16 %v723
    %v742 = vunpack.c.h.b16 %v723
    %v743 = vunpack.c.l.b16 %v724
    %v744 = vunpack.c.h.b16 %v724
    %v745 = vunpack.c.l.b16 %v725
    %v746 = vunpack.c.h.b16 %v725
    %v747 = vunpack.c.l.b16 %v726
    %v748 = vunpack.c.h.b16 %v726
    %v749 = vunpack.c.l.b16 %v727
    %v750 = vunpack.c.h.b16 %v727
    %v751 = vunpack.c.l.b16 %v728
    %v752 = vunpack.c.h.b16 %v728
    %v753 = vpack.c.b16 %v737, %v737
    %v754 = vpack.c.b16 %v738, %v738
    %v755 = vpack.c.b16 %v739, %v739
    %v756 = vpack.c.b16 %v740, %v740
    %v757 = vpack.c.b16 %v741, %v741
    %v758 = vpack.c.b16 %v742, %v742
    %v759 = vpack.c.b16 %v743, %v743
    %v760 = vpack.c.b16 %v744, %v744
    %v761 = vpack.c.b16 %v745, %v745
    %v762 = vpack.c.b16 %v746, %v746
    %v763 = vpack.c.b16 %v747, %v747
    %v764 = vpack.c.b16 %v748, %v748
    %v765 = vpack.c.b16 %v749, %v749
    %v766 = vpack.c.b16 %v750, %v750
    %v767 = vpack.c.b16 %v751, %v751
    %v768 = vpack.c.b16 %v752, %v752
    %vm785 = vcmask 519168
    %786 = vst.msk [vmem:[%s3] sm:$0xf] %vm785, %v753
    %787 = vst.msk [vmem:[%s3 + $0x4] sm:$0xf] %vm785, %v754
    %788 = vst.msk [vmem:[%s3 + $0x8] sm:$0xf] %vm785, %v755
    %789 = vst.msk [vmem:[%s3 + $0xc] sm:$0xf] %vm785, %v756
    %790 = vst.msk [vmem:[%s3 + $0x10] sm:$0xf] %vm785, %v757
    %791 = vst.msk [vmem:[%s3 + $0x14] sm:$0xf] %vm785, %v758
    %792 = vst.msk [vmem:[%s3 + $0x18] sm:$0xf] %vm785, %v759
    %793 = vst.msk [vmem:[%s3 + $0x1c] sm:$0xf] %vm785, %v760
    %794 = vst.msk [vmem:[%s3 + $0x20] sm:$0xf] %vm785, %v761
    %795 = vst.msk [vmem:[%s3 + $0x24] sm:$0xf] %vm785, %v762
    %796 = vst.msk [vmem:[%s3 + $0x28] sm:$0xf] %vm785, %v763
    %797 = vst.msk [vmem:[%s3 + $0x2c] sm:$0xf] %vm785, %v764
    %798 = vst.msk [vmem:[%s3 + $0x30] sm:$0xf] %vm785, %v765
    %799 = vst.msk [vmem:[%s3 + $0x34] sm:$0xf] %vm785, %v766
    %800 = vst.msk [vmem:[%s3 + $0x38] sm:$0xf] %vm785, %v767
    %801 = vst.msk [vmem:[%s3 + $0x3c] sm:$0xf] %vm785, %v768
  $region21: #{cspdarknet_tiny_forward.17} parent=0 // pred_fallthru
    _
  // Predicated region
  $region22: #{cspdarknet_tiny_forward.17} parent=0 // pred_check
    _
  $region23: #{cspdarknet_tiny_forward.17} parent=0 // pred_check_branch
    %803 = sbr.rel (0) target = $region25
  $region24: #{cspdarknet_tiny_forward.17} parent=0 // pred_region
    _
  $region25: #{cspdarknet_tiny_forward.17} parent=0 // pred_fallthru
    _
  // Predicated region
  $region26: #{cspdarknet_tiny_forward.17} parent=0 // pred_check
    _
  $region27: #{cspdarknet_tiny_forward.17} parent=0 // pred_check_branch
    %805 = sbr.rel (0) target = $region29
  $region28: #{cspdarknet_tiny_forward.17} parent=0 // pred_region
    _
  $region29: #{cspdarknet_tiny_forward.17} parent=0 // pred_fallthru
    _

// kernel: cspdarknet_tiny_forward.18
$region0: #{cspdarknet_tiny_forward.18}
  #allocation0 [shape = 'u32[]', space=smem, size = 0x4, offset = 0x4, fixed_abs, tag = 'smem constant byte address 0x4 - core index']
  #allocation1 [shape = 'u32[144,128]{1,0:T(1,128)}', space=vmem, size = 0x12000, scoped, tag = 'internal scratch']
  #allocation2 [shape = 'f32[128,64]{1,0:T(8,128)}', space=vmem, size = 0x10000, scoped, tag = 'scratch operand']
  %s0 = inlined_call_operand.vmem [shape: bf16[128,640], index: 0, kind: input, shape index: {}]
  %s1 = inlined_call_operand.vmem [shape: bf16[640,64], index: 1, kind: input, shape index: {}]
  %s2 = inlined_call_operand.vmem [shape: f32[1,64], index: 2, kind: input, shape index: {}]
  %s3 = inlined_call_operand.vmem [shape: bf16[128,64], index: 3, kind: output, shape index: {}]
  %s4 = sld [smem:[#allocation0]]
  $region94: #{cspdarknet_tiny_forward.18} parent=0
    _
  %s6 = ssub.s32 1, %s4
  %s7 = scalar_select 0, %s6, %s4
  $region1: #{cspdarknet_tiny_forward.18} parent=0
    #allocation3 [shape = 'u8[65536]{0}', space=vmem, size = 0x10000, scoped, tag = 'input window, operand 0']
    loop: start=0, step=1, limit=7
    $region2: #{cspdarknet_tiny_forward.18} parent=1 // loop_pre_header
      _
    $region3: #{cspdarknet_tiny_forward.18} parent=1 // loop_header
      %s9 = sphi 0, %s13
      %p10 = scmp.ge.s32.totalorder %s9, 7
      %s16 = sphi 0, %s35
      %s17 = sphi 0, %s31
      %s18 = sphi 0, %s27
      %s19 = sphi 0, %s16
      %s20 = sphi 0, %s17
      %s21 = sphi 0, %s18
      %s22 = sphi 0, %s19
      %s23 = sphi 0, %s20
      %s24 = sphi 0, %s21
      %s40 = sphi 0, %s42
      %s43 = sphi 0, %s40
      %s44 = sphi 0, %s43
      %s60 = sphi 0, %s44
      %s68 = sphi 0, %s70
      %s71 = sphi 0, %s68
      %s72 = sphi 0, %s71
      %s88 = sphi 0, %s72
      %s94 = sphi 0, %s96
      %s97 = sphi 0, %s94
      %s98 = sphi 0, %s97
      %s114 = sphi 0, %s98
      %s122 = sphi 0, %s124
      %s125 = sphi 0, %s122
      %s126 = sphi 0, %s125
      %s142 = sphi 0, %s126
    $region4: #{cspdarknet_tiny_forward.18} parent=1 // loop_header_branch
      %12 = sbr.rel (%p10) target = $region8
    $region5: #{cspdarknet_tiny_forward.18} parent=1 // loop_body
      %s14 = ssub.s32 %s9, 1
      %s15 = ssub.s32 %s9, 2
      %s25 = sadd.s32 1, %s18
      %p26 = scmp.ge.s32.totalorder %s25, 5
      %s27 = scalar_select %p26, 0, %s25
      %s28 = sadd.s32 1, %s17
      %s29 = scalar_select %p26, %s28, %s17
      %p30 = scmp.ge.s32.totalorder %s29, 1
      %s31 = scalar_select %p30, 0, %s29
      %s32 = sadd.s32 1, %s16
      %s33 = scalar_select %p30, %s32, %s16
      %p34 = scmp.ge.s32.totalorder %s33, 1
      %s35 = scalar_select %p34, 0, %s33
      %s36 = ssub.s32 %s16, %s35
      %s37 = ssub.s32 %s18, %s27
      %s38 = sor.u32 %s36, %s37
      %p39 = scmp.eq.s32.totalorder %s38, 0
      %s41 = sadd.s32 %s40, 1
      %s42 = scalar_select %p39, %s40, %s41
      %p45 = pneg %p39
      %p46 = scmp.eq.s32.totalorder %s9, 4
      %p47 = por %p45, %p46
      %p48 = scmp.ne.s32.totalorder %s40, %s43
      %p49 = scmp.eq.s32.totalorder %s9, 0
      %p50 = por %p48, %p49
      %p51 = scmp.ne.s32.totalorder %s40, %s43
      %p52 = scmp.eq.s32.totalorder %s14, 4
      %p53 = por %p51, %p52
      %p54 = scmp.ne.s32.totalorder %s43, %s44
      %p55 = scmp.eq.s32.totalorder %s14, 0
      %p56 = por %p54, %p55
      %p57 = scmp.ne.s32.totalorder %s43, %s44
      %p58 = scmp.eq.s32.totalorder %s15, 4
      %p59 = por %p57, %p58
      %p61 = scmp.ne.s32.totalorder %s44, %s60
      %p62 = scmp.eq.s32.totalorder %s15, 0
      %p63 = por %p61, %p62
      %s64 = ssub.s32 %s18, %s27
      %s65 = ssub.s32 %s17, %s31
      %s66 = sor.u32 %s64, %s65
      %p67 = scmp.eq.s32.totalorder %s66, 0
      %s69 = sadd.s32 %s68, 1
      %s70 = scalar_select %p67, %s68, %s69
      %p73 = pneg %p67
      %p74 = scmp.eq.s32.totalorder %s9, 4
      %p75 = por %p73, %p74
      %p76 = scmp.ne.s32.totalorder %s68, %s71
      %p77 = scmp.eq.s32.totalorder %s9, 0
      %p78 = por %p76, %p77
      %p79 = scmp.ne.s32.totalorder %s68, %s71
      %p80 = scmp.eq.s32.totalorder %s14, 4
      %p81 = por %p79, %p80
      %p82 = scmp.ne.s32.totalorder %s71, %s72
      %p83 = scmp.eq.s32.totalorder %s14, 0
      %p84 = por %p82, %p83
      %p85 = scmp.ne.s32.totalorder %s71, %s72
      %p86 = scmp.eq.s32.totalorder %s15, 4
      %p87 = por %p85, %p86
      %p89 = scmp.ne.s32.totalorder %s72, %s88
      %p90 = scmp.eq.s32.totalorder %s15, 0
      %p91 = por %p89, %p90
      %s92 = ssub.s32 %s17, %s31
      %p93 = scmp.eq.s32.totalorder %s92, 0
      %s95 = sadd.s32 %s94, 1
      %s96 = scalar_select %p93, %s94, %s95
      %p99 = pneg %p93
      %p100 = scmp.eq.s32.totalorder %s9, 4
      %p101 = por %p99, %p100
      %p102 = scmp.ne.s32.totalorder %s94, %s97
      %p103 = scmp.eq.s32.totalorder %s9, 0
      %p104 = por %p102, %p103
      %p105 = scmp.ne.s32.totalorder %s94, %s97
      %p106 = scmp.eq.s32.totalorder %s14, 4
      %p107 = por %p105, %p106
      %p108 = scmp.ne.s32.totalorder %s97, %s98
      %p109 = scmp.eq.s32.totalorder %s14, 0
      %p110 = por %p108, %p109
      %p111 = scmp.ne.s32.totalorder %s97, %s98
      %p112 = scmp.eq.s32.totalorder %s15, 4
      %p113 = por %p111, %p112
      %p115 = scmp.ne.s32.totalorder %s98, %s114
      %p116 = scmp.eq.s32.totalorder %s15, 0
      %p117 = por %p115, %p116
      %s118 = ssub.s32 %s16, %s35
      %s119 = ssub.s32 %s17, %s31
      %s120 = sor.u32 %s118, %s119
      %p121 = scmp.eq.s32.totalorder %s120, 0
      %s123 = sadd.s32 %s122, 1
      %s124 = scalar_select %p121, %s122, %s123
      %p127 = pneg %p121
      %p128 = scmp.eq.s32.totalorder %s9, 4
      %p129 = por %p127, %p128
      %p130 = scmp.ne.s32.totalorder %s122, %s125
      %p131 = scmp.eq.s32.totalorder %s9, 0
      %p132 = por %p130, %p131
      %p133 = scmp.ne.s32.totalorder %s122, %s125
      %p134 = scmp.eq.s32.totalorder %s14, 4
      %p135 = por %p133, %p134
      %p136 = scmp.ne.s32.totalorder %s125, %s126
      %p137 = scmp.eq.s32.totalorder %s14, 0
      %p138 = por %p136, %p137
      %p139 = scmp.ne.s32.totalorder %s125, %s126
      %p140 = scmp.eq.s32.totalorder %s15, 4
      %p141 = por %p139, %p140
      %p143 = scmp.ne.s32.totalorder %s126, %s142
      %p144 = scmp.eq.s32.totalorder %s15, 0
      %p145 = por %p143, %p144
      %p146 = scmp.le.s32.totalorder 1, %s9
      %p147 = scmp.lt.s32.totalorder %s9, 6
      %p148 = pnand %p146, %p147
      %p149 = pneg %p148
      // Predicated region
      $region9: #{cspdarknet_tiny_forward.18} parent=5 // pred_check
        _
      $region10: #{cspdarknet_tiny_forward.18} parent=5 // pred_check_branch
        %151 = sbr.rel (%p148) target = $region12
      $region11: #{cspdarknet_tiny_forward.18} parent=5 // pred_region
        %s152 = ssub.s32 %s9, 1
        // Predicated region
        $region13: #{cspdarknet_tiny_forward.18} parent=11 // pred_check
          %p153 = pneg %p110
        $region14: #{cspdarknet_tiny_forward.18} parent=11 // pred_check_branch
          %155 = sbr.rel (%p153) target = $region16
        $region15: #{cspdarknet_tiny_forward.18} parent=11 // pred_region
          %p156 = scmp.lt.s32.totalorder %s20, 0
          %s157 = scalar_select %p156, %s20, 0
          %s158 = scalar_lea.vmem %s2, %s157
        $region16: #{cspdarknet_tiny_forward.18} parent=11 // pred_fallthru
          _
      $region12: #{cspdarknet_tiny_forward.18} parent=5 // pred_fallthru
        _
      %p159 = scmp.lt.s32.totalorder %s9, 5
      // Predicated region
      $region17: #{cspdarknet_tiny_forward.18} parent=5 // pred_check
        %p160 = pneg %p159
      $region18: #{cspdarknet_tiny_forward.18} parent=5 // pred_check_branch
        %162 = sbr.rel (%p160) target = $region20
      $region19: #{cspdarknet_tiny_forward.18} parent=5 // pred_region
        // Predicated region
        $region21: #{cspdarknet_tiny_forward.18} parent=19 // pred_check
          %p163 = pneg %p50
        $region22: #{cspdarknet_tiny_forward.18} parent=19 // pred_check_branch
          %165 = sbr.rel (%p163) target = $region24
        $region23: #{cspdarknet_tiny_forward.18} parent=19 // pred_region
          %s166 = sand.u32 %s40, 1
          %s167 = sand.u32 %s40, 1
          %s168 = smul.addr %s167, 64
          %s169 = scalar_lea.vmem [#allocation3], %s168
          %s170 = smul.u32 16, %s16
          %s171 = smul.addr %s170, 5
          %s172 = sadd.s32 %s18, %s171
          %s173 = smul.addr %s172, 4
          %s174 = scalar_lea.vmem %s0, %s173
          // Predicated region
          $region25: #{cspdarknet_tiny_forward.18} parent=23 // pred_check
            _
          $region26: #{cspdarknet_tiny_forward.18} parent=23 // pred_check_branch
            %176 = sbr.rel (0) target = $region28
          $region27: #{cspdarknet_tiny_forward.18} parent=23 // pred_region
            // Predicated region
            $region29: #{cspdarknet_tiny_forward.18} parent=27 // pred_check
              _
            $region30: #{cspdarknet_tiny_forward.18} parent=27 // pred_check_branch
              %178 = sbr.rel target = $region32
            $region31: #{cspdarknet_tiny_forward.18} parent=27 // pred_region
              // Predicated region
              $region44: #{cspdarknet_tiny_forward.18} parent=31 // pred_check
                _
              $region45: #{cspdarknet_tiny_forward.18} parent=31 // pred_check_branch
                %223 = sbr.rel (0) target = $region47
              $region46: #{cspdarknet_tiny_forward.18} parent=31 // pred_region
                loop: start=0, step=1, limit=1
                $region48: #{cspdarknet_tiny_forward.18} parent=46 // loop_pre_header
                  _
                $region49: #{cspdarknet_tiny_forward.18} parent=46 // loop_header
                  %s225 = sphi 0, %s229
                  %p226 = scmp.ge.s32.totalorder %s225, 1
                  %s230 = sphi %s174, %s174
                  %s231 = sphi %s169, %s169
                $region50: #{cspdarknet_tiny_forward.18} parent=46 // loop_header_branch
                  %228 = sbr.rel (%p226) target = $region54
                $region51: #{cspdarknet_tiny_forward.18} parent=46 // loop_body
                  _
                $region52: #{cspdarknet_tiny_forward.18} parent=46 // loop_footer
                  %s229 = sadd.s32 1, %s225
                $region53: #{cspdarknet_tiny_forward.18} parent=46 // loop_footer_branch
                  %224 = sbr.rel target = $region49
                $region54: #{cspdarknet_tiny_forward.18} parent=46 // loop_exit
                  _
                loop: start=0, step=1, limit=1
                $region55: #{cspdarknet_tiny_forward.18} parent=46 // loop_pre_header
                  _
                $region56: #{cspdarknet_tiny_forward.18} parent=46 // loop_header
                  %s234 = sphi 0, %s238
                  %p235 = scmp.ge.s32.totalorder %s234, 1
                  %s239 = sphi %s174, %s174
                  %s240 = sphi %s169, %s169
                $region57: #{cspdarknet_tiny_forward.18} parent=46 // loop_header_branch
                  %237 = sbr.rel (%p235) target = $region61
                $region58: #{cspdarknet_tiny_forward.18} parent=46 // loop_body
                  %v241 = vld [vmem:[%s239] sm:$0xf]
                  %242 = vst [vmem:[%s240] sm:$0xf] %v241
                  %v243 = vld [vmem:[%s239 + $0x14] sm:$0xf]
                  %244 = vst [vmem:[%s240 + $0x4] sm:$0xf] %v243
                  %v245 = vld [vmem:[%s239 + $0x28] sm:$0xf]
                  %246 = vst [vmem:[%s240 + $0x8] sm:$0xf] %v245
                  %v247 = vld [vmem:[%s239 + $0x3c] sm:$0xf]
                  %248 = vst [vmem:[%s240 + $0xc] sm:$0xf] %v247
                  %v249 = vld [vmem:[%s239 + $0x50] sm:$0xf]
                  %250 = vst [vmem:[%s240 + $0x10] sm:$0xf] %v249
                  %v251 = vld [vmem:[%s239 + $0x64] sm:$0xf]
                  %252 = vst [vmem:[%s240 + $0x14] sm:$0xf] %v251
                  %v253 = vld [vmem:[%s239 + $0x78] sm:$0xf]
                  %254 = vst [vmem:[%s240 + $0x18] sm:$0xf] %v253
                  %v255 = vld [vmem:[%s239 + $0x8c] sm:$0xf]
                  %256 = vst [vmem:[%s240 + $0x1c] sm:$0xf] %v255
                  %v257 = vld [vmem:[%s239 + $0xa0] sm:$0xf]
                  %258 = vst [vmem:[%s240 + $0x20] sm:$0xf] %v257
                  %v259 = vld [vmem:[%s239 + $0xb4] sm:$0xf]
                  %260 = vst [vmem:[%s240 + $0x24] sm:$0xf] %v259
                  %v261 = vld [vmem:[%s239 + $0xc8] sm:$0xf]
                  %262 = vst [vmem:[%s240 + $0x28] sm:$0xf] %v261
                  %v263 = vld [vmem:[%s239 + $0xdc] sm:$0xf]
                  %264 = vst [vmem:[%s240 + $0x2c] sm:$0xf] %v263
                  %v265 = vld [vmem:[%s239 + $0xf0] sm:$0xf]
                  %266 = vst [vmem:[%s240 + $0x30] sm:$0xf] %v265
                  %v267 = vld [vmem:[%s239 + $0x104] sm:$0xf]
                  %268 = vst [vmem:[%s240 + $0x34] sm:$0xf] %v267
                  %v269 = vld [vmem:[%s239 + $0x118] sm:$0xf]
                  %270 = vst [vmem:[%s240 + $0x38] sm:$0xf] %v269
                  %v271 = vld [vmem:[%s239 + $0x12c] sm:$0xf]
                  %272 = vst [vmem:[%s240 + $0x3c] sm:$0xf] %v271
                $region59: #{cspdarknet_tiny_forward.18} parent=46 // loop_footer
                  %s238 = sadd.s32 1, %s234
                $region60: #{cspdarknet_tiny_forward.18} parent=46 // loop_footer_branch
                  %233 = sbr.rel target = $region56
                $region61: #{cspdarknet_tiny_forward.18} parent=46 // loop_exit
                  _
              $region47: #{cspdarknet_tiny_forward.18} parent=31 // pred_fallthru
                _
            $region32: #{cspdarknet_tiny_forward.18} parent=27 // pred_fallthru
              _
            // Predicated region
            $region33: #{cspdarknet_tiny_forward.18} parent=27 // pred_check
              _
            $region34: #{cspdarknet_tiny_forward.18} parent=27 // pred_check_branch
              %180 = sbr.rel (0) target = $region36
            $region35: #{cspdarknet_tiny_forward.18} parent=27 // pred_region
              loop: start=0, step=1, limit=1
              $region37: #{cspdarknet_tiny_forward.18} parent=35 // loop_pre_header
                _
              $region38: #{cspdarknet_tiny_forward.18} parent=35 // loop_header
                %s183 = sphi 0, %s187
                %p184 = scmp.ge.s32.totalorder %s183, 1
                %s188 = sphi %s174, %s174
                %s189 = sphi %s169, %s169
              $region39: #{cspdarknet_tiny_forward.18} parent=35 // loop_header_branch
                %186 = sbr.rel (%p184) target = $region43
              $region40: #{cspdarknet_tiny_forward.18} parent=35 // loop_body
                %v190 = vld [vmem:[%s188] sm:$0xf]
                %191 = vst [vmem:[%s189] sm:$0xf] %v190
                %v192 = vld [vmem:[%s188 + $0x14] sm:$0xf]
                %193 = vst [vmem:[%s189 + $0x4] sm:$0xf] %v192
                %v194 = vld [vmem:[%s188 + $0x28] sm:$0xf]
                %195 = vst [vmem:[%s189 + $0x8] sm:$0xf] %v194
                %v196 = vld [vmem:[%s188 + $0x3c] sm:$0xf]
                %197 = vst [vmem:[%s189 + $0xc] sm:$0xf] %v196
                %v198 = vld [vmem:[%s188 + $0x50] sm:$0xf]
                %199 = vst [vmem:[%s189 + $0x10] sm:$0xf] %v198
                %v200 = vld [vmem:[%s188 + $0x64] sm:$0xf]
                %201 = vst [vmem:[%s189 + $0x14] sm:$0xf] %v200
                %v202 = vld [vmem:[%s188 + $0x78] sm:$0xf]
                %203 = vst [vmem:[%s189 + $0x18] sm:$0xf] %v202
                %v204 = vld [vmem:[%s188 + $0x8c] sm:$0xf]
                %205 = vst [vmem:[%s189 + $0x1c] sm:$0xf] %v204
                %v206 = vld [vmem:[%s188 + $0xa0] sm:$0xf]
                %207 = vst [vmem:[%s189 + $0x20] sm:$0xf] %v206
                %v208 = vld [vmem:[%s188 + $0xb4] sm:$0xf]
                %209 = vst [vmem:[%s189 + $0x24] sm:$0xf] %v208
                %v210 = vld [vmem:[%s188 + $0xc8] sm:$0xf]
                %211 = vst [vmem:[%s189 + $0x28] sm:$0xf] %v210
                %v212 = vld [vmem:[%s188 + $0xdc] sm:$0xf]
                %213 = vst [vmem:[%s189 + $0x2c] sm:$0xf] %v212
                %v214 = vld [vmem:[%s188 + $0xf0] sm:$0xf]
                %215 = vst [vmem:[%s189 + $0x30] sm:$0xf] %v214
                %v216 = vld [vmem:[%s188 + $0x104] sm:$0xf]
                %217 = vst [vmem:[%s189 + $0x34] sm:$0xf] %v216
                %v218 = vld [vmem:[%s188 + $0x118] sm:$0xf]
                %219 = vst [vmem:[%s189 + $0x38] sm:$0xf] %v218
                %v220 = vld [vmem:[%s188 + $0x12c] sm:$0xf]
                %221 = vst [vmem:[%s189 + $0x3c] sm:$0xf] %v220
              $region41: #{cspdarknet_tiny_forward.18} parent=35 // loop_footer
                %s187 = sadd.s32 1, %s183
              $region42: #{cspdarknet_tiny_forward.18} parent=35 // loop_footer_branch
                %182 = sbr.rel target = $region38
              $region43: #{cspdarknet_tiny_forward.18} parent=35 // loop_exit
                _
            $region36: #{cspdarknet_tiny_forward.18} parent=27 // pred_fallthru
              _
          $region28: #{cspdarknet_tiny_forward.18} parent=23 // pred_fallthru
            _
          %273 = vnop
        $region24: #{cspdarknet_tiny_forward.18} parent=19 // pred_fallthru
          _
        // Predicated region
        $region62: #{cspdarknet_tiny_forward.18} parent=19 // pred_check
          %p274 = pneg %p78
        $region63: #{cspdarknet_tiny_forward.18} parent=19 // pred_check_branch
          %276 = sbr.rel (%p274) target = $region65
        $region64: #{cspdarknet_tiny_forward.18} parent=19 // pred_region
          %s277 = smul.u32 16, %s18
          %p278 = scmp.lt.s32.totalorder %s277, 79
          %s279 = scalar_select %p278, %s277, 79
          %p280 = scmp.lt.s32.totalorder %s17, 0
          %s281 = scalar_select %p280, %s17, 0
          %s282 = sadd.s32 %s281, %s279
          %s283 = smul.addr %s282, 4
          %s284 = scalar_lea.vmem %s1, %s283
          %s285 = smul.u32 16, %s18
        $region65: #{cspdarknet_tiny_forward.18} parent=19 // pred_fallthru
          _
      $region20: #{cspdarknet_tiny_forward.18} parent=5 // pred_fallthru
        _
      %p286 = scmp.le.s32.totalorder 1, %s9
      %p287 = scmp.lt.s32.totalorder %s9, 6
      %p288 = pnand %p286, %p287
      %p289 = pneg %p288
      // Predicated region
      $region66: #{cspdarknet_tiny_forward.18} parent=5 // pred_check
        _
      $region67: #{cspdarknet_tiny_forward.18} parent=5 // pred_check_branch
        %291 = sbr.rel (%p288) target = $region69
      $region68: #{cspdarknet_tiny_forward.18} parent=5 // pred_region
        %s292 = ssub.s32 %s9, 1
        %s293 = sand.u32 %s43, 1
        %s294 = sand.u32 %s43, 1
        %s295 = smul.addr %s294, 64
        %s296 = scalar_lea.vmem [#allocation3], %s295
        // Predicated region
        $region70: #{cspdarknet_tiny_forward.18} parent=68 // pred_check
          %p297 = pneg %p56
        $region71: #{cspdarknet_tiny_forward.18} parent=68 // pred_check_branch
          %299 = sbr.rel (%p297) target = $region73
        $region72: #{cspdarknet_tiny_forward.18} parent=68 // pred_region
          _
        $region73: #{cspdarknet_tiny_forward.18} parent=68 // pred_fallthru
          _
        %s300 = sand.u32 %s43, 1
        %s301 = sand.u32 %s43, 1
        %s302 = smul.addr %s301, 64
        %s303 = scalar_lea.vmem [#allocation3], %s302
        %p304 = pneg %p56
        %p305 = pneg %p53
        %s306 = smul.u32 16, %s21
        %p307 = scmp.lt.s32.totalorder %s306, 79
        %s308 = scalar_select %p307, %s306, 79
        %p309 = scmp.lt.s32.totalorder %s20, 0
        %s310 = scalar_select %p309, %s20, 0
        %s311 = sadd.s32 %s310, %s308
        %s312 = smul.addr %s311, 4
        %s313 = scalar_lea.vmem %s1, %s312
        %p314 = pneg %p84
        %p315 = pneg %p81
        %p316 = scmp.lt.s32.totalorder %s20, 0
        %s317 = scalar_select %p316, %s20, 0
        %s318 = scalar_lea.vmem %s2, %s317
        %p319 = pneg %p110
        %p320 = pneg %p107
        %p321 = pneg %p138
        %p322 = pneg %p135
        %s323 = smul.u32 16, %s19
        %p324 = scmp.lt.s32.totalorder %s323, 15
        %s325 = scalar_select %p324, %s323, 15
        %p326 = scmp.lt.s32.totalorder %s20, 0
        %s327 = scalar_select %p326, %s20, 0
        %s328 = sadd.s32 %s327, %s325
        %s329 = smul.addr %s328, 4
        %s330 = scalar_lea.vmem %s3, %s329
        %s331 = smul.u32 16, %s19
        %s332 = smul.u32 16, %s21
        %p333 = scmp.lt.s32.totalorder %s332, 79
        %s334 = scalar_select %p333, %s332, 79
        %p335 = scmp.lt.s32.totalorder %s20, 0
        %s336 = scalar_select %p335, %s20, 0
        %s337 = sadd.s32 %s336, %s334
        %s338 = smul.addr %s337, 4
        %s339 = scalar_lea.vmem %s1, %s338
        %s340 = smul.u32 16, %s21
        %p341 = scmp.lt.s32.totalorder %s20, 0
        %s342 = scalar_select %p341, %s20, 0
        %s343 = scalar_lea.vmem %s2, %s342
        %s344 = smul.u32 16, %s19
        %p345 = scmp.lt.s32.totalorder %s344, 15
        %s346 = scalar_select %p345, %s344, 15
        %p347 = scmp.lt.s32.totalorder %s20, 0
        %s348 = scalar_select %p347, %s20, 0
        %s349 = sadd.s32 %s348, %s346
        %s350 = smul.addr %s349, 4
        %s351 = scalar_lea.vmem %s3, %s350
        %s352 = smul.u32 16, %s19
        %p354 = scmp.eq.s32.totalorder %s21, 0
        // Predicated region
        $region74: #{cspdarknet_tiny_forward.18} parent=68 // pred_check
          %p355 = pneg %p354
        $region75: #{cspdarknet_tiny_forward.18} parent=68 // pred_check_branch
          %357 = sbr.rel (%p355) target = $region77
        $region76: #{cspdarknet_tiny_forward.18} parent=68 // pred_region
          %vm358 = vcmask 523264
          %359 = vst.msk [vmem:[#allocation2] sm:$0xff] %vm358, 0.0
          %360 = vst.msk [vmem:[#allocation2 + $0x8] sm:$0xff] %vm358, 0.0
          %361 = vst.msk [vmem:[#allocation2 + $0x10] sm:$0xff] %vm358, 0.0
          %362 = vst.msk [vmem:[#allocation2 + $0x18] sm:$0xff] %vm358, 0.0
          %363 = vst.msk [vmem:[#allocation2 + $0x20] sm:$0xff] %vm358, 0.0
          %364 = vst.msk [vmem:[#allocation2 + $0x28] sm:$0xff] %vm358, 0.0
          %365 = vst.msk [vmem:[#allocation2 + $0x30] sm:$0xff] %vm358, 0.0
          %366 = vst.msk [vmem:[#allocation2 + $0x38] sm:$0xff] %vm358, 0.0
          %367 = vst.msk [vmem:[#allocation2 + $0x40] sm:$0xff] %vm358, 0.0
          %368 = vst.msk [vmem:[#allocation2 + $0x48] sm:$0xff] %vm358, 0.0
          %369 = vst.msk [vmem:[#allocation2 + $0x50] sm:$0xff] %vm358, 0.0
          %370 = vst.msk [vmem:[#allocation2 + $0x58] sm:$0xff] %vm358, 0.0
          %371 = vst.msk [vmem:[#allocation2 + $0x60] sm:$0xff] %vm358, 0.0
          %372 = vst.msk [vmem:[#allocation2 + $0x68] sm:$0xff] %vm358, 0.0
          %373 = vst.msk [vmem:[#allocation2 + $0x70] sm:$0xff] %vm358, 0.0
          %374 = vst.msk [vmem:[#allocation2 + $0x78] sm:$0xff] %vm358, 0.0
        $region77: #{cspdarknet_tiny_forward.18} parent=68 // pred_fallthru
          _
        %v375 = vld [vmem:[#allocation2] sm:$0xff]
        %v376 = vld [vmem:[#allocation2 + $0x8] sm:$0xff]
        %v377 = vld [vmem:[#allocation2 + $0x10] sm:$0xff]
        %v378 = vld [vmem:[#allocation2 + $0x18] sm:$0xff]
        %v379 = vld [vmem:[#allocation2 + $0x20] sm:$0xff]
        %v380 = vld [vmem:[#allocation2 + $0x28] sm:$0xff]
        %v381 = vld [vmem:[#allocation2 + $0x30] sm:$0xff]
        %v382 = vld [vmem:[#allocation2 + $0x38] sm:$0xff]
        %v383 = vld [vmem:[#allocation2 + $0x40] sm:$0xff]
        %v384 = vld [vmem:[#allocation2 + $0x48] sm:$0xff]
        %v385 = vld [vmem:[#allocation2 + $0x50] sm:$0xff]
        %v386 = vld [vmem:[#allocation2 + $0x58] sm:$0xff]
        %v387 = vld [vmem:[#allocation2 + $0x60] sm:$0xff]
        %v388 = vld [vmem:[#allocation2 + $0x68] sm:$0xff]
        %v389 = vld [vmem:[#allocation2 + $0x70] sm:$0xff]
        %v390 = vld [vmem:[#allocation2 + $0x78] sm:$0xff]
        %v391 = vld [vmem:[%s296] sm:$0xf]
        %v392 = vld [vmem:[%s296 + $0x4] sm:$0xf]
        %v393 = vld [vmem:[%s296 + $0x8] sm:$0xf]
        %v394 = vld [vmem:[%s296 + $0xc] sm:$0xf]
        %v395 = vld [vmem:[%s296 + $0x10] sm:$0xf]
        %v396 = vld [vmem:[%s296 + $0x14] sm:$0xf]
        %v397 = vld [vmem:[%s296 + $0x18] sm:$0xf]
        %v398 = vld [vmem:[%s296 + $0x1c] sm:$0xf]
        %v399 = vld [vmem:[%s296 + $0x20] sm:$0xf]
        %v400 = vld [vmem:[%s296 + $0x24] sm:$0xf]
        %v401 = vld [vmem:[%s296 + $0x28] sm:$0xf]
        %v402 = vld [vmem:[%s296 + $0x2c] sm:$0xf]
        %v403 = vld [vmem:[%s296 + $0x30] sm:$0xf]
        %v404 = vld [vmem:[%s296 + $0x34] sm:$0xf]
        %v405 = vld [vmem:[%s296 + $0x38] sm:$0xf]
        %v406 = vld [vmem:[%s296 + $0x3c] sm:$0xf]
        %v407 = vld [vmem:[%s339] sm:$0xf]
        %v408 = vld [vmem:[%s339 + $0x4] sm:$0xf]
        %v409 = vld [vmem:[%s339 + $0x8] sm:$0xf]
        %v410 = vld [vmem:[%s339 + $0xc] sm:$0xf]
        %v411 = vld [vmem:[%s339 + $0x10] sm:$0xf]
        %v412 = vld [vmem:[%s339 + $0x14] sm:$0xf]
        %v413 = vld [vmem:[%s339 + $0x18] sm:$0xf]
        %v414 = vld [vmem:[%s339 + $0x1c] sm:$0xf]
        %v415 = vld [vmem:[%s339 + $0x20] sm:$0xf]
        %v416 = vld [vmem:[%s339 + $0x24] sm:$0xf]
        %v417 = vld [vmem:[%s339 + $0x28] sm:$0xf]
        %v418 = vld [vmem:[%s339 + $0x2c] sm:$0xf]
        %v419 = vld [vmem:[%s339 + $0x30] sm:$0xf]
        %v420 = vld [vmem:[%s339 + $0x34] sm:$0xf]
        %v421 = vld [vmem:[%s339 + $0x38] sm:$0xf]
        %v422 = vld [vmem:[%s339 + $0x3c] sm:$0xf]
        %v439 = vunpack.c.l.b16 %v391
        %v440 = vunpack.c.l.b16 %v392
        %v441 = vunpack.c.l.b16 %v393
        %v442 = vunpack.c.l.b16 %v394
        %v443 = vunpack.c.l.b16 %v395
        %v444 = vunpack.c.l.b16 %v396
        %v445 = vunpack.c.l.b16 %v397
        %v446 = vunpack.c.l.b16 %v398
        %v447 = vunpack.c.l.b16 %v399
        %v448 = vunpack.c.l.b16 %v400
        %v449 = vunpack.c.l.b16 %v401
        %v450 = vunpack.c.l.b16 %v402
        %v451 = vunpack.c.l.b16 %v403
        %v452 = vunpack.c.l.b16 %v404
        %v453 = vunpack.c.l.b16 %v405
        %v454 = vunpack.c.l.b16 %v406
        %v455 = vpack.c.b16 %v440, %v439
        %v456 = vpack.c.b16 %v442, %v441
        %v457 = vpack.c.b16 %v444, %v443
        %v458 = vpack.c.b16 %v446, %v445
        %v459 = vpack.c.b16 %v448, %v447
        %v460 = vpack.c.b16 %v450, %v449
        %v461 = vpack.c.b16 %v452, %v451
        %v462 = vpack.c.b16 %v454, %v453
        %v487 = vunpack.c.l.b16 %v407
        %v488 = vunpack.c.l.b16 %v408
        %v489 = vunpack.c.l.b16 %v409
        %v490 = vunpack.c.l.b16 %v410
        %v491 = vunpack.c.l.b16 %v411
        %v492 = vunpack.c.l.b16 %v412
        %v493 = vunpack.c.l.b16 %v413
        %v494 = vunpack.c.l.b16 %v414
        %v495 = vunpack.c.l.b16 %v415
        %v496 = vunpack.c.l.b16 %v416
        %v497 = vunpack.c.l.b16 %v417
        %v498 = vunpack.c.l.b16 %v418
        %v499 = vunpack.c.l.b16 %v419
        %v500 = vunpack.c.l.b16 %v420
        %v501 = vunpack.c.l.b16 %v421
        %v502 = vunpack.c.l.b16 %v422
        %v503 = vpack.c.b16 %v488, %v487
        %v504 = vpack.c.b16 %v490, %v489
        %v505 = vpack.c.b16 %v492, %v491
        %v506 = vpack.c.b16 %v494, %v493
        %v507 = vpack.c.b16 %v496, %v495
        %v508 = vpack.c.b16 %v498, %v497
        %v509 = vpack.c.b16 %v500, %v499
        %v510 = vpack.c.b16 %v502, %v501
        %519 = vmatprep.subr.bf16.mxu0 0
        %520 = vmatpush1.bf16.msra.mxu0 %v503
        %521 = vmatprep.subr.bf16.mxu0 0
        %522 = vmatpush1.bf16.msra.mxu0 %v504
        %523 = vmatprep.subr.bf16.mxu0 0
        %524 = vmatpush1.bf16.msra.mxu0 %v505
        %525 = vmatprep.subr.bf16.mxu0 0
        %526 = vmatpush1.bf16.msra.mxu0 %v506
        %527 = vmatprep.subr.bf16.mxu0 0
        %528 = vmatpush1.bf16.msra.mxu0 %v507
        %529 = vmatprep.subr.bf16.mxu0 0
        %530 = vmatpush1.bf16.msra.mxu0 %v508
        %531 = vmatprep.subr.bf16.mxu0 0
        %532 = vmatpush1.bf16.msra.mxu0 %v509
        %533 = vmatprep.subr.bf16.mxu0 0
        %534 = vmatpush1.bf16.msra.mxu0 %v510
        %535 = vmatprep.subr.bf16.mxu0 0
        %536 = vmatpush1.bf16.msra.mxu0 0
        %537 = vmatprep.subr.bf16.mxu0 0
        %538 = vmatpush1.bf16.msra.mxu0 0
        %539 = vmatprep.subr.bf16.mxu0 0
        %540 = vmatpush1.bf16.msra.mxu0 0
        %541 = vmatprep.subr.bf16.mxu0 0
        %542 = vmatpush1.bf16.msra.mxu0 0
        %543 = vmatprep.subr.bf16.mxu0 0
        %544 = vmatpush1.bf16.msra.mxu0 0
        %545 = vmatprep.subr.bf16.mxu0 0
        %546 = vmatpush1.bf16.msra.mxu0 0
        %547 = vmatprep.subr.bf16.mxu0 0
        %548 = vmatpush1.bf16.msra.mxu0 0
        %549 = vmatprep.subr.bf16.mxu0 0
        %550 = vmatpush1.bf16.msra.mxu0 0
        %551 = vmatprep.mubr.bf16.mxu0 0
        %552 = vmatmul.mubr.bf16.gmra.mrb[0].mxu0 %v455
        %v553 = vpop.f32.mrb[0].mxu0
        %v554 = vadd.f32 0.0, %v553
        %v555 = vpop.f32.mrb[0].mxu0
        %v556 = vpop.f32.mrb[0].mxu0
        %v557 = vadd.f32 0.0, %v556
        %v558 = vpop.f32.mrb[0].mxu0
        %559 = vmatprep.mubr.bf16.mxu0 0
        %560 = vmatmul.mubr.bf16.gmra.mrb[0].mxu0 %v456
        %v561 = vpop.f32.mrb[0].mxu0
        %v562 = vadd.f32 0.0, %v561
        %v563 = vpop.f32.mrb[0].mxu0
        %v564 = vpop.f32.mrb[0].mxu0
        %v565 = vadd.f32 0.0, %v564
        %v566 = vpop.f32.mrb[0].mxu0
        %567 = vmatprep.mubr.bf16.mxu0 0
        %568 = vmatmul.mubr.bf16.gmra.mrb[0].mxu0 %v457
        %v569 = vpop.f32.mrb[0].mxu0
        %v570 = vadd.f32 0.0, %v569
        %v571 = vpop.f32.mrb[0].mxu0
        %v572 = vpop.f32.mrb[0].mxu0
        %v573 = vadd.f32 0.0, %v572
        %v574 = vpop.f32.mrb[0].mxu0
        %575 = vmatprep.mubr.bf16.mxu0 0
        %576 = vmatmul.mubr.bf16.gmra.mrb[0].mxu0 %v458
        %v577 = vpop.f32.mrb[0].mxu0
        %v578 = vadd.f32 0.0, %v577
        %v579 = vpop.f32.mrb[0].mxu0
        %v580 = vpop.f32.mrb[0].mxu0
        %v581 = vadd.f32 0.0, %v580
        %v582 = vpop.f32.mrb[0].mxu0
        %583 = vmatprep.mubr.bf16.mxu0 0
        %584 = vmatmul.mubr.bf16.gmra.mrb[0].mxu0 %v459
        %v585 = vpop.f32.mrb[0].mxu0
        %v586 = vadd.f32 0.0, %v585
        %v587 = vpop.f32.mrb[0].mxu0
        %v588 = vpop.f32.mrb[0].mxu0
        %v589 = vadd.f32 0.0, %v588
        %v590 = vpop.f32.mrb[0].mxu0
        %591 = vmatprep.mubr.bf16.mxu0 0
        %592 = vmatmul.mubr.bf16.gmra.mrb[0].mxu0 %v460
        %v593 = vpop.f32.mrb[0].mxu0
        %v594 = vadd.f32 0.0, %v593
        %v595 = vpop.f32.mrb[0].mxu0
        %v596 = vpop.f32.mrb[0].mxu0
        %v597 = vadd.f32 0.0, %v596
        %v598 = vpop.f32.mrb[0].mxu0
        %599 = vmatprep.mubr.bf16.mxu0 0
        %600 = vmatmul.mubr.bf16.gmra.mrb[0].mxu0 %v461
        %v601 = vpop.f32.mrb[0].mxu0
        %v602 = vadd.f32 0.0, %v601
        %v603 = vpop.f32.mrb[0].mxu0
        %v604 = vpop.f32.mrb[0].mxu0
        %v605 = vadd.f32 0.0, %v604
        %v606 = vpop.f32.mrb[0].mxu0
        %607 = vmatprep.mubr.bf16.mxu0 0
        %608 = vmatmul.mubr.bf16.gmra.mrb[0].mxu0 %v462
        %v609 = vpop.f32.mrb[0].mxu0
        %v610 = vadd.f32 0.0, %v609
        %v611 = vpop.f32.mrb[0].mxu0
        %v612 = vpop.f32.mrb[0].mxu0
        %v613 = vadd.f32 0.0, %v612
        %v614 = vpop.f32.mrb[0].mxu0
        %615 = vdwg.mxu0
        %v616 = vadd.f32 %v375, %v554
        %v617 = vadd.f32 %v376, %v557
        %v618 = vadd.f32 %v377, %v562
        %v619 = vadd.f32 %v378, %v565
        %v620 = vadd.f32 %v379, %v570
        %v621 = vadd.f32 %v380, %v573
        %v622 = vadd.f32 %v381, %v578
        %v623 = vadd.f32 %v382, %v581
        %v624 = vadd.f32 %v383, %v586
        %v625 = vadd.f32 %v384, %v589
        %v626 = vadd.f32 %v385, %v594
        %v627 = vadd.f32 %v386, %v597
        %v628 = vadd.f32 %v387, %v602
        %v629 = vadd.f32 %v388, %v605
        %v630 = vadd.f32 %v389, %v610
        %v631 = vadd.f32 %v390, %v613
        %vm632 = vcmask 523264
        %633 = vst.msk [vmem:[#allocation2] sm:$0xff] %vm632, %v616
        %634 = vst.msk [vmem:[#allocation2 + $0x8] sm:$0xff] %vm632, %v617
        %635 = vst.msk [vmem:[#allocation2 + $0x10] sm:$0xff] %vm632, %v618
        %636 = vst.msk [vmem:[#allocation2 + $0x18] sm:$0xff] %vm632, %v619
        %637 = vst.msk [vmem:[#allocation2 + $0x20] sm:$0xff] %vm632, %v620
        %638 = vst.msk [vmem:[#allocation2 + $0x28] sm:$0xff] %vm632, %v621
        %639 = vst.msk [vmem:[#allocation2 + $0x30] sm:$0xff] %vm632, %v622
        %640 = vst.msk [vmem:[#allocation2 + $0x38] sm:$0xff] %vm632, %v623
        %641 = vst.msk [vmem:[#allocation2 + $0x40] sm:$0xff] %vm632, %v624
        %642 = vst.msk [vmem:[#allocation2 + $0x48] sm:$0xff] %vm632, %v625
        %643 = vst.msk [vmem:[#allocation2 + $0x50] sm:$0xff] %vm632, %v626
        %644 = vst.msk [vmem:[#allocation2 + $0x58] sm:$0xff] %vm632, %v627
        %645 = vst.msk [vmem:[#allocation2 + $0x60] sm:$0xff] %vm632, %v628
        %646 = vst.msk [vmem:[#allocation2 + $0x68] sm:$0xff] %vm632, %v629
        %647 = vst.msk [vmem:[#allocation2 + $0x70] sm:$0xff] %vm632, %v630
        %648 = vst.msk [vmem:[#allocation2 + $0x78] sm:$0xff] %vm632, %v631
        %p649 = scmp.eq.s32.totalorder %s21, 4
        // Predicated region
        $region78: #{cspdarknet_tiny_forward.18} parent=68 // pred_check
          %p650 = pneg %p649
        $region79: #{cspdarknet_tiny_forward.18} parent=68 // pred_check_branch
          %652 = sbr.rel (%p650) target = $region81
        $region80: #{cspdarknet_tiny_forward.18} parent=68 // pred_region
          %v653 = vld [vmem:[#allocation2] sm:$0xff]
          %v654 = vld [vmem:[#allocation2 + $0x8] sm:$0xff]
          %v655 = vld [vmem:[#allocation2 + $0x10] sm:$0xff]
          %v656 = vld [vmem:[#allocation2 + $0x18] sm:$0xff]
          %v657 = vld [vmem:[#allocation2 + $0x20] sm:$0xff]
          %v658 = vld [vmem:[#allocation2 + $0x28] sm:$0xff]
          %v659 = vld [vmem:[#allocation2 + $0x30] sm:$0xff]
          %v660 = vld [vmem:[#allocation2 + $0x38] sm:$0xff]
          %v661 = vld [vmem:[#allocation2 + $0x40] sm:$0xff]
          %v662 = vld [vmem:[#allocation2 + $0x48] sm:$0xff]
          %v663 = vld [vmem:[#allocation2 + $0x50] sm:$0xff]
          %v664 = vld [vmem:[#allocation2 + $0x58] sm:$0xff]
          %v665 = vld [vmem:[#allocation2 + $0x60] sm:$0xff]
          %v666 = vld [vmem:[#allocation2 + $0x68] sm:$0xff]
          %v667 = vld [vmem:[#allocation2 + $0x70] sm:$0xff]
          %v668 = vld [vmem:[#allocation2 + $0x78] sm:$0xff]
          %v669 = vld [vmem:[%s343] sm:$0x1]
          %v671 = vlaneseq
          %v672 = vshrl.u32 %v671, 7
          %v673 = vsub.s32 0, %v672
          %v674 = vrot.slane %v669, %v673
          %v676 = vadd.f32 %v653, %v674
          %v677 = vadd.f32 %v654, %v674
          %v678 = vadd.f32 %v655, %v674
          %v679 = vadd.f32 %v656, %v674
          %v680 = vadd.f32 %v657, %v674
          %v681 = vadd.f32 %v658, %v674
          %v682 = vadd.f32 %v659, %v674
          %v683 = vadd.f32 %v660, %v674
          %v684 = vadd.f32 %v661, %v674
          %v685 = vadd.f32 %v662, %v674
          %v686 = vadd.f32 %v663, %v674
          %v687 = vadd.f32 %v664, %v674
          %v688 = vadd.f32 %v665, %v674
          %v689 = vadd.f32 %v666, %v674
          %v690 = vadd.f32 %v667, %v674
          %v691 = vadd.f32 %v668, %v674
          %vm692 = vcmp.gt.f32.partialorder %v676, 0.0
          %vm693 = vcmp.gt.f32.partialorder %v677, 0.0
          %vm694 = vcmp.gt.f32.partialorder %v678, 0.0
          %vm695 = vcmp.gt.f32.partialorder %v679, 0.0
          %vm696 = vcmp.gt.f32.partialorder %v680, 0.0
          %vm697 = vcmp.gt.f32.partialorder %v681, 0.0
          %vm698 = vcmp.gt.f32.partialorder %v682, 0.0
          %vm699 = vcmp.gt.f32.partialorder %v683, 0.0
          %vm700 = vcmp.gt.f32.partialorder %v684, 0.0
          %vm701 = vcmp.gt.f32.partialorder %v685, 0.0
          %vm702 = vcmp.gt.f32.partialorder %v686, 0.0
          %vm703 = vcmp.gt.f32.partialorder %v687, 0.0
          %vm704 = vcmp.gt.f32.partialorder %v688, 0.0
          %vm705 = vcmp.gt.f32.partialorder %v689, 0.0
          %vm706 = vcmp.gt.f32.partialorder %v690, 0.0
          %vm707 = vcmp.gt.f32.partialorder %v691, 0.0
          %v708 = vmul.f32 %v676, 0.1
          %v709 = vmul.f32 %v677, 0.1
          %v710 = vmul.f32 %v678, 0.1
          %v711 = vmul.f32 %v679, 0.1
          %v712 = vmul.f32 %v680, 0.1
          %v713 = vmul.f32 %v681, 0.1
          %v714 = vmul.f32 %v682, 0.1
          %v715 = vmul.f32 %v683, 0.1
          %v716 = vmul.f32 %v684, 0.1
          %v717 = vmul.f32 %v685, 0.1
          %v718 = vmul.f32 %v686, 0.1
          %v719 = vmul.f32 %v687, 0.1
          %v720 = vmul.f32 %v688, 0.1
          %v721 = vmul.f32 %v689, 0.1
          %v722 = vmul.f32 %v690, 0.1
          %v723 = vmul.f32 %v691, 0.1
          %v724 = vsel %vm692, %v676, %v708
          %v725 = vsel %vm693, %v677, %v709
          %v726 = vsel %vm694, %v678, %v710
          %v727 = vsel %vm695, %v679, %v711
          %v728 = vsel %vm696, %v680, %v712
          %v729 = vsel %vm697, %v681, %v713
          %v730 = vsel %vm698, %v682, %v714
          %v731 = vsel %vm699, %v683, %v715
          %v732 = vsel %vm700, %v684, %v716
          %v733 = vsel %vm701, %v685, %v717
          %v734 = vsel %vm702, %v686, %v718
          %v735 = vsel %vm703, %v687, %v719
          %v736 = vsel %vm704, %v688, %v720
          %v737 = vsel %vm705, %v689, %v721
          %v738 = vsel %vm706, %v690, %v722
          %v739 = vsel %vm707, %v691, %v723
          %v740 = vpack.c.bf16 %v725, %v724
          %v741 = vpack.c.bf16 %v727, %v726
          %v742 = vpack.c.bf16 %v729, %v728
          %v743 = vpack.c.bf16 %v731, %v730
          %v744 = vpack.c.bf16 %v733, %v732
          %v745 = vpack.c.bf16 %v735, %v734
          %v746 = vpack.c.bf16 %v737, %v736
          %v747 = vpack.c.bf16 %v739, %v738
          %v756 = vunpack.c.l.b16 %v740
          %v757 = vunpack.c.h.b16 %v740
          %v758 = vunpack.c.l.b16 %v741
          %v759 = vunpack.c.h.b16 %v741
          %v760 = vunpack.c.l.b16 %v742
          %v761 = vunpack.c.h.b16 %v742
          %v762 = vunpack.c.l.b16 %v743
          %v763 = vunpack.c.h.b16 %v743
          %v764 = vunpack.c.l.b16 %v744
          %v765 = vunpack.c.h.b16 %v744
          %v766 = vunpack.c.l.b16 %v745
          %v767 = vunpack.c.h.b16 %v745
          %v768 = vunpack.c.l.b16 %v746
          %v769 = vunpack.c.h.b16 %v746
          %v770 = vunpack.c.l.b16 %v747
          %v771 = vunpack.c.h.b16 %v747
          %v772 = vpack.c.b16 %v756, %v756
          %v773 = vpack.c.b16 %v757, %v757
          %v774 = vpack.c.b16 %v758, %v758
          %v775 = vpack.c.b16 %v759, %v759
          %v776 = vpack.c.b16 %v760, %v760
          %v777 = vpack.c.b16 %v761, %v761
          %v778 = vpack.c.b16 %v762, %v762
          %v779 = vpack.c.b16 %v763, %v763
          %v780 = vpack.c.b16 %v764, %v764
          %v781 = vpack.c.b16 %v765, %v765
          %v782 = vpack.c.b16 %v766, %v766
          %v783 = vpack.c.b16 %v767, %v767
          %v784 = vpack.c.b16 %v768, %v768
          %v785 = vpack.c.b16 %v769, %v769
          %v786 = vpack.c.b16 %v770, %v770
          %v787 = vpack.c.b16 %v771, %v771
          %vm804 = vcmask 519168
          %805 = vst.msk [vmem:[%s351] sm:$0xf] %vm804, %v772
          %806 = vst.msk [vmem:[%s351 + $0x4] sm:$0xf] %vm804, %v773
          %807 = vst.msk [vmem:[%s351 + $0x8] sm:$0xf] %vm804, %v774
          %808 = vst.msk [vmem:[%s351 + $0xc] sm:$0xf] %vm804, %v775
          %809 = vst.msk [vmem:[%s351 + $0x10] sm:$0xf] %vm804, %v776
          %810 = vst.msk [vmem:[%s351 + $0x14] sm:$0xf] %vm804, %v777
          %811 = vst.msk [vmem:[%s351 + $0x18] sm:$0xf] %vm804, %v778
          %812 = vst.msk [vmem:[%s351 + $0x1c] sm:$0xf] %vm804, %v779
          %813 = vst.msk [vmem:[%s351 + $0x20] sm:$0xf] %vm804, %v780
          %814 = vst.msk [vmem:[%s351 + $0x24] sm:$0xf] %vm804, %v781
          %815 = vst.msk [vmem:[%s351 + $0x28] sm:$0xf] %vm804, %v782
          %816 = vst.msk [vmem:[%s351 + $0x2c] sm:$0xf] %vm804, %v783
          %817 = vst.msk [vmem:[%s351 + $0x30] sm:$0xf] %vm804, %v784
          %818 = vst.msk [vmem:[%s351 + $0x34] sm:$0xf] %vm804, %v785
          %819 = vst.msk [vmem:[%s351 + $0x38] sm:$0xf] %vm804, %v786
          %820 = vst.msk [vmem:[%s351 + $0x3c] sm:$0xf] %vm804, %v787
        $region81: #{cspdarknet_tiny_forward.18} parent=68 // pred_fallthru
          _
        %s821 = smul.u32 16, %s19
        %p822 = scmp.lt.s32.totalorder %s821, 15
        %s823 = scalar_select %p822, %s821, 15
        %p824 = scmp.lt.s32.totalorder %s20, 0
        %s825 = scalar_select %p824, %s20, 0
        %s826 = sadd.s32 %s825, %s823
        %s827 = smul.addr %s826, 4
        %s828 = scalar_lea.vmem %s3, %s827
        // Predicated region
        $region82: #{cspdarknet_tiny_forward.18} parent=68 // pred_check
          %p829 = pneg %p135
        $region83: #{cspdarknet_tiny_forward.18} parent=68 // pred_check_branch
          %831 = sbr.rel (%p829) target = $region85
        $region84: #{cspdarknet_tiny_forward.18} parent=68 // pred_region
          %s832 = smul.u32 16, %s19
        $region85: #{cspdarknet_tiny_forward.18} parent=68 // pred_fallthru
          _
        // Predicated region
        $region86: #{cspdarknet_tiny_forward.18} parent=68 // pred_check
          %p833 = pneg %p135
        $region87: #{cspdarknet_tiny_forward.18} parent=68 // pred_check_branch
          %835 = sbr.rel (%p833) target = $region89
        $region88: #{cspdarknet_tiny_forward.18} parent=68 // pred_region
          %s836 = smul.u32 16, %s19
          %p837 = scmp.lt.s32.totalorder %s836, 15
          %s838 = scalar_select %p837, %s836, 15
          %p839 = scmp.lt.s32.totalorder %s20, 0
          %s840 = scalar_select %p839, %s20, 0
          %s841 = sadd.s32 %s840, %s838
          %s842 = smul.addr %s841, 4
          %s843 = scalar_lea.vmem %s3, %s842
        $region89: #{cspdarknet_tiny_forward.18} parent=68 // pred_fallthru
          _
      $region69: #{cspdarknet_tiny_forward.18} parent=5 // pred_fallthru
        _
      %p844 = scmp.le.s32.totalorder 2, %s9
      // Predicated region
      $region90: #{cspdarknet_tiny_forward.18} parent=5 // pred_check
        %p845 = pneg %p844
      $region91: #{cspdarknet_tiny_forward.18} parent=5 // pred_check_branch
        %847 = sbr.rel (%p845) target = $region93
      $region92: #{cspdarknet_tiny_forward.18} parent=5 // pred_region
        %s848 = ssub.s32 %s9, 2
      $region93: #{cspdarknet_tiny_forward.18} parent=5 // pred_fallthru
        _
    $region6: #{cspdarknet_tiny_forward.18} parent=1 // loop_footer
      %s13 = sadd.s32 1, %s9
    $region7: #{cspdarknet_tiny_forward.18} parent=1 // loop_footer_branch
      %8 = sbr.rel target = $region3
    $region8: #{cspdarknet_tiny_forward.18} parent=1 // loop_exit
      _

// kernel: cspdarknet_tiny_forward.21
$region0: #{cspdarknet_tiny_forward.21}
  #allocation0 [shape = 'u32[]', space=smem, size = 0x4, offset = 0x4, fixed_abs, tag = 'smem constant byte address 0x4 - core index']
  #allocation1 [shape = 'u32[144,128]{1,0:T(1,128)}', space=vmem, size = 0x12000, scoped, tag = 'internal scratch']
  #allocation2 [shape = 'f32[128,64]{1,0:T(8,128)}', space=vmem, size = 0x10000, scoped, tag = 'scratch operand']
  %s0 = inlined_call_operand.vmem [shape: bf16[128,128], index: 0, kind: input, shape index: {}]
  %s1 = inlined_call_operand.vmem [shape: bf16[128,64], index: 1, kind: input, shape index: {}]
  %s2 = inlined_call_operand.vmem [shape: f32[1,64], index: 2, kind: input, shape index: {}]
  %s3 = inlined_call_operand.vmem [shape: bf16[128,64], index: 3, kind: output, shape index: {}]
  %s4 = sld [smem:[#allocation0]]
  $region30: #{cspdarknet_tiny_forward.21} parent=0
    _
  %s6 = ssub.s32 1, %s4
  %s7 = scalar_select 0, %s6, %s4
  // Predicated region
  $region2: #{cspdarknet_tiny_forward.21} parent=0 // pred_check
    _
  $region3: #{cspdarknet_tiny_forward.21} parent=0 // pred_check_branch
    %9 = sbr.rel (0) target = $region5
  $region4: #{cspdarknet_tiny_forward.21} parent=0 // pred_region
    _
  $region5: #{cspdarknet_tiny_forward.21} parent=0 // pred_fallthru
    _
  // Predicated region
  $region6: #{cspdarknet_tiny_forward.21} parent=0 // pred_check
    _
  $region7: #{cspdarknet_tiny_forward.21} parent=0 // pred_check_branch
    %11 = sbr.rel (0) target = $region9
  $region8: #{cspdarknet_tiny_forward.21} parent=0 // pred_region
    _
  $region9: #{cspdarknet_tiny_forward.21} parent=0 // pred_fallthru
    _
  // Predicated region
  $region10: #{cspdarknet_tiny_forward.21} parent=0 // pred_check
    _
  $region11: #{cspdarknet_tiny_forward.21} parent=0 // pred_check_branch
    %13 = sbr.rel (0) target = $region13
  $region12: #{cspdarknet_tiny_forward.21} parent=0 // pred_region
    _
  $region13: #{cspdarknet_tiny_forward.21} parent=0 // pred_fallthru
    _
  %p15 = scmp.eq.s32.totalorder 0, 0
  // Predicated region
  $region14: #{cspdarknet_tiny_forward.21} parent=0 // pred_check
    %p16 = pneg %p15
  $region15: #{cspdarknet_tiny_forward.21} parent=0 // pred_check_branch
    %18 = sbr.rel (%p16) target = $region17
  $region16: #{cspdarknet_tiny_forward.21} parent=0 // pred_region
    %vm19 = vcmask 523264
    %20 = vst.msk [vmem:[#allocation2] sm:$0xff] %vm19, 0.0
    %21 = vst.msk [vmem:[#allocation2 + $0x8] sm:$0xff] %vm19, 0.0
    %22 = vst.msk [vmem:[#allocation2 + $0x10] sm:$0xff] %vm19, 0.0
    %23 = vst.msk [vmem:[#allocation2 + $0x18] sm:$0xff] %vm19, 0.0
    %24 = vst.msk [vmem:[#allocation2 + $0x20] sm:$0xff] %vm19, 0.0
    %25 = vst.msk [vmem:[#allocation2 + $0x28] sm:$0xff] %vm19, 0.0
    %26 = vst.msk [vmem:[#allocation2 + $0x30] sm:$0xff] %vm19, 0.0
    %27 = vst.msk [vmem:[#allocation2 + $0x38] sm:$0xff] %vm19, 0.0
    %28 = vst.msk [vmem:[#allocation2 + $0x40] sm:$0xff] %vm19, 0.0
    %29 = vst.msk [vmem:[#allocation2 + $0x48] sm:$0xff] %vm19, 0.0
    %30 = vst.msk [vmem:[#allocation2 + $0x50] sm:$0xff] %vm19, 0.0
    %31 = vst.msk [vmem:[#allocation2 + $0x58] sm:$0xff] %vm19, 0.0
    %32 = vst.msk [vmem:[#allocation2 + $0x60] sm:$0xff] %vm19, 0.0
    %33 = vst.msk [vmem:[#allocation2 + $0x68] sm:$0xff] %vm19, 0.0
    %34 = vst.msk [vmem:[#allocation2 + $0x70] sm:$0xff] %vm19, 0.0
    %35 = vst.msk [vmem:[#allocation2 + $0x78] sm:$0xff] %vm19, 0.0
  $region17: #{cspdarknet_tiny_forward.21} parent=0 // pred_fallthru
    _
  %v36 = vld [vmem:[#allocation2] sm:$0xff]
  %v37 = vld [vmem:[#allocation2 + $0x8] sm:$0xff]
  %v38 = vld [vmem:[#allocation2 + $0x10] sm:$0xff]
  %v39 = vld [vmem:[#allocation2 + $0x18] sm:$0xff]
  %v40 = vld [vmem:[#allocation2 + $0x20] sm:$0xff]
  %v41 = vld [vmem:[#allocation2 + $0x28] sm:$0xff]
  %v42 = vld [vmem:[#allocation2 + $0x30] sm:$0xff]
  %v43 = vld [vmem:[#allocation2 + $0x38] sm:$0xff]
  %v44 = vld [vmem:[#allocation2 + $0x40] sm:$0xff]
  %v45 = vld [vmem:[#allocation2 + $0x48] sm:$0xff]
  %v46 = vld [vmem:[#allocation2 + $0x50] sm:$0xff]
  %v47 = vld [vmem:[#allocation2 + $0x58] sm:$0xff]
  %v48 = vld [vmem:[#allocation2 + $0x60] sm:$0xff]
  %v49 = vld [vmem:[#allocation2 + $0x68] sm:$0xff]
  %v50 = vld [vmem:[#allocation2 + $0x70] sm:$0xff]
  %v51 = vld [vmem:[#allocation2 + $0x78] sm:$0xff]
  %v52 = vld [vmem:[%s0] sm:$0xf]
  %v53 = vld [vmem:[%s0 + $0x4] sm:$0xf]
  %v54 = vld [vmem:[%s0 + $0x8] sm:$0xf]
  %v55 = vld [vmem:[%s0 + $0xc] sm:$0xf]
  %v56 = vld [vmem:[%s0 + $0x10] sm:$0xf]
  %v57 = vld [vmem:[%s0 + $0x14] sm:$0xf]
  %v58 = vld [vmem:[%s0 + $0x18] sm:$0xf]
  %v59 = vld [vmem:[%s0 + $0x1c] sm:$0xf]
  %v60 = vld [vmem:[%s0 + $0x20] sm:$0xf]
  %v61 = vld [vmem:[%s0 + $0x24] sm:$0xf]
  %v62 = vld [vmem:[%s0 + $0x28] sm:$0xf]
  %v63 = vld [vmem:[%s0 + $0x2c] sm:$0xf]
  %v64 = vld [vmem:[%s0 + $0x30] sm:$0xf]
  %v65 = vld [vmem:[%s0 + $0x34] sm:$0xf]
  %v66 = vld [vmem:[%s0 + $0x38] sm:$0xf]
  %v67 = vld [vmem:[%s0 + $0x3c] sm:$0xf]
  %v68 = vld [vmem:[%s1] sm:$0xf]
  %v69 = vld [vmem:[%s1 + $0x4] sm:$0xf]
  %v70 = vld [vmem:[%s1 + $0x8] sm:$0xf]
  %v71 = vld [vmem:[%s1 + $0xc] sm:$0xf]
  %v72 = vld [vmem:[%s1 + $0x10] sm:$0xf]
  %v73 = vld [vmem:[%s1 + $0x14] sm:$0xf]
  %v74 = vld [vmem:[%s1 + $0x18] sm:$0xf]
  %v75 = vld [vmem:[%s1 + $0x1c] sm:$0xf]
  %v76 = vld [vmem:[%s1 + $0x20] sm:$0xf]
  %v77 = vld [vmem:[%s1 + $0x24] sm:$0xf]
  %v78 = vld [vmem:[%s1 + $0x28] sm:$0xf]
  %v79 = vld [vmem:[%s1 + $0x2c] sm:$0xf]
  %v80 = vld [vmem:[%s1 + $0x30] sm:$0xf]
  %v81 = vld [vmem:[%s1 + $0x34] sm:$0xf]
  %v82 = vld [vmem:[%s1 + $0x38] sm:$0xf]
  %v83 = vld [vmem:[%s1 + $0x3c] sm:$0xf]
  %v100 = vunpack.c.l.b16 %v52
  %v101 = vunpack.c.l.b16 %v53
  %v102 = vunpack.c.l.b16 %v54
  %v103 = vunpack.c.l.b16 %v55
  %v104 = vunpack.c.l.b16 %v56
  %v105 = vunpack.c.l.b16 %v57
  %v106 = vunpack.c.l.b16 %v58
  %v107 = vunpack.c.l.b16 %v59
  %v108 = vunpack.c.l.b16 %v60
  %v109 = vunpack.c.l.b16 %v61
  %v110 = vunpack.c.l.b16 %v62
  %v111 = vunpack.c.l.b16 %v63
  %v112 = vunpack.c.l.b16 %v64
  %v113 = vunpack.c.l.b16 %v65
  %v114 = vunpack.c.l.b16 %v66
  %v115 = vunpack.c.l.b16 %v67
  %v116 = vpack.c.b16 %v101, %v100
  %v117 = vpack.c.b16 %v103, %v102
  %v118 = vpack.c.b16 %v105, %v104
  %v119 = vpack.c.b16 %v107, %v106
  %v120 = vpack.c.b16 %v109, %v108
  %v121 = vpack.c.b16 %v111, %v110
  %v122 = vpack.c.b16 %v113, %v112
  %v123 = vpack.c.b16 %v115, %v114
  %v148 = vunpack.c.l.b16 %v68
  %v149 = vunpack.c.l.b16 %v69
  %v150 = vunpack.c.l.b16 %v70
  %v151 = vunpack.c.l.b16 %v71
  %v152 = vunpack.c.l.b16 %v72
  %v153 = vunpack.c.l.b16 %v73
  %v154 = vunpack.c.l.b16 %v74
  %v155 = vunpack.c.l.b16 %v75
  %v156 = vunpack.c.l.b16 %v76
  %v157 = vunpack.c.l.b16 %v77
  %v158 = vunpack.c.l.b16 %v78
  %v159 = vunpack.c.l.b16 %v79
  %v160 = vunpack.c.l.b16 %v80
  %v161 = vunpack.c.l.b16 %v81
  %v162 = vunpack.c.l.b16 %v82
  %v163 = vunpack.c.l.b16 %v83
  %v164 = vpack.c.b16 %v149, %v148
  %v165 = vpack.c.b16 %v151, %v150
  %v166 = vpack.c.b16 %v153, %v152
  %v167 = vpack.c.b16 %v155, %v154
  %v168 = vpack.c.b16 %v157, %v156
  %v169 = vpack.c.b16 %v159, %v158
  %v170 = vpack.c.b16 %v161, %v160
  %v171 = vpack.c.b16 %v163, %v162
  %180 = vmatprep.subr.bf16.mxu0 0
  %181 = vmatpush1.bf16.msra.mxu0 %v164
  %182 = vmatprep.subr.bf16.mxu0 0
  %183 = vmatpush1.bf16.msra.mxu0 %v165
  %184 = vmatprep.subr.bf16.mxu0 0
  %185 = vmatpush1.bf16.msra.mxu0 %v166
  %186 = vmatprep.subr.bf16.mxu0 0
  %187 = vmatpush1.bf16.msra.mxu0 %v167
  %188 = vmatprep.subr.bf16.mxu0 0
  %189 = vmatpush1.bf16.msra.mxu0 %v168
  %190 = vmatprep.subr.bf16.mxu0 0
  %191 = vmatpush1.bf16.msra.mxu0 %v169
  %192 = vmatprep.subr.bf16.mxu0 0
  %193 = vmatpush1.bf16.msra.mxu0 %v170
  %194 = vmatprep.subr.bf16.mxu0 0
  %195 = vmatpush1.bf16.msra.mxu0 %v171
  %196 = vmatprep.subr.bf16.mxu0 0
  %197 = vmatpush1.bf16.msra.mxu0 0
  %198 = vmatprep.subr.bf16.mxu0 0
  %199 = vmatpush1.bf16.msra.mxu0 0
  %200 = vmatprep.subr.bf16.mxu0 0
  %201 = vmatpush1.bf16.msra.mxu0 0
  %202 = vmatprep.subr.bf16.mxu0 0
  %203 = vmatpush1.bf16.msra.mxu0 0
  %204 = vmatprep.subr.bf16.mxu0 0
  %205 = vmatpush1.bf16.msra.mxu0 0
  %206 = vmatprep.subr.bf16.mxu0 0
  %207 = vmatpush1.bf16.msra.mxu0 0
  %208 = vmatprep.subr.bf16.mxu0 0
  %209 = vmatpush1.bf16.msra.mxu0 0
  %210 = vmatprep.subr.bf16.mxu0 0
  %211 = vmatpush1.bf16.msra.mxu0 0
  %212 = vmatprep.mubr.bf16.mxu0 0
  %213 = vmatmul.mubr.bf16.gmra.mrb[0].mxu0 %v116
  %v214 = vpop.f32.mrb[0].mxu0
  %v215 = vadd.f32 0.0, %v214
  %v216 = vpop.f32.mrb[0].mxu0
  %v217 = vpop.f32.mrb[0].mxu0
  %v218 = vadd.f32 0.0, %v217
  %v219 = vpop.f32.mrb[0].mxu0
  %220 = vmatprep.mubr.bf16.mxu0 0
  %221 = vmatmul.mubr.bf16.gmra.mrb[0].mxu0 %v117
  %v222 = vpop.f32.mrb[0].mxu0
  %v223 = vadd.f32 0.0, %v222
  %v224 = vpop.f32.mrb[0].mxu0
  %v225 = vpop.f32.mrb[0].mxu0
  %v226 = vadd.f32 0.0, %v225
  %v227 = vpop.f32.mrb[0].mxu0
  %228 = vmatprep.mubr.bf16.mxu0 0
  %229 = vmatmul.mubr.bf16.gmra.mrb[0].mxu0 %v118
  %v230 = vpop.f32.mrb[0].mxu0
  %v231 = vadd.f32 0.0, %v230
  %v232 = vpop.f32.mrb[0].mxu0
  %v233 = vpop.f32.mrb[0].mxu0
  %v234 = vadd.f32 0.0, %v233
  %v235 = vpop.f32.mrb[0].mxu0
  %236 = vmatprep.mubr.bf16.mxu0 0
  %237 = vmatmul.mubr.bf16.gmra.mrb[0].mxu0 %v119
  %v238 = vpop.f32.mrb[0].mxu0
  %v239 = vadd.f32 0.0, %v238
  %v240 = vpop.f32.mrb[0].mxu0
  %v241 = vpop.f32.mrb[0].mxu0
  %v242 = vadd.f32 0.0, %v241
  %v243 = vpop.f32.mrb[0].mxu0
  %244 = vmatprep.mubr.bf16.mxu0 0
  %245 = vmatmul.mubr.bf16.gmra.mrb[0].mxu0 %v120
  %v246 = vpop.f32.mrb[0].mxu0
  %v247 = vadd.f32 0.0, %v246
  %v248 = vpop.f32.mrb[0].mxu0
  %v249 = vpop.f32.mrb[0].mxu0
  %v250 = vadd.f32 0.0, %v249
  %v251 = vpop.f32.mrb[0].mxu0
  %252 = vmatprep.mubr.bf16.mxu0 0
  %253 = vmatmul.mubr.bf16.gmra.mrb[0].mxu0 %v121
  %v254 = vpop.f32.mrb[0].mxu0
  %v255 = vadd.f32 0.0, %v254
  %v256 = vpop.f32.mrb[0].mxu0
  %v257 = vpop.f32.mrb[0].mxu0
  %v258 = vadd.f32 0.0, %v257
  %v259 = vpop.f32.mrb[0].mxu0
  %260 = vmatprep.mubr.bf16.mxu0 0
  %261 = vmatmul.mubr.bf16.gmra.mrb[0].mxu0 %v122
  %v262 = vpop.f32.mrb[0].mxu0
  %v263 = vadd.f32 0.0, %v262
  %v264 = vpop.f32.mrb[0].mxu0
  %v265 = vpop.f32.mrb[0].mxu0
  %v266 = vadd.f32 0.0, %v265
  %v267 = vpop.f32.mrb[0].mxu0
  %268 = vmatprep.mubr.bf16.mxu0 0
  %269 = vmatmul.mubr.bf16.gmra.mrb[0].mxu0 %v123
  %v270 = vpop.f32.mrb[0].mxu0
  %v271 = vadd.f32 0.0, %v270
  %v272 = vpop.f32.mrb[0].mxu0
  %v273 = vpop.f32.mrb[0].mxu0
  %v274 = vadd.f32 0.0, %v273
  %v275 = vpop.f32.mrb[0].mxu0
  %276 = vdwg.mxu0
  %v277 = vadd.f32 %v36, %v215
  %v278 = vadd.f32 %v37, %v218
  %v279 = vadd.f32 %v38, %v223
  %v280 = vadd.f32 %v39, %v226
  %v281 = vadd.f32 %v40, %v231
  %v282 = vadd.f32 %v41, %v234
  %v283 = vadd.f32 %v42, %v239
  %v284 = vadd.f32 %v43, %v242
  %v285 = vadd.f32 %v44, %v247
  %v286 = vadd.f32 %v45, %v250
  %v287 = vadd.f32 %v46, %v255
  %v288 = vadd.f32 %v47, %v258
  %v289 = vadd.f32 %v48, %v263
  %v290 = vadd.f32 %v49, %v266
  %v291 = vadd.f32 %v50, %v271
  %v292 = vadd.f32 %v51, %v274
  %vm293 = vcmask 523264
  %294 = vst.msk [vmem:[#allocation2] sm:$0xff] %vm293, %v277
  %295 = vst.msk [vmem:[#allocation2 + $0x8] sm:$0xff] %vm293, %v278
  %296 = vst.msk [vmem:[#allocation2 + $0x10] sm:$0xff] %vm293, %v279
  %297 = vst.msk [vmem:[#allocation2 + $0x18] sm:$0xff] %vm293, %v280
  %298 = vst.msk [vmem:[#allocation2 + $0x20] sm:$0xff] %vm293, %v281
  %299 = vst.msk [vmem:[#allocation2 + $0x28] sm:$0xff] %vm293, %v282
  %300 = vst.msk [vmem:[#allocation2 + $0x30] sm:$0xff] %vm293, %v283
  %301 = vst.msk [vmem:[#allocation2 + $0x38] sm:$0xff] %vm293, %v284
  %302 = vst.msk [vmem:[#allocation2 + $0x40] sm:$0xff] %vm293, %v285
  %303 = vst.msk [vmem:[#allocation2 + $0x48] sm:$0xff] %vm293, %v286
  %304 = vst.msk [vmem:[#allocation2 + $0x50] sm:$0xff] %vm293, %v287
  %305 = vst.msk [vmem:[#allocation2 + $0x58] sm:$0xff] %vm293, %v288
  %306 = vst.msk [vmem:[#allocation2 + $0x60] sm:$0xff] %vm293, %v289
  %307 = vst.msk [vmem:[#allocation2 + $0x68] sm:$0xff] %vm293, %v290
  %308 = vst.msk [vmem:[#allocation2 + $0x70] sm:$0xff] %vm293, %v291
  %309 = vst.msk [vmem:[#allocation2 + $0x78] sm:$0xff] %vm293, %v292
  // Predicated region
  $region18: #{cspdarknet_tiny_forward.21} parent=0 // pred_check
    %p310 = pneg %p15
  $region19: #{cspdarknet_tiny_forward.21} parent=0 // pred_check_branch
    %312 = sbr.rel (%p310) target = $region21
  $region20: #{cspdarknet_tiny_forward.21} parent=0 // pred_region
    %v313 = vld [vmem:[#allocation2] sm:$0xff]
    %v314 = vld [vmem:[#allocation2 + $0x8] sm:$0xff]
    %v315 = vld [vmem:[#allocation2 + $0x10] sm:$0xff]
    %v316 = vld [vmem:[#allocation2 + $0x18] sm:$0xff]
    %v317 = vld [vmem:[#allocation2 + $0x20] sm:$0xff]
    %v318 = vld [vmem:[#allocation2 + $0x28] sm:$0xff]
    %v319 = vld [vmem:[#allocation2 + $0x30] sm:$0xff]
    %v320 = vld [vmem:[#allocation2 + $0x38] sm:$0xff]
    %v321 = vld [vmem:[#allocation2 + $0x40] sm:$0xff]
    %v322 = vld [vmem:[#allocation2 + $0x48] sm:$0xff]
    %v323 = vld [vmem:[#allocation2 + $0x50] sm:$0xff]
    %v324 = vld [vmem:[#allocation2 + $0x58] sm:$0xff]
    %v325 = vld [vmem:[#allocation2 + $0x60] sm:$0xff]
    %v326 = vld [vmem:[#allocation2 + $0x68] sm:$0xff]
    %v327 = vld [vmem:[#allocation2 + $0x70] sm:$0xff]
    %v328 = vld [vmem:[#allocation2 + $0x78] sm:$0xff]
    %v329 = vld [vmem:[%s2] sm:$0x1]
    %v331 = vlaneseq
    %v332 = vshrl.u32 %v331, 7
    %v333 = vsub.s32 0, %v332
    %v334 = vrot.slane %v329, %v333
    %v336 = vadd.f32 %v313, %v334
    %v337 = vadd.f32 %v314, %v334
    %v338 = vadd.f32 %v315, %v334
    %v339 = vadd.f32 %v316, %v334
    %v340 = vadd.f32 %v317, %v334
    %v341 = vadd.f32 %v318, %v334
    %v342 = vadd.f32 %v319, %v334
    %v343 = vadd.f32 %v320, %v334
    %v344 = vadd.f32 %v321, %v334
    %v345 = vadd.f32 %v322, %v334
    %v346 = vadd.f32 %v323, %v334
    %v347 = vadd.f32 %v324, %v334
    %v348 = vadd.f32 %v325, %v334
    %v349 = vadd.f32 %v326, %v334
    %v350 = vadd.f32 %v327, %v334
    %v351 = vadd.f32 %v328, %v334
    %vm352 = vcmp.gt.f32.partialorder %v336, 0.0
    %vm353 = vcmp.gt.f32.partialorder %v337, 0.0
    %vm354 = vcmp.gt.f32.partialorder %v338, 0.0
    %vm355 = vcmp.gt.f32.partialorder %v339, 0.0
    %vm356 = vcmp.gt.f32.partialorder %v340, 0.0
    %vm357 = vcmp.gt.f32.partialorder %v341, 0.0
    %vm358 = vcmp.gt.f32.partialorder %v342, 0.0
    %vm359 = vcmp.gt.f32.partialorder %v343, 0.0
    %vm360 = vcmp.gt.f32.partialorder %v344, 0.0
    %vm361 = vcmp.gt.f32.partialorder %v345, 0.0
    %vm362 = vcmp.gt.f32.partialorder %v346, 0.0
    %vm363 = vcmp.gt.f32.partialorder %v347, 0.0
    %vm364 = vcmp.gt.f32.partialorder %v348, 0.0
    %vm365 = vcmp.gt.f32.partialorder %v349, 0.0
    %vm366 = vcmp.gt.f32.partialorder %v350, 0.0
    %vm367 = vcmp.gt.f32.partialorder %v351, 0.0
    %v368 = vmul.f32 %v336, 0.1
    %v369 = vmul.f32 %v337, 0.1
    %v370 = vmul.f32 %v338, 0.1
    %v371 = vmul.f32 %v339, 0.1
    %v372 = vmul.f32 %v340, 0.1
    %v373 = vmul.f32 %v341, 0.1
    %v374 = vmul.f32 %v342, 0.1
    %v375 = vmul.f32 %v343, 0.1
    %v376 = vmul.f32 %v344, 0.1
    %v377 = vmul.f32 %v345, 0.1
    %v378 = vmul.f32 %v346, 0.1
    %v379 = vmul.f32 %v347, 0.1
    %v380 = vmul.f32 %v348, 0.1
    %v381 = vmul.f32 %v349, 0.1
    %v382 = vmul.f32 %v350, 0.1
    %v383 = vmul.f32 %v351, 0.1
    %v384 = vsel %vm352, %v336, %v368
    %v385 = vsel %vm353, %v337, %v369
    %v386 = vsel %vm354, %v338, %v370
    %v387 = vsel %vm355, %v339, %v371
    %v388 = vsel %vm356, %v340, %v372
    %v389 = vsel %vm357, %v341, %v373
    %v390 = vsel %vm358, %v342, %v374
    %v391 = vsel %vm359, %v343, %v375
    %v392 = vsel %vm360, %v344, %v376
    %v393 = vsel %vm361, %v345, %v377
    %v394 = vsel %vm362, %v346, %v378
    %v395 = vsel %vm363, %v347, %v379
    %v396 = vsel %vm364, %v348, %v380
    %v397 = vsel %vm365, %v349, %v381
    %v398 = vsel %vm366, %v350, %v382
    %v399 = vsel %vm367, %v351, %v383
    %v400 = vpack.c.bf16 %v385, %v384
    %v401 = vpack.c.bf16 %v387, %v386
    %v402 = vpack.c.bf16 %v389, %v388
    %v403 = vpack.c.bf16 %v391, %v390
    %v404 = vpack.c.bf16 %v393, %v392
    %v405 = vpack.c.bf16 %v395, %v394
    %v406 = vpack.c.bf16 %v397, %v396
    %v407 = vpack.c.bf16 %v399, %v398
    %v416 = vunpack.c.l.b16 %v400
    %v417 = vunpack.c.h.b16 %v400
    %v418 = vunpack.c.l.b16 %v401
    %v419 = vunpack.c.h.b16 %v401
    %v420 = vunpack.c.l.b16 %v402
    %v421 = vunpack.c.h.b16 %v402
    %v422 = vunpack.c.l.b16 %v403
    %v423 = vunpack.c.h.b16 %v403
    %v424 = vunpack.c.l.b16 %v404
    %v425 = vunpack.c.h.b16 %v404
    %v426 = vunpack.c.l.b16 %v405
    %v427 = vunpack.c.h.b16 %v405
    %v428 = vunpack.c.l.b16 %v406
    %v429 = vunpack.c.h.b16 %v406
    %v430 = vunpack.c.l.b16 %v407
    %v431 = vunpack.c.h.b16 %v407
    %v432 = vpack.c.b16 %v416, %v416
    %v433 = vpack.c.b16 %v417, %v417
    %v434 = vpack.c.b16 %v418, %v418
    %v435 = vpack.c.b16 %v419, %v419
    %v436 = vpack.c.b16 %v420, %v420
    %v437 = vpack.c.b16 %v421, %v421
    %v438 = vpack.c.b16 %v422, %v422
    %v439 = vpack.c.b16 %v423, %v423
    %v440 = vpack.c.b16 %v424, %v424
    %v441 = vpack.c.b16 %v425, %v425
    %v442 = vpack.c.b16 %v426, %v426
    %v443 = vpack.c.b16 %v427, %v427
    %v444 = vpack.c.b16 %v428, %v428
    %v445 = vpack.c.b16 %v429, %v429
    %v446 = vpack.c.b16 %v430, %v430
    %v447 = vpack.c.b16 %v431, %v431
    %vm464 = vcmask 519168
    %465 = vst.msk [vmem:[%s3] sm:$0xf] %vm464, %v432
    %466 = vst.msk [vmem:[%s3 + $0x4] sm:$0xf] %vm464, %v433
    %467 = vst.msk [vmem:[%s3 + $0x8] sm:$0xf] %vm464, %v434
    %468 = vst.msk [vmem:[%s3 + $0xc] sm:$0xf] %vm464, %v435
    %469 = vst.msk [vmem:[%s3 + $0x10] sm:$0xf] %vm464, %v436
    %470 = vst.msk [vmem:[%s3 + $0x14] sm:$0xf] %vm464, %v437
    %471 = vst.msk [vmem:[%s3 + $0x18] sm:$0xf] %vm464, %v438
    %472 = vst.msk [vmem:[%s3 + $0x1c] sm:$0xf] %vm464, %v439
    %473 = vst.msk [vmem:[%s3 + $0x20] sm:$0xf] %vm464, %v440
    %474 = vst.msk [vmem:[%s3 + $0x24] sm:$0xf] %vm464, %v441
    %475 = vst.msk [vmem:[%s3 + $0x28] sm:$0xf] %vm464, %v442
    %476 = vst.msk [vmem:[%s3 + $0x2c] sm:$0xf] %vm464, %v443
    %477 = vst.msk [vmem:[%s3 + $0x30] sm:$0xf] %vm464, %v444
    %478 = vst.msk [vmem:[%s3 + $0x34] sm:$0xf] %vm464, %v445
    %479 = vst.msk [vmem:[%s3 + $0x38] sm:$0xf] %vm464, %v446
    %480 = vst.msk [vmem:[%s3 + $0x3c] sm:$0xf] %vm464, %v447
  $region21: #{cspdarknet_tiny_forward.21} parent=0 // pred_fallthru
    _
  // Predicated region
  $region22: #{cspdarknet_tiny_forward.21} parent=0 // pred_check
    _
  $region23: #{cspdarknet_tiny_forward.21} parent=0 // pred_check_branch
    %482 = sbr.rel (0) target = $region25
  $region24: #{cspdarknet_tiny_forward.21} parent=0 // pred_region
    _
  $region25: #{cspdarknet_tiny_forward.21} parent=0 // pred_fallthru
    _
  // Predicated region
  $region26: #{cspdarknet_tiny_forward.21} parent=0 // pred_check
    _
  $region27: #{cspdarknet_tiny_forward.21} parent=0 // pred_check_branch
    %484 = sbr.rel (0) target = $region29
  $region28: #{cspdarknet_tiny_forward.21} parent=0 // pred_region
    _
  $region29: #{cspdarknet_tiny_forward.21} parent=0 // pred_fallthru
    _

// kernel: cspdarknet_tiny_forward.19
$region0: #{cspdarknet_tiny_forward.19}
  #allocation0 [shape = 'u32[]', space=smem, size = 0x4, offset = 0x4, fixed_abs, tag = 'smem constant byte address 0x4 - core index']
  #allocation1 [shape = 'u32[144,128]{1,0:T(1,128)}', space=vmem, size = 0x12000, scoped, tag = 'internal scratch']
  #allocation2 [shape = 'f32[128,32]{1,0:T(8,128)}', space=vmem, size = 0x10000, scoped, tag = 'scratch operand']
  %s0 = inlined_call_operand.vmem [shape: bf16[128,384], index: 0, kind: input, shape index: {}]
  %s1 = inlined_call_operand.vmem [shape: bf16[384,32], index: 1, kind: input, shape index: {}]
  %s2 = inlined_call_operand.vmem [shape: f32[1,32], index: 2, kind: input, shape index: {}]
  %s3 = inlined_call_operand.vmem [shape: bf16[128,32], index: 3, kind: output, shape index: {}]
  %s4 = sld [smem:[#allocation0]]
  $region30: #{cspdarknet_tiny_forward.19} parent=0
    _
  %s6 = ssub.s32 1, %s4
  %s7 = scalar_select 0, %s6, %s4
  // Predicated region
  $region2: #{cspdarknet_tiny_forward.19} parent=0 // pred_check
    _
  $region3: #{cspdarknet_tiny_forward.19} parent=0 // pred_check_branch
    %9 = sbr.rel (0) target = $region5
  $region4: #{cspdarknet_tiny_forward.19} parent=0 // pred_region
    _
  $region5: #{cspdarknet_tiny_forward.19} parent=0 // pred_fallthru
    _
  // Predicated region
  $region6: #{cspdarknet_tiny_forward.19} parent=0 // pred_check
    _
  $region7: #{cspdarknet_tiny_forward.19} parent=0 // pred_check_branch
    %11 = sbr.rel (0) target = $region9
  $region8: #{cspdarknet_tiny_forward.19} parent=0 // pred_region
    _
  $region9: #{cspdarknet_tiny_forward.19} parent=0 // pred_fallthru
    _
  // Predicated region
  $region10: #{cspdarknet_tiny_forward.19} parent=0 // pred_check
    _
  $region11: #{cspdarknet_tiny_forward.19} parent=0 // pred_check_branch
    %13 = sbr.rel (0) target = $region13
  $region12: #{cspdarknet_tiny_forward.19} parent=0 // pred_region
    _
  $region13: #{cspdarknet_tiny_forward.19} parent=0 // pred_fallthru
    _
  %p15 = scmp.eq.s32.totalorder 0, 0
  // Predicated region
  $region14: #{cspdarknet_tiny_forward.19} parent=0 // pred_check
    %p16 = pneg %p15
  $region15: #{cspdarknet_tiny_forward.19} parent=0 // pred_check_branch
    %18 = sbr.rel (%p16) target = $region17
  $region16: #{cspdarknet_tiny_forward.19} parent=0 // pred_region
    %vm19 = vcmask 261120
    %20 = vst.msk [vmem:[#allocation2] sm:$0xff] %vm19, 0.0
    %21 = vst.msk [vmem:[#allocation2 + $0x8] sm:$0xff] %vm19, 0.0
    %22 = vst.msk [vmem:[#allocation2 + $0x10] sm:$0xff] %vm19, 0.0
    %23 = vst.msk [vmem:[#allocation2 + $0x18] sm:$0xff] %vm19, 0.0
    %24 = vst.msk [vmem:[#allocation2 + $0x20] sm:$0xff] %vm19, 0.0
    %25 = vst.msk [vmem:[#allocation2 + $0x28] sm:$0xff] %vm19, 0.0
    %26 = vst.msk [vmem:[#allocation2 + $0x30] sm:$0xff] %vm19, 0.0
    %27 = vst.msk [vmem:[#allocation2 + $0x38] sm:$0xff] %vm19, 0.0
    %28 = vst.msk [vmem:[#allocation2 + $0x40] sm:$0xff] %vm19, 0.0
    %29 = vst.msk [vmem:[#allocation2 + $0x48] sm:$0xff] %vm19, 0.0
    %30 = vst.msk [vmem:[#allocation2 + $0x50] sm:$0xff] %vm19, 0.0
    %31 = vst.msk [vmem:[#allocation2 + $0x58] sm:$0xff] %vm19, 0.0
    %32 = vst.msk [vmem:[#allocation2 + $0x60] sm:$0xff] %vm19, 0.0
    %33 = vst.msk [vmem:[#allocation2 + $0x68] sm:$0xff] %vm19, 0.0
    %34 = vst.msk [vmem:[#allocation2 + $0x70] sm:$0xff] %vm19, 0.0
    %35 = vst.msk [vmem:[#allocation2 + $0x78] sm:$0xff] %vm19, 0.0
  $region17: #{cspdarknet_tiny_forward.19} parent=0 // pred_fallthru
    _
  %v36 = vld [vmem:[#allocation2] sm:$0xff]
  %v37 = vld [vmem:[#allocation2 + $0x8] sm:$0xff]
  %v38 = vld [vmem:[#allocation2 + $0x10] sm:$0xff]
  %v39 = vld [vmem:[#allocation2 + $0x18] sm:$0xff]
  %v40 = vld [vmem:[#allocation2 + $0x20] sm:$0xff]
  %v41 = vld [vmem:[#allocation2 + $0x28] sm:$0xff]
  %v42 = vld [vmem:[#allocation2 + $0x30] sm:$0xff]
  %v43 = vld [vmem:[#allocation2 + $0x38] sm:$0xff]
  %v44 = vld [vmem:[#allocation2 + $0x40] sm:$0xff]
  %v45 = vld [vmem:[#allocation2 + $0x48] sm:$0xff]
  %v46 = vld [vmem:[#allocation2 + $0x50] sm:$0xff]
  %v47 = vld [vmem:[#allocation2 + $0x58] sm:$0xff]
  %v48 = vld [vmem:[#allocation2 + $0x60] sm:$0xff]
  %v49 = vld [vmem:[#allocation2 + $0x68] sm:$0xff]
  %v50 = vld [vmem:[#allocation2 + $0x70] sm:$0xff]
  %v51 = vld [vmem:[#allocation2 + $0x78] sm:$0xff]
  %v52 = vld [vmem:[%s0] sm:$0xff]
  %v53 = vld [vmem:[%s0 + $0x8] sm:$0xf]
  %v54 = vld [vmem:[%s0 + $0xc] sm:$0xff]
  %v55 = vld [vmem:[%s0 + $0x14] sm:$0xf]
  %v56 = vld [vmem:[%s0 + $0x18] sm:$0xff]
  %v57 = vld [vmem:[%s0 + $0x20] sm:$0xf]
  %v58 = vld [vmem:[%s0 + $0x24] sm:$0xff]
  %v59 = vld [vmem:[%s0 + $0x2c] sm:$0xf]
  %v60 = vld [vmem:[%s0 + $0x30] sm:$0xff]
  %v61 = vld [vmem:[%s0 + $0x38] sm:$0xf]
  %v62 = vld [vmem:[%s0 + $0x3c] sm:$0xff]
  %v63 = vld [vmem:[%s0 + $0x44] sm:$0xf]
  %v64 = vld [vmem:[%s0 + $0x48] sm:$0xff]
  %v65 = vld [vmem:[%s0 + $0x50] sm:$0xf]
  %v66 = vld [vmem:[%s0 + $0x54] sm:$0xff]
  %v67 = vld [vmem:[%s0 + $0x5c] sm:$0xf]
  %v68 = vld [vmem:[%s0 + $0x60] sm:$0xff]
  %v69 = vld [vmem:[%s0 + $0x68] sm:$0xf]
  %v70 = vld [vmem:[%s0 + $0x6c] sm:$0xff]
  %v71 = vld [vmem:[%s0 + $0x74] sm:$0xf]
  %v72 = vld [vmem:[%s0 + $0x78] sm:$0xff]
  %v73 = vld [vmem:[%s0 + $0x80] sm:$0xf]
  %v74 = vld [vmem:[%s0 + $0x84] sm:$0xff]
  %v75 = vld [vmem:[%s0 + $0x8c] sm:$0xf]
  %v76 = vld [vmem:[%s0 + $0x90] sm:$0xff]
  %v77 = vld [vmem:[%s0 + $0x98] sm:$0xf]
  %v78 = vld [vmem:[%s0 + $0x9c] sm:$0xff]
  %v79 = vld [vmem:[%s0 + $0xa4] sm:$0xf]
  %v80 = vld [vmem:[%s0 + $0xa8] sm:$0xff]
  %v81 = vld [vmem:[%s0 + $0xb0] sm:$0xf]
  %v82 = vld [vmem:[%s0 + $0xb4] sm:$0xff]
  %v83 = vld [vmem:[%s0 + $0xbc] sm:$0xf]
  %v84 = vld [vmem:[%s1] sm:$0xf]
  %v85 = vld [vmem:[%s1 + $0x4] sm:$0xf]
  %v86 = vld [vmem:[%s1 + $0x8] sm:$0xf]
  %v87 = vld [vmem:[%s1 + $0xc] sm:$0xf]
  %v88 = vld [vmem:[%s1 + $0x10] sm:$0xf]
  %v89 = vld [vmem:[%s1 + $0x14] sm:$0xf]
  %v90 = vld [vmem:[%s1 + $0x18] sm:$0xf]
  %v91 = vld [vmem:[%s1 + $0x1c] sm:$0xf]
  %v92 = vld [vmem:[%s1 + $0x20] sm:$0xf]
  %v93 = vld [vmem:[%s1 + $0x24] sm:$0xf]
  %v94 = vld [vmem:[%s1 + $0x28] sm:$0xf]
  %v95 = vld [vmem:[%s1 + $0x2c] sm:$0xf]
  %v96 = vld [vmem:[%s1 + $0x30] sm:$0xf]
  %v97 = vld [vmem:[%s1 + $0x34] sm:$0xf]
  %v98 = vld [vmem:[%s1 + $0x38] sm:$0xf]
  %v99 = vld [vmem:[%s1 + $0x3c] sm:$0xf]
  %v100 = vld [vmem:[%s1 + $0x40] sm:$0xf]
  %v101 = vld [vmem:[%s1 + $0x44] sm:$0xf]
  %v102 = vld [vmem:[%s1 + $0x48] sm:$0xf]
  %v103 = vld [vmem:[%s1 + $0x4c] sm:$0xf]
  %v104 = vld [vmem:[%s1 + $0x50] sm:$0xf]
  %v105 = vld [vmem:[%s1 + $0x54] sm:$0xf]
  %v106 = vld [vmem:[%s1 + $0x58] sm:$0xf]
  %v107 = vld [vmem:[%s1 + $0x5c] sm:$0xf]
  %v108 = vld [vmem:[%s1 + $0x60] sm:$0xf]
  %v109 = vld [vmem:[%s1 + $0x64] sm:$0xf]
  %v110 = vld [vmem:[%s1 + $0x68] sm:$0xf]
  %v111 = vld [vmem:[%s1 + $0x6c] sm:$0xf]
  %v112 = vld [vmem:[%s1 + $0x70] sm:$0xf]
  %v113 = vld [vmem:[%s1 + $0x74] sm:$0xf]
  %v114 = vld [vmem:[%s1 + $0x78] sm:$0xf]
  %v115 = vld [vmem:[%s1 + $0x7c] sm:$0xf]
  %v116 = vld [vmem:[%s1 + $0x80] sm:$0xf]
  %v117 = vld [vmem:[%s1 + $0x84] sm:$0xf]
  %v118 = vld [vmem:[%s1 + $0x88] sm:$0xf]
  %v119 = vld [vmem:[%s1 + $0x8c] sm:$0xf]
  %v120 = vld [vmem:[%s1 + $0x90] sm:$0xf]
  %v121 = vld [vmem:[%s1 + $0x94] sm:$0xf]
  %v122 = vld [vmem:[%s1 + $0x98] sm:$0xf]
  %v123 = vld [vmem:[%s1 + $0x9c] sm:$0xf]
  %v124 = vld [vmem:[%s1 + $0xa0] sm:$0xf]
  %v125 = vld [vmem:[%s1 + $0xa4] sm:$0xf]
  %v126 = vld [vmem:[%s1 + $0xa8] sm:$0xf]
  %v127 = vld [vmem:[%s1 + $0xac] sm:$0xf]
  %v128 = vld [vmem:[%s1 + $0xb0] sm:$0xf]
  %v129 = vld [vmem:[%s1 + $0xb4] sm:$0xf]
  %v130 = vld [vmem:[%s1 + $0xb8] sm:$0xf]
  %v131 = vld [vmem:[%s1 + $0xbc] sm:$0xf]
  %v164 = vunpack.c.l.b16 %v52
  %v165 = vunpack.c.h.b16 %v52
  %v166 = vunpack.c.l.b16 %v53
  %v167 = vunpack.c.l.b16 %v54
  %v168 = vunpack.c.h.b16 %v54
  %v169 = vunpack.c.l.b16 %v55
  %v170 = vunpack.c.l.b16 %v56
  %v171 = vunpack.c.h.b16 %v56
  %v172 = vunpack.c.l.b16 %v57
  %v173 = vunpack.c.l.b16 %v58
  %v174 = vunpack.c.h.b16 %v58
  %v175 = vunpack.c.l.b16 %v59
  %v176 = vunpack.c.l.b16 %v60
  %v177 = vunpack.c.h.b16 %v60
  %v178 = vunpack.c.l.b16 %v61
  %v179 = vunpack.c.l.b16 %v62
  %v180 = vunpack.c.h.b16 %v62
  %v181 = vunpack.c.l.b16 %v63
  %v182 = vunpack.c.l.b16 %v64
  %v183 = vunpack.c.h.b16 %v64
  %v184 = vunpack.c.l.b16 %v65
  %v185 = vunpack.c.l.b16 %v66
  %v186 = vunpack.c.h.b16 %v66
  %v187 = vunpack.c.l.b16 %v67
  %v188 = vunpack.c.l.b16 %v68
  %v189 = vunpack.c.h.b16 %v68
  %v190 = vunpack.c.l.b16 %v69
  %v191 = vunpack.c.l.b16 %v70
  %v192 = vunpack.c.h.b16 %v70
  %v193 = vunpack.c.l.b16 %v71
  %v194 = vunpack.c.l.b16 %v72
  %v195 = vunpack.c.h.b16 %v72
  %v196 = vunpack.c.l.b16 %v73
  %v197 = vunpack.c.l.b16 %v74
  %v198 = vunpack.c.h.b16 %v74
  %v199 = vunpack.c.l.b16 %v75
  %v200 = vunpack.c.l.b16 %v76
  %v201 = vunpack.c.h.b16 %v76
  %v202 = vunpack.c.l.b16 %v77
  %v203 = vunpack.c.l.b16 %v78
  %v204 = vunpack.c.h.b16 %v78
  %v205 = vunpack.c.l.b16 %v79
  %v206 = vunpack.c.l.b16 %v80
  %v207 = vunpack.c.h.b16 %v80
  %v208 = vunpack.c.l.b16 %v81
  %v209 = vunpack.c.l.b16 %v82
  %v210 = vunpack.c.h.b16 %v82
  %v211 = vunpack.c.l.b16 %v83
  %v212 = vpack.c.b16 %v167, %v164
  %v213 = vpack.c.b16 %v168, %v165
  %v214 = vpack.c.b16 %v169, %v166
  %v215 = vpack.c.b16 %v173, %v170
  %v216 = vpack.c.b16 %v174, %v171
  %v217 = vpack.c.b16 %v175, %v172
  %v218 = vpack.c.b16 %v179, %v176
  %v219 = vpack.c.b16 %v180, %v177
  %v220 = vpack.c.b16 %v181, %v178
  %v221 = vpack.c.b16 %v185, %v182
  %v222 = vpack.c.b16 %v186, %v183
  %v223 = vpack.c.b16 %v187, %v184
  %v224 = vpack.c.b16 %v191, %v188
  %v225 = vpack.c.b16 %v192, %v189
  %v226 = vpack.c.b16 %v193, %v190
  %v227 = vpack.c.b16 %v197, %v194
  %v228 = vpack.c.b16 %v198, %v195
  %v229 = vpack.c.b16 %v199, %v196
  %v230 = vpack.c.b16 %v203, %v200
  %v231 = vpack.c.b16 %v204, %v201
  %v232 = vpack.c.b16 %v205, %v202
  %v233 = vpack.c.b16 %v209, %v206
  %v234 = vpack.c.b16 %v210, %v207
  %v235 = vpack.c.b16 %v211, %v208
  %v308 = vunpack.c.l.b16 %v84
  %v309 = vunpack.c.l.b16 %v85
  %v310 = vunpack.c.l.b16 %v86
  %v311 = vunpack.c.l.b16 %v87
  %v312 = vunpack.c.l.b16 %v88
  %v313 = vunpack.c.l.b16 %v89
  %v314 = vunpack.c.l.b16 %v90
  %v315 = vunpack.c.l.b16 %v91
  %v316 = vunpack.c.l.b16 %v92
  %v317 = vunpack.c.l.b16 %v93
  %v318 = vunpack.c.l.b16 %v94
  %v319 = vunpack.c.l.b16 %v95
  %v320 = vunpack.c.l.b16 %v96
  %v321 = vunpack.c.l.b16 %v97
  %v322 = vunpack.c.l.b16 %v98
  %v323 = vunpack.c.l.b16 %v99
  %v324 = vunpack.c.l.b16 %v100
  %v325 = vunpack.c.l.b16 %v101
  %v326 = vunpack.c.l.b16 %v102
  %v327 = vunpack.c.l.b16 %v103
  %v328 = vunpack.c.l.b16 %v104
  %v329 = vunpack.c.l.b16 %v105
  %v330 = vunpack.c.l.b16 %v106
  %v331 = vunpack.c.l.b16 %v107
  %v332 = vunpack.c.l.b16 %v108
  %v333 = vunpack.c.l.b16 %v109
  %v334 = vunpack.c.l.b16 %v110
  %v335 = vunpack.c.l.b16 %v111
  %v336 = vunpack.c.l.b16 %v112
  %v337 = vunpack.c.l.b16 %v113
  %v338 = vunpack.c.l.b16 %v114
  %v339 = vunpack.c.l.b16 %v115
  %v340 = vunpack.c.l.b16 %v116
  %v341 = vunpack.c.l.b16 %v117
  %v342 = vunpack.c.l.b16 %v118
  %v343 = vunpack.c.l.b16 %v119
  %v344 = vunpack.c.l.b16 %v120
  %v345 = vunpack.c.l.b16 %v121
  %v346 = vunpack.c.l.b16 %v122
  %v347 = vunpack.c.l.b16 %v123
  %v348 = vunpack.c.l.b16 %v124
  %v349 = vunpack.c.l.b16 %v125
  %v350 = vunpack.c.l.b16 %v126
  %v351 = vunpack.c.l.b16 %v127
  %v352 = vunpack.c.l.b16 %v128
  %v353 = vunpack.c.l.b16 %v129
  %v354 = vunpack.c.l.b16 %v130
  %v355 = vunpack.c.l.b16 %v131
  %v356 = vpack.c.b16 %v309, %v308
  %v357 = vpack.c.b16 %v311, %v310
  %v358 = vpack.c.b16 %v313, %v312
  %v359 = vpack.c.b16 %v315, %v314
  %v360 = vpack.c.b16 %v317, %v316
  %v361 = vpack.c.b16 %v319, %v318
  %v362 = vpack.c.b16 %v321, %v320
  %v363 = vpack.c.b16 %v323, %v322
  %v364 = vpack.c.b16 %v325, %v324
  %v365 = vpack.c.b16 %v327, %v326
  %v366 = vpack.c.b16 %v329, %v328
  %v367 = vpack.c.b16 %v331, %v330
  %v368 = vpack.c.b16 %v333, %v332
  %v369 = vpack.c.b16 %v335, %v334
  %v370 = vpack.c.b16 %v337, %v336
  %v371 = vpack.c.b16 %v339, %v338
  %v372 = vpack.c.b16 %v341, %v340
  %v373 = vpack.c.b16 %v343, %v342
  %v374 = vpack.c.b16 %v345, %v344
  %v375 = vpack.c.b16 %v347, %v346
  %v376 = vpack.c.b16 %v349, %v348
  %v377 = vpack.c.b16 %v351, %v350
  %v378 = vpack.c.b16 %v353, %v352
  %v379 = vpack.c.b16 %v355, %v354
  %404 = vmatprep.subr.bf16.mxu0 0
  %405 = vmatpush1.bf16.msra.mxu0 %v356
  %406 = vmatprep.subr.bf16.mxu0 0
  %407 = vmatpush1.bf16.msra.mxu0 %v357
  %408 = vmatprep.subr.bf16.mxu0 0
  %409 = vmatpush1.bf16.msra.mxu0 %v358
  %410 = vmatprep.subr.bf16.mxu0 0
  %411 = vmatpush1.bf16.msra.mxu0 %v359
  %412 = vmatprep.subr.bf16.mxu0 0
  %413 = vmatpush1.bf16.msra.mxu0 %v360
  %414 = vmatprep.subr.bf16.mxu0 0
  %415 = vmatpush1.bf16.msra.mxu0 %v361
  %416 = vmatprep.subr.bf16.mxu0 0
  %417 = vmatpush1.bf16.msra.mxu0 %v362
  %418 = vmatprep.subr.bf16.mxu0 0
  %419 = vmatpush1.bf16.msra.mxu0 %v363
  %420 = vmatprep.subr.bf16.mxu0 0
  %421 = vmatpush1.bf16.msra.mxu0 %v364
  %422 = vmatprep.subr.bf16.mxu0 0
  %423 = vmatpush1.bf16.msra.mxu0 %v365
  %424 = vmatprep.subr.bf16.mxu0 0
  %425 = vmatpush1.bf16.msra.mxu0 %v366
  %426 = vmatprep.subr.bf16.mxu0 0
  %427 = vmatpush1.bf16.msra.mxu0 %v367
  %428 = vmatprep.subr.bf16.mxu0 0
  %429 = vmatpush1.bf16.msra.mxu0 %v368
  %430 = vmatprep.subr.bf16.mxu0 0
  %431 = vmatpush1.bf16.msra.mxu0 %v369
  %432 = vmatprep.subr.bf16.mxu0 0
  %433 = vmatpush1.bf16.msra.mxu0 %v370
  %434 = vmatprep.subr.bf16.mxu0 0
  %435 = vmatpush1.bf16.msra.mxu0 %v371
  %436 = vmatprep.mubr.bf16.mxu0 %v213
  %437 = vmatmul.mubr.bf16.gmra.mrb[0].mxu0 %v212
  %v438 = vpop.f32.mrb[0].mxu0
  %v439 = vadd.f32 0.0, %v438
  %v440 = vpop.f32.mrb[0].mxu0
  %v441 = vpop.f32.mrb[0].mxu0
  %v442 = vadd.f32 0.0, %v441
  %v443 = vpop.f32.mrb[0].mxu0
  %444 = vmatprep.mubr.bf16.mxu0 %v216
  %445 = vmatmul.mubr.bf16.gmra.mrb[0].mxu0 %v215
  %v446 = vpop.f32.mrb[0].mxu0
  %v447 = vadd.f32 0.0, %v446
  %v448 = vpop.f32.mrb[0].mxu0
  %v449 = vpop.f32.mrb[0].mxu0
  %v450 = vadd.f32 0.0, %v449
  %v451 = vpop.f32.mrb[0].mxu0
  %452 = vmatprep.mubr.bf16.mxu0 %v219
  %453 = vmatmul.mubr.bf16.gmra.mrb[0].mxu0 %v218
  %v454 = vpop.f32.mrb[0].mxu0
  %v455 = vadd.f32 0.0, %v454
  %v456 = vpop.f32.mrb[0].mxu0
  %v457 = vpop.f32.mrb[0].mxu0
  %v458 = vadd.f32 0.0, %v457
  %v459 = vpop.f32.mrb[0].mxu0
  %460 = vmatprep.mubr.bf16.mxu0 %v222
  %461 = vmatmul.mubr.bf16.gmra.mrb[0].mxu0 %v221
  %v462 = vpop.f32.mrb[0].mxu0
  %v463 = vadd.f32 0.0, %v462
  %v464 = vpop.f32.mrb[0].mxu0
  %v465 = vpop.f32.mrb[0].mxu0
  %v466 = vadd.f32 0.0, %v465
  %v467 = vpop.f32.mrb[0].mxu0
  %468 = vmatprep.mubr.bf16.mxu0 %v225
  %469 = vmatmul.mubr.bf16.gmra.mrb[0].mxu0 %v224
  %v470 = vpop.f32.mrb[0].mxu0
  %v471 = vadd.f32 0.0, %v470
  %v472 = vpop.f32.mrb[0].mxu0
  %v473 = vpop.f32.mrb[0].mxu0
  %v474 = vadd.f32 0.0, %v473
  %v475 = vpop.f32.mrb[0].mxu0
  %476 = vmatprep.mubr.bf16.mxu0 %v228
  %477 = vmatmul.mubr.bf16.gmra.mrb[0].mxu0 %v227
  %v478 = vpop.f32.mrb[0].mxu0
  %v479 = vadd.f32 0.0, %v478
  %v480 = vpop.f32.mrb[0].mxu0
  %v481 = vpop.f32.mrb[0].mxu0
  %v482 = vadd.f32 0.0, %v481
  %v483 = vpop.f32.mrb[0].mxu0
  %484 = vmatprep.mubr.bf16.mxu0 %v231
  %485 = vmatmul.mubr.bf16.gmra.mrb[0].mxu0 %v230
  %v486 = vpop.f32.mrb[0].mxu0
  %v487 = vadd.f32 0.0, %v486
  %v488 = vpop.f32.mrb[0].mxu0
  %v489 = vpop.f32.mrb[0].mxu0
  %v490 = vadd.f32 0.0, %v489
  %v491 = vpop.f32.mrb[0].mxu0
  %492 = vmatprep.mubr.bf16.mxu0 %v234
  %493 = vmatmul.mubr.bf16.gmra.mrb[0].mxu0 %v233
  %v494 = vpop.f32.mrb[0].mxu0
  %v495 = vadd.f32 0.0, %v494
  %v496 = vpop.f32.mrb[0].mxu0
  %v497 = vpop.f32.mrb[0].mxu0
  %v498 = vadd.f32 0.0, %v497
  %v499 = vpop.f32.mrb[0].mxu0
  %500 = vdwg.mxu0
  %501 = vmatprep.subr.bf16.mxu0 0
  %502 = vmatpush1.bf16.msra.mxu0 %v372
  %503 = vmatprep.subr.bf16.mxu0 0
  %504 = vmatpush1.bf16.msra.mxu0 %v373
  %505 = vmatprep.subr.bf16.mxu0 0
  %506 = vmatpush1.bf16.msra.mxu0 %v374
  %507 = vmatprep.subr.bf16.mxu0 0
  %508 = vmatpush1.bf16.msra.mxu0 %v375
  %509 = vmatprep.subr.bf16.mxu0 0
  %510 = vmatpush1.bf16.msra.mxu0 %v376
  %511 = vmatprep.subr.bf16.mxu0 0
  %512 = vmatpush1.bf16.msra.mxu0 %v377
  %513 = vmatprep.subr.bf16.mxu0 0
  %514 = vmatpush1.bf16.msra.mxu0 %v378
  %515 = vmatprep.subr.bf16.mxu0 0
  %516 = vmatpush1.bf16.msra.mxu0 %v379
  %517 = vmatprep.subr.bf16.mxu0 0
  %518 = vmatpush1.bf16.msra.mxu0 0
  %519 = vmatprep.subr.bf16.mxu0 0
  %520 = vmatpush1.bf16.msra.mxu0 0
  %521 = vmatprep.subr.bf16.mxu0 0
  %522 = vmatpush1.bf16.msra.mxu0 0
  %523 = vmatprep.subr.bf16.mxu0 0
  %524 = vmatpush1.bf16.msra.mxu0 0
  %525 = vmatprep.subr.bf16.mxu0 0
  %526 = vmatpush1.bf16.msra.mxu0 0
  %527 = vmatprep.subr.bf16.mxu0 0
  %528 = vmatpush1.bf16.msra.mxu0 0
  %529 = vmatprep.subr.bf16.mxu0 0
  %530 = vmatpush1.bf16.msra.mxu0 0
  %531 = vmatprep.subr.bf16.mxu0 0
  %532 = vmatpush1.bf16.msra.mxu0 0
  %533 = vmatprep.mubr.bf16.mxu0 0
  %534 = vmatmul.mubr.bf16.gmra.mrb[0].mxu0 %v214
  %v535 = vpop.f32.mrb[0].mxu0
  %v536 = vadd.f32 %v439, %v535
  %v537 = vpop.f32.mrb[0].mxu0
  %v538 = vpop.f32.mrb[0].mxu0
  %v539 = vadd.f32 %v442, %v538
  %v540 = vpop.f32.mrb[0].mxu0
  %541 = vmatprep.mubr.bf16.mxu0 0
  %542 = vmatmul.mubr.bf16.gmra.mrb[0].mxu0 %v217
  %v543 = vpop.f32.mrb[0].mxu0
  %v544 = vadd.f32 %v447, %v543
  %v545 = vpop.f32.mrb[0].mxu0
  %v546 = vpop.f32.mrb[0].mxu0
  %v547 = vadd.f32 %v450, %v546
  %v548 = vpop.f32.mrb[0].mxu0
  %549 = vmatprep.mubr.bf16.mxu0 0
  %550 = vmatmul.mubr.bf16.gmra.mrb[0].mxu0 %v220
  %v551 = vpop.f32.mrb[0].mxu0
  %v552 = vadd.f32 %v455, %v551
  %v553 = vpop.f32.mrb[0].mxu0
  %v554 = vpop.f32.mrb[0].mxu0
  %v555 = vadd.f32 %v458, %v554
  %v556 = vpop.f32.mrb[0].mxu0
  %557 = vmatprep.mubr.bf16.mxu0 0
  %558 = vmatmul.mubr.bf16.gmra.mrb[0].mxu0 %v223
  %v559 = vpop.f32.mrb[0].mxu0
  %v560 = vadd.f32 %v463, %v559
  %v561 = vpop.f32.mrb[0].mxu0
  %v562 = vpop.f32.mrb[0].mxu0
  %v563 = vadd.f32 %v466, %v562
  %v564 = vpop.f32.mrb[0].mxu0
  %565 = vmatprep.mubr.bf16.mxu0 0
  %566 = vmatmul.mubr.bf16.gmra.mrb[0].mxu0 %v226
  %v567 = vpop.f32.mrb[0].mxu0
  %v568 = vadd.f32 %v471, %v567
  %v569 = vpop.f32.mrb[0].mxu0
  %v570 = vpop.f32.mrb[0].mxu0
  %v571 = vadd.f32 %v474, %v570
  %v572 = vpop.f32.mrb[0].mxu0
  %573 = vmatprep.mubr.bf16.mxu0 0
  %574 = vmatmul.mubr.bf16.gmra.mrb[0].mxu0 %v229
  %v575 = vpop.f32.mrb[0].mxu0
  %v576 = vadd.f32 %v479, %v575
  %v577 = vpop.f32.mrb[0].mxu0
  %v578 = vpop.f32.mrb[0].mxu0
  %v579 = vadd.f32 %v482, %v578
  %v580 = vpop.f32.mrb[0].mxu0
  %581 = vmatprep.mubr.bf16.mxu0 0
  %582 = vmatmul.mubr.bf16.gmra.mrb[0].mxu0 %v232
  %v583 = vpop.f32.mrb[0].mxu0
  %v584 = vadd.f32 %v487, %v583
  %v585 = vpop.f32.mrb[0].mxu0
  %v586 = vpop.f32.mrb[0].mxu0
  %v587 = vadd.f32 %v490, %v586
  %v588 = vpop.f32.mrb[0].mxu0
  %589 = vmatprep.mubr.bf16.mxu0 0
  %590 = vmatmul.mubr.bf16.gmra.mrb[0].mxu0 %v235
  %v591 = vpop.f32.mrb[0].mxu0
  %v592 = vadd.f32 %v495, %v591
  %v593 = vpop.f32.mrb[0].mxu0
  %v594 = vpop.f32.mrb[0].mxu0
  %v595 = vadd.f32 %v498, %v594
  %v596 = vpop.f32.mrb[0].mxu0
  %597 = vdwg.mxu0
  %v598 = vadd.f32 %v36, %v536
  %v599 = vadd.f32 %v37, %v539
  %v600 = vadd.f32 %v38, %v544
  %v601 = vadd.f32 %v39, %v547
  %v602 = vadd.f32 %v40, %v552
  %v603 = vadd.f32 %v41, %v555
  %v604 = vadd.f32 %v42, %v560
  %v605 = vadd.f32 %v43, %v563
  %v606 = vadd.f32 %v44, %v568
  %v607 = vadd.f32 %v45, %v571
  %v608 = vadd.f32 %v46, %v576
  %v609 = vadd.f32 %v47, %v579
  %v610 = vadd.f32 %v48, %v584
  %v611 = vadd.f32 %v49, %v587
  %v612 = vadd.f32 %v50, %v592
  %v613 = vadd.f32 %v51, %v595
  %vm614 = vcmask 261120
  %615 = vst.msk [vmem:[#allocation2] sm:$0xff] %vm614, %v598
  %616 = vst.msk [vmem:[#allocation2 + $0x8] sm:$0xff] %vm614, %v599
  %617 = vst.msk [vmem:[#allocation2 + $0x10] sm:$0xff] %vm614, %v600
  %618 = vst.msk [vmem:[#allocation2 + $0x18] sm:$0xff] %vm614, %v601
  %619 = vst.msk [vmem:[#allocation2 + $0x20] sm:$0xff] %vm614, %v602
  %620 = vst.msk [vmem:[#allocation2 + $0x28] sm:$0xff] %vm614, %v603
  %621 = vst.msk [vmem:[#allocation2 + $0x30] sm:$0xff] %vm614, %v604
  %622 = vst.msk [vmem:[#allocation2 + $0x38] sm:$0xff] %vm614, %v605
  %623 = vst.msk [vmem:[#allocation2 + $0x40] sm:$0xff] %vm614, %v606
  %624 = vst.msk [vmem:[#allocation2 + $0x48] sm:$0xff] %vm614, %v607
  %625 = vst.msk [vmem:[#allocation2 + $0x50] sm:$0xff] %vm614, %v608
  %626 = vst.msk [vmem:[#allocation2 + $0x58] sm:$0xff] %vm614, %v609
  %627 = vst.msk [vmem:[#allocation2 + $0x60] sm:$0xff] %vm614, %v610
  %628 = vst.msk [vmem:[#allocation2 + $0x68] sm:$0xff] %vm614, %v611
  %629 = vst.msk [vmem:[#allocation2 + $0x70] sm:$0xff] %vm614, %v612
  %630 = vst.msk [vmem:[#allocation2 + $0x78] sm:$0xff] %vm614, %v613
  // Predicated region
  $region18: #{cspdarknet_tiny_forward.19} parent=0 // pred_check
    %p631 = pneg %p15
  $region19: #{cspdarknet_tiny_forward.19} parent=0 // pred_check_branch
    %633 = sbr.rel (%p631) target = $region21
  $region20: #{cspdarknet_tiny_forward.19} parent=0 // pred_region
    %v634 = vld [vmem:[#allocation2] sm:$0xff]
    %v635 = vld [vmem:[#allocation2 + $0x8] sm:$0xff]
    %v636 = vld [vmem:[#allocation2 + $0x10] sm:$0xff]
    %v637 = vld [vmem:[#allocation2 + $0x18] sm:$0xff]
    %v638 = vld [vmem:[#allocation2 + $0x20] sm:$0xff]
    %v639 = vld [vmem:[#allocation2 + $0x28] sm:$0xff]
    %v640 = vld [vmem:[#allocation2 + $0x30] sm:$0xff]
    %v641 = vld [vmem:[#allocation2 + $0x38] sm:$0xff]
    %v642 = vld [vmem:[#allocation2 + $0x40] sm:$0xff]
    %v643 = vld [vmem:[#allocation2 + $0x48] sm:$0xff]
    %v644 = vld [vmem:[#allocation2 + $0x50] sm:$0xff]
    %v645 = vld [vmem:[#allocation2 + $0x58] sm:$0xff]
    %v646 = vld [vmem:[#allocation2 + $0x60] sm:$0xff]
    %v647 = vld [vmem:[#allocation2 + $0x68] sm:$0xff]
    %v648 = vld [vmem:[#allocation2 + $0x70] sm:$0xff]
    %v649 = vld [vmem:[#allocation2 + $0x78] sm:$0xff]
    %v650 = vld [vmem:[%s2] sm:$0x1]
    %v652 = vlaneseq
    %v653 = vshrl.u32 %v652, 7
    %v654 = vsub.s32 0, %v653
    %v655 = vrot.slane %v650, %v654
    %v657 = vadd.f32 %v634, %v655
    %v658 = vadd.f32 %v635, %v655
    %v659 = vadd.f32 %v636, %v655
    %v660 = vadd.f32 %v637, %v655
    %v661 = vadd.f32 %v638, %v655
    %v662 = vadd.f32 %v639, %v655
    %v663 = vadd.f32 %v640, %v655
    %v664 = vadd.f32 %v641, %v655
    %v665 = vadd.f32 %v642, %v655
    %v666 = vadd.f32 %v643, %v655
    %v667 = vadd.f32 %v644, %v655
    %v668 = vadd.f32 %v645, %v655
    %v669 = vadd.f32 %v646, %v655
    %v670 = vadd.f32 %v647, %v655
    %v671 = vadd.f32 %v648, %v655
    %v672 = vadd.f32 %v649, %v655
    %vm673 = vcmp.gt.f32.partialorder %v657, 0.0
    %vm674 = vcmp.gt.f32.partialorder %v658, 0.0
    %vm675 = vcmp.gt.f32.partialorder %v659, 0.0
    %vm676 = vcmp.gt.f32.partialorder %v660, 0.0
    %vm677 = vcmp.gt.f32.partialorder %v661, 0.0
    %vm678 = vcmp.gt.f32.partialorder %v662, 0.0
    %vm679 = vcmp.gt.f32.partialorder %v663, 0.0
    %vm680 = vcmp.gt.f32.partialorder %v664, 0.0
    %vm681 = vcmp.gt.f32.partialorder %v665, 0.0
    %vm682 = vcmp.gt.f32.partialorder %v666, 0.0
    %vm683 = vcmp.gt.f32.partialorder %v667, 0.0
    %vm684 = vcmp.gt.f32.partialorder %v668, 0.0
    %vm685 = vcmp.gt.f32.partialorder %v669, 0.0
    %vm686 = vcmp.gt.f32.partialorder %v670, 0.0
    %vm687 = vcmp.gt.f32.partialorder %v671, 0.0
    %vm688 = vcmp.gt.f32.partialorder %v672, 0.0
    %v689 = vmul.f32 %v657, 0.1
    %v690 = vmul.f32 %v658, 0.1
    %v691 = vmul.f32 %v659, 0.1
    %v692 = vmul.f32 %v660, 0.1
    %v693 = vmul.f32 %v661, 0.1
    %v694 = vmul.f32 %v662, 0.1
    %v695 = vmul.f32 %v663, 0.1
    %v696 = vmul.f32 %v664, 0.1
    %v697 = vmul.f32 %v665, 0.1
    %v698 = vmul.f32 %v666, 0.1
    %v699 = vmul.f32 %v667, 0.1
    %v700 = vmul.f32 %v668, 0.1
    %v701 = vmul.f32 %v669, 0.1
    %v702 = vmul.f32 %v670, 0.1
    %v703 = vmul.f32 %v671, 0.1
    %v704 = vmul.f32 %v672, 0.1
    %v705 = vsel %vm673, %v657, %v689
    %v706 = vsel %vm674, %v658, %v690
    %v707 = vsel %vm675, %v659, %v691
    %v708 = vsel %vm676, %v660, %v692
    %v709 = vsel %vm677, %v661, %v693
    %v710 = vsel %vm678, %v662, %v694
    %v711 = vsel %vm679, %v663, %v695
    %v712 = vsel %vm680, %v664, %v696
    %v713 = vsel %vm681, %v665, %v697
    %v714 = vsel %vm682, %v666, %v698
    %v715 = vsel %vm683, %v667, %v699
    %v716 = vsel %vm684, %v668, %v700
    %v717 = vsel %vm685, %v669, %v701
    %v718 = vsel %vm686, %v670, %v702
    %v719 = vsel %vm687, %v671, %v703
    %v720 = vsel %vm688, %v672, %v704
    %v721 = vpack.c.bf16 %v706, %v705
    %v722 = vpack.c.bf16 %v708, %v707
    %v723 = vpack.c.bf16 %v710, %v709
    %v724 = vpack.c.bf16 %v712, %v711
    %v725 = vpack.c.bf16 %v714, %v713
    %v726 = vpack.c.bf16 %v716, %v715
    %v727 = vpack.c.bf16 %v718, %v717
    %v728 = vpack.c.bf16 %v720, %v719
    %v737 = vunpack.c.l.b16 %v721
    %v738 = vunpack.c.h.b16 %v721
    %v739 = vunpack.c.l.b16 %v722
    %v740 = vunpack.c.h.b16 %v722
    %v741 = vunpack.c.l.b16 %v723
    %v742 = vunpack.c.h.b16 %v723
    %v743 = vunpack.c.l.b16 %v724
    %v744 = vunpack.c.h.b16 %v724
    %v745 = vunpack.c.l.b16 %v725
    %v746 = vunpack.c.h.b16 %v725
    %v747 = vunpack.c.l.b16 %v726
    %v748 = vunpack.c.h.b16 %v726
    %v749 = vunpack.c.l.b16 %v727
    %v750 = vunpack.c.h.b16 %v727
    %v751 = vunpack.c.l.b16 %v728
    %v752 = vunpack.c.h.b16 %v728
    %v753 = vpack.c.b16 %v737, %v737
    %v754 = vpack.c.b16 %v738, %v738
    %v755 = vpack.c.b16 %v739, %v739
    %v756 = vpack.c.b16 %v740, %v740
    %v757 = vpack.c.b16 %v741, %v741
    %v758 = vpack.c.b16 %v742, %v742
    %v759 = vpack.c.b16 %v743, %v743
    %v760 = vpack.c.b16 %v744, %v744
    %v761 = vpack.c.b16 %v745, %v745
    %v762 = vpack.c.b16 %v746, %v746
    %v763 = vpack.c.b16 %v747, %v747
    %v764 = vpack.c.b16 %v748, %v748
    %v765 = vpack.c.b16 %v749, %v749
    %v766 = vpack.c.b16 %v750, %v750
    %v767 = vpack.c.b16 %v751, %v751
    %v768 = vpack.c.b16 %v752, %v752
    %vm785 = vcmask 257024
    %786 = vst.msk [vmem:[%s3] sm:$0xf] %vm785, %v753
    %787 = vst.msk [vmem:[%s3 + $0x4] sm:$0xf] %vm785, %v754
    %788 = vst.msk [vmem:[%s3 + $0x8] sm:$0xf] %vm785, %v755
    %789 = vst.msk [vmem:[%s3 + $0xc] sm:$0xf] %vm785, %v756
    %790 = vst.msk [vmem:[%s3 + $0x10] sm:$0xf] %vm785, %v757
    %791 = vst.msk [vmem:[%s3 + $0x14] sm:$0xf] %vm785, %v758
    %792 = vst.msk [vmem:[%s3 + $0x18] sm:$0xf] %vm785, %v759
    %793 = vst.msk [vmem:[%s3 + $0x1c] sm:$0xf] %vm785, %v760
    %794 = vst.msk [vmem:[%s3 + $0x20] sm:$0xf] %vm785, %v761
    %795 = vst.msk [vmem:[%s3 + $0x24] sm:$0xf] %vm785, %v762
    %796 = vst.msk [vmem:[%s3 + $0x28] sm:$0xf] %vm785, %v763
    %797 = vst.msk [vmem:[%s3 + $0x2c] sm:$0xf] %vm785, %v764
    %798 = vst.msk [vmem:[%s3 + $0x30] sm:$0xf] %vm785, %v765
    %799 = vst.msk [vmem:[%s3 + $0x34] sm:$0xf] %vm785, %v766
    %800 = vst.msk [vmem:[%s3 + $0x38] sm:$0xf] %vm785, %v767
    %801 = vst.msk [vmem:[%s3 + $0x3c] sm:$0xf] %vm785, %v768
  $region21: #{cspdarknet_tiny_forward.19} parent=0 // pred_fallthru
    _
  // Predicated region
  $region22: #{cspdarknet_tiny_forward.19} parent=0 // pred_check
    _
  $region23: #{cspdarknet_tiny_forward.19} parent=0 // pred_check_branch
    %803 = sbr.rel (0) target = $region25
  $region24: #{cspdarknet_tiny_forward.19} parent=0 // pred_region
    _
  $region25: #{cspdarknet_tiny_forward.19} parent=0 // pred_fallthru
    _
  // Predicated region
  $region26: #{cspdarknet_tiny_forward.19} parent=0 // pred_check
    _
  $region27: #{cspdarknet_tiny_forward.19} parent=0 // pred_check_branch
    %805 = sbr.rel (0) target = $region29
  $region28: #{cspdarknet_tiny_forward.19} parent=0 // pred_region
    _
  $region29: #{cspdarknet_tiny_forward.19} parent=0 // pred_fallthru
    _

// kernel: cspdarknet_tiny_forward.25
$region0: #{cspdarknet_tiny_forward.25}
  #allocation0 [shape = 'u32[]', space=smem, size = 0x4, offset = 0x4, fixed_abs, tag = 'smem constant byte address 0x4 - core index']
  #allocation1 [shape = 'u32[144,128]{1,0:T(1,128)}', space=vmem, size = 0x12000, scoped, tag = 'internal scratch']
  #allocation2 [shape = 'f32[32,128]{1,0:T(8,128)}', space=vmem, size = 0x4000, scoped, tag = 'scratch operand']
  %s0 = inlined_call_operand.vmem [shape: bf16[32,128], index: 0, kind: input, shape index: {}]
  %s1 = inlined_call_operand.vmem [shape: bf16[128,128], index: 1, kind: input, shape index: {}]
  %s2 = inlined_call_operand.vmem [shape: f32[1,128], index: 2, kind: input, shape index: {}]
  %s3 = inlined_call_operand.vmem [shape: bf16[32,128], index: 3, kind: output, shape index: {}]
  %s4 = sld [smem:[#allocation0]]
  $region30: #{cspdarknet_tiny_forward.25} parent=0
    _
  %s6 = ssub.s32 1, %s4
  %s7 = scalar_select 0, %s6, %s4
  // Predicated region
  $region2: #{cspdarknet_tiny_forward.25} parent=0 // pred_check
    _
  $region3: #{cspdarknet_tiny_forward.25} parent=0 // pred_check_branch
    %9 = sbr.rel (0) target = $region5
  $region4: #{cspdarknet_tiny_forward.25} parent=0 // pred_region
    _
  $region5: #{cspdarknet_tiny_forward.25} parent=0 // pred_fallthru
    _
  // Predicated region
  $region6: #{cspdarknet_tiny_forward.25} parent=0 // pred_check
    _
  $region7: #{cspdarknet_tiny_forward.25} parent=0 // pred_check_branch
    %11 = sbr.rel (0) target = $region9
  $region8: #{cspdarknet_tiny_forward.25} parent=0 // pred_region
    _
  $region9: #{cspdarknet_tiny_forward.25} parent=0 // pred_fallthru
    _
  // Predicated region
  $region10: #{cspdarknet_tiny_forward.25} parent=0 // pred_check
    _
  $region11: #{cspdarknet_tiny_forward.25} parent=0 // pred_check_branch
    %13 = sbr.rel (0) target = $region13
  $region12: #{cspdarknet_tiny_forward.25} parent=0 // pred_region
    _
  $region13: #{cspdarknet_tiny_forward.25} parent=0 // pred_fallthru
    _
  %p15 = scmp.eq.s32.totalorder 0, 0
  // Predicated region
  $region14: #{cspdarknet_tiny_forward.25} parent=0 // pred_check
    %p16 = pneg %p15
  $region15: #{cspdarknet_tiny_forward.25} parent=0 // pred_check_branch
    %18 = sbr.rel (%p16) target = $region17
  $region16: #{cspdarknet_tiny_forward.25} parent=0 // pred_region
    %19 = vst [vmem:[#allocation2] sm:$0xff] 0.0
    %20 = vst [vmem:[#allocation2 + $0x8] sm:$0xff] 0.0
    %21 = vst [vmem:[#allocation2 + $0x10] sm:$0xff] 0.0
    %22 = vst [vmem:[#allocation2 + $0x18] sm:$0xff] 0.0
  $region17: #{cspdarknet_tiny_forward.25} parent=0 // pred_fallthru
    _
  %v23 = vld [vmem:[#allocation2] sm:$0xff]
  %v24 = vld [vmem:[#allocation2 + $0x8] sm:$0xff]
  %v25 = vld [vmem:[#allocation2 + $0x10] sm:$0xff]
  %v26 = vld [vmem:[#allocation2 + $0x18] sm:$0xff]
  %v27 = vld [vmem:[%s0] sm:$0xf]
  %v28 = vld [vmem:[%s0 + $0x4] sm:$0xf]
  %v29 = vld [vmem:[%s0 + $0x8] sm:$0xf]
  %v30 = vld [vmem:[%s0 + $0xc] sm:$0xf]
  %v31 = vld [vmem:[%s1] sm:$0xf]
  %v32 = vld [vmem:[%s1 + $0x4] sm:$0xf]
  %v33 = vld [vmem:[%s1 + $0x8] sm:$0xf]
  %v34 = vld [vmem:[%s1 + $0xc] sm:$0xf]
  %v35 = vld [vmem:[%s1 + $0x10] sm:$0xf]
  %v36 = vld [vmem:[%s1 + $0x14] sm:$0xf]
  %v37 = vld [vmem:[%s1 + $0x18] sm:$0xf]
  %v38 = vld [vmem:[%s1 + $0x1c] sm:$0xf]
  %v39 = vld [vmem:[%s1 + $0x20] sm:$0xf]
  %v40 = vld [vmem:[%s1 + $0x24] sm:$0xf]
  %v41 = vld [vmem:[%s1 + $0x28] sm:$0xf]
  %v42 = vld [vmem:[%s1 + $0x2c] sm:$0xf]
  %v43 = vld [vmem:[%s1 + $0x30] sm:$0xf]
  %v44 = vld [vmem:[%s1 + $0x34] sm:$0xf]
  %v45 = vld [vmem:[%s1 + $0x38] sm:$0xf]
  %v46 = vld [vmem:[%s1 + $0x3c] sm:$0xf]
  %v51 = vunpack.c.l.b16 %v27
  %v52 = vunpack.c.l.b16 %v28
  %v53 = vunpack.c.l.b16 %v29
  %v54 = vunpack.c.l.b16 %v30
  %v55 = vpack.c.b16 %v52, %v51
  %v56 = vpack.c.b16 %v54, %v53
  %v75 = vunpack.c.l.b16 %v31
  %v76 = vunpack.c.l.b16 %v32
  %v77 = vunpack.c.l.b16 %v33
  %v78 = vunpack.c.l.b16 %v34
  %v79 = vunpack.c.l.b16 %v35
  %v80 = vunpack.c.l.b16 %v36
  %v81 = vunpack.c.l.b16 %v37
  %v82 = vunpack.c.l.b16 %v38
  %v83 = vunpack.c.l.b16 %v39
  %v84 = vunpack.c.l.b16 %v40
  %v85 = vunpack.c.l.b16 %v41
  %v86 = vunpack.c.l.b16 %v42
  %v87 = vunpack.c.l.b16 %v43
  %v88 = vunpack.c.l.b16 %v44
  %v89 = vunpack.c.l.b16 %v45
  %v90 = vunpack.c.l.b16 %v46
  %v91 = vpack.c.b16 %v76, %v75
  %v92 = vpack.c.b16 %v78, %v77
  %v93 = vpack.c.b16 %v80, %v79
  %v94 = vpack.c.b16 %v82, %v81
  %v95 = vpack.c.b16 %v84, %v83
  %v96 = vpack.c.b16 %v86, %v85
  %v97 = vpack.c.b16 %v88, %v87
  %v98 = vpack.c.b16 %v90, %v89
  %107 = vmatprep.subr.bf16.mxu0 0
  %108 = vmatpush1.bf16.msra.mxu0 %v91
  %109 = vmatprep.subr.bf16.mxu0 0
  %110 = vmatpush1.bf16.msra.mxu0 %v92
  %111 = vmatprep.subr.bf16.mxu0 0
  %112 = vmatpush1.bf16.msra.mxu0 %v93
  %113 = vmatprep.subr.bf16.mxu0 0
  %114 = vmatpush1.bf16.msra.mxu0 %v94
  %115 = vmatprep.subr.bf16.mxu0 0
  %116 = vmatpush1.bf16.msra.mxu0 %v95
  %117 = vmatprep.subr.bf16.mxu0 0
  %118 = vmatpush1.bf16.msra.mxu0 %v96
  %119 = vmatprep.subr.bf16.mxu0 0
  %120 = vmatpush1.bf16.msra.mxu0 %v97
  %121 = vmatprep.subr.bf16.mxu0 0
  %122 = vmatpush1.bf16.msra.mxu0 %v98
  %123 = vmatprep.subr.bf16.mxu0 0
  %124 = vmatpush1.bf16.msra.mxu0 0
  %125 = vmatprep.subr.bf16.mxu0 0
  %126 = vmatpush1.bf16.msra.mxu0 0
  %127 = vmatprep.subr.bf16.mxu0 0
  %128 = vmatpush1.bf16.msra.mxu0 0
  %129 = vmatprep.subr.bf16.mxu0 0
  %130 = vmatpush1.bf16.msra.mxu0 0
  %131 = vmatprep.subr.bf16.mxu0 0
  %132 = vmatpush1.bf16.msra.mxu0 0
  %133 = vmatprep.subr.bf16.mxu0 0
  %134 = vmatpush1.bf16.msra.mxu0 0
  %135 = vmatprep.subr.bf16.mxu0 0
  %136 = vmatpush1.bf16.msra.mxu0 0
  %137 = vmatprep.subr.bf16.mxu0 0
  %138 = vmatpush1.bf16.msra.mxu0 0
  %139 = vmatprep.mubr.bf16.mxu0 0
  %140 = vmatmul.mubr.bf16.gmra.mrb[0].mxu0 %v55
  %v141 = vpop.f32.mrb[0].mxu0
  %v142 = vadd.f32 0.0, %v141
  %v143 = vpop.f32.mrb[0].mxu0
  %v144 = vpop.f32.mrb[0].mxu0
  %v145 = vadd.f32 0.0, %v144
  %v146 = vpop.f32.mrb[0].mxu0
  %147 = vmatprep.mubr.bf16.mxu0 0
  %148 = vmatmul.mubr.bf16.gmra.mrb[0].mxu0 %v56
  %v149 = vpop.f32.mrb[0].mxu0
  %v150 = vadd.f32 0.0, %v149
  %v151 = vpop.f32.mrb[0].mxu0
  %v152 = vpop.f32.mrb[0].mxu0
  %v153 = vadd.f32 0.0, %v152
  %v154 = vpop.f32.mrb[0].mxu0
  %155 = vdwg.mxu0
  %v156 = vadd.f32 %v23, %v142
  %v157 = vadd.f32 %v24, %v145
  %v158 = vadd.f32 %v25, %v150
  %v159 = vadd.f32 %v26, %v153
  %160 = vst [vmem:[#allocation2] sm:$0xff] %v156
  %161 = vst [vmem:[#allocation2 + $0x8] sm:$0xff] %v157
  %162 = vst [vmem:[#allocation2 + $0x10] sm:$0xff] %v158
  %163 = vst [vmem:[#allocation2 + $0x18] sm:$0xff] %v159
  // Predicated region
  $region18: #{cspdarknet_tiny_forward.25} parent=0 // pred_check
    %p164 = pneg %p15
  $region19: #{cspdarknet_tiny_forward.25} parent=0 // pred_check_branch
    %166 = sbr.rel (%p164) target = $region21
  $region20: #{cspdarknet_tiny_forward.25} parent=0 // pred_region
    %v167 = vld [vmem:[#allocation2] sm:$0xff]
    %v168 = vld [vmem:[#allocation2 + $0x8] sm:$0xff]
    %v169 = vld [vmem:[#allocation2 + $0x10] sm:$0xff]
    %v170 = vld [vmem:[#allocation2 + $0x18] sm:$0xff]
    %v171 = vld [vmem:[%s2] sm:$0x1]
    %v173 = vlaneseq
    %v174 = vshrl.u32 %v173, 7
    %v175 = vsub.s32 0, %v174
    %v176 = vrot.slane %v171, %v175
    %v178 = vadd.f32 %v167, %v176
    %v179 = vadd.f32 %v168, %v176
    %v180 = vadd.f32 %v169, %v176
    %v181 = vadd.f32 %v170, %v176
    %vm182 = vcmp.gt.f32.partialorder %v178, 0.0
    %vm183 = vcmp.gt.f32.partialorder %v179, 0.0
    %vm184 = vcmp.gt.f32.partialorder %v180, 0.0
    %vm185 = vcmp.gt.f32.partialorder %v181, 0.0
    %v186 = vmul.f32 %v178, 0.1
    %v187 = vmul.f32 %v179, 0.1
    %v188 = vmul.f32 %v180, 0.1
    %v189 = vmul.f32 %v181, 0.1
    %v190 = vsel %vm182, %v178, %v186
    %v191 = vsel %vm183, %v179, %v187
    %v192 = vsel %vm184, %v180, %v188
    %v193 = vsel %vm185, %v181, %v189
    %v194 = vpack.c.bf16 %v191, %v190
    %v195 = vpack.c.bf16 %v193, %v192
    %v198 = vunpack.c.l.b16 %v194
    %v199 = vunpack.c.h.b16 %v194
    %v200 = vunpack.c.l.b16 %v195
    %v201 = vunpack.c.h.b16 %v195
    %v202 = vpack.c.b16 %v198, %v198
    %v203 = vpack.c.b16 %v199, %v199
    %v204 = vpack.c.b16 %v200, %v200
    %v205 = vpack.c.b16 %v201, %v201
    %210 = vst [vmem:[%s3] sm:$0xf] %v202
    %211 = vst [vmem:[%s3 + $0x4] sm:$0xf] %v203
    %212 = vst [vmem:[%s3 + $0x8] sm:$0xf] %v204
    %213 = vst [vmem:[%s3 + $0xc] sm:$0xf] %v205
  $region21: #{cspdarknet_tiny_forward.25} parent=0 // pred_fallthru
    _
  // Predicated region
  $region22: #{cspdarknet_tiny_forward.25} parent=0 // pred_check
    _
  $region23: #{cspdarknet_tiny_forward.25} parent=0 // pred_check_branch
    %215 = sbr.rel (0) target = $region25
  $region24: #{cspdarknet_tiny_forward.25} parent=0 // pred_region
    _
  $region25: #{cspdarknet_tiny_forward.25} parent=0 // pred_fallthru
    _
  // Predicated region
  $region26: #{cspdarknet_tiny_forward.25} parent=0 // pred_check
    _
  $region27: #{cspdarknet_tiny_forward.25} parent=0 // pred_check_branch
    %217 = sbr.rel (0) target = $region29
  $region28: #{cspdarknet_tiny_forward.25} parent=0 // pred_region
    _
  $region29: #{cspdarknet_tiny_forward.25} parent=0 // pred_fallthru
    _

// kernel: cspdarknet_tiny_forward.22
$region0: #{cspdarknet_tiny_forward.22}
  #allocation0 [shape = 'u32[]', space=smem, size = 0x4, offset = 0x4, fixed_abs, tag = 'smem constant byte address 0x4 - core index']
  #allocation1 [shape = 'u32[144,128]{1,0:T(1,128)}', space=vmem, size = 0x12000, scoped, tag = 'internal scratch']
  #allocation2 [shape = 'f32[32,128]{1,0:T(8,128)}', space=vmem, size = 0x4000, scoped, tag = 'scratch operand']
  %s0 = inlined_call_operand.vmem [shape: bf16[32,1152], index: 0, kind: input, shape index: {}]
  %s1 = inlined_call_operand.vmem [shape: bf16[1152,128], index: 1, kind: input, shape index: {}]
  %s2 = inlined_call_operand.vmem [shape: f32[1,128], index: 2, kind: input, shape index: {}]
  %s3 = inlined_call_operand.vmem [shape: bf16[32,128], index: 3, kind: output, shape index: {}]
  %s4 = sld [smem:[#allocation0]]
  $region79: #{cspdarknet_tiny_forward.22} parent=0
    _
  %s6 = ssub.s32 1, %s4
  %s7 = scalar_select 0, %s6, %s4
  $region1: #{cspdarknet_tiny_forward.22} parent=0
    #allocation3 [shape = 'u8[49152]{0}', space=vmem, size = 0xc000, scoped, tag = 'input window, operand 0']
    loop: start=0, step=1, limit=5
    $region2: #{cspdarknet_tiny_forward.22} parent=1 // loop_pre_header
      _
    $region3: #{cspdarknet_tiny_forward.22} parent=1 // loop_header
      %s9 = sphi 0, %s13
      %p10 = scmp.ge.s32.totalorder %s9, 5
      %s16 = sphi 0, %s35
      %s17 = sphi 0, %s31
      %s18 = sphi 0, %s27
      %s19 = sphi 0, %s16
      %s20 = sphi 0, %s17
      %s21 = sphi 0, %s18
      %s22 = sphi 0, %s19
      %s23 = sphi 0, %s20
      %s24 = sphi 0, %s21
      %s40 = sphi 0, %s42
      %s43 = sphi 0, %s40
      %s44 = sphi 0, %s43
      %s60 = sphi 0, %s44
      %s68 = sphi 0, %s70
      %s71 = sphi 0, %s68
      %s72 = sphi 0, %s71
      %s88 = sphi 0, %s72
      %s94 = sphi 0, %s96
      %s97 = sphi 0, %s94
      %s98 = sphi 0, %s97
      %s114 = sphi 0, %s98
      %s122 = sphi 0, %s124
      %s125 = sphi 0, %s122
      %s126 = sphi 0, %s125
      %s142 = sphi 0, %s126
    $region4: #{cspdarknet_tiny_forward.22} parent=1 // loop_header_branch
      %12 = sbr.rel (%p10) target = $region8
    $region5: #{cspdarknet_tiny_forward.22} parent=1 // loop_body
      %s14 = ssub.s32 %s9, 1
      %s15 = ssub.s32 %s9, 2
      %s25 = sadd.s32 1, %s18
      %p26 = scmp.ge.s32.totalorder %s25, 3
      %s27 = scalar_select %p26, 0, %s25
      %s28 = sadd.s32 1, %s17
      %s29 = scalar_select %p26, %s28, %s17
      %p30 = scmp.ge.s32.totalorder %s29, 1
      %s31 = scalar_select %p30, 0, %s29
      %s32 = sadd.s32 1, %s16
      %s33 = scalar_select %p30, %s32, %s16
      %p34 = scmp.ge.s32.totalorder %s33, 1
      %s35 = scalar_select %p34, 0, %s33
      %s36 = ssub.s32 %s16, %s35
      %s37 = ssub.s32 %s18, %s27
      %s38 = sor.u32 %s36, %s37
      %p39 = scmp.eq.s32.totalorder %s38, 0
      %s41 = sadd.s32 %s40, 1
      %s42 = scalar_select %p39, %s40, %s41
      %p45 = pneg %p39
      %p46 = scmp.eq.s32.totalorder %s9, 2
      %p47 = por %p45, %p46
      %p48 = scmp.ne.s32.totalorder %s40, %s43
      %p49 = scmp.eq.s32.totalorder %s9, 0
      %p50 = por %p48, %p49
      %p51 = scmp.ne.s32.totalorder %s40, %s43
      %p52 = scmp.eq.s32.totalorder %s14, 2
      %p53 = por %p51, %p52
      %p54 = scmp.ne.s32.totalorder %s43, %s44
      %p55 = scmp.eq.s32.totalorder %s14, 0
      %p56 = por %p54, %p55
      %p57 = scmp.ne.s32.totalorder %s43, %s44
      %p58 = scmp.eq.s32.totalorder %s15, 2
      %p59 = por %p57, %p58
      %p61 = scmp.ne.s32.totalorder %s44, %s60
      %p62 = scmp.eq.s32.totalorder %s15, 0
      %p63 = por %p61, %p62
      %s64 = ssub.s32 %s18, %s27
      %s65 = ssub.s32 %s17, %s31
      %s66 = sor.u32 %s64, %s65
      %p67 = scmp.eq.s32.totalorder %s66, 0
      %s69 = sadd.s32 %s68, 1
      %s70 = scalar_select %p67, %s68, %s69
      %p73 = pneg %p67
      %p74 = scmp.eq.s32.totalorder %s9, 2
      %p75 = por %p73, %p74
      %p76 = scmp.ne.s32.totalorder %s68, %s71
      %p77 = scmp.eq.s32.totalorder %s9, 0
      %p78 = por %p76, %p77
      %p79 = scmp.ne.s32.totalorder %s68, %s71
      %p80 = scmp.eq.s32.totalorder %s14, 2
      %p81 = por %p79, %p80
      %p82 = scmp.ne.s32.totalorder %s71, %s72
      %p83 = scmp.eq.s32.totalorder %s14, 0
      %p84 = por %p82, %p83
      %p85 = scmp.ne.s32.totalorder %s71, %s72
      %p86 = scmp.eq.s32.totalorder %s15, 2
      %p87 = por %p85, %p86
      %p89 = scmp.ne.s32.totalorder %s72, %s88
      %p90 = scmp.eq.s32.totalorder %s15, 0
      %p91 = por %p89, %p90
      %s92 = ssub.s32 %s17, %s31
      %p93 = scmp.eq.s32.totalorder %s92, 0
      %s95 = sadd.s32 %s94, 1
      %s96 = scalar_select %p93, %s94, %s95
      %p99 = pneg %p93
      %p100 = scmp.eq.s32.totalorder %s9, 2
      %p101 = por %p99, %p100
      %p102 = scmp.ne.s32.totalorder %s94, %s97
      %p103 = scmp.eq.s32.totalorder %s9, 0
      %p104 = por %p102, %p103
      %p105 = scmp.ne.s32.totalorder %s94, %s97
      %p106 = scmp.eq.s32.totalorder %s14, 2
      %p107 = por %p105, %p106
      %p108 = scmp.ne.s32.totalorder %s97, %s98
      %p109 = scmp.eq.s32.totalorder %s14, 0
      %p110 = por %p108, %p109
      %p111 = scmp.ne.s32.totalorder %s97, %s98
      %p112 = scmp.eq.s32.totalorder %s15, 2
      %p113 = por %p111, %p112
      %p115 = scmp.ne.s32.totalorder %s98, %s114
      %p116 = scmp.eq.s32.totalorder %s15, 0
      %p117 = por %p115, %p116
      %s118 = ssub.s32 %s16, %s35
      %s119 = ssub.s32 %s17, %s31
      %s120 = sor.u32 %s118, %s119
      %p121 = scmp.eq.s32.totalorder %s120, 0
      %s123 = sadd.s32 %s122, 1
      %s124 = scalar_select %p121, %s122, %s123
      %p127 = pneg %p121
      %p128 = scmp.eq.s32.totalorder %s9, 2
      %p129 = por %p127, %p128
      %p130 = scmp.ne.s32.totalorder %s122, %s125
      %p131 = scmp.eq.s32.totalorder %s9, 0
      %p132 = por %p130, %p131
      %p133 = scmp.ne.s32.totalorder %s122, %s125
      %p134 = scmp.eq.s32.totalorder %s14, 2
      %p135 = por %p133, %p134
      %p136 = scmp.ne.s32.totalorder %s125, %s126
      %p137 = scmp.eq.s32.totalorder %s14, 0
      %p138 = por %p136, %p137
      %p139 = scmp.ne.s32.totalorder %s125, %s126
      %p140 = scmp.eq.s32.totalorder %s15, 2
      %p141 = por %p139, %p140
      %p143 = scmp.ne.s32.totalorder %s126, %s142
      %p144 = scmp.eq.s32.totalorder %s15, 0
      %p145 = por %p143, %p144
      %p146 = scmp.le.s32.totalorder 1, %s9
      %p147 = scmp.lt.s32.totalorder %s9, 4
      %p148 = pnand %p146, %p147
      %p149 = pneg %p148
      // Predicated region
      $region9: #{cspdarknet_tiny_forward.22} parent=5 // pred_check
        _
      $region10: #{cspdarknet_tiny_forward.22} parent=5 // pred_check_branch
        %151 = sbr.rel (%p148) target = $region12
      $region11: #{cspdarknet_tiny_forward.22} parent=5 // pred_region
        %s152 = ssub.s32 %s9, 1
        // Predicated region
        $region13: #{cspdarknet_tiny_forward.22} parent=11 // pred_check
          %p153 = pneg %p110
        $region14: #{cspdarknet_tiny_forward.22} parent=11 // pred_check_branch
          %155 = sbr.rel (%p153) target = $region16
        $region15: #{cspdarknet_tiny_forward.22} parent=11 // pred_region
          %p156 = scmp.lt.s32.totalorder %s20, 0
          %s157 = scalar_select %p156, %s20, 0
          %s158 = scalar_lea.vmem %s2, %s157
        $region16: #{cspdarknet_tiny_forward.22} parent=11 // pred_fallthru
          _
      $region12: #{cspdarknet_tiny_forward.22} parent=5 // pred_fallthru
        _
      %p159 = scmp.lt.s32.totalorder %s9, 3
      // Predicated region
      $region17: #{cspdarknet_tiny_forward.22} parent=5 // pred_check
        %p160 = pneg %p159
      $region18: #{cspdarknet_tiny_forward.22} parent=5 // pred_check_branch
        %162 = sbr.rel (%p160) target = $region20
      $region19: #{cspdarknet_tiny_forward.22} parent=5 // pred_region
        // Predicated region
        $region21: #{cspdarknet_tiny_forward.22} parent=19 // pred_check
          %p163 = pneg %p50
        $region22: #{cspdarknet_tiny_forward.22} parent=19 // pred_check_branch
          %165 = sbr.rel (%p163) target = $region24
        $region23: #{cspdarknet_tiny_forward.22} parent=19 // pred_region
          %s166 = sand.u32 %s40, 1
          %s167 = sand.u32 %s40, 1
          %s168 = smul.addr %s167, 48
          %s169 = scalar_lea.vmem [#allocation3], %s168
          %s170 = smul.u32 4, %s16
          %s171 = smul.u32 3, %s18
          %s172 = smul.addr %s170, 9
          %s173 = sadd.s32 %s171, %s172
          %s174 = smul.addr %s173, 4
          %s175 = scalar_lea.vmem %s0, %s174
          // Predicated region
          $region25: #{cspdarknet_tiny_forward.22} parent=23 // pred_check
            _
          $region26: #{cspdarknet_tiny_forward.22} parent=23 // pred_check_branch
            %177 = sbr.rel (0) target = $region28
          $region27: #{cspdarknet_tiny_forward.22} parent=23 // pred_region
            // Predicated region
            $region29: #{cspdarknet_tiny_forward.22} parent=27 // pred_check
              _
            $region30: #{cspdarknet_tiny_forward.22} parent=27 // pred_check_branch
              %179 = sbr.rel (0) target = $region32
            $region31: #{cspdarknet_tiny_forward.22} parent=27 // pred_region
              %s180 = scalar_lea.vmem %s175, 8
              %s181 = scalar_lea.vmem %s169, 8 [#allocation3]
              loop: start=0, step=1, limit=1
              $region33: #{cspdarknet_tiny_forward.22} parent=31 // loop_pre_header
                _
              $region34: #{cspdarknet_tiny_forward.22} parent=31 // loop_header
                %s183 = sphi 0, %s187
                %p184 = scmp.ge.s32.totalorder %s183, 1
                %s188 = sphi %s175, %s175
                %s189 = sphi %s169, %s169
              $region35: #{cspdarknet_tiny_forward.22} parent=31 // loop_header_branch
                %186 = sbr.rel (%p184) target = $region39
              $region36: #{cspdarknet_tiny_forward.22} parent=31 // loop_body
                %v190 = vld [vmem:[%s188] sm:$0xff]
                %191 = vst [vmem:[%s189] sm:$0xff] %v190
                %v192 = vld [vmem:[%s188 + $0x24] sm:$0xff]
                %193 = vst [vmem:[%s189 + $0xc] sm:$0xff] %v192
                %v194 = vld [vmem:[%s188 + $0x48] sm:$0xff]
                %195 = vst [vmem:[%s189 + $0x18] sm:$0xff] %v194
                %v196 = vld [vmem:[%s188 + $0x6c] sm:$0xff]
                %197 = vst [vmem:[%s189 + $0x24] sm:$0xff] %v196
              $region37: #{cspdarknet_tiny_forward.22} parent=31 // loop_footer
                %s187 = sadd.s32 1, %s183
              $region38: #{cspdarknet_tiny_forward.22} parent=31 // loop_footer_branch
                %182 = sbr.rel target = $region34
              $region39: #{cspdarknet_tiny_forward.22} parent=31 // loop_exit
                _
              loop: start=0, step=1, limit=1
              $region40: #{cspdarknet_tiny_forward.22} parent=31 // loop_pre_header
                _
              $region41: #{cspdarknet_tiny_forward.22} parent=31 // loop_header
                %s200 = sphi 0, %s204
                %p201 = scmp.ge.s32.totalorder %s200, 1
                %s205 = sphi %s180, %s180
                %s206 = sphi %s181, %s181
              $region42: #{cspdarknet_tiny_forward.22} parent=31 // loop_header_branch
                %203 = sbr.rel (%p201) target = $region46
              $region43: #{cspdarknet_tiny_forward.22} parent=31 // loop_body
                %v207 = vld [vmem:[%s205] sm:$0xf]
                %208 = vst [vmem:[%s206] sm:$0xf] %v207
                %v209 = vld [vmem:[%s205 + $0x24] sm:$0xf]
                %210 = vst [vmem:[%s206 + $0xc] sm:$0xf] %v209
                %v211 = vld [vmem:[%s205 + $0x48] sm:$0xf]
                %212 = vst [vmem:[%s206 + $0x18] sm:$0xf] %v211
                %v213 = vld [vmem:[%s205 + $0x6c] sm:$0xf]
                %214 = vst [vmem:[%s206 + $0x24] sm:$0xf] %v213
              $region44: #{cspdarknet_tiny_forward.22} parent=31 // loop_footer
                %s204 = sadd.s32 1, %s200
              $region45: #{cspdarknet_tiny_forward.22} parent=31 // loop_footer_branch
                %199 = sbr.rel target = $region41
              $region46: #{cspdarknet_tiny_forward.22} parent=31 // loop_exit
                _
            $region32: #{cspdarknet_tiny_forward.22} parent=27 // pred_fallthru
              _
          $region28: #{cspdarknet_tiny_forward.22} parent=23 // pred_fallthru
            _
          %215 = vnop
        $region24: #{cspdarknet_tiny_forward.22} parent=19 // pred_fallthru
          _
        // Predicated region
        $region47: #{cspdarknet_tiny_forward.22} parent=19 // pred_check
          %p216 = pneg %p78
        $region48: #{cspdarknet_tiny_forward.22} parent=19 // pred_check_branch
          %218 = sbr.rel (%p216) target = $region50
        $region49: #{cspdarknet_tiny_forward.22} parent=19 // pred_region
          %s219 = smul.u32 48, %s18
          %p220 = scmp.lt.s32.totalorder %s219, 143
          %s221 = scalar_select %p220, %s219, 143
          %p222 = scmp.lt.s32.totalorder %s17, 0
          %s223 = scalar_select %p222, %s17, 0
          %s224 = sadd.s32 %s223, %s221
          %s225 = smul.addr %s224, 4
          %s226 = scalar_lea.vmem %s1, %s225
          %s227 = smul.u32 48, %s18
        $region50: #{cspdarknet_tiny_forward.22} parent=19 // pred_fallthru
          _
      $region20: #{cspdarknet_tiny_forward.22} parent=5 // pred_fallthru
        _
      %p228 = scmp.le.s32.totalorder 1, %s9
      %p229 = scmp.lt.s32.totalorder %s9, 4
      %p230 = pnand %p228, %p229
      %p231 = pneg %p230
      // Predicated region
      $region51: #{cspdarknet_tiny_forward.22} parent=5 // pred_check
        _
      $region52: #{cspdarknet_tiny_forward.22} parent=5 // pred_check_branch
        %233 = sbr.rel (%p230) target = $region54
      $region53: #{cspdarknet_tiny_forward.22} parent=5 // pred_region
        %s234 = ssub.s32 %s9, 1
        %s235 = sand.u32 %s43, 1
        %s236 = sand.u32 %s43, 1
        %s237 = smul.addr %s236, 48
        %s238 = scalar_lea.vmem [#allocation3], %s237
        // Predicated region
        $region55: #{cspdarknet_tiny_forward.22} parent=53 // pred_check
          %p239 = pneg %p56
        $region56: #{cspdarknet_tiny_forward.22} parent=53 // pred_check_branch
          %241 = sbr.rel (%p239) target = $region58
        $region57: #{cspdarknet_tiny_forward.22} parent=53 // pred_region
          _
        $region58: #{cspdarknet_tiny_forward.22} parent=53 // pred_fallthru
          _
        %s242 = sand.u32 %s43, 1
        %s243 = sand.u32 %s43, 1
        %s244 = smul.addr %s243, 48
        %s245 = scalar_lea.vmem [#allocation3], %s244
        %p246 = pneg %p56
        %p247 = pneg %p53
        %s248 = smul.u32 48, %s21
        %p249 = scmp.lt.s32.totalorder %s248, 143
        %s250 = scalar_select %p249, %s248, 143
        %p251 = scmp.lt.s32.totalorder %s20, 0
        %s252 = scalar_select %p251, %s20, 0
        %s253 = sadd.s32 %s252, %s250
        %s254 = smul.addr %s253, 4
        %s255 = scalar_lea.vmem %s1, %s254
        %p256 = pneg %p84
        %p257 = pneg %p81
        %p258 = scmp.lt.s32.totalorder %s20, 0
        %s259 = scalar_select %p258, %s20, 0
        %s260 = scalar_lea.vmem %s2, %s259
        %p261 = pneg %p110
        %p262 = pneg %p107
        %p263 = pneg %p138
        %p264 = pneg %p135
        %s265 = smul.u32 4, %s19
        %p266 = scmp.lt.s32.totalorder %s265, 3
        %s267 = scalar_select %p266, %s265, 3
        %p268 = scmp.lt.s32.totalorder %s20, 0
        %s269 = scalar_select %p268, %s20, 0
        %s270 = sadd.s32 %s269, %s267
        %s271 = smul.addr %s270, 4
        %s272 = scalar_lea.vmem %s3, %s271
        %s273 = smul.u32 4, %s19
        %s274 = smul.u32 3, %s21
        %s275 = smul.u32 48, %s21
        %p276 = scmp.lt.s32.totalorder %s275, 143
        %s277 = scalar_select %p276, %s275, 143
        %p278 = scmp.lt.s32.totalorder %s20, 0
        %s279 = scalar_select %p278, %s20, 0
        %s280 = sadd.s32 %s279, %s277
        %s281 = smul.addr %s280, 4
        %s282 = scalar_lea.vmem %s1, %s281
        %s283 = smul.u32 48, %s21
        %p284 = scmp.lt.s32.totalorder %s20, 0
        %s285 = scalar_select %p284, %s20, 0
        %s286 = scalar_lea.vmem %s2, %s285
        %s287 = smul.u32 4, %s19
        %p288 = scmp.lt.s32.totalorder %s287, 3
        %s289 = scalar_select %p288, %s287, 3
        %p290 = scmp.lt.s32.totalorder %s20, 0
        %s291 = scalar_select %p290, %s20, 0
        %s292 = sadd.s32 %s291, %s289
        %s293 = smul.addr %s292, 4
        %s294 = scalar_lea.vmem %s3, %s293
        %s295 = smul.u32 4, %s19
        %p297 = scmp.eq.s32.totalorder %s21, 0
        // Predicated region
        $region59: #{cspdarknet_tiny_forward.22} parent=53 // pred_check
          %p298 = pneg %p297
        $region60: #{cspdarknet_tiny_forward.22} parent=53 // pred_check_branch
          %300 = sbr.rel (%p298) target = $region62
        $region61: #{cspdarknet_tiny_forward.22} parent=53 // pred_region
          %301 = vst [vmem:[#allocation2] sm:$0xff] 0.0
          %302 = vst [vmem:[#allocation2 + $0x8] sm:$0xff] 0.0
          %303 = vst [vmem:[#allocation2 + $0x10] sm:$0xff] 0.0
          %304 = vst [vmem:[#allocation2 + $0x18] sm:$0xff] 0.0
        $region62: #{cspdarknet_tiny_forward.22} parent=53 // pred_fallthru
          _
        %v305 = vld [vmem:[#allocation2] sm:$0xff]
        %v306 = vld [vmem:[#allocation2 + $0x8] sm:$0xff]
        %v307 = vld [vmem:[#allocation2 + $0x10] sm:$0xff]
        %v308 = vld [vmem:[#allocation2 + $0x18] sm:$0xff]
        %v309 = vld [vmem:[%s238] sm:$0xff]
        %v310 = vld [vmem:[%s238 + $0x8] sm:$0xf]
        %v311 = vld [vmem:[%s238 + $0xc] sm:$0xff]
        %v312 = vld [vmem:[%s238 + $0x14] sm:$0xf]
        %v313 = vld [vmem:[%s238 + $0x18] sm:$0xff]
        %v314 = vld [vmem:[%s238 + $0x20] sm:$0xf]
        %v315 = vld [vmem:[%s238 + $0x24] sm:$0xff]
        %v316 = vld [vmem:[%s238 + $0x2c] sm:$0xf]
        %v317 = vld [vmem:[%s282] sm:$0xf]
        %v318 = vld [vmem:[%s282 + $0x4] sm:$0xf]
        %v319 = vld [vmem:[%s282 + $0x8] sm:$0xf]
        %v320 = vld [vmem:[%s282 + $0xc] sm:$0xf]
        %v321 = vld [vmem:[%s282 + $0x10] sm:$0xf]
        %v322 = vld [vmem:[%s282 + $0x14] sm:$0xf]
        %v323 = vld [vmem:[%s282 + $0x18] sm:$0xf]
        %v324 = vld [vmem:[%s282 + $0x1c] sm:$0xf]
        %v325 = vld [vmem:[%s282 + $0x20] sm:$0xf]
        %v326 = vld [vmem:[%s282 + $0x24] sm:$0xf]
        %v327 = vld [vmem:[%s282 + $0x28] sm:$0xf]
        %v328 = vld [vmem:[%s282 + $0x2c] sm:$0xf]
        %v329 = vld [vmem:[%s282 + $0x30] sm:$0xf]
        %v330 = vld [vmem:[%s282 + $0x34] sm:$0xf]
        %v331 = vld [vmem:[%s282 + $0x38] sm:$0xf]
        %v332 = vld [vmem:[%s282 + $0x3c] sm:$0xf]
        %v333 = vld [vmem:[%s282 + $0x40] sm:$0xf]
        %v334 = vld [vmem:[%s282 + $0x44] sm:$0xf]
        %v335 = vld [vmem:[%s282 + $0x48] sm:$0xf]
        %v336 = vld [vmem:[%s282 + $0x4c] sm:$0xf]
        %v337 = vld [vmem:[%s282 + $0x50] sm:$0xf]
        %v338 = vld [vmem:[%s282 + $0x54] sm:$0xf]
        %v339 = vld [vmem:[%s282 + $0x58] sm:$0xf]
        %v340 = vld [vmem:[%s282 + $0x5c] sm:$0xf]
        %v341 = vld [vmem:[%s282 + $0x60] sm:$0xf]
        %v342 = vld [vmem:[%s282 + $0x64] sm:$0xf]
        %v343 = vld [vmem:[%s282 + $0x68] sm:$0xf]
        %v344 = vld [vmem:[%s282 + $0x6c] sm:$0xf]
        %v345 = vld [vmem:[%s282 + $0x70] sm:$0xf]
        %v346 = vld [vmem:[%s282 + $0x74] sm:$0xf]
        %v347 = vld [vmem:[%s282 + $0x78] sm:$0xf]
        %v348 = vld [vmem:[%s282 + $0x7c] sm:$0xf]
        %v349 = vld [vmem:[%s282 + $0x80] sm:$0xf]
        %v350 = vld [vmem:[%s282 + $0x84] sm:$0xf]
        %v351 = vld [vmem:[%s282 + $0x88] sm:$0xf]
        %v352 = vld [vmem:[%s282 + $0x8c] sm:$0xf]
        %v353 = vld [vmem:[%s282 + $0x90] sm:$0xf]
        %v354 = vld [vmem:[%s282 + $0x94] sm:$0xf]
        %v355 = vld [vmem:[%s282 + $0x98] sm:$0xf]
        %v356 = vld [vmem:[%s282 + $0x9c] sm:$0xf]
        %v357 = vld [vmem:[%s282 + $0xa0] sm:$0xf]
        %v358 = vld [vmem:[%s282 + $0xa4] sm:$0xf]
        %v359 = vld [vmem:[%s282 + $0xa8] sm:$0xf]
        %v360 = vld [vmem:[%s282 + $0xac] sm:$0xf]
        %v361 = vld [vmem:[%s282 + $0xb0] sm:$0xf]
        %v362 = vld [vmem:[%s282 + $0xb4] sm:$0xf]
        %v363 = vld [vmem:[%s282 + $0xb8] sm:$0xf]
        %v364 = vld [vmem:[%s282 + $0xbc] sm:$0xf]
        %v373 = vunpack.c.l.b16 %v309
        %v374 = vunpack.c.h.b16 %v309
        %v375 = vunpack.c.l.b16 %v310
        %v376 = vunpack.c.l.b16 %v311
        %v377 = vunpack.c.h.b16 %v311
        %v378 = vunpack.c.l.b16 %v312
        %v379 = vunpack.c.l.b16 %v313
        %v380 = vunpack.c.h.b16 %v313
        %v381 = vunpack.c.l.b16 %v314
        %v382 = vunpack.c.l.b16 %v315
        %v383 = vunpack.c.h.b16 %v315
        %v384 = vunpack.c.l.b16 %v316
        %v385 = vpack.c.b16 %v376, %v373
        %v386 = vpack.c.b16 %v377, %v374
        %v387 = vpack.c.b16 %v378, %v375
        %v388 = vpack.c.b16 %v382, %v379
        %v389 = vpack.c.b16 %v383, %v380
        %v390 = vpack.c.b16 %v384, %v381
        %v445 = vunpack.c.l.b16 %v317
        %v446 = vunpack.c.l.b16 %v318
        %v447 = vunpack.c.l.b16 %v319
        %v448 = vunpack.c.l.b16 %v320
        %v449 = vunpack.c.l.b16 %v321
        %v450 = vunpack.c.l.b16 %v322
        %v451 = vunpack.c.l.b16 %v323
        %v452 = vunpack.c.l.b16 %v324
        %v453 = vunpack.c.l.b16 %v325
        %v454 = vunpack.c.l.b16 %v326
        %v455 = vunpack.c.l.b16 %v327
        %v456 = vunpack.c.l.b16 %v328
        %v457 = vunpack.c.l.b16 %v329
        %v458 = vunpack.c.l.b16 %v330
        %v459 = vunpack.c.l.b16 %v331
        %v460 = vunpack.c.l.b16 %v332
        %v461 = vunpack.c.l.b16 %v333
        %v462 = vunpack.c.l.b16 %v334
        %v463 = vunpack.c.l.b16 %v335
        %v464 = vunpack.c.l.b16 %v336
        %v465 = vunpack.c.l.b16 %v337
        %v466 = vunpack.c.l.b16 %v338
        %v467 = vunpack.c.l.b16 %v339
        %v468 = vunpack.c.l.b16 %v340
        %v469 = vunpack.c.l.b16 %v341
        %v470 = vunpack.c.l.b16 %v342
        %v471 = vunpack.c.l.b16 %v343
        %v472 = vunpack.c.l.b16 %v344
        %v473 = vunpack.c.l.b16 %v345
        %v474 = vunpack.c.l.b16 %v346
        %v475 = vunpack.c.l.b16 %v347
        %v476 = vunpack.c.l.b16 %v348
        %v477 = vunpack.c.l.b16 %v349
        %v478 = vunpack.c.l.b16 %v350
        %v479 = vunpack.c.l.b16 %v351
        %v480 = vunpack.c.l.b16 %v352
        %v481 = vunpack.c.l.b16 %v353
        %v482 = vunpack.c.l.b16 %v354
        %v483 = vunpack.c.l.b16 %v355
        %v484 = vunpack.c.l.b16 %v356
        %v485 = vunpack.c.l.b16 %v357
        %v486 = vunpack.c.l.b16 %v358
        %v487 = vunpack.c.l.b16 %v359
        %v488 = vunpack.c.l.b16 %v360
        %v489 = vunpack.c.l.b16 %v361
        %v490 = vunpack.c.l.b16 %v362
        %v491 = vunpack.c.l.b16 %v363
        %v492 = vunpack.c.l.b16 %v364
        %v493 = vpack.c.b16 %v446, %v445
        %v494 = vpack.c.b16 %v448, %v447
        %v495 = vpack.c.b16 %v450, %v449
        %v496 = vpack.c.b16 %v452, %v451
        %v497 = vpack.c.b16 %v454, %v453
        %v498 = vpack.c.b16 %v456, %v455
        %v499 = vpack.c.b16 %v458, %v457
        %v500 = vpack.c.b16 %v460, %v459
        %v501 = vpack.c.b16 %v462, %v461
        %v502 = vpack.c.b16 %v464, %v463
        %v503 = vpack.c.b16 %v466, %v465
        %v504 = vpack.c.b16 %v468, %v467
        %v505 = vpack.c.b16 %v470, %v469
        %v506 = vpack.c.b16 %v472, %v471
        %v507 = vpack.c.b16 %v474, %v473
        %v508 = vpack.c.b16 %v476, %v475
        %v509 = vpack.c.b16 %v478, %v477
        %v510 = vpack.c.b16 %v480, %v479
        %v511 = vpack.c.b16 %v482, %v481
        %v512 = vpack.c.b16 %v484, %v483
        %v513 = vpack.c.b16 %v486, %v485
        %v514 = vpack.c.b16 %v488, %v487
        %v515 = vpack.c.b16 %v490, %v489
        %v516 = vpack.c.b16 %v492, %v491
        %541 = vmatprep.subr.bf16.mxu0 0
        %542 = vmatpush1.bf16.msra.mxu0 %v493
        %543 = vmatprep.subr.bf16.mxu0 0
        %544 = vmatpush1.bf16.msra.mxu0 %v494
        %545 = vmatprep.subr.bf16.mxu0 0
        %546 = vmatpush1.bf16.msra.mxu0 %v495
        %547 = vmatprep.subr.bf16.mxu0 0
        %548 = vmatpush1.bf16.msra.mxu0 %v496
        %549 = vmatprep.subr.bf16.mxu0 0
        %550 = vmatpush1.bf16.msra.mxu0 %v497
        %551 = vmatprep.subr.bf16.mxu0 0
        %552 = vmatpush1.bf16.msra.mxu0 %v498
        %553 = vmatprep.subr.bf16.mxu0 0
        %554 = vmatpush1.bf16.msra.mxu0 %v499
        %555 = vmatprep.subr.bf16.mxu0 0
        %556 = vmatpush1.bf16.msra.mxu0 %v500
        %557 = vmatprep.subr.bf16.mxu0 0
        %558 = vmatpush1.bf16.msra.mxu0 %v501
        %559 = vmatprep.subr.bf16.mxu0 0
        %560 = vmatpush1.bf16.msra.mxu0 %v502
        %561 = vmatprep.subr.bf16.mxu0 0
        %562 = vmatpush1.bf16.msra.mxu0 %v503
        %563 = vmatprep.subr.bf16.mxu0 0
        %564 = vmatpush1.bf16.msra.mxu0 %v504
        %565 = vmatprep.subr.bf16.mxu0 0
        %566 = vmatpush1.bf16.msra.mxu0 %v505
        %567 = vmatprep.subr.bf16.mxu0 0
        %568 = vmatpush1.bf16.msra.mxu0 %v506
        %569 = vmatprep.subr.bf16.mxu0 0
        %570 = vmatpush1.bf16.msra.mxu0 %v507
        %571 = vmatprep.subr.bf16.mxu0 0
        %572 = vmatpush1.bf16.msra.mxu0 %v508
        %573 = vmatprep.mubr.bf16.mxu0 %v386
        %574 = vmatmul.mubr.bf16.gmra.mrb[0].mxu0 %v385
        %v575 = vpop.f32.mrb[0].mxu0
        %v576 = vadd.f32 0.0, %v575
        %v577 = vpop.f32.mrb[0].mxu0
        %v578 = vpop.f32.mrb[0].mxu0
        %v579 = vadd.f32 0.0, %v578
        %v580 = vpop.f32.mrb[0].mxu0
        %581 = vmatprep.mubr.bf16.mxu0 %v389
        %582 = vmatmul.mubr.bf16.gmra.mrb[0].mxu0 %v388
        %v583 = vpop.f32.mrb[0].mxu0
        %v584 = vadd.f32 0.0, %v583
        %v585 = vpop.f32.mrb[0].mxu0
        %v586 = vpop.f32.mrb[0].mxu0
        %v587 = vadd.f32 0.0, %v586
        %v588 = vpop.f32.mrb[0].mxu0
        %589 = vdwg.mxu0
        %590 = vmatprep.subr.bf16.mxu0 0
        %591 = vmatpush1.bf16.msra.mxu0 %v509
        %592 = vmatprep.subr.bf16.mxu0 0
        %593 = vmatpush1.bf16.msra.mxu0 %v510
        %594 = vmatprep.subr.bf16.mxu0 0
        %595 = vmatpush1.bf16.msra.mxu0 %v511
        %596 = vmatprep.subr.bf16.mxu0 0
        %597 = vmatpush1.bf16.msra.mxu0 %v512
        %598 = vmatprep.subr.bf16.mxu0 0
        %599 = vmatpush1.bf16.msra.mxu0 %v513
        %600 = vmatprep.subr.bf16.mxu0 0
        %601 = vmatpush1.bf16.msra.mxu0 %v514
        %602 = vmatprep.subr.bf16.mxu0 0
        %603 = vmatpush1.bf16.msra.mxu0 %v515
        %604 = vmatprep.subr.bf16.mxu0 0
        %605 = vmatpush1.bf16.msra.mxu0 %v516
        %606 = vmatprep.subr.bf16.mxu0 0
        %607 = vmatpush1.bf16.msra.mxu0 0
        %608 = vmatprep.subr.bf16.mxu0 0
        %609 = vmatpush1.bf16.msra.mxu0 0
        %610 = vmatprep.subr.bf16.mxu0 0
        %611 = vmatpush1.bf16.msra.mxu0 0
        %612 = vmatprep.subr.bf16.mxu0 0
        %613 = vmatpush1.bf16.msra.mxu0 0
        %614 = vmatprep.subr.bf16.mxu0 0
        %615 = vmatpush1.bf16.msra.mxu0 0
        %616 = vmatprep.subr.bf16.mxu0 0
        %617 = vmatpush1.bf16.msra.mxu0 0
        %618 = vmatprep.subr.bf16.mxu0 0
        %619 = vmatpush1.bf16.msra.mxu0 0
        %620 = vmatprep.subr.bf16.mxu0 0
        %621 = vmatpush1.bf16.msra.mxu0 0
        %622 = vmatprep.mubr.bf16.mxu0 0
        %623 = vmatmul.mubr.bf16.gmra.mrb[0].mxu0 %v387
        %v624 = vpop.f32.mrb[0].mxu0
        %v625 = vadd.f32 %v576, %v624
        %v626 = vpop.f32.mrb[0].mxu0
        %v627 = vpop.f32.mrb[0].mxu0
        %v628 = vadd.f32 %v579, %v627
        %v629 = vpop.f32.mrb[0].mxu0
        %630 = vmatprep.mubr.bf16.mxu0 0
        %631 = vmatmul.mubr.bf16.gmra.mrb[0].mxu0 %v390
        %v632 = vpop.f32.mrb[0].mxu0
        %v633 = vadd.f32 %v584, %v632
        %v634 = vpop.f32.mrb[0].mxu0
        %v635 = vpop.f32.mrb[0].mxu0
        %v636 = vadd.f32 %v587, %v635
        %v637 = vpop.f32.mrb[0].mxu0
        %638 = vdwg.mxu0
        %v639 = vadd.f32 %v305, %v625
        %v640 = vadd.f32 %v306, %v628
        %v641 = vadd.f32 %v307, %v633
        %v642 = vadd.f32 %v308, %v636
        %643 = vst [vmem:[#allocation2] sm:$0xff] %v639
        %644 = vst [vmem:[#allocation2 + $0x8] sm:$0xff] %v640
        %645 = vst [vmem:[#allocation2 + $0x10] sm:$0xff] %v641
        %646 = vst [vmem:[#allocation2 + $0x18] sm:$0xff] %v642
        %p647 = scmp.eq.s32.totalorder %s21, 2
        // Predicated region
        $region63: #{cspdarknet_tiny_forward.22} parent=53 // pred_check
          %p648 = pneg %p647
        $region64: #{cspdarknet_tiny_forward.22} parent=53 // pred_check_branch
          %650 = sbr.rel (%p648) target = $region66
        $region65: #{cspdarknet_tiny_forward.22} parent=53 // pred_region
          %v651 = vld [vmem:[#allocation2] sm:$0xff]
          %v652 = vld [vmem:[#allocation2 + $0x8] sm:$0xff]
          %v653 = vld [vmem:[#allocation2 + $0x10] sm:$0xff]
          %v654 = vld [vmem:[#allocation2 + $0x18] sm:$0xff]
          %v655 = vld [vmem:[%s286] sm:$0x1]
          %v657 = vlaneseq
          %v658 = vshrl.u32 %v657, 7
          %v659 = vsub.s32 0, %v658
          %v660 = vrot.slane %v655, %v659
          %v662 = vadd.f32 %v651, %v660
          %v663 = vadd.f32 %v652, %v660
          %v664 = vadd.f32 %v653, %v660
          %v665 = vadd.f32 %v654, %v660
          %vm666 = vcmp.gt.f32.partialorder %v662, 0.0
          %vm667 = vcmp.gt.f32.partialorder %v663, 0.0
          %vm668 = vcmp.gt.f32.partialorder %v664, 0.0
          %vm669 = vcmp.gt.f32.partialorder %v665, 0.0
          %v670 = vmul.f32 %v662, 0.1
          %v671 = vmul.f32 %v663, 0.1
          %v672 = vmul.f32 %v664, 0.1
          %v673 = vmul.f32 %v665, 0.1
          %v674 = vsel %vm666, %v662, %v670
          %v675 = vsel %vm667, %v663, %v671
          %v676 = vsel %vm668, %v664, %v672
          %v677 = vsel %vm669, %v665, %v673
          %v678 = vpack.c.bf16 %v675, %v674
          %v679 = vpack.c.bf16 %v677, %v676
          %v682 = vunpack.c.l.b16 %v678
          %v683 = vunpack.c.h.b16 %v678
          %v684 = vunpack.c.l.b16 %v679
          %v685 = vunpack.c.h.b16 %v679
          %v686 = vpack.c.b16 %v682, %v682
          %v687 = vpack.c.b16 %v683, %v683
          %v688 = vpack.c.b16 %v684, %v684
          %v689 = vpack.c.b16 %v685, %v685
          %694 = vst [vmem:[%s294] sm:$0xf] %v686
          %695 = vst [vmem:[%s294 + $0x4] sm:$0xf] %v687
          %696 = vst [vmem:[%s294 + $0x8] sm:$0xf] %v688
          %697 = vst [vmem:[%s294 + $0xc] sm:$0xf] %v689
        $region66: #{cspdarknet_tiny_forward.22} parent=53 // pred_fallthru
          _
        %s698 = smul.u32 4, %s19
        %p699 = scmp.lt.s32.totalorder %s698, 3
        %s700 = scalar_select %p699, %s698, 3
        %p701 = scmp.lt.s32.totalorder %s20, 0
        %s702 = scalar_select %p701, %s20, 0
        %s703 = sadd.s32 %s702, %s700
        %s704 = smul.addr %s703, 4
        %s705 = scalar_lea.vmem %s3, %s704
        // Predicated region
        $region67: #{cspdarknet_tiny_forward.22} parent=53 // pred_check
          %p706 = pneg %p135
        $region68: #{cspdarknet_tiny_forward.22} parent=53 // pred_check_branch
          %708 = sbr.rel (%p706) target = $region70
        $region69: #{cspdarknet_tiny_forward.22} parent=53 // pred_region
          %s709 = smul.u32 4, %s19
        $region70: #{cspdarknet_tiny_forward.22} parent=53 // pred_fallthru
          _
        // Predicated region
        $region71: #{cspdarknet_tiny_forward.22} parent=53 // pred_check
          %p710 = pneg %p135
        $region72: #{cspdarknet_tiny_forward.22} parent=53 // pred_check_branch
          %712 = sbr.rel (%p710) target = $region74
        $region73: #{cspdarknet_tiny_forward.22} parent=53 // pred_region
          %s713 = smul.u32 4, %s19
          %p714 = scmp.lt.s32.totalorder %s713, 3
          %s715 = scalar_select %p714, %s713, 3
          %p716 = scmp.lt.s32.totalorder %s20, 0
          %s717 = scalar_select %p716, %s20, 0
          %s718 = sadd.s32 %s717, %s715
          %s719 = smul.addr %s718, 4
          %s720 = scalar_lea.vmem %s3, %s719
        $region74: #{cspdarknet_tiny_forward.22} parent=53 // pred_fallthru
          _
      $region54: #{cspdarknet_tiny_forward.22} parent=5 // pred_fallthru
        _
      %p721 = scmp.le.s32.totalorder 2, %s9
      // Predicated region
      $region75: #{cspdarknet_tiny_forward.22} parent=5 // pred_check
        %p722 = pneg %p721
      $region76: #{cspdarknet_tiny_forward.22} parent=5 // pred_check_branch
        %724 = sbr.rel (%p722) target = $region78
      $region77: #{cspdarknet_tiny_forward.22} parent=5 // pred_region
        %s725 = ssub.s32 %s9, 2
      $region78: #{cspdarknet_tiny_forward.22} parent=5 // pred_fallthru
        _
    $region6: #{cspdarknet_tiny_forward.22} parent=1 // loop_footer
      %s13 = sadd.s32 1, %s9
    $region7: #{cspdarknet_tiny_forward.22} parent=1 // loop_footer_branch
      %8 = sbr.rel target = $region3
    $region8: #{cspdarknet_tiny_forward.22} parent=1 // loop_exit
      _

// kernel: cspdarknet_tiny_forward.23
$region0: #{cspdarknet_tiny_forward.23}
  #allocation0 [shape = 'u32[]', space=smem, size = 0x4, offset = 0x4, fixed_abs, tag = 'smem constant byte address 0x4 - core index']
  #allocation1 [shape = 'u32[144,128]{1,0:T(1,128)}', space=vmem, size = 0x12000, scoped, tag = 'internal scratch']
  #allocation2 [shape = 'f32[32,64]{1,0:T(8,128)}', space=vmem, size = 0x4000, scoped, tag = 'scratch operand']
  %s0 = inlined_call_operand.vmem [shape: bf16[32,640], index: 0, kind: input, shape index: {}]
  %s1 = inlined_call_operand.vmem [shape: bf16[640,64], index: 1, kind: input, shape index: {}]
  %s2 = inlined_call_operand.vmem [shape: f32[1,64], index: 2, kind: input, shape index: {}]
  %s3 = inlined_call_operand.vmem [shape: bf16[32,64], index: 3, kind: output, shape index: {}]
  %s4 = sld [smem:[#allocation0]]
  $region94: #{cspdarknet_tiny_forward.23} parent=0
    _
  %s6 = ssub.s32 1, %s4
  %s7 = scalar_select 0, %s6, %s4
  $region1: #{cspdarknet_tiny_forward.23} parent=0
    #allocation3 [shape = 'u8[16384]{0}', space=vmem, size = 0x4000, scoped, tag = 'input window, operand 0']
    loop: start=0, step=1, limit=7
    $region2: #{cspdarknet_tiny_forward.23} parent=1 // loop_pre_header
      _
    $region3: #{cspdarknet_tiny_forward.23} parent=1 // loop_header
      %s9 = sphi 0, %s13
      %p10 = scmp.ge.s32.totalorder %s9, 7
      %s16 = sphi 0, %s35
      %s17 = sphi 0, %s31
      %s18 = sphi 0, %s27
      %s19 = sphi 0, %s16
      %s20 = sphi 0, %s17
      %s21 = sphi 0, %s18
      %s22 = sphi 0, %s19
      %s23 = sphi 0, %s20
      %s24 = sphi 0, %s21
      %s40 = sphi 0, %s42
      %s43 = sphi 0, %s40
      %s44 = sphi 0, %s43
      %s60 = sphi 0, %s44
      %s68 = sphi 0, %s70
      %s71 = sphi 0, %s68
      %s72 = sphi 0, %s71
      %s88 = sphi 0, %s72
      %s94 = sphi 0, %s96
      %s97 = sphi 0, %s94
      %s98 = sphi 0, %s97
      %s114 = sphi 0, %s98
      %s122 = sphi 0, %s124
      %s125 = sphi 0, %s122
      %s126 = sphi 0, %s125
      %s142 = sphi 0, %s126
    $region4: #{cspdarknet_tiny_forward.23} parent=1 // loop_header_branch
      %12 = sbr.rel (%p10) target = $region8
    $region5: #{cspdarknet_tiny_forward.23} parent=1 // loop_body
      %s14 = ssub.s32 %s9, 1
      %s15 = ssub.s32 %s9, 2
      %s25 = sadd.s32 1, %s18
      %p26 = scmp.ge.s32.totalorder %s25, 5
      %s27 = scalar_select %p26, 0, %s25
      %s28 = sadd.s32 1, %s17
      %s29 = scalar_select %p26, %s28, %s17
      %p30 = scmp.ge.s32.totalorder %s29, 1
      %s31 = scalar_select %p30, 0, %s29
      %s32 = sadd.s32 1, %s16
      %s33 = scalar_select %p30, %s32, %s16
      %p34 = scmp.ge.s32.totalorder %s33, 1
      %s35 = scalar_select %p34, 0, %s33
      %s36 = ssub.s32 %s16, %s35
      %s37 = ssub.s32 %s18, %s27
      %s38 = sor.u32 %s36, %s37
      %p39 = scmp.eq.s32.totalorder %s38, 0
      %s41 = sadd.s32 %s40, 1
      %s42 = scalar_select %p39, %s40, %s41
      %p45 = pneg %p39
      %p46 = scmp.eq.s32.totalorder %s9, 4
      %p47 = por %p45, %p46
      %p48 = scmp.ne.s32.totalorder %s40, %s43
      %p49 = scmp.eq.s32.totalorder %s9, 0
      %p50 = por %p48, %p49
      %p51 = scmp.ne.s32.totalorder %s40, %s43
      %p52 = scmp.eq.s32.totalorder %s14, 4
      %p53 = por %p51, %p52
      %p54 = scmp.ne.s32.totalorder %s43, %s44
      %p55 = scmp.eq.s32.totalorder %s14, 0
      %p56 = por %p54, %p55
      %p57 = scmp.ne.s32.totalorder %s43, %s44
      %p58 = scmp.eq.s32.totalorder %s15, 4
      %p59 = por %p57, %p58
      %p61 = scmp.ne.s32.totalorder %s44, %s60
      %p62 = scmp.eq.s32.totalorder %s15, 0
      %p63 = por %p61, %p62
      %s64 = ssub.s32 %s18, %s27
      %s65 = ssub.s32 %s17, %s31
      %s66 = sor.u32 %s64, %s65
      %p67 = scmp.eq.s32.totalorder %s66, 0
      %s69 = sadd.s32 %s68, 1
      %s70 = scalar_select %p67, %s68, %s69
      %p73 = pneg %p67
      %p74 = scmp.eq.s32.totalorder %s9, 4
      %p75 = por %p73, %p74
      %p76 = scmp.ne.s32.totalorder %s68, %s71
      %p77 = scmp.eq.s32.totalorder %s9, 0
      %p78 = por %p76, %p77
      %p79 = scmp.ne.s32.totalorder %s68, %s71
      %p80 = scmp.eq.s32.totalorder %s14, 4
      %p81 = por %p79, %p80
      %p82 = scmp.ne.s32.totalorder %s71, %s72
      %p83 = scmp.eq.s32.totalorder %s14, 0
      %p84 = por %p82, %p83
      %p85 = scmp.ne.s32.totalorder %s71, %s72
      %p86 = scmp.eq.s32.totalorder %s15, 4
      %p87 = por %p85, %p86
      %p89 = scmp.ne.s32.totalorder %s72, %s88
      %p90 = scmp.eq.s32.totalorder %s15, 0
      %p91 = por %p89, %p90
      %s92 = ssub.s32 %s17, %s31
      %p93 = scmp.eq.s32.totalorder %s92, 0
      %s95 = sadd.s32 %s94, 1
      %s96 = scalar_select %p93, %s94, %s95
      %p99 = pneg %p93
      %p100 = scmp.eq.s32.totalorder %s9, 4
      %p101 = por %p99, %p100
      %p102 = scmp.ne.s32.totalorder %s94, %s97
      %p103 = scmp.eq.s32.totalorder %s9, 0
      %p104 = por %p102, %p103
      %p105 = scmp.ne.s32.totalorder %s94, %s97
      %p106 = scmp.eq.s32.totalorder %s14, 4
      %p107 = por %p105, %p106
      %p108 = scmp.ne.s32.totalorder %s97, %s98
      %p109 = scmp.eq.s32.totalorder %s14, 0
      %p110 = por %p108, %p109
      %p111 = scmp.ne.s32.totalorder %s97, %s98
      %p112 = scmp.eq.s32.totalorder %s15, 4
      %p113 = por %p111, %p112
      %p115 = scmp.ne.s32.totalorder %s98, %s114
      %p116 = scmp.eq.s32.totalorder %s15, 0
      %p117 = por %p115, %p116
      %s118 = ssub.s32 %s16, %s35
      %s119 = ssub.s32 %s17, %s31
      %s120 = sor.u32 %s118, %s119
      %p121 = scmp.eq.s32.totalorder %s120, 0
      %s123 = sadd.s32 %s122, 1
      %s124 = scalar_select %p121, %s122, %s123
      %p127 = pneg %p121
      %p128 = scmp.eq.s32.totalorder %s9, 4
      %p129 = por %p127, %p128
      %p130 = scmp.ne.s32.totalorder %s122, %s125
      %p131 = scmp.eq.s32.totalorder %s9, 0
      %p132 = por %p130, %p131
      %p133 = scmp.ne.s32.totalorder %s122, %s125
      %p134 = scmp.eq.s32.totalorder %s14, 4
      %p135 = por %p133, %p134
      %p136 = scmp.ne.s32.totalorder %s125, %s126
      %p137 = scmp.eq.s32.totalorder %s14, 0
      %p138 = por %p136, %p137
      %p139 = scmp.ne.s32.totalorder %s125, %s126
      %p140 = scmp.eq.s32.totalorder %s15, 4
      %p141 = por %p139, %p140
      %p143 = scmp.ne.s32.totalorder %s126, %s142
      %p144 = scmp.eq.s32.totalorder %s15, 0
      %p145 = por %p143, %p144
      %p146 = scmp.le.s32.totalorder 1, %s9
      %p147 = scmp.lt.s32.totalorder %s9, 6
      %p148 = pnand %p146, %p147
      %p149 = pneg %p148
      // Predicated region
      $region9: #{cspdarknet_tiny_forward.23} parent=5 // pred_check
        _
      $region10: #{cspdarknet_tiny_forward.23} parent=5 // pred_check_branch
        %151 = sbr.rel (%p148) target = $region12
      $region11: #{cspdarknet_tiny_forward.23} parent=5 // pred_region
        %s152 = ssub.s32 %s9, 1
        // Predicated region
        $region13: #{cspdarknet_tiny_forward.23} parent=11 // pred_check
          %p153 = pneg %p110
        $region14: #{cspdarknet_tiny_forward.23} parent=11 // pred_check_branch
          %155 = sbr.rel (%p153) target = $region16
        $region15: #{cspdarknet_tiny_forward.23} parent=11 // pred_region
          %p156 = scmp.lt.s32.totalorder %s20, 0
          %s157 = scalar_select %p156, %s20, 0
          %s158 = scalar_lea.vmem %s2, %s157
        $region16: #{cspdarknet_tiny_forward.23} parent=11 // pred_fallthru
          _
      $region12: #{cspdarknet_tiny_forward.23} parent=5 // pred_fallthru
        _
      %p159 = scmp.lt.s32.totalorder %s9, 5
      // Predicated region
      $region17: #{cspdarknet_tiny_forward.23} parent=5 // pred_check
        %p160 = pneg %p159
      $region18: #{cspdarknet_tiny_forward.23} parent=5 // pred_check_branch
        %162 = sbr.rel (%p160) target = $region20
      $region19: #{cspdarknet_tiny_forward.23} parent=5 // pred_region
        // Predicated region
        $region21: #{cspdarknet_tiny_forward.23} parent=19 // pred_check
          %p163 = pneg %p50
        $region22: #{cspdarknet_tiny_forward.23} parent=19 // pred_check_branch
          %165 = sbr.rel (%p163) target = $region24
        $region23: #{cspdarknet_tiny_forward.23} parent=19 // pred_region
          %s166 = sand.u32 %s40, 1
          %s167 = sand.u32 %s40, 1
          %s168 = smul.addr %s167, 16
          %s169 = scalar_lea.vmem [#allocation3], %s168
          %s170 = smul.u32 4, %s16
          %s171 = smul.addr %s170, 5
          %s172 = sadd.s32 %s18, %s171
          %s173 = smul.addr %s172, 4
          %s174 = scalar_lea.vmem %s0, %s173
          // Predicated region
          $region25: #{cspdarknet_tiny_forward.23} parent=23 // pred_check
            _
          $region26: #{cspdarknet_tiny_forward.23} parent=23 // pred_check_branch
            %176 = sbr.rel (0) target = $region28
          $region27: #{cspdarknet_tiny_forward.23} parent=23 // pred_region
            // Predicated region
            $region29: #{cspdarknet_tiny_forward.23} parent=27 // pred_check
              _
            $region30: #{cspdarknet_tiny_forward.23} parent=27 // pred_check_branch
              %178 = sbr.rel target = $region32
            $region31: #{cspdarknet_tiny_forward.23} parent=27 // pred_region
              // Predicated region
              $region44: #{cspdarknet_tiny_forward.23} parent=31 // pred_check
                _
              $region45: #{cspdarknet_tiny_forward.23} parent=31 // pred_check_branch
                %199 = sbr.rel (0) target = $region47
              $region46: #{cspdarknet_tiny_forward.23} parent=31 // pred_region
                loop: start=0, step=1, limit=1
                $region48: #{cspdarknet_tiny_forward.23} parent=46 // loop_pre_header
                  _
                $region49: #{cspdarknet_tiny_forward.23} parent=46 // loop_header
                  %s201 = sphi 0, %s205
                  %p202 = scmp.ge.s32.totalorder %s201, 1
                  %s206 = sphi %s174, %s174
                  %s207 = sphi %s169, %s169
                $region50: #{cspdarknet_tiny_forward.23} parent=46 // loop_header_branch
                  %204 = sbr.rel (%p202) target = $region54
                $region51: #{cspdarknet_tiny_forward.23} parent=46 // loop_body
                  _
                $region52: #{cspdarknet_tiny_forward.23} parent=46 // loop_footer
                  %s205 = sadd.s32 1, %s201
                $region53: #{cspdarknet_tiny_forward.23} parent=46 // loop_footer_branch
                  %200 = sbr.rel target = $region49
                $region54: #{cspdarknet_tiny_forward.23} parent=46 // loop_exit
                  _
                loop: start=0, step=1, limit=1
                $region55: #{cspdarknet_tiny_forward.23} parent=46 // loop_pre_header
                  _
                $region56: #{cspdarknet_tiny_forward.23} parent=46 // loop_header
                  %s210 = sphi 0, %s214
                  %p211 = scmp.ge.s32.totalorder %s210, 1
                  %s215 = sphi %s174, %s174
                  %s216 = sphi %s169, %s169
                $region57: #{cspdarknet_tiny_forward.23} parent=46 // loop_header_branch
                  %213 = sbr.rel (%p211) target = $region61
                $region58: #{cspdarknet_tiny_forward.23} parent=46 // loop_body
                  %v217 = vld [vmem:[%s215] sm:$0xf]
                  %218 = vst [vmem:[%s216] sm:$0xf] %v217
                  %v219 = vld [vmem:[%s215 + $0x14] sm:$0xf]
                  %220 = vst [vmem:[%s216 + $0x4] sm:$0xf] %v219
                  %v221 = vld [vmem:[%s215 + $0x28] sm:$0xf]
                  %222 = vst [vmem:[%s216 + $0x8] sm:$0xf] %v221
                  %v223 = vld [vmem:[%s215 + $0x3c] sm:$0xf]
                  %224 = vst [vmem:[%s216 + $0xc] sm:$0xf] %v223
                $region59: #{cspdarknet_tiny_forward.23} parent=46 // loop_footer
                  %s214 = sadd.s32 1, %s210
                $region60: #{cspdarknet_tiny_forward.23} parent=46 // loop_footer_branch
                  %209 = sbr.rel target = $region56
                $region61: #{cspdarknet_tiny_forward.23} parent=46 // loop_exit
                  _
              $region47: #{cspdarknet_tiny_forward.23} parent=31 // pred_fallthru
                _
            $region32: #{cspdarknet_tiny_forward.23} parent=27 // pred_fallthru
              _
            // Predicated region
            $region33: #{cspdarknet_tiny_forward.23} parent=27 // pred_check
              _
            $region34: #{cspdarknet_tiny_forward.23} parent=27 // pred_check_branch
              %180 = sbr.rel (0) target = $region36
            $region35: #{cspdarknet_tiny_forward.23} parent=27 // pred_region
              loop: start=0, step=1, limit=1
              $region37: #{cspdarknet_tiny_forward.23} parent=35 // loop_pre_header
                _
              $region38: #{cspdarknet_tiny_forward.23} parent=35 // loop_header
                %s183 = sphi 0, %s187
                %p184 = scmp.ge.s32.totalorder %s183, 1
                %s188 = sphi %s174, %s174
                %s189 = sphi %s169, %s169
              $region39: #{cspdarknet_tiny_forward.23} parent=35 // loop_header_branch
                %186 = sbr.rel (%p184) target = $region43
              $region40: #{cspdarknet_tiny_forward.23} parent=35 // loop_body
                %v190 = vld [vmem:[%s188] sm:$0xf]
                %191 = vst [vmem:[%s189] sm:$0xf] %v190
                %v192 = vld [vmem:[%s188 + $0x14] sm:$0xf]
                %193 = vst [vmem:[%s189 + $0x4] sm:$0xf] %v192
                %v194 = vld [vmem:[%s188 + $0x28] sm:$0xf]
                %195 = vst [vmem:[%s189 + $0x8] sm:$0xf] %v194
                %v196 = vld [vmem:[%s188 + $0x3c] sm:$0xf]
                %197 = vst [vmem:[%s189 + $0xc] sm:$0xf] %v196
              $region41: #{cspdarknet_tiny_forward.23} parent=35 // loop_footer
                %s187 = sadd.s32 1, %s183
              $region42: #{cspdarknet_tiny_forward.23} parent=35 // loop_footer_branch
                %182 = sbr.rel target = $region38
              $region43: #{cspdarknet_tiny_forward.23} parent=35 // loop_exit
                _
            $region36: #{cspdarknet_tiny_forward.23} parent=27 // pred_fallthru
              _
          $region28: #{cspdarknet_tiny_forward.23} parent=23 // pred_fallthru
            _
          %225 = vnop
        $region24: #{cspdarknet_tiny_forward.23} parent=19 // pred_fallthru
          _
        // Predicated region
        $region62: #{cspdarknet_tiny_forward.23} parent=19 // pred_check
          %p226 = pneg %p78
        $region63: #{cspdarknet_tiny_forward.23} parent=19 // pred_check_branch
          %228 = sbr.rel (%p226) target = $region65
        $region64: #{cspdarknet_tiny_forward.23} parent=19 // pred_region
          %s229 = smul.u32 16, %s18
          %p230 = scmp.lt.s32.totalorder %s229, 79
          %s231 = scalar_select %p230, %s229, 79
          %p232 = scmp.lt.s32.totalorder %s17, 0
          %s233 = scalar_select %p232, %s17, 0
          %s234 = sadd.s32 %s233, %s231
          %s235 = smul.addr %s234, 4
          %s236 = scalar_lea.vmem %s1, %s235
          %s237 = smul.u32 16, %s18
        $region65: #{cspdarknet_tiny_forward.23} parent=19 // pred_fallthru
          _
      $region20: #{cspdarknet_tiny_forward.23} parent=5 // pred_fallthru
        _
      %p238 = scmp.le.s32.totalorder 1, %s9
      %p239 = scmp.lt.s32.totalorder %s9, 6
      %p240 = pnand %p238, %p239
      %p241 = pneg %p240
      // Predicated region
      $region66: #{cspdarknet_tiny_forward.23} parent=5 // pred_check
        _
      $region67: #{cspdarknet_tiny_forward.23} parent=5 // pred_check_branch
        %243 = sbr.rel (%p240) target = $region69
      $region68: #{cspdarknet_tiny_forward.23} parent=5 // pred_region
        %s244 = ssub.s32 %s9, 1
        %s245 = sand.u32 %s43, 1
        %s246 = sand.u32 %s43, 1
        %s247 = smul.addr %s246, 16
        %s248 = scalar_lea.vmem [#allocation3], %s247
        // Predicated region
        $region70: #{cspdarknet_tiny_forward.23} parent=68 // pred_check
          %p249 = pneg %p56
        $region71: #{cspdarknet_tiny_forward.23} parent=68 // pred_check_branch
          %251 = sbr.rel (%p249) target = $region73
        $region72: #{cspdarknet_tiny_forward.23} parent=68 // pred_region
          _
        $region73: #{cspdarknet_tiny_forward.23} parent=68 // pred_fallthru
          _
        %s252 = sand.u32 %s43, 1
        %s253 = sand.u32 %s43, 1
        %s254 = smul.addr %s253, 16
        %s255 = scalar_lea.vmem [#allocation3], %s254
        %p256 = pneg %p56
        %p257 = pneg %p53
        %s258 = smul.u32 16, %s21
        %p259 = scmp.lt.s32.totalorder %s258, 79
        %s260 = scalar_select %p259, %s258, 79
        %p261 = scmp.lt.s32.totalorder %s20, 0
        %s262 = scalar_select %p261, %s20, 0
        %s263 = sadd.s32 %s262, %s260
        %s264 = smul.addr %s263, 4
        %s265 = scalar_lea.vmem %s1, %s264
        %p266 = pneg %p84
        %p267 = pneg %p81
        %p268 = scmp.lt.s32.totalorder %s20, 0
        %s269 = scalar_select %p268, %s20, 0
        %s270 = scalar_lea.vmem %s2, %s269
        %p271 = pneg %p110
        %p272 = pneg %p107
        %p273 = pneg %p138
        %p274 = pneg %p135
        %s275 = smul.u32 4, %s19
        %p276 = scmp.lt.s32.totalorder %s275, 3
        %s277 = scalar_select %p276, %s275, 3
        %p278 = scmp.lt.s32.totalorder %s20, 0
        %s279 = scalar_select %p278, %s20, 0
        %s280 = sadd.s32 %s279, %s277
        %s281 = smul.addr %s280, 4
        %s282 = scalar_lea.vmem %s3, %s281
        %s283 = smul.u32 4, %s19
        %s284 = smul.u32 16, %s21
        %p285 = scmp.lt.s32.totalorder %s284, 79
        %s286 = scalar_select %p285, %s284, 79
        %p287 = scmp.lt.s32.totalorder %s20, 0
        %s288 = scalar_select %p287, %s20, 0
        %s289 = sadd.s32 %s288, %s286
        %s290 = smul.addr %s289, 4
        %s291 = scalar_lea.vmem %s1, %s290
        %s292 = smul.u32 16, %s21
        %p293 = scmp.lt.s32.totalorder %s20, 0
        %s294 = scalar_select %p293, %s20, 0
        %s295 = scalar_lea.vmem %s2, %s294
        %s296 = smul.u32 4, %s19
        %p297 = scmp.lt.s32.totalorder %s296, 3
        %s298 = scalar_select %p297, %s296, 3
        %p299 = scmp.lt.s32.totalorder %s20, 0
        %s300 = scalar_select %p299, %s20, 0
        %s301 = sadd.s32 %s300, %s298
        %s302 = smul.addr %s301, 4
        %s303 = scalar_lea.vmem %s3, %s302
        %s304 = smul.u32 4, %s19
        %p306 = scmp.eq.s32.totalorder %s21, 0
        // Predicated region
        $region74: #{cspdarknet_tiny_forward.23} parent=68 // pred_check
          %p307 = pneg %p306
        $region75: #{cspdarknet_tiny_forward.23} parent=68 // pred_check_branch
          %309 = sbr.rel (%p307) target = $region77
        $region76: #{cspdarknet_tiny_forward.23} parent=68 // pred_region
          %vm310 = vcmask 523264
          %311 = vst.msk [vmem:[#allocation2] sm:$0xff] %vm310, 0.0
          %312 = vst.msk [vmem:[#allocation2 + $0x8] sm:$0xff] %vm310, 0.0
          %313 = vst.msk [vmem:[#allocation2 + $0x10] sm:$0xff] %vm310, 0.0
          %314 = vst.msk [vmem:[#allocation2 + $0x18] sm:$0xff] %vm310, 0.0
        $region77: #{cspdarknet_tiny_forward.23} parent=68 // pred_fallthru
          _
        %v315 = vld [vmem:[#allocation2] sm:$0xff]
        %v316 = vld [vmem:[#allocation2 + $0x8] sm:$0xff]
        %v317 = vld [vmem:[#allocation2 + $0x10] sm:$0xff]
        %v318 = vld [vmem:[#allocation2 + $0x18] sm:$0xff]
        %v319 = vld [vmem:[%s248] sm:$0xf]
        %v320 = vld [vmem:[%s248 + $0x4] sm:$0xf]
        %v321 = vld [vmem:[%s248 + $0x8] sm:$0xf]
        %v322 = vld [vmem:[%s248 + $0xc] sm:$0xf]
        %v323 = vld [vmem:[%s291] sm:$0xf]
        %v324 = vld [vmem:[%s291 + $0x4] sm:$0xf]
        %v325 = vld [vmem:[%s291 + $0x8] sm:$0xf]
        %v326 = vld [vmem:[%s291 + $0xc] sm:$0xf]
        %v327 = vld [vmem:[%s291 + $0x10] sm:$0xf]
        %v328 = vld [vmem:[%s291 + $0x14] sm:$0xf]
        %v329 = vld [vmem:[%s291 + $0x18] sm:$0xf]
        %v330 = vld [vmem:[%s291 + $0x1c] sm:$0xf]
        %v331 = vld [vmem:[%s291 + $0x20] sm:$0xf]
        %v332 = vld [vmem:[%s291 + $0x24] sm:$0xf]
        %v333 = vld [vmem:[%s291 + $0x28] sm:$0xf]
        %v334 = vld [vmem:[%s291 + $0x2c] sm:$0xf]
        %v335 = vld [vmem:[%s291 + $0x30] sm:$0xf]
        %v336 = vld [vmem:[%s291 + $0x34] sm:$0xf]
        %v337 = vld [vmem:[%s291 + $0x38] sm:$0xf]
        %v338 = vld [vmem:[%s291 + $0x3c] sm:$0xf]
        %v343 = vunpack.c.l.b16 %v319
        %v344 = vunpack.c.l.b16 %v320
        %v345 = vunpack.c.l.b16 %v321
        %v346 = vunpack.c.l.b16 %v322
        %v347 = vpack.c.b16 %v344, %v343
        %v348 = vpack.c.b16 %v346, %v345
        %v367 = vunpack.c.l.b16 %v323
        %v368 = vunpack.c.l.b16 %v324
        %v369 = vunpack.c.l.b16 %v325
        %v370 = vunpack.c.l.b16 %v326
        %v371 = vunpack.c.l.b16 %v327
        %v372 = vunpack.c.l.b16 %v328
        %v373 = vunpack.c.l.b16 %v329
        %v374 = vunpack.c.l.b16 %v330
        %v375 = vunpack.c.l.b16 %v331
        %v376 = vunpack.c.l.b16 %v332
        %v377 = vunpack.c.l.b16 %v333
        %v378 = vunpack.c.l.b16 %v334
        %v379 = vunpack.c.l.b16 %v335
        %v380 = vunpack.c.l.b16 %v336
        %v381 = vunpack.c.l.b16 %v337
        %v382 = vunpack.c.l.b16 %v338
        %v383 = vpack.c.b16 %v368, %v367
        %v384 = vpack.c.b16 %v370, %v369
        %v385 = vpack.c.b16 %v372, %v371
        %v386 = vpack.c.b16 %v374, %v373
        %v387 = vpack.c.b16 %v376, %v375
        %v388 = vpack.c.b16 %v378, %v377
        %v389 = vpack.c.b16 %v380, %v379
        %v390 = vpack.c.b16 %v382, %v381
        %399 = vmatprep.subr.bf16.mxu0 0
        %400 = vmatpush1.bf16.msra.mxu0 %v383
        %401 = vmatprep.subr.bf16.mxu0 0
        %402 = vmatpush1.bf16.msra.mxu0 %v384
        %403 = vmatprep.subr.bf16.mxu0 0
        %404 = vmatpush1.bf16.msra.mxu0 %v385
        %405 = vmatprep.subr.bf16.mxu0 0
        %406 = vmatpush1.bf16.msra.mxu0 %v386
        %407 = vmatprep.subr.bf16.mxu0 0
        %408 = vmatpush1.bf16.msra.mxu0 %v387
        %409 = vmatprep.subr.bf16.mxu0 0
        %410 = vmatpush1.bf16.msra.mxu0 %v388
        %411 = vmatprep.subr.bf16.mxu0 0
        %412 = vmatpush1.bf16.msra.mxu0 %v389
        %413 = vmatprep.subr.bf16.mxu0 0
        %414 = vmatpush1.bf16.msra.mxu0 %v390
        %415 = vmatprep.subr.bf16.mxu0 0
        %416 = vmatpush1.bf16.msra.mxu0 0
        %417 = vmatprep.subr.bf16.mxu0 0
        %418 = vmatpush1.bf16.msra.mxu0 0
        %419 = vmatprep.subr.bf16.mxu0 0
        %420 = vmatpush1.bf16.msra.mxu0 0
        %421 = vmatprep.subr.bf16.mxu0 0
        %422 = vmatpush1.bf16.msra.mxu0 0
        %423 = vmatprep.subr.bf16.mxu0 0
        %424 = vmatpush1.bf16.msra.mxu0 0
        %425 = vmatprep.subr.bf16.mxu0 0
        %426 = vmatpush1.bf16.msra.mxu0 0
        %427 = vmatprep.subr.bf16.mxu0 0
        %428 = vmatpush1.bf16.msra.mxu0 0
        %429 = vmatprep.subr.bf16.mxu0 0
        %430 = vmatpush1.bf16.msra.mxu0 0
        %431 = vmatprep.mubr.bf16.mxu0 0
        %432 = vmatmul.mubr.bf16.gmra.mrb[0].mxu0 %v347
        %v433 = vpop.f32.mrb[0].mxu0
        %v434 = vadd.f32 0.0, %v433
        %v435 = vpop.f32.mrb[0].mxu0
        %v436 = vpop.f32.mrb[0].mxu0
        %v437 = vadd.f32 0.0, %v436
        %v438 = vpop.f32.mrb[0].mxu0
        %439 = vmatprep.mubr.bf16.mxu0 0
        %440 = vmatmul.mubr.bf16.gmra.mrb[0].mxu0 %v348
        %v441 = vpop.f32.mrb[0].mxu0
        %v442 = vadd.f32 0.0, %v441
        %v443 = vpop.f32.mrb[0].mxu0
        %v444 = vpop.f32.mrb[0].mxu0
        %v445 = vadd.f32 0.0, %v444
        %v446 = vpop.f32.mrb[0].mxu0
        %447 = vdwg.mxu0
        %v448 = vadd.f32 %v315, %v434
        %v449 = vadd.f32 %v316, %v437
        %v450 = vadd.f32 %v317, %v442
        %v451 = vadd.f32 %v318, %v445
        %vm452 = vcmask 523264
        %453 = vst.msk [vmem:[#allocation2] sm:$0xff] %vm452, %v448
        %454 = vst.msk [vmem:[#allocation2 + $0x8] sm:$0xff] %vm452, %v449
        %455 = vst.msk [vmem:[#allocation2 + $0x10] sm:$0xff] %vm452, %v450
        %456 = vst.msk [vmem:[#allocation2 + $0x18] sm:$0xff] %vm452, %v451
        %p457 = scmp.eq.s32.totalorder %s21, 4
        // Predicated region
        $region78: #{cspdarknet_tiny_forward.23} parent=68 // pred_check
          %p458 = pneg %p457
        $region79: #{cspdarknet_tiny_forward.23} parent=68 // pred_check_branch
          %460 = sbr.rel (%p458) target = $region81
        $region80: #{cspdarknet_tiny_forward.23} parent=68 // pred_region
          %v461 = vld [vmem:[#allocation2] sm:$0xff]
          %v462 = vld [vmem:[#allocation2 + $0x8] sm:$0xff]
          %v463 = vld [vmem:[#allocation2 + $0x10] sm:$0xff]
          %v464 = vld [vmem:[#allocation2 + $0x18] sm:$0xff]
          %v465 = vld [vmem:[%s295] sm:$0x1]
          %v467 = vlaneseq
          %v468 = vshrl.u32 %v467, 7
          %v469 = vsub.s32 0, %v468
          %v470 = vrot.slane %v465, %v469
          %v472 = vadd.f32 %v461, %v470
          %v473 = vadd.f32 %v462, %v470
          %v474 = vadd.f32 %v463, %v470
          %v475 = vadd.f32 %v464, %v470
          %vm476 = vcmp.gt.f32.partialorder %v472, 0.0
          %vm477 = vcmp.gt.f32.partialorder %v473, 0.0
          %vm478 = vcmp.gt.f32.partialorder %v474, 0.0
          %vm479 = vcmp.gt.f32.partialorder %v475, 0.0
          %v480 = vmul.f32 %v472, 0.1
          %v481 = vmul.f32 %v473, 0.1
          %v482 = vmul.f32 %v474, 0.1
          %v483 = vmul.f32 %v475, 0.1
          %v484 = vsel %vm476, %v472, %v480
          %v485 = vsel %vm477, %v473, %v481
          %v486 = vsel %vm478, %v474, %v482
          %v487 = vsel %vm479, %v475, %v483
          %v488 = vpack.c.bf16 %v485, %v484
          %v489 = vpack.c.bf16 %v487, %v486
          %v492 = vunpack.c.l.b16 %v488
          %v493 = vunpack.c.h.b16 %v488
          %v494 = vunpack.c.l.b16 %v489
          %v495 = vunpack.c.h.b16 %v489
          %v496 = vpack.c.b16 %v492, %v492
          %v497 = vpack.c.b16 %v493, %v493
          %v498 = vpack.c.b16 %v494, %v494
          %v499 = vpack.c.b16 %v495, %v495
          %vm504 = vcmask 519168
          %505 = vst.msk [vmem:[%s303] sm:$0xf] %vm504, %v496
          %506 = vst.msk [vmem:[%s303 + $0x4] sm:$0xf] %vm504, %v497
          %507 = vst.msk [vmem:[%s303 + $0x8] sm:$0xf] %vm504, %v498
          %508 = vst.msk [vmem:[%s303 + $0xc] sm:$0xf] %vm504, %v499
        $region81: #{cspdarknet_tiny_forward.23} parent=68 // pred_fallthru
          _
        %s509 = smul.u32 4, %s19
        %p510 = scmp.lt.s32.totalorder %s509, 3
        %s511 = scalar_select %p510, %s509, 3
        %p512 = scmp.lt.s32.totalorder %s20, 0
        %s513 = scalar_select %p512, %s20, 0
        %s514 = sadd.s32 %s513, %s511
        %s515 = smul.addr %s514, 4
        %s516 = scalar_lea.vmem %s3, %s515
        // Predicated region
        $region82: #{cspdarknet_tiny_forward.23} parent=68 // pred_check
          %p517 = pneg %p135
        $region83: #{cspdarknet_tiny_forward.23} parent=68 // pred_check_branch
          %519 = sbr.rel (%p517) target = $region85
        $region84: #{cspdarknet_tiny_forward.23} parent=68 // pred_region
          %s520 = smul.u32 4, %s19
        $region85: #{cspdarknet_tiny_forward.23} parent=68 // pred_fallthru
          _
        // Predicated region
        $region86: #{cspdarknet_tiny_forward.23} parent=68 // pred_check
          %p521 = pneg %p135
        $region87: #{cspdarknet_tiny_forward.23} parent=68 // pred_check_branch
          %523 = sbr.rel (%p521) target = $region89
        $region88: #{cspdarknet_tiny_forward.23} parent=68 // pred_region
          %s524 = smul.u32 4, %s19
          %p525 = scmp.lt.s32.totalorder %s524, 3
          %s526 = scalar_select %p525, %s524, 3
          %p527 = scmp.lt.s32.totalorder %s20, 0
          %s528 = scalar_select %p527, %s20, 0
          %s529 = sadd.s32 %s528, %s526
          %s530 = smul.addr %s529, 4
          %s531 = scalar_lea.vmem %s3, %s530
        $region89: #{cspdarknet_tiny_forward.23} parent=68 // pred_fallthru
          _
      $region69: #{cspdarknet_tiny_forward.23} parent=5 // pred_fallthru
        _
      %p532 = scmp.le.s32.totalorder 2, %s9
      // Predicated region
      $region90: #{cspdarknet_tiny_forward.23} parent=5 // pred_check
        %p533 = pneg %p532
      $region91: #{cspdarknet_tiny_forward.23} parent=5 // pred_check_branch
        %535 = sbr.rel (%p533) target = $region93
      $region92: #{cspdarknet_tiny_forward.23} parent=5 // pred_region
        %s536 = ssub.s32 %s9, 2
      $region93: #{cspdarknet_tiny_forward.23} parent=5 // pred_fallthru
        _
    $region6: #{cspdarknet_tiny_forward.23} parent=1 // loop_footer
      %s13 = sadd.s32 1, %s9
    $region7: #{cspdarknet_tiny_forward.23} parent=1 // loop_footer_branch
      %8 = sbr.rel target = $region3
    $region8: #{cspdarknet_tiny_forward.23} parent=1 // loop_exit
      _

// kernel: cspdarknet_tiny_forward.26
$region0: #{cspdarknet_tiny_forward.26}
  #allocation0 [shape = 'u32[]', space=smem, size = 0x4, offset = 0x4, fixed_abs, tag = 'smem constant byte address 0x4 - core index']
  #allocation1 [shape = 'u32[144,128]{1,0:T(1,128)}', space=vmem, size = 0x12000, scoped, tag = 'internal scratch']
  #allocation2 [shape = 'f32[8,256]{1,0:T(8,128)}', space=vmem, size = 0x2000, scoped, tag = 'scratch operand']
  %s0 = inlined_call_operand.vmem [shape: bf16[8,2304], index: 0, kind: input, shape index: {}]
  %s1 = inlined_call_operand.vmem [shape: bf16[2304,256], index: 1, kind: input, shape index: {}]
  %s2 = inlined_call_operand.vmem [shape: f32[1,256], index: 2, kind: input, shape index: {}]
  %s3 = inlined_call_operand.vmem [shape: bf16[8,256], index: 3, kind: output, shape index: {}]
  %s4 = sld [smem:[#allocation0]]
  $region53: #{cspdarknet_tiny_forward.26} parent=0
    _
  %s6 = ssub.s32 1, %s4
  %s7 = scalar_select 0, %s6, %s4
  loop: start=0, step=1, limit=8
  $region2: #{cspdarknet_tiny_forward.26} parent=0 // loop_pre_header
    _
  $region3: #{cspdarknet_tiny_forward.26} parent=0 // loop_header
    %s9 = sphi 0, %s13
    %p10 = scmp.ge.s32.totalorder %s9, 8
    %s16 = sphi 0, %s35
    %s17 = sphi 0, %s31
    %s18 = sphi 0, %s27
    %s19 = sphi 0, %s16
    %s20 = sphi 0, %s17
    %s21 = sphi 0, %s18
    %s22 = sphi 0, %s19
    %s23 = sphi 0, %s20
    %s24 = sphi 0, %s21
    %s40 = sphi 0, %s42
    %s43 = sphi 0, %s40
    %s44 = sphi 0, %s43
    %s60 = sphi 0, %s44
    %s68 = sphi 0, %s70
    %s71 = sphi 0, %s68
    %s72 = sphi 0, %s71
    %s88 = sphi 0, %s72
    %s94 = sphi 0, %s96
    %s97 = sphi 0, %s94
    %s98 = sphi 0, %s97
    %s114 = sphi 0, %s98
    %s122 = sphi 0, %s124
    %s125 = sphi 0, %s122
    %s126 = sphi 0, %s125
    %s142 = sphi 0, %s126
  $region4: #{cspdarknet_tiny_forward.26} parent=0 // loop_header_branch
    %12 = sbr.rel (%p10) target = $region8
  $region5: #{cspdarknet_tiny_forward.26} parent=0 // loop_body
    %s14 = ssub.s32 %s9, 1
    %s15 = ssub.s32 %s9, 2
    %s25 = sadd.s32 1, %s18
    %p26 = scmp.ge.s32.totalorder %s25, 6
    %s27 = scalar_select %p26, 0, %s25
    %s28 = sadd.s32 1, %s17
    %s29 = scalar_select %p26, %s28, %s17
    %p30 = scmp.ge.s32.totalorder %s29, 1
    %s31 = scalar_select %p30, 0, %s29
    %s32 = sadd.s32 1, %s16
    %s33 = scalar_select %p30, %s32, %s16
    %p34 = scmp.ge.s32.totalorder %s33, 1
    %s35 = scalar_select %p34, 0, %s33
    %s36 = ssub.s32 %s16, %s35
    %s37 = ssub.s32 %s18, %s27
    %s38 = sor.u32 %s36, %s37
    %p39 = scmp.eq.s32.totalorder %s38, 0
    %s41 = sadd.s32 %s40, 1
    %s42 = scalar_select %p39, %s40, %s41
    %p45 = pneg %p39
    %p46 = scmp.eq.s32.totalorder %s9, 5
    %p47 = por %p45, %p46
    %p48 = scmp.ne.s32.totalorder %s40, %s43
    %p49 = scmp.eq.s32.totalorder %s9, 0
    %p50 = por %p48, %p49
    %p51 = scmp.ne.s32.totalorder %s40, %s43
    %p52 = scmp.eq.s32.totalorder %s14, 5
    %p53 = por %p51, %p52
    %p54 = scmp.ne.s32.totalorder %s43, %s44
    %p55 = scmp.eq.s32.totalorder %s14, 0
    %p56 = por %p54, %p55
    %p57 = scmp.ne.s32.totalorder %s43, %s44
    %p58 = scmp.eq.s32.totalorder %s15, 5
    %p59 = por %p57, %p58
    %p61 = scmp.ne.s32.totalorder %s44, %s60
    %p62 = scmp.eq.s32.totalorder %s15, 0
    %p63 = por %p61, %p62
    %s64 = ssub.s32 %s18, %s27
    %s65 = ssub.s32 %s17, %s31
    %s66 = sor.u32 %s64, %s65
    %p67 = scmp.eq.s32.totalorder %s66, 0
    %s69 = sadd.s32 %s68, 1
    %s70 = scalar_select %p67, %s68, %s69
    %p73 = pneg %p67
    %p74 = scmp.eq.s32.totalorder %s9, 5
    %p75 = por %p73, %p74
    %p76 = scmp.ne.s32.totalorder %s68, %s71
    %p77 = scmp.eq.s32.totalorder %s9, 0
    %p78 = por %p76, %p77
    %p79 = scmp.ne.s32.totalorder %s68, %s71
    %p80 = scmp.eq.s32.totalorder %s14, 5
    %p81 = por %p79, %p80
    %p82 = scmp.ne.s32.totalorder %s71, %s72
    %p83 = scmp.eq.s32.totalorder %s14, 0
    %p84 = por %p82, %p83
    %p85 = scmp.ne.s32.totalorder %s71, %s72
    %p86 = scmp.eq.s32.totalorder %s15, 5
    %p87 = por %p85, %p86
    %p89 = scmp.ne.s32.totalorder %s72, %s88
    %p90 = scmp.eq.s32.totalorder %s15, 0
    %p91 = por %p89, %p90
    %s92 = ssub.s32 %s17, %s31
    %p93 = scmp.eq.s32.totalorder %s92, 0
    %s95 = sadd.s32 %s94, 1
    %s96 = scalar_select %p93, %s94, %s95
    %p99 = pneg %p93
    %p100 = scmp.eq.s32.totalorder %s9, 5
    %p101 = por %p99, %p100
    %p102 = scmp.ne.s32.totalorder %s94, %s97
    %p103 = scmp.eq.s32.totalorder %s9, 0
    %p104 = por %p102, %p103
    %p105 = scmp.ne.s32.totalorder %s94, %s97
    %p106 = scmp.eq.s32.totalorder %s14, 5
    %p107 = por %p105, %p106
    %p108 = scmp.ne.s32.totalorder %s97, %s98
    %p109 = scmp.eq.s32.totalorder %s14, 0
    %p110 = por %p108, %p109
    %p111 = scmp.ne.s32.totalorder %s97, %s98
    %p112 = scmp.eq.s32.totalorder %s15, 5
    %p113 = por %p111, %p112
    %p115 = scmp.ne.s32.totalorder %s98, %s114
    %p116 = scmp.eq.s32.totalorder %s15, 0
    %p117 = por %p115, %p116
    %s118 = ssub.s32 %s16, %s35
    %s119 = ssub.s32 %s17, %s31
    %s120 = sor.u32 %s118, %s119
    %p121 = scmp.eq.s32.totalorder %s120, 0
    %s123 = sadd.s32 %s122, 1
    %s124 = scalar_select %p121, %s122, %s123
    %p127 = pneg %p121
    %p128 = scmp.eq.s32.totalorder %s9, 5
    %p129 = por %p127, %p128
    %p130 = scmp.ne.s32.totalorder %s122, %s125
    %p131 = scmp.eq.s32.totalorder %s9, 0
    %p132 = por %p130, %p131
    %p133 = scmp.ne.s32.totalorder %s122, %s125
    %p134 = scmp.eq.s32.totalorder %s14, 5
    %p135 = por %p133, %p134
    %p136 = scmp.ne.s32.totalorder %s125, %s126
    %p137 = scmp.eq.s32.totalorder %s14, 0
    %p138 = por %p136, %p137
    %p139 = scmp.ne.s32.totalorder %s125, %s126
    %p140 = scmp.eq.s32.totalorder %s15, 5
    %p141 = por %p139, %p140
    %p143 = scmp.ne.s32.totalorder %s126, %s142
    %p144 = scmp.eq.s32.totalorder %s15, 0
    %p145 = por %p143, %p144
    %p146 = scmp.le.s32.totalorder 1, %s9
    %p147 = scmp.lt.s32.totalorder %s9, 7
    %p148 = pnand %p146, %p147
    %p149 = pneg %p148
    // Predicated region
    $region9: #{cspdarknet_tiny_forward.26} parent=5 // pred_check
      _
    $region10: #{cspdarknet_tiny_forward.26} parent=5 // pred_check_branch
      %151 = sbr.rel (%p148) target = $region12
    $region11: #{cspdarknet_tiny_forward.26} parent=5 // pred_region
      %s152 = ssub.s32 %s9, 1
      // Predicated region
      $region13: #{cspdarknet_tiny_forward.26} parent=11 // pred_check
        %p153 = pneg %p110
      $region14: #{cspdarknet_tiny_forward.26} parent=11 // pred_check_branch
        %155 = sbr.rel (%p153) target = $region16
      $region15: #{cspdarknet_tiny_forward.26} parent=11 // pred_region
        %s156 = smul.u32 2, %s20
        %p157 = scmp.lt.s32.totalorder %s156, 1
        %s158 = scalar_select %p157, %s156, 1
        %s159 = scalar_lea.vmem %s2, %s158
        %s160 = smul.u32 2, %s20
      $region16: #{cspdarknet_tiny_forward.26} parent=11 // pred_fallthru
        _
    $region12: #{cspdarknet_tiny_forward.26} parent=5 // pred_fallthru
      _
    %p161 = scmp.lt.s32.totalorder %s9, 6
    // Predicated region
    $region17: #{cspdarknet_tiny_forward.26} parent=5 // pred_check
      %p162 = pneg %p161
    $region18: #{cspdarknet_tiny_forward.26} parent=5 // pred_check_branch
      %164 = sbr.rel (%p162) target = $region20
    $region19: #{cspdarknet_tiny_forward.26} parent=5 // pred_region
      // Predicated region
      $region21: #{cspdarknet_tiny_forward.26} parent=19 // pred_check
        %p165 = pneg %p50
      $region22: #{cspdarknet_tiny_forward.26} parent=19 // pred_check_branch
        %167 = sbr.rel (%p165) target = $region24
      $region23: #{cspdarknet_tiny_forward.26} parent=19 // pred_region
        %s168 = smul.u32 3, %s18
        %p169 = scmp.lt.s32.totalorder %s16, 0
        %s170 = scalar_select %p169, %s16, 0
        %p171 = scmp.lt.s32.totalorder %s168, 17
        %s172 = scalar_select %p171, %s168, 17
        %s173 = smul.addr %s170, 18
        %s174 = sadd.s32 %s172, %s173
        %s175 = smul.addr %s174, 4
        %s176 = scalar_lea.vmem %s0, %s175
        %s177 = smul.u32 3, %s18
      $region24: #{cspdarknet_tiny_forward.26} parent=19 // pred_fallthru
        _
      // Predicated region
      $region25: #{cspdarknet_tiny_forward.26} parent=19 // pred_check
        %p178 = pneg %p78
      $region26: #{cspdarknet_tiny_forward.26} parent=19 // pred_check_branch
        %180 = sbr.rel (%p178) target = $region28
      $region27: #{cspdarknet_tiny_forward.26} parent=19 // pred_region
        %s181 = smul.u32 48, %s18
        %s182 = smul.u32 2, %s17
        %p183 = scmp.lt.s32.totalorder %s181, 287
        %s184 = scalar_select %p183, %s181, 287
        %p185 = scmp.lt.s32.totalorder %s182, 1
        %s186 = scalar_select %p185, %s182, 1
        %s187 = smul.addr %s184, 2
        %s188 = sadd.s32 %s186, %s187
        %s189 = smul.addr %s188, 4
        %s190 = scalar_lea.vmem %s1, %s189
        %s191 = smul.u32 48, %s18
        %s192 = smul.u32 2, %s17
      $region28: #{cspdarknet_tiny_forward.26} parent=19 // pred_fallthru
        _
    $region20: #{cspdarknet_tiny_forward.26} parent=5 // pred_fallthru
      _
    %p193 = scmp.le.s32.totalorder 1, %s9
    %p194 = scmp.lt.s32.totalorder %s9, 7
    %p195 = pnand %p193, %p194
    %p196 = pneg %p195
    // Predicated region
    $region29: #{cspdarknet_tiny_forward.26} parent=5 // pred_check
      _
    $region30: #{cspdarknet_tiny_forward.26} parent=5 // pred_check_branch
      %198 = sbr.rel (%p195) target = $region32
    $region31: #{cspdarknet_tiny_forward.26} parent=5 // pred_region
      %s199 = ssub.s32 %s9, 1
      %s200 = smul.u32 3, %s21
      %p201 = scmp.lt.s32.totalorder %s19, 0
      %s202 = scalar_select %p201, %s19, 0
      %p203 = scmp.lt.s32.totalorder %s200, 17
      %s204 = scalar_select %p203, %s200, 17
      %s205 = smul.addr %s202, 18
      %s206 = sadd.s32 %s204, %s205
      %s207 = smul.addr %s206, 4
      %s208 = scalar_lea.vmem %s0, %s207
      %p209 = pneg %p56
      %p210 = pneg %p53
      %s211 = smul.u32 48, %s21
      %s212 = smul.u32 2, %s20
      %p213 = scmp.lt.s32.totalorder %s211, 287
      %s214 = scalar_select %p213, %s211, 287
      %p215 = scmp.lt.s32.totalorder %s212, 1
      %s216 = scalar_select %p215, %s212, 1
      %s217 = smul.addr %s214, 2
      %s218 = sadd.s32 %s216, %s217
      %s219 = smul.addr %s218, 4
      %s220 = scalar_lea.vmem %s1, %s219
      %p221 = pneg %p84
      %p222 = pneg %p81
      %s223 = smul.u32 2, %s20
      %p224 = scmp.lt.s32.totalorder %s223, 1
      %s225 = scalar_select %p224, %s223, 1
      %s226 = scalar_lea.vmem %s2, %s225
      %p227 = pneg %p110
      %p228 = pneg %p107
      %p229 = pneg %p138
      %p230 = pneg %p135
      %s231 = smul.u32 2, %s20
      %p232 = scmp.lt.s32.totalorder %s19, 0
      %s233 = scalar_select %p232, %s19, 0
      %p234 = scmp.lt.s32.totalorder %s231, 1
      %s235 = scalar_select %p234, %s231, 1
      %s236 = smul.addr %s233, 2
      %s237 = sadd.s32 %s235, %s236
      %s238 = smul.addr %s237, 4
      %s239 = scalar_lea.vmem %s3, %s238
      %s240 = smul.u32 3, %s21
      %p241 = scmp.lt.s32.totalorder %s19, 0
      %s242 = scalar_select %p241, %s19, 0
      %p243 = scmp.lt.s32.totalorder %s240, 17
      %s244 = scalar_select %p243, %s240, 17
      %s245 = smul.addr %s242, 18
      %s246 = sadd.s32 %s244, %s245
      %s247 = smul.addr %s246, 4
      %s248 = scalar_lea.vmem %s0, %s247
      %s249 = smul.u32 3, %s21
      %s250 = smul.u32 48, %s21
      %s251 = smul.u32 2, %s20
      %p252 = scmp.lt.s32.totalorder %s250, 287
      %s253 = scalar_select %p252, %s250, 287
      %p254 = scmp.lt.s32.totalorder %s251, 1
      %s255 = scalar_select %p254, %s251, 1
      %s256 = smul.addr %s253, 2
      %s257 = sadd.s32 %s255, %s256
      %s258 = smul.addr %s257, 4
      %s259 = scalar_lea.vmem %s1, %s258
      %s260 = smul.u32 48, %s21
      %s261 = smul.u32 2, %s20
      %s262 = smul.u32 2, %s20
      %p263 = scmp.lt.s32.totalorder %s262, 1
      %s264 = scalar_select %p263, %s262, 1
      %s265 = scalar_lea.vmem %s2, %s264
      %s266 = smul.u32 2, %s20
      %s267 = smul.u32 2, %s20
      %p268 = scmp.lt.s32.totalorder %s19, 0
      %s269 = scalar_select %p268, %s19, 0
      %p270 = scmp.lt.s32.totalorder %s267, 1
      %s271 = scalar_select %p270, %s267, 1
      %s272 = smul.addr %s269, 2
      %s273 = sadd.s32 %s271, %s272
      %s274 = smul.addr %s273, 4
      %s275 = scalar_lea.vmem %s3, %s274
      %s276 = smul.u32 2, %s20
      %p278 = scmp.eq.s32.totalorder %s21, 0
      // Predicated region
      $region33: #{cspdarknet_tiny_forward.26} parent=31 // pred_check
        %p279 = pneg %p278
      $region34: #{cspdarknet_tiny_forward.26} parent=31 // pred_check_branch
        %281 = sbr.rel (%p279) target = $region36
      $region35: #{cspdarknet_tiny_forward.26} parent=31 // pred_region
        %282 = vst [vmem:[#allocation2] sm:$0xff] 0.0
        %283 = vst [vmem:[#allocation2 + $0x8] sm:$0xff] 0.0
      $region36: #{cspdarknet_tiny_forward.26} parent=31 // pred_fallthru
        _
      %v284 = vld [vmem:[#allocation2] sm:$0xff]
      %v285 = vld [vmem:[#allocation2 + $0x8] sm:$0xff]
      %v286 = vld [vmem:[%s248] sm:$0xff]
      %v287 = vld [vmem:[%s248 + $0x8] sm:$0xf]
      %v288 = vld [vmem:[%s259] sm:$0xff]
      %v289 = vld [vmem:[%s259 + $0x8] sm:$0xff]
      %v290 = vld [vmem:[%s259 + $0x10] sm:$0xff]
      %v291 = vld [vmem:[%s259 + $0x18] sm:$0xff]
      %v292 = vld [vmem:[%s259 + $0x20] sm:$0xff]
      %v293 = vld [vmem:[%s259 + $0x28] sm:$0xff]
      %v294 = vld [vmem:[%s259 + $0x30] sm:$0xff]
      %v295 = vld [vmem:[%s259 + $0x38] sm:$0xff]
      %v296 = vld [vmem:[%s259 + $0x40] sm:$0xff]
      %v297 = vld [vmem:[%s259 + $0x48] sm:$0xff]
      %v298 = vld [vmem:[%s259 + $0x50] sm:$0xff]
      %v299 = vld [vmem:[%s259 + $0x58] sm:$0xff]
      %v300 = vld [vmem:[%s259 + $0x60] sm:$0xff]
      %v301 = vld [vmem:[%s259 + $0x68] sm:$0xff]
      %v302 = vld [vmem:[%s259 + $0x70] sm:$0xff]
      %v303 = vld [vmem:[%s259 + $0x78] sm:$0xff]
      %v304 = vld [vmem:[%s259 + $0x80] sm:$0xff]
      %v305 = vld [vmem:[%s259 + $0x88] sm:$0xff]
      %v306 = vld [vmem:[%s259 + $0x90] sm:$0xff]
      %v307 = vld [vmem:[%s259 + $0x98] sm:$0xff]
      %v308 = vld [vmem:[%s259 + $0xa0] sm:$0xff]
      %v309 = vld [vmem:[%s259 + $0xa8] sm:$0xff]
      %v310 = vld [vmem:[%s259 + $0xb0] sm:$0xff]
      %v311 = vld [vmem:[%s259 + $0xb8] sm:$0xff]
      %v312 = vld [vmem:[%s259 + $0xc0] sm:$0xff]
      %v313 = vld [vmem:[%s259 + $0xc8] sm:$0xff]
      %v314 = vld [vmem:[%s259 + $0xd0] sm:$0xff]
      %v315 = vld [vmem:[%s259 + $0xd8] sm:$0xff]
      %v316 = vld [vmem:[%s259 + $0xe0] sm:$0xff]
      %v317 = vld [vmem:[%s259 + $0xe8] sm:$0xff]
      %v318 = vld [vmem:[%s259 + $0xf0] sm:$0xff]
      %v319 = vld [vmem:[%s259 + $0xf8] sm:$0xff]
      %v320 = vld [vmem:[%s259 + $0x100] sm:$0xff]
      %v321 = vld [vmem:[%s259 + $0x108] sm:$0xff]
      %v322 = vld [vmem:[%s259 + $0x110] sm:$0xff]
      %v323 = vld [vmem:[%s259 + $0x118] sm:$0xff]
      %v324 = vld [vmem:[%s259 + $0x120] sm:$0xff]
      %v325 = vld [vmem:[%s259 + $0x128] sm:$0xff]
      %v326 = vld [vmem:[%s259 + $0x130] sm:$0xff]
      %v327 = vld [vmem:[%s259 + $0x138] sm:$0xff]
      %v328 = vld [vmem:[%s259 + $0x140] sm:$0xff]
      %v329 = vld [vmem:[%s259 + $0x148] sm:$0xff]
      %v330 = vld [vmem:[%s259 + $0x150] sm:$0xff]
      %v331 = vld [vmem:[%s259 + $0x158] sm:$0xff]
      %v332 = vld [vmem:[%s259 + $0x160] sm:$0xff]
      %v333 = vld [vmem:[%s259 + $0x168] sm:$0xff]
      %v334 = vld [vmem:[%s259 + $0x170] sm:$0xff]
      %v335 = vld [vmem:[%s259 + $0x178] sm:$0xff]
      %v338 = vunpack.c.l.b16 %v286
      %v339 = vunpack.c.h.b16 %v286
      %v340 = vunpack.c.l.b16 %v287
      %v341 = vpack.c.b16 %v338, %v338
      %v342 = vpack.c.b16 %v339, %v339
      %v343 = vpack.c.b16 %v340, %v340
      %v395 = vunpack.c.l.b16 %v288
      %v396 = vunpack.c.h.b16 %v288
      %v397 = vunpack.c.l.b16 %v289
      %v398 = vunpack.c.h.b16 %v289
      %v399 = vunpack.c.l.b16 %v290
      %v400 = vunpack.c.h.b16 %v290
      %v401 = vunpack.c.l.b16 %v291
      %v402 = vunpack.c.h.b16 %v291
      %v403 = vunpack.c.l.b16 %v292
      %v404 = vunpack.c.h.b16 %v292
      %v405 = vunpack.c.l.b16 %v293
      %v406 = vunpack.c.h.b16 %v293
      %v407 = vunpack.c.l.b16 %v294
      %v408 = vunpack.c.h.b16 %v294
      %v409 = vunpack.c.l.b16 %v295
      %v410 = vunpack.c.h.b16 %v295
      %v411 = vunpack.c.l.b16 %v296
      %v412 = vunpack.c.h.b16 %v296
      %v413 = vunpack.c.l.b16 %v297
      %v414 = vunpack.c.h.b16 %v297
      %v415 = vunpack.c.l.b16 %v298
      %v416 = vunpack.c.h.b16 %v298
      %v417 = vunpack.c.l.b16 %v299
      %v418 = vunpack.c.h.b16 %v299
      %v419 = vunpack.c.l.b16 %v300
      %v420 = vunpack.c.h.b16 %v300
      %v421 = vunpack.c.l.b16 %v301
      %v422 = vunpack.c.h.b16 %v301
      %v423 = vunpack.c.l.b16 %v302
      %v424 = vunpack.c.h.b16 %v302
      %v425 = vunpack.c.l.b16 %v303
      %v426 = vunpack.c.h.b16 %v303
      %v427 = vunpack.c.l.b16 %v304
      %v428 = vunpack.c.h.b16 %v304
      %v429 = vunpack.c.l.b16 %v305
      %v430 = vunpack.c.h.b16 %v305
      %v431 = vunpack.c.l.b16 %v306
      %v432 = vunpack.c.h.b16 %v306
      %v433 = vunpack.c.l.b16 %v307
      %v434 = vunpack.c.h.b16 %v307
      %v435 = vunpack.c.l.b16 %v308
      %v436 = vunpack.c.h.b16 %v308
      %v437 = vunpack.c.l.b16 %v309
      %v438 = vunpack.c.h.b16 %v309
      %v439 = vunpack.c.l.b16 %v310
      %v440 = vunpack.c.h.b16 %v310
      %v441 = vunpack.c.l.b16 %v311
      %v442 = vunpack.c.h.b16 %v311
      %v443 = vunpack.c.l.b16 %v312
      %v444 = vunpack.c.h.b16 %v312
      %v445 = vunpack.c.l.b16 %v313
      %v446 = vunpack.c.h.b16 %v313
      %v447 = vunpack.c.l.b16 %v314
      %v448 = vunpack.c.h.b16 %v314
      %v449 = vunpack.c.l.b16 %v315
      %v450 = vunpack.c.h.b16 %v315
      %v451 = vunpack.c.l.b16 %v316
      %v452 = vunpack.c.h.b16 %v316
      %v453 = vunpack.c.l.b16 %v317
      %v454 = vunpack.c.h.b16 %v317
      %v455 = vunpack.c.l.b16 %v318
      %v456 = vunpack.c.h.b16 %v318
      %v457 = vunpack.c.l.b16 %v319
      %v458 = vunpack.c.h.b16 %v319
      %v459 = vunpack.c.l.b16 %v320
      %v460 = vunpack.c.h.b16 %v320
      %v461 = vunpack.c.l.b16 %v321
      %v462 = vunpack.c.h.b16 %v321
      %v463 = vunpack.c.l.b16 %v322
      %v464 = vunpack.c.h.b16 %v322
      %v465 = vunpack.c.l.b16 %v323
      %v466 = vunpack.c.h.b16 %v323
      %v467 = vunpack.c.l.b16 %v324
      %v468 = vunpack.c.h.b16 %v324
      %v469 = vunpack.c.l.b16 %v325
      %v470 = vunpack.c.h.b16 %v325
      %v471 = vunpack.c.l.b16 %v326
      %v472 = vunpack.c.h.b16 %v326
      %v473 = vunpack.c.l.b16 %v327
      %v474 = vunpack.c.h.b16 %v327
      %v475 = vunpack.c.l.b16 %v328
      %v476 = vunpack.c.h.b16 %v328
      %v477 = vunpack.c.l.b16 %v329
      %v478 = vunpack.c.h.b16 %v329
      %v479 = vunpack.c.l.b16 %v330
      %v480 = vunpack.c.h.b16 %v330
      %v481 = vunpack.c.l.b16 %v331
      %v482 = vunpack.c.h.b16 %v331
      %v483 = vunpack.c.l.b16 %v332
      %v484 = vunpack.c.h.b16 %v332
      %v485 = vunpack.c.l.b16 %v333
      %v486 = vunpack.c.h.b16 %v333
      %v487 = vunpack.c.l.b16 %v334
      %v488 = vunpack.c.h.b16 %v334
      %v489 = vunpack.c.l.b16 %v335
      %v490 = vunpack.c.h.b16 %v335
      %v491 = vpack.c.b16 %v397, %v395
      %v492 = vpack.c.b16 %v398, %v396
      %v493 = vpack.c.b16 %v401, %v399
      %v494 = vpack.c.b16 %v402, %v400
      %v495 = vpack.c.b16 %v405, %v403
      %v496 = vpack.c.b16 %v406, %v404
      %v497 = vpack.c.b16 %v409, %v407
      %v498 = vpack.c.b16 %v410, %v408
      %v499 = vpack.c.b16 %v413, %v411
      %v500 = vpack.c.b16 %v414, %v412
      %v501 = vpack.c.b16 %v417, %v415
      %v502 = vpack.c.b16 %v418, %v416
      %v503 = vpack.c.b16 %v421, %v419
      %v504 = vpack.c.b16 %v422, %v420
      %v505 = vpack.c.b16 %v425, %v423
      %v506 = vpack.c.b16 %v426, %v424
      %v507 = vpack.c.b16 %v429, %v427
      %v508 = vpack.c.b16 %v430, %v428
      %v509 = vpack.c.b16 %v433, %v431
      %v510 = vpack.c.b16 %v434, %v432
      %v511 = vpack.c.b16 %v437, %v435
      %v512 = vpack.c.b16 %v438, %v436
      %v513 = vpack.c.b16 %v441, %v439
      %v514 = vpack.c.b16 %v442, %v440
      %v515 = vpack.c.b16 %v445, %v443
      %v516 = vpack.c.b16 %v446, %v444
      %v517 = vpack.c.b16 %v449, %v447
      %v518 = vpack.c.b16 %v450, %v448
      %v519 = vpack.c.b16 %v453, %v451
      %v520 = vpack.c.b16 %v454, %v452
      %v521 = vpack.c.b16 %v457, %v455
      %v522 = vpack.c.b16 %v458, %v456
      %v523 = vpack.c.b16 %v461, %v459
      %v524 = vpack.c.b16 %v462, %v460
      %v525 = vpack.c.b16 %v465, %v463
      %v526 = vpack.c.b16 %v466, %v464
      %v527 = vpack.c.b16 %v469, %v467
      %v528 = vpack.c.b16 %v470, %v468
      %v529 = vpack.c.b16 %v473, %v471
      %v530 = vpack.c.b16 %v474, %v472
      %v531 = vpack.c.b16 %v477, %v475
      %v532 = vpack.c.b16 %v478, %v476
      %v533 = vpack.c.b16 %v481, %v479
      %v534 = vpack.c.b16 %v482, %v480
      %v535 = vpack.c.b16 %v485, %v483
      %v536 = vpack.c.b16 %v486, %v484
      %v537 = vpack.c.b16 %v489, %v487
      %v538 = vpack.c.b16 %v490, %v488
      %587 = vmatprep.subr.bf16.mxu0 %v492
      %588 = vmatpush1.bf16.msra.mxu0 %v491
      %589 = vmatprep.subr.bf16.mxu0 %v494
      %590 = vmatpush1.bf16.msra.mxu0 %v493
      %591 = vmatprep.subr.bf16.mxu0 %v496
      %592 = vmatpush1.bf16.msra.mxu0 %v495
      %593 = vmatprep.subr.bf16.mxu0 %v498
      %594 = vmatpush1.bf16.msra.mxu0 %v497
      %595 = vmatprep.subr.bf16.mxu0 %v500
      %596 = vmatpush1.bf16.msra.mxu0 %v499
      %597 = vmatprep.subr.bf16.mxu0 %v502
      %598 = vmatpush1.bf16.msra.mxu0 %v501
      %599 = vmatprep.subr.bf16.mxu0 %v504
      %600 = vmatpush1.bf16.msra.mxu0 %v503
      %601 = vmatprep.subr.bf16.mxu0 %v506
      %602 = vmatpush1.bf16.msra.mxu0 %v505
      %603 = vmatprep.subr.bf16.mxu0 %v508
      %604 = vmatpush1.bf16.msra.mxu0 %v507
      %605 = vmatprep.subr.bf16.mxu0 %v510
      %606 = vmatpush1.bf16.msra.mxu0 %v509
      %607 = vmatprep.subr.bf16.mxu0 %v512
      %608 = vmatpush1.bf16.msra.mxu0 %v511
      %609 = vmatprep.subr.bf16.mxu0 %v514
      %610 = vmatpush1.bf16.msra.mxu0 %v513
      %611 = vmatprep.subr.bf16.mxu0 %v516
      %612 = vmatpush1.bf16.msra.mxu0 %v515
      %613 = vmatprep.subr.bf16.mxu0 %v518
      %614 = vmatpush1.bf16.msra.mxu0 %v517
      %615 = vmatprep.subr.bf16.mxu0 %v520
      %616 = vmatpush1.bf16.msra.mxu0 %v519
      %617 = vmatprep.subr.bf16.mxu0 %v522
      %618 = vmatpush1.bf16.msra.mxu0 %v521
      %619 = vmatprep.mubr.bf16.mxu0 %v342
      %620 = vmatmul.mubr.bf16.gmra.mrb[0].mxu0 %v341
      %v621 = vpop.f32.mrb[0].mxu0
      %v622 = vadd.f32 0.0, %v621
      %v623 = vpop.f32.mrb[0].mxu0
      %v624 = vadd.f32 0.0, %v623
      %v625 = vpop.f32.mrb[0].mxu0
      %v626 = vpop.f32.mrb[0].mxu0
      %627 = vdwg.mxu0
      %628 = vmatprep.subr.bf16.mxu0 %v524
      %629 = vmatpush1.bf16.msra.mxu0 %v523
      %630 = vmatprep.subr.bf16.mxu0 %v526
      %631 = vmatpush1.bf16.msra.mxu0 %v525
      %632 = vmatprep.subr.bf16.mxu0 %v528
      %633 = vmatpush1.bf16.msra.mxu0 %v527
      %634 = vmatprep.subr.bf16.mxu0 %v530
      %635 = vmatpush1.bf16.msra.mxu0 %v529
      %636 = vmatprep.subr.bf16.mxu0 %v532
      %637 = vmatpush1.bf16.msra.mxu0 %v531
      %638 = vmatprep.subr.bf16.mxu0 %v534
      %639 = vmatpush1.bf16.msra.mxu0 %v533
      %640 = vmatprep.subr.bf16.mxu0 %v536
      %641 = vmatpush1.bf16.msra.mxu0 %v535
      %642 = vmatprep.subr.bf16.mxu0 %v538
      %643 = vmatpush1.bf16.msra.mxu0 %v537
      %644 = vmatprep.subr.bf16.mxu0 0
      %645 = vmatpush1.bf16.msra.mxu0 0
      %646 = vmatprep.subr.bf16.mxu0 0
      %647 = vmatpush1.bf16.msra.mxu0 0
      %648 = vmatprep.subr.bf16.mxu0 0
      %649 = vmatpush1.bf16.msra.mxu0 0
      %650 = vmatprep.subr.bf16.mxu0 0
      %651 = vmatpush1.bf16.msra.mxu0 0
      %652 = vmatprep.subr.bf16.mxu0 0
      %653 = vmatpush1.bf16.msra.mxu0 0
      %654 = vmatprep.subr.bf16.mxu0 0
      %655 = vmatpush1.bf16.msra.mxu0 0
      %656 = vmatprep.subr.bf16.mxu0 0
      %657 = vmatpush1.bf16.msra.mxu0 0
      %658 = vmatprep.subr.bf16.mxu0 0
      %659 = vmatpush1.bf16.msra.mxu0 0
      %660 = vmatprep.mubr.bf16.mxu0 0
      %661 = vmatmul.mubr.bf16.gmra.mrb[0].mxu0 %v343
      %v662 = vpop.f32.mrb[0].mxu0
      %v663 = vadd.f32 %v622, %v662
      %v664 = vpop.f32.mrb[0].mxu0
      %v665 = vadd.f32 %v624, %v664
      %v666 = vpop.f32.mrb[0].mxu0
      %v667 = vpop.f32.mrb[0].mxu0
      %668 = vdwg.mxu0
      %v669 = vadd.f32 %v284, %v663
      %v670 = vadd.f32 %v285, %v665
      %671 = vst [vmem:[#allocation2] sm:$0xff] %v669
      %672 = vst [vmem:[#allocation2 + $0x8] sm:$0xff] %v670
      %p673 = scmp.eq.s32.totalorder %s21, 5
      // Predicated region
      $region37: #{cspdarknet_tiny_forward.26} parent=31 // pred_check
        %p674 = pneg %p673
      $region38: #{cspdarknet_tiny_forward.26} parent=31 // pred_check_branch
        %676 = sbr.rel (%p674) target = $region40
      $region39: #{cspdarknet_tiny_forward.26} parent=31 // pred_region
        %v677 = vld [vmem:[#allocation2] sm:$0xff]
        %v678 = vld [vmem:[#allocation2 + $0x8] sm:$0xff]
        %v679 = vld [vmem:[%s265] sm:$0x3]
        %v681 = vlaneseq
        %v682 = vshrl.u32 %v681, 7
        %v683 = vsub.s32 0, %v682
        %v684 = vrot.slane %v679, %v683
        %v685 = vlaneseq
        %v686 = vshrl.u32 %v685, 7
        %v687 = vsub.s32 1, %v686
        %v688 = vrot.slane %v679, %v687
        %v691 = vadd.f32 %v677, %v684
        %v692 = vadd.f32 %v678, %v688
        %vm693 = vcmp.gt.f32.partialorder %v691, 0.0
        %vm694 = vcmp.gt.f32.partialorder %v692, 0.0
        %v695 = vmul.f32 %v691, 0.1
        %v696 = vmul.f32 %v692, 0.1
        %v697 = vsel %vm693, %v691, %v695
        %v698 = vsel %vm694, %v692, %v696
        %v699 = vpack.c.bf16 %v697, %v697
        %v700 = vpack.c.bf16 %v698, %v698
        %v703 = vunpack.c.l.b16 %v699
        %v704 = vunpack.c.l.b16 %v700
        %v705 = vpack.c.b16 %v704, %v703
        %707 = vst [vmem:[%s275] sm:$0xff] %v705
      $region40: #{cspdarknet_tiny_forward.26} parent=31 // pred_fallthru
        _
      %s708 = smul.u32 2, %s20
      %p709 = scmp.lt.s32.totalorder %s19, 0
      %s710 = scalar_select %p709, %s19, 0
      %p711 = scmp.lt.s32.totalorder %s708, 1
      %s712 = scalar_select %p711, %s708, 1
      %s713 = smul.addr %s710, 2
      %s714 = sadd.s32 %s712, %s713
      %s715 = smul.addr %s714, 4
      %s716 = scalar_lea.vmem %s3, %s715
      // Predicated region
      $region41: #{cspdarknet_tiny_forward.26} parent=31 // pred_check
        %p717 = pneg %p135
      $region42: #{cspdarknet_tiny_forward.26} parent=31 // pred_check_branch
        %719 = sbr.rel (%p717) target = $region44
      $region43: #{cspdarknet_tiny_forward.26} parent=31 // pred_region
        %s720 = smul.u32 2, %s20
      $region44: #{cspdarknet_tiny_forward.26} parent=31 // pred_fallthru
        _
      // Predicated region
      $region45: #{cspdarknet_tiny_forward.26} parent=31 // pred_check
        %p721 = pneg %p135
      $region46: #{cspdarknet_tiny_forward.26} parent=31 // pred_check_branch
        %723 = sbr.rel (%p721) target = $region48
      $region47: #{cspdarknet_tiny_forward.26} parent=31 // pred_region
        %s724 = smul.u32 2, %s20
        %p725 = scmp.lt.s32.totalorder %s19, 0
        %s726 = scalar_select %p725, %s19, 0
        %p727 = scmp.lt.s32.totalorder %s724, 1
        %s728 = scalar_select %p727, %s724, 1
        %s729 = smul.addr %s726, 2
        %s730 = sadd.s32 %s728, %s729
        %s731 = smul.addr %s730, 4
        %s732 = scalar_lea.vmem %s3, %s731
      $region48: #{cspdarknet_tiny_forward.26} parent=31 // pred_fallthru
        _
    $region32: #{cspdarknet_tiny_forward.26} parent=5 // pred_fallthru
      _
    %p733 = scmp.le.s32.totalorder 2, %s9
    // Predicated region
    $region49: #{cspdarknet_tiny_forward.26} parent=5 // pred_check
      %p734 = pneg %p733
    $region50: #{cspdarknet_tiny_forward.26} parent=5 // pred_check_branch
      %736 = sbr.rel (%p734) target = $region52
    $region51: #{cspdarknet_tiny_forward.26} parent=5 // pred_region
      %s737 = ssub.s32 %s9, 2
    $region52: #{cspdarknet_tiny_forward.26} parent=5 // pred_fallthru
      _
  $region6: #{cspdarknet_tiny_forward.26} parent=0 // loop_footer
    %s13 = sadd.s32 1, %s9
  $region7: #{cspdarknet_tiny_forward.26} parent=0 // loop_footer_branch
    %8 = sbr.rel target = $region3
  $region8: #{cspdarknet_tiny_forward.26} parent=0 // loop_exit
    _

// kernel: cspdarknet_tiny_forward.27
$region0: #{cspdarknet_tiny_forward.27}
  #allocation0 [shape = 'u32[]', space=smem, size = 0x4, offset = 0x4, fixed_abs, tag = 'smem constant byte address 0x4 - core index']
  #allocation1 [shape = 'u32[144,128]{1,0:T(1,128)}', space=vmem, size = 0x12000, scoped, tag = 'internal scratch']
  #allocation2 [shape = 'f32[8,128]{1,0:T(8,128)}', space=vmem, size = 0x1000, scoped, tag = 'scratch operand']
  %s0 = inlined_call_operand.vmem [shape: bf16[8,1152], index: 0, kind: input, shape index: {}]
  %s1 = inlined_call_operand.vmem [shape: bf16[1152,128], index: 1, kind: input, shape index: {}]
  %s2 = inlined_call_operand.vmem [shape: f32[1,128], index: 2, kind: input, shape index: {}]
  %s3 = inlined_call_operand.vmem [shape: bf16[8,128], index: 3, kind: output, shape index: {}]
  %s4 = sld [smem:[#allocation0]]
  $region53: #{cspdarknet_tiny_forward.27} parent=0
    _
  %s6 = ssub.s32 1, %s4
  %s7 = scalar_select 0, %s6, %s4
  loop: start=0, step=1, limit=5
  $region2: #{cspdarknet_tiny_forward.27} parent=0 // loop_pre_header
    _
  $region3: #{cspdarknet_tiny_forward.27} parent=0 // loop_header
    %s9 = sphi 0, %s13
    %p10 = scmp.ge.s32.totalorder %s9, 5
    %s16 = sphi 0, %s35
    %s17 = sphi 0, %s31
    %s18 = sphi 0, %s27
    %s19 = sphi 0, %s16
    %s20 = sphi 0, %s17
    %s21 = sphi 0, %s18
    %s22 = sphi 0, %s19
    %s23 = sphi 0, %s20
    %s24 = sphi 0, %s21
    %s40 = sphi 0, %s42
    %s43 = sphi 0, %s40
    %s44 = sphi 0, %s43
    %s60 = sphi 0, %s44
    %s68 = sphi 0, %s70
    %s71 = sphi 0, %s68
    %s72 = sphi 0, %s71
    %s88 = sphi 0, %s72
    %s94 = sphi 0, %s96
    %s97 = sphi 0, %s94
    %s98 = sphi 0, %s97
    %s114 = sphi 0, %s98
    %s122 = sphi 0, %s124
    %s125 = sphi 0, %s122
    %s126 = sphi 0, %s125
    %s142 = sphi 0, %s126
  $region4: #{cspdarknet_tiny_forward.27} parent=0 // loop_header_branch
    %12 = sbr.rel (%p10) target = $region8
  $region5: #{cspdarknet_tiny_forward.27} parent=0 // loop_body
    %s14 = ssub.s32 %s9, 1
    %s15 = ssub.s32 %s9, 2
    %s25 = sadd.s32 1, %s18
    %p26 = scmp.ge.s32.totalorder %s25, 3
    %s27 = scalar_select %p26, 0, %s25
    %s28 = sadd.s32 1, %s17
    %s29 = scalar_select %p26, %s28, %s17
    %p30 = scmp.ge.s32.totalorder %s29, 1
    %s31 = scalar_select %p30, 0, %s29
    %s32 = sadd.s32 1, %s16
    %s33 = scalar_select %p30, %s32, %s16
    %p34 = scmp.ge.s32.totalorder %s33, 1
    %s35 = scalar_select %p34, 0, %s33
    %s36 = ssub.s32 %s16, %s35
    %s37 = ssub.s32 %s18, %s27
    %s38 = sor.u32 %s36, %s37
    %p39 = scmp.eq.s32.totalorder %s38, 0
    %s41 = sadd.s32 %s40, 1
    %s42 = scalar_select %p39, %s40, %s41
    %p45 = pneg %p39
    %p46 = scmp.eq.s32.totalorder %s9, 2
    %p47 = por %p45, %p46
    %p48 = scmp.ne.s32.totalorder %s40, %s43
    %p49 = scmp.eq.s32.totalorder %s9, 0
    %p50 = por %p48, %p49
    %p51 = scmp.ne.s32.totalorder %s40, %s43
    %p52 = scmp.eq.s32.totalorder %s14, 2
    %p53 = por %p51, %p52
    %p54 = scmp.ne.s32.totalorder %s43, %s44
    %p55 = scmp.eq.s32.totalorder %s14, 0
    %p56 = por %p54, %p55
    %p57 = scmp.ne.s32.totalorder %s43, %s44
    %p58 = scmp.eq.s32.totalorder %s15, 2
    %p59 = por %p57, %p58
    %p61 = scmp.ne.s32.totalorder %s44, %s60
    %p62 = scmp.eq.s32.totalorder %s15, 0
    %p63 = por %p61, %p62
    %s64 = ssub.s32 %s18, %s27
    %s65 = ssub.s32 %s17, %s31
    %s66 = sor.u32 %s64, %s65
    %p67 = scmp.eq.s32.totalorder %s66, 0
    %s69 = sadd.s32 %s68, 1
    %s70 = scalar_select %p67, %s68, %s69
    %p73 = pneg %p67
    %p74 = scmp.eq.s32.totalorder %s9, 2
    %p75 = por %p73, %p74
    %p76 = scmp.ne.s32.totalorder %s68, %s71
    %p77 = scmp.eq.s32.totalorder %s9, 0
    %p78 = por %p76, %p77
    %p79 = scmp.ne.s32.totalorder %s68, %s71
    %p80 = scmp.eq.s32.totalorder %s14, 2
    %p81 = por %p79, %p80
    %p82 = scmp.ne.s32.totalorder %s71, %s72
    %p83 = scmp.eq.s32.totalorder %s14, 0
    %p84 = por %p82, %p83
    %p85 = scmp.ne.s32.totalorder %s71, %s72
    %p86 = scmp.eq.s32.totalorder %s15, 2
    %p87 = por %p85, %p86
    %p89 = scmp.ne.s32.totalorder %s72, %s88
    %p90 = scmp.eq.s32.totalorder %s15, 0
    %p91 = por %p89, %p90
    %s92 = ssub.s32 %s17, %s31
    %p93 = scmp.eq.s32.totalorder %s92, 0
    %s95 = sadd.s32 %s94, 1
    %s96 = scalar_select %p93, %s94, %s95
    %p99 = pneg %p93
    %p100 = scmp.eq.s32.totalorder %s9, 2
    %p101 = por %p99, %p100
    %p102 = scmp.ne.s32.totalorder %s94, %s97
    %p103 = scmp.eq.s32.totalorder %s9, 0
    %p104 = por %p102, %p103
    %p105 = scmp.ne.s32.totalorder %s94, %s97
    %p106 = scmp.eq.s32.totalorder %s14, 2
    %p107 = por %p105, %p106
    %p108 = scmp.ne.s32.totalorder %s97, %s98
    %p109 = scmp.eq.s32.totalorder %s14, 0
    %p110 = por %p108, %p109
    %p111 = scmp.ne.s32.totalorder %s97, %s98
    %p112 = scmp.eq.s32.totalorder %s15, 2
    %p113 = por %p111, %p112
    %p115 = scmp.ne.s32.totalorder %s98, %s114
    %p116 = scmp.eq.s32.totalorder %s15, 0
    %p117 = por %p115, %p116
    %s118 = ssub.s32 %s16, %s35
    %s119 = ssub.s32 %s17, %s31
    %s120 = sor.u32 %s118, %s119
    %p121 = scmp.eq.s32.totalorder %s120, 0
    %s123 = sadd.s32 %s122, 1
    %s124 = scalar_select %p121, %s122, %s123
    %p127 = pneg %p121
    %p128 = scmp.eq.s32.totalorder %s9, 2
    %p129 = por %p127, %p128
    %p130 = scmp.ne.s32.totalorder %s122, %s125
    %p131 = scmp.eq.s32.totalorder %s9, 0
    %p132 = por %p130, %p131
    %p133 = scmp.ne.s32.totalorder %s122, %s125
    %p134 = scmp.eq.s32.totalorder %s14, 2
    %p135 = por %p133, %p134
    %p136 = scmp.ne.s32.totalorder %s125, %s126
    %p137 = scmp.eq.s32.totalorder %s14, 0
    %p138 = por %p136, %p137
    %p139 = scmp.ne.s32.totalorder %s125, %s126
    %p140 = scmp.eq.s32.totalorder %s15, 2
    %p141 = por %p139, %p140
    %p143 = scmp.ne.s32.totalorder %s126, %s142
    %p144 = scmp.eq.s32.totalorder %s15, 0
    %p145 = por %p143, %p144
    %p146 = scmp.le.s32.totalorder 1, %s9
    %p147 = scmp.lt.s32.totalorder %s9, 4
    %p148 = pnand %p146, %p147
    %p149 = pneg %p148
    // Predicated region
    $region9: #{cspdarknet_tiny_forward.27} parent=5 // pred_check
      _
    $region10: #{cspdarknet_tiny_forward.27} parent=5 // pred_check_branch
      %151 = sbr.rel (%p148) target = $region12
    $region11: #{cspdarknet_tiny_forward.27} parent=5 // pred_region
      %s152 = ssub.s32 %s9, 1
      // Predicated region
      $region13: #{cspdarknet_tiny_forward.27} parent=11 // pred_check
        %p153 = pneg %p110
      $region14: #{cspdarknet_tiny_forward.27} parent=11 // pred_check_branch
        %155 = sbr.rel (%p153) target = $region16
      $region15: #{cspdarknet_tiny_forward.27} parent=11 // pred_region
        %p156 = scmp.lt.s32.totalorder %s20, 0
        %s157 = scalar_select %p156, %s20, 0
        %s158 = scalar_lea.vmem %s2, %s157
      $region16: #{cspdarknet_tiny_forward.27} parent=11 // pred_fallthru
        _
    $region12: #{cspdarknet_tiny_forward.27} parent=5 // pred_fallthru
      _
    %p159 = scmp.lt.s32.totalorder %s9, 3
    // Predicated region
    $region17: #{cspdarknet_tiny_forward.27} parent=5 // pred_check
      %p160 = pneg %p159
    $region18: #{cspdarknet_tiny_forward.27} parent=5 // pred_check_branch
      %162 = sbr.rel (%p160) target = $region20
    $region19: #{cspdarknet_tiny_forward.27} parent=5 // pred_region
      // Predicated region
      $region21: #{cspdarknet_tiny_forward.27} parent=19 // pred_check
        %p163 = pneg %p50
      $region22: #{cspdarknet_tiny_forward.27} parent=19 // pred_check_branch
        %165 = sbr.rel (%p163) target = $region24
      $region23: #{cspdarknet_tiny_forward.27} parent=19 // pred_region
        %s166 = smul.u32 3, %s18
        %p167 = scmp.lt.s32.totalorder %s16, 0
        %s168 = scalar_select %p167, %s16, 0
        %p169 = scmp.lt.s32.totalorder %s166, 8
        %s170 = scalar_select %p169, %s166, 8
        %s171 = smul.addr %s168, 9
        %s172 = sadd.s32 %s170, %s171
        %s173 = smul.addr %s172, 4
        %s174 = scalar_lea.vmem %s0, %s173
        %s175 = smul.u32 3, %s18
      $region24: #{cspdarknet_tiny_forward.27} parent=19 // pred_fallthru
        _
      // Predicated region
      $region25: #{cspdarknet_tiny_forward.27} parent=19 // pred_check
        %p176 = pneg %p78
      $region26: #{cspdarknet_tiny_forward.27} parent=19 // pred_check_branch
        %178 = sbr.rel (%p176) target = $region28
      $region27: #{cspdarknet_tiny_forward.27} parent=19 // pred_region
        %s179 = smul.u32 48, %s18
        %p180 = scmp.lt.s32.totalorder %s179, 143
        %s181 = scalar_select %p180, %s179, 143
        %p182 = scmp.lt.s32.totalorder %s17, 0
        %s183 = scalar_select %p182, %s17, 0
        %s184 = sadd.s32 %s183, %s181
        %s185 = smul.addr %s184, 4
        %s186 = scalar_lea.vmem %s1, %s185
        %s187 = smul.u32 48, %s18
      $region28: #{cspdarknet_tiny_forward.27} parent=19 // pred_fallthru
        _
    $region20: #{cspdarknet_tiny_forward.27} parent=5 // pred_fallthru
      _
    %p188 = scmp.le.s32.totalorder 1, %s9
    %p189 = scmp.lt.s32.totalorder %s9, 4
    %p190 = pnand %p188, %p189
    %p191 = pneg %p190
    // Predicated region
    $region29: #{cspdarknet_tiny_forward.27} parent=5 // pred_check
      _
    $region30: #{cspdarknet_tiny_forward.27} parent=5 // pred_check_branch
      %193 = sbr.rel (%p190) target = $region32
    $region31: #{cspdarknet_tiny_forward.27} parent=5 // pred_region
      %s194 = ssub.s32 %s9, 1
      %s195 = smul.u32 3, %s21
      %p196 = scmp.lt.s32.totalorder %s19, 0
      %s197 = scalar_select %p196, %s19, 0
      %p198 = scmp.lt.s32.totalorder %s195, 8
      %s199 = scalar_select %p198, %s195, 8
      %s200 = smul.addr %s197, 9
      %s201 = sadd.s32 %s199, %s200
      %s202 = smul.addr %s201, 4
      %s203 = scalar_lea.vmem %s0, %s202
      %p204 = pneg %p56
      %p205 = pneg %p53
      %s206 = smul.u32 48, %s21
      %p207 = scmp.lt.s32.totalorder %s206, 143
      %s208 = scalar_select %p207, %s206, 143
      %p209 = scmp.lt.s32.totalorder %s20, 0
      %s210 = scalar_select %p209, %s20, 0
      %s211 = sadd.s32 %s210, %s208
      %s212 = smul.addr %s211, 4
      %s213 = scalar_lea.vmem %s1, %s212
      %p214 = pneg %p84
      %p215 = pneg %p81
      %p216 = scmp.lt.s32.totalorder %s20, 0
      %s217 = scalar_select %p216, %s20, 0
      %s218 = scalar_lea.vmem %s2, %s217
      %p219 = pneg %p110
      %p220 = pneg %p107
      %p221 = pneg %p138
      %p222 = pneg %p135
      %p223 = scmp.lt.s32.totalorder %s19, 0
      %s224 = scalar_select %p223, %s19, 0
      %p225 = scmp.lt.s32.totalorder %s20, 0
      %s226 = scalar_select %p225, %s20, 0
      %s227 = sadd.s32 %s226, %s224
      %s228 = smul.addr %s227, 4
      %s229 = scalar_lea.vmem %s3, %s228
      %s230 = smul.u32 3, %s21
      %p231 = scmp.lt.s32.totalorder %s19, 0
      %s232 = scalar_select %p231, %s19, 0
      %p233 = scmp.lt.s32.totalorder %s230, 8
      %s234 = scalar_select %p233, %s230, 8
      %s235 = smul.addr %s232, 9
      %s236 = sadd.s32 %s234, %s235
      %s237 = smul.addr %s236, 4
      %s238 = scalar_lea.vmem %s0, %s237
      %s239 = smul.u32 3, %s21
      %s240 = smul.u32 48, %s21
      %p241 = scmp.lt.s32.totalorder %s240, 143
      %s242 = scalar_select %p241, %s240, 143
      %p243 = scmp.lt.s32.totalorder %s20, 0
      %s244 = scalar_select %p243, %s20, 0
      %s245 = sadd.s32 %s244, %s242
      %s246 = smul.addr %s245, 4
      %s247 = scalar_lea.vmem %s1, %s246
      %s248 = smul.u32 48, %s21
      %p249 = scmp.lt.s32.totalorder %s20, 0
      %s250 = scalar_select %p249, %s20, 0
      %s251 = scalar_lea.vmem %s2, %s250
      %p252 = scmp.lt.s32.totalorder %s19, 0
      %s253 = scalar_select %p252, %s19, 0
      %p254 = scmp.lt.s32.totalorder %s20, 0
      %s255 = scalar_select %p254, %s20, 0
      %s256 = sadd.s32 %s255, %s253
      %s257 = smul.addr %s256, 4
      %s258 = scalar_lea.vmem %s3, %s257
      %p260 = scmp.eq.s32.totalorder %s21, 0
      // Predicated region
      $region33: #{cspdarknet_tiny_forward.27} parent=31 // pred_check
        %p261 = pneg %p260
      $region34: #{cspdarknet_tiny_forward.27} parent=31 // pred_check_branch
        %263 = sbr.rel (%p261) target = $region36
      $region35: #{cspdarknet_tiny_forward.27} parent=31 // pred_region
        %264 = vst [vmem:[#allocation2] sm:$0xff] 0.0
      $region36: #{cspdarknet_tiny_forward.27} parent=31 // pred_fallthru
        _
      %v265 = vld [vmem:[#allocation2] sm:$0xff]
      %v266 = vld [vmem:[%s238] sm:$0xff]
      %v267 = vld [vmem:[%s238 + $0x8] sm:$0xf]
      %v268 = vld [vmem:[%s247] sm:$0xf]
      %v269 = vld [vmem:[%s247 + $0x4] sm:$0xf]
      %v270 = vld [vmem:[%s247 + $0x8] sm:$0xf]
      %v271 = vld [vmem:[%s247 + $0xc] sm:$0xf]
      %v272 = vld [vmem:[%s247 + $0x10] sm:$0xf]
      %v273 = vld [vmem:[%s247 + $0x14] sm:$0xf]
      %v274 = vld [vmem:[%s247 + $0x18] sm:$0xf]
      %v275 = vld [vmem:[%s247 + $0x1c] sm:$0xf]
      %v276 = vld [vmem:[%s247 + $0x20] sm:$0xf]
      %v277 = vld [vmem:[%s247 + $0x24] sm:$0xf]
      %v278 = vld [vmem:[%s247 + $0x28] sm:$0xf]
      %v279 = vld [vmem:[%s247 + $0x2c] sm:$0xf]
      %v280 = vld [vmem:[%s247 + $0x30] sm:$0xf]
      %v281 = vld [vmem:[%s247 + $0x34] sm:$0xf]
      %v282 = vld [vmem:[%s247 + $0x38] sm:$0xf]
      %v283 = vld [vmem:[%s247 + $0x3c] sm:$0xf]
      %v284 = vld [vmem:[%s247 + $0x40] sm:$0xf]
      %v285 = vld [vmem:[%s247 + $0x44] sm:$0xf]
      %v286 = vld [vmem:[%s247 + $0x48] sm:$0xf]
      %v287 = vld [vmem:[%s247 + $0x4c] sm:$0xf]
      %v288 = vld [vmem:[%s247 + $0x50] sm:$0xf]
      %v289 = vld [vmem:[%s247 + $0x54] sm:$0xf]
      %v290 = vld [vmem:[%s247 + $0x58] sm:$0xf]
      %v291 = vld [vmem:[%s247 + $0x5c] sm:$0xf]
      %v292 = vld [vmem:[%s247 + $0x60] sm:$0xf]
      %v293 = vld [vmem:[%s247 + $0x64] sm:$0xf]
      %v294 = vld [vmem:[%s247 + $0x68] sm:$0xf]
      %v295 = vld [vmem:[%s247 + $0x6c] sm:$0xf]
      %v296 = vld [vmem:[%s247 + $0x70] sm:$0xf]
      %v297 = vld [vmem:[%s247 + $0x74] sm:$0xf]
      %v298 = vld [vmem:[%s247 + $0x78] sm:$0xf]
      %v299 = vld [vmem:[%s247 + $0x7c] sm:$0xf]
      %v300 = vld [vmem:[%s247 + $0x80] sm:$0xf]
      %v301 = vld [vmem:[%s247 + $0x84] sm:$0xf]
      %v302 = vld [vmem:[%s247 + $0x88] sm:$0xf]
      %v303 = vld [vmem:[%s247 + $0x8c] sm:$0xf]
      %v304 = vld [vmem:[%s247 + $0x90] sm:$0xf]
      %v305 = vld [vmem:[%s247 + $0x94] sm:$0xf]
      %v306 = vld [vmem:[%s247 + $0x98] sm:$0xf]
      %v307 = vld [vmem:[%s247 + $0x9c] sm:$0xf]
      %v308 = vld [vmem:[%s247 + $0xa0] sm:$0xf]
      %v309 = vld [vmem:[%s247 + $0xa4] sm:$0xf]
      %v310 = vld [vmem:[%s247 + $0xa8] sm:$0xf]
      %v311 = vld [vmem:[%s247 + $0xac] sm:$0xf]
      %v312 = vld [vmem:[%s247 + $0xb0] sm:$0xf]
      %v313 = vld [vmem:[%s247 + $0xb4] sm:$0xf]
      %v314 = vld [vmem:[%s247 + $0xb8] sm:$0xf]
      %v315 = vld [vmem:[%s247 + $0xbc] sm:$0xf]
      %v318 = vunpack.c.l.b16 %v266
      %v319 = vunpack.c.h.b16 %v266
      %v320 = vunpack.c.l.b16 %v267
      %v321 = vpack.c.b16 %v318, %v318
      %v322 = vpack.c.b16 %v319, %v319
      %v323 = vpack.c.b16 %v320, %v320
      %v375 = vunpack.c.l.b16 %v268
      %v376 = vunpack.c.l.b16 %v269
      %v377 = vunpack.c.l.b16 %v270
      %v378 = vunpack.c.l.b16 %v271
      %v379 = vunpack.c.l.b16 %v272
      %v380 = vunpack.c.l.b16 %v273
      %v381 = vunpack.c.l.b16 %v274
      %v382 = vunpack.c.l.b16 %v275
      %v383 = vunpack.c.l.b16 %v276
      %v384 = vunpack.c.l.b16 %v277
      %v385 = vunpack.c.l.b16 %v278
      %v386 = vunpack.c.l.b16 %v279
      %v387 = vunpack.c.l.b16 %v280
      %v388 = vunpack.c.l.b16 %v281
      %v389 = vunpack.c.l.b16 %v282
      %v390 = vunpack.c.l.b16 %v283
      %v391 = vunpack.c.l.b16 %v284
      %v392 = vunpack.c.l.b16 %v285
      %v393 = vunpack.c.l.b16 %v286
      %v394 = vunpack.c.l.b16 %v287
      %v395 = vunpack.c.l.b16 %v288
      %v396 = vunpack.c.l.b16 %v289
      %v397 = vunpack.c.l.b16 %v290
      %v398 = vunpack.c.l.b16 %v291
      %v399 = vunpack.c.l.b16 %v292
      %v400 = vunpack.c.l.b16 %v293
      %v401 = vunpack.c.l.b16 %v294
      %v402 = vunpack.c.l.b16 %v295
      %v403 = vunpack.c.l.b16 %v296
      %v404 = vunpack.c.l.b16 %v297
      %v405 = vunpack.c.l.b16 %v298
      %v406 = vunpack.c.l.b16 %v299
      %v407 = vunpack.c.l.b16 %v300
      %v408 = vunpack.c.l.b16 %v301
      %v409 = vunpack.c.l.b16 %v302
      %v410 = vunpack.c.l.b16 %v303
      %v411 = vunpack.c.l.b16 %v304
      %v412 = vunpack.c.l.b16 %v305
      %v413 = vunpack.c.l.b16 %v306
      %v414 = vunpack.c.l.b16 %v307
      %v415 = vunpack.c.l.b16 %v308
      %v416 = vunpack.c.l.b16 %v309
      %v417 = vunpack.c.l.b16 %v310
      %v418 = vunpack.c.l.b16 %v311
      %v419 = vunpack.c.l.b16 %v312
      %v420 = vunpack.c.l.b16 %v313
      %v421 = vunpack.c.l.b16 %v314
      %v422 = vunpack.c.l.b16 %v315
      %v423 = vpack.c.b16 %v376, %v375
      %v424 = vpack.c.b16 %v378, %v377
      %v425 = vpack.c.b16 %v380, %v379
      %v426 = vpack.c.b16 %v382, %v381
      %v427 = vpack.c.b16 %v384, %v383
      %v428 = vpack.c.b16 %v386, %v385
      %v429 = vpack.c.b16 %v388, %v387
      %v430 = vpack.c.b16 %v390, %v389
      %v431 = vpack.c.b16 %v392, %v391
      %v432 = vpack.c.b16 %v394, %v393
      %v433 = vpack.c.b16 %v396, %v395
      %v434 = vpack.c.b16 %v398, %v397
      %v435 = vpack.c.b16 %v400, %v399
      %v436 = vpack.c.b16 %v402, %v401
      %v437 = vpack.c.b16 %v404, %v403
      %v438 = vpack.c.b16 %v406, %v405
      %v439 = vpack.c.b16 %v408, %v407
      %v440 = vpack.c.b16 %v410, %v409
      %v441 = vpack.c.b16 %v412, %v411
      %v442 = vpack.c.b16 %v414, %v413
      %v443 = vpack.c.b16 %v416, %v415
      %v444 = vpack.c.b16 %v418, %v417
      %v445 = vpack.c.b16 %v420, %v419
      %v446 = vpack.c.b16 %v422, %v421
      %471 = vmatprep.subr.bf16.mxu0 0
      %472 = vmatpush1.bf16.msra.mxu0 %v423
      %473 = vmatprep.subr.bf16.mxu0 0
      %474 = vmatpush1.bf16.msra.mxu0 %v424
      %475 = vmatprep.subr.bf16.mxu0 0
      %476 = vmatpush1.bf16.msra.mxu0 %v425
      %477 = vmatprep.subr.bf16.mxu0 0
      %478 = vmatpush1.bf16.msra.mxu0 %v426
      %479 = vmatprep.subr.bf16.mxu0 0
      %480 = vmatpush1.bf16.msra.mxu0 %v427
      %481 = vmatprep.subr.bf16.mxu0 0
      %482 = vmatpush1.bf16.msra.mxu0 %v428
      %483 = vmatprep.subr.bf16.mxu0 0
      %484 = vmatpush1.bf16.msra.mxu0 %v429
      %485 = vmatprep.subr.bf16.mxu0 0
      %486 = vmatpush1.bf16.msra.mxu0 %v430
      %487 = vmatprep.subr.bf16.mxu0 0
      %488 = vmatpush1.bf16.msra.mxu0 %v431
      %489 = vmatprep.subr.bf16.mxu0 0
      %490 = vmatpush1.bf16.msra.mxu0 %v432
      %491 = vmatprep.subr.bf16.mxu0 0
      %492 = vmatpush1.bf16.msra.mxu0 %v433
      %493 = vmatprep.subr.bf16.mxu0 0
      %494 = vmatpush1.bf16.msra.mxu0 %v434
      %495 = vmatprep.subr.bf16.mxu0 0
      %496 = vmatpush1.bf16.msra.mxu0 %v435
      %497 = vmatprep.subr.bf16.mxu0 0
      %498 = vmatpush1.bf16.msra.mxu0 %v436
      %499 = vmatprep.subr.bf16.mxu0 0
      %500 = vmatpush1.bf16.msra.mxu0 %v437
      %501 = vmatprep.subr.bf16.mxu0 0
      %502 = vmatpush1.bf16.msra.mxu0 %v438
      %503 = vmatprep.mubr.bf16.mxu0 %v322
      %504 = vmatmul.mubr.bf16.gmra.mrb[0].mxu0 %v321
      %v505 = vpop.f32.mrb[0].mxu0
      %v506 = vadd.f32 0.0, %v505
      %v507 = vpop.f32.mrb[0].mxu0
      %v508 = vpop.f32.mrb[0].mxu0
      %v509 = vpop.f32.mrb[0].mxu0
      %510 = vdwg.mxu0
      %511 = vmatprep.subr.bf16.mxu0 0
      %512 = vmatpush1.bf16.msra.mxu0 %v439
      %513 = vmatprep.subr.bf16.mxu0 0
      %514 = vmatpush1.bf16.msra.mxu0 %v440
      %515 = vmatprep.subr.bf16.mxu0 0
      %516 = vmatpush1.bf16.msra.mxu0 %v441
      %517 = vmatprep.subr.bf16.mxu0 0
      %518 = vmatpush1.bf16.msra.mxu0 %v442
      %519 = vmatprep.subr.bf16.mxu0 0
      %520 = vmatpush1.bf16.msra.mxu0 %v443
      %521 = vmatprep.subr.bf16.mxu0 0
      %522 = vmatpush1.bf16.msra.mxu0 %v444
      %523 = vmatprep.subr.bf16.mxu0 0
      %524 = vmatpush1.bf16.msra.mxu0 %v445
      %525 = vmatprep.subr.bf16.mxu0 0
      %526 = vmatpush1.bf16.msra.mxu0 %v446
      %527 = vmatprep.subr.bf16.mxu0 0
      %528 = vmatpush1.bf16.msra.mxu0 0
      %529 = vmatprep.subr.bf16.mxu0 0
      %530 = vmatpush1.bf16.msra.mxu0 0
      %531 = vmatprep.subr.bf16.mxu0 0
      %532 = vmatpush1.bf16.msra.mxu0 0
      %533 = vmatprep.subr.bf16.mxu0 0
      %534 = vmatpush1.bf16.msra.mxu0 0
      %535 = vmatprep.subr.bf16.mxu0 0
      %536 = vmatpush1.bf16.msra.mxu0 0
      %537 = vmatprep.subr.bf16.mxu0 0
      %538 = vmatpush1.bf16.msra.mxu0 0
      %539 = vmatprep.subr.bf16.mxu0 0
      %540 = vmatpush1.bf16.msra.mxu0 0
      %541 = vmatprep.subr.bf16.mxu0 0
      %542 = vmatpush1.bf16.msra.mxu0 0
      %543 = vmatprep.mubr.bf16.mxu0 0
      %544 = vmatmul.mubr.bf16.gmra.mrb[0].mxu0 %v323
      %v545 = vpop.f32.mrb[0].mxu0
      %v546 = vadd.f32 %v506, %v545
      %v547 = vpop.f32.mrb[0].mxu0
      %v548 = vpop.f32.mrb[0].mxu0
      %v549 = vpop.f32.mrb[0].mxu0
      %550 = vdwg.mxu0
      %v551 = vadd.f32 %v265, %v546
      %552 = vst [vmem:[#allocation2] sm:$0xff] %v551
      %p553 = scmp.eq.s32.totalorder %s21, 2
      // Predicated region
      $region37: #{cspdarknet_tiny_forward.27} parent=31 // pred_check
        %p554 = pneg %p553
      $region38: #{cspdarknet_tiny_forward.27} parent=31 // pred_check_branch
        %556 = sbr.rel (%p554) target = $region40
      $region39: #{cspdarknet_tiny_forward.27} parent=31 // pred_region
        %v557 = vld [vmem:[#allocation2] sm:$0xff]
        %v558 = vld [vmem:[%s251] sm:$0x1]
        %v560 = vlaneseq
        %v561 = vshrl.u32 %v560, 7
        %v562 = vsub.s32 0, %v561
        %v563 = vrot.slane %v558, %v562
        %v565 = vadd.f32 %v557, %v563
        %vm566 = vcmp.gt.f32.partialorder %v565, 0.0
        %v567 = vmul.f32 %v565, 0.1
        %v568 = vsel %vm566, %v565, %v567
        %v569 = vpack.c.bf16 %v568, %v568
        %570 = vst [vmem:[%s258] sm:$0xf] %v569
      $region40: #{cspdarknet_tiny_forward.27} parent=31 // pred_fallthru
        _
      %p571 = scmp.lt.s32.totalorder %s19, 0
      %s572 = scalar_select %p571, %s19, 0
      %p573 = scmp.lt.s32.totalorder %s20, 0
      %s574 = scalar_select %p573, %s20, 0
      %s575 = sadd.s32 %s574, %s572
      %s576 = smul.addr %s575, 4
      %s577 = scalar_lea.vmem %s3, %s576
      // Predicated region
      $region41: #{cspdarknet_tiny_forward.27} parent=31 // pred_check
        %p578 = pneg %p135
      $region42: #{cspdarknet_tiny_forward.27} parent=31 // pred_check_branch
        %580 = sbr.rel (%p578) target = $region44
      $region43: #{cspdarknet_tiny_forward.27} parent=31 // pred_region
        _
      $region44: #{cspdarknet_tiny_forward.27} parent=31 // pred_fallthru
        _
      // Predicated region
      $region45: #{cspdarknet_tiny_forward.27} parent=31 // pred_check
        %p581 = pneg %p135
      $region46: #{cspdarknet_tiny_forward.27} parent=31 // pred_check_branch
        %583 = sbr.rel (%p581) target = $region48
      $region47: #{cspdarknet_tiny_forward.27} parent=31 // pred_region
        %p584 = scmp.lt.s32.totalorder %s19, 0
        %s585 = scalar_select %p584, %s19, 0
        %p586 = scmp.lt.s32.totalorder %s20, 0
        %s587 = scalar_select %p586, %s20, 0
        %s588 = sadd.s32 %s587, %s585
        %s589 = smul.addr %s588, 4
        %s590 = scalar_lea.vmem %s3, %s589
      $region48: #{cspdarknet_tiny_forward.27} parent=31 // pred_fallthru
        _
    $region32: #{cspdarknet_tiny_forward.27} parent=5 // pred_fallthru
      _
    %p591 = scmp.le.s32.totalorder 2, %s9
    // Predicated region
    $region49: #{cspdarknet_tiny_forward.27} parent=5 // pred_check
      %p592 = pneg %p591
    $region50: #{cspdarknet_tiny_forward.27} parent=5 // pred_check_branch
      %594 = sbr.rel (%p592) target = $region52
    $region51: #{cspdarknet_tiny_forward.27} parent=5 // pred_region
      %s595 = ssub.s32 %s9, 2
    $region52: #{cspdarknet_tiny_forward.27} parent=5 // pred_fallthru
      _
  $region6: #{cspdarknet_tiny_forward.27} parent=0 // loop_footer
    %s13 = sadd.s32 1, %s9
  $region7: #{cspdarknet_tiny_forward.27} parent=0 // loop_footer_branch
    %8 = sbr.rel target = $region3
  $region8: #{cspdarknet_tiny_forward.27} parent=0 // loop_exit
    _

// kernel: cspdarknet_tiny_forward.29
$region0: #{cspdarknet_tiny_forward.29}
  #allocation0 [shape = 'u32[]', space=smem, size = 0x4, offset = 0x4, fixed_abs, tag = 'smem constant byte address 0x4 - core index']
  #allocation1 [shape = 'u32[144,128]{1,0:T(1,128)}', space=vmem, size = 0x12000, scoped, tag = 'internal scratch']
  #allocation2 [shape = 'f32[8,256]{1,0:T(8,128)}', space=vmem, size = 0x2000, scoped, tag = 'scratch operand']
  %s0 = inlined_call_operand.vmem [shape: bf16[8,256], index: 0, kind: input, shape index: {}]
  %s1 = inlined_call_operand.vmem [shape: bf16[256,256], index: 1, kind: input, shape index: {}]
  %s2 = inlined_call_operand.vmem [shape: f32[1,256], index: 2, kind: input, shape index: {}]
  %s3 = inlined_call_operand.vmem [shape: bf16[8,256], index: 3, kind: output, shape index: {}]
  %s4 = sld [smem:[#allocation0]]
  $region30: #{cspdarknet_tiny_forward.29} parent=0
    _
  %s6 = ssub.s32 1, %s4
  %s7 = scalar_select 0, %s6, %s4
  // Predicated region
  $region2: #{cspdarknet_tiny_forward.29} parent=0 // pred_check
    _
  $region3: #{cspdarknet_tiny_forward.29} parent=0 // pred_check_branch
    %9 = sbr.rel (0) target = $region5
  $region4: #{cspdarknet_tiny_forward.29} parent=0 // pred_region
    _
  $region5: #{cspdarknet_tiny_forward.29} parent=0 // pred_fallthru
    _
  // Predicated region
  $region6: #{cspdarknet_tiny_forward.29} parent=0 // pred_check
    _
  $region7: #{cspdarknet_tiny_forward.29} parent=0 // pred_check_branch
    %11 = sbr.rel (0) target = $region9
  $region8: #{cspdarknet_tiny_forward.29} parent=0 // pred_region
    _
  $region9: #{cspdarknet_tiny_forward.29} parent=0 // pred_fallthru
    _
  // Predicated region
  $region10: #{cspdarknet_tiny_forward.29} parent=0 // pred_check
    _
  $region11: #{cspdarknet_tiny_forward.29} parent=0 // pred_check_branch
    %13 = sbr.rel (0) target = $region13
  $region12: #{cspdarknet_tiny_forward.29} parent=0 // pred_region
    _
  $region13: #{cspdarknet_tiny_forward.29} parent=0 // pred_fallthru
    _
  %p14 = scmp.eq.s32.totalorder 0, 0
  // Predicated region
  $region14: #{cspdarknet_tiny_forward.29} parent=0 // pred_check
    %p15 = pneg %p14
  $region15: #{cspdarknet_tiny_forward.29} parent=0 // pred_check_branch
    %17 = sbr.rel (%p15) target = $region17
  $region16: #{cspdarknet_tiny_forward.29} parent=0 // pred_region
    %18 = vst [vmem:[#allocation2] sm:$0xff] 0.0
    %19 = vst [vmem:[#allocation2 + $0x8] sm:$0xff] 0.0
  $region17: #{cspdarknet_tiny_forward.29} parent=0 // pred_fallthru
    _
  %v20 = vld [vmem:[#allocation2] sm:$0xff]
  %v21 = vld [vmem:[#allocation2 + $0x8] sm:$0xff]
  %v22 = vld [vmem:[%s0] sm:$0xff]
  %v23 = vld [vmem:[%s1] sm:$0xff]
  %v24 = vld [vmem:[%s1 + $0x8] sm:$0xff]
  %v25 = vld [vmem:[%s1 + $0x10] sm:$0xff]
  %v26 = vld [vmem:[%s1 + $0x18] sm:$0xff]
  %v27 = vld [vmem:[%s1 + $0x20] sm:$0xff]
  %v28 = vld [vmem:[%s1 + $0x28] sm:$0xff]
  %v29 = vld [vmem:[%s1 + $0x30] sm:$0xff]
  %v30 = vld [vmem:[%s1 + $0x38] sm:$0xff]
  %v31 = vld [vmem:[%s1 + $0x40] sm:$0xff]
  %v32 = vld [vmem:[%s1 + $0x48] sm:$0xff]
  %v33 = vld [vmem:[%s1 + $0x50] sm:$0xff]
  %v34 = vld [vmem:[%s1 + $0x58] sm:$0xff]
  %v35 = vld [vmem:[%s1 + $0x60] sm:$0xff]
  %v36 = vld [vmem:[%s1 + $0x68] sm:$0xff]
  %v37 = vld [vmem:[%s1 + $0x70] sm:$0xff]
  %v38 = vld [vmem:[%s1 + $0x78] sm:$0xff]
  %v39 = vld [vmem:[%s1 + $0x80] sm:$0xff]
  %v40 = vld [vmem:[%s1 + $0x88] sm:$0xff]
  %v41 = vld [vmem:[%s1 + $0x90] sm:$0xff]
  %v42 = vld [vmem:[%s1 + $0x98] sm:$0xff]
  %v43 = vld [vmem:[%s1 + $0xa0] sm:$0xff]
  %v44 = vld [vmem:[%s1 + $0xa8] sm:$0xff]
  %v45 = vld [vmem:[%s1 + $0xb0] sm:$0xff]
  %v46 = vld [vmem:[%s1 + $0xb8] sm:$0xff]
  %v47 = vld [vmem:[%s1 + $0xc0] sm:$0xff]
  %v48 = vld [vmem:[%s1 + $0xc8] sm:$0xff]
  %v49 = vld [vmem:[%s1 + $0xd0] sm:$0xff]
  %v50 = vld [vmem:[%s1 + $0xd8] sm:$0xff]
  %v51 = vld [vmem:[%s1 + $0xe0] sm:$0xff]
  %v52 = vld [vmem:[%s1 + $0xe8] sm:$0xff]
  %v53 = vld [vmem:[%s1 + $0xf0] sm:$0xff]
  %v54 = vld [vmem:[%s1 + $0xf8] sm:$0xff]
  %v56 = vunpack.c.l.b16 %v22
  %v57 = vunpack.c.h.b16 %v22
  %v58 = vpack.c.b16 %v56, %v56
  %v59 = vpack.c.b16 %v57, %v57
  %v94 = vunpack.c.l.b16 %v23
  %v95 = vunpack.c.h.b16 %v23
  %v96 = vunpack.c.l.b16 %v24
  %v97 = vunpack.c.h.b16 %v24
  %v98 = vunpack.c.l.b16 %v25
  %v99 = vunpack.c.h.b16 %v25
  %v100 = vunpack.c.l.b16 %v26
  %v101 = vunpack.c.h.b16 %v26
  %v102 = vunpack.c.l.b16 %v27
  %v103 = vunpack.c.h.b16 %v27
  %v104 = vunpack.c.l.b16 %v28
  %v105 = vunpack.c.h.b16 %v28
  %v106 = vunpack.c.l.b16 %v29
  %v107 = vunpack.c.h.b16 %v29
  %v108 = vunpack.c.l.b16 %v30
  %v109 = vunpack.c.h.b16 %v30
  %v110 = vunpack.c.l.b16 %v31
  %v111 = vunpack.c.h.b16 %v31
  %v112 = vunpack.c.l.b16 %v32
  %v113 = vunpack.c.h.b16 %v32
  %v114 = vunpack.c.l.b16 %v33
  %v115 = vunpack.c.h.b16 %v33
  %v116 = vunpack.c.l.b16 %v34
  %v117 = vunpack.c.h.b16 %v34
  %v118 = vunpack.c.l.b16 %v35
  %v119 = vunpack.c.h.b16 %v35
  %v120 = vunpack.c.l.b16 %v36
  %v121 = vunpack.c.h.b16 %v36
  %v122 = vunpack.c.l.b16 %v37
  %v123 = vunpack.c.h.b16 %v37
  %v124 = vunpack.c.l.b16 %v38
  %v125 = vunpack.c.h.b16 %v38
  %v126 = vunpack.c.l.b16 %v39
  %v127 = vunpack.c.h.b16 %v39
  %v128 = vunpack.c.l.b16 %v40
  %v129 = vunpack.c.h.b16 %v40
  %v130 = vunpack.c.l.b16 %v41
  %v131 = vunpack.c.h.b16 %v41
  %v132 = vunpack.c.l.b16 %v42
  %v133 = vunpack.c.h.b16 %v42
  %v134 = vunpack.c.l.b16 %v43
  %v135 = vunpack.c.h.b16 %v43
  %v136 = vunpack.c.l.b16 %v44
  %v137 = vunpack.c.h.b16 %v44
  %v138 = vunpack.c.l.b16 %v45
  %v139 = vunpack.c.h.b16 %v45
  %v140 = vunpack.c.l.b16 %v46
  %v141 = vunpack.c.h.b16 %v46
  %v142 = vunpack.c.l.b16 %v47
  %v143 = vunpack.c.h.b16 %v47
  %v144 = vunpack.c.l.b16 %v48
  %v145 = vunpack.c.h.b16 %v48
  %v146 = vunpack.c.l.b16 %v49
  %v147 = vunpack.c.h.b16 %v49
  %v148 = vunpack.c.l.b16 %v50
  %v149 = vunpack.c.h.b16 %v50
  %v150 = vunpack.c.l.b16 %v51
  %v151 = vunpack.c.h.b16 %v51
  %v152 = vunpack.c.l.b16 %v52
  %v153 = vunpack.c.h.b16 %v52
  %v154 = vunpack.c.l.b16 %v53
  %v155 = vunpack.c.h.b16 %v53
  %v156 = vunpack.c.l.b16 %v54
  %v157 = vunpack.c.h.b16 %v54
  %v158 = vpack.c.b16 %v96, %v94
  %v159 = vpack.c.b16 %v97, %v95
  %v160 = vpack.c.b16 %v100, %v98
  %v161 = vpack.c.b16 %v101, %v99
  %v162 = vpack.c.b16 %v104, %v102
  %v163 = vpack.c.b16 %v105, %v103
  %v164 = vpack.c.b16 %v108, %v106
  %v165 = vpack.c.b16 %v109, %v107
  %v166 = vpack.c.b16 %v112, %v110
  %v167 = vpack.c.b16 %v113, %v111
  %v168 = vpack.c.b16 %v116, %v114
  %v169 = vpack.c.b16 %v117, %v115
  %v170 = vpack.c.b16 %v120, %v118
  %v171 = vpack.c.b16 %v121, %v119
  %v172 = vpack.c.b16 %v124, %v122
  %v173 = vpack.c.b16 %v125, %v123
  %v174 = vpack.c.b16 %v128, %v126
  %v175 = vpack.c.b16 %v129, %v127
  %v176 = vpack.c.b16 %v132, %v130
  %v177 = vpack.c.b16 %v133, %v131
  %v178 = vpack.c.b16 %v136, %v134
  %v179 = vpack.c.b16 %v137, %v135
  %v180 = vpack.c.b16 %v140, %v138
  %v181 = vpack.c.b16 %v141, %v139
  %v182 = vpack.c.b16 %v144, %v142
  %v183 = vpack.c.b16 %v145, %v143
  %v184 = vpack.c.b16 %v148, %v146
  %v185 = vpack.c.b16 %v149, %v147
  %v186 = vpack.c.b16 %v152, %v150
  %v187 = vpack.c.b16 %v153, %v151
  %v188 = vpack.c.b16 %v156, %v154
  %v189 = vpack.c.b16 %v157, %v155
  %222 = vmatprep.subr.bf16.mxu0 %v159
  %223 = vmatpush1.bf16.msra.mxu0 %v158
  %224 = vmatprep.subr.bf16.mxu0 %v161
  %225 = vmatpush1.bf16.msra.mxu0 %v160
  %226 = vmatprep.subr.bf16.mxu0 %v163
  %227 = vmatpush1.bf16.msra.mxu0 %v162
  %228 = vmatprep.subr.bf16.mxu0 %v165
  %229 = vmatpush1.bf16.msra.mxu0 %v164
  %230 = vmatprep.subr.bf16.mxu0 %v167
  %231 = vmatpush1.bf16.msra.mxu0 %v166
  %232 = vmatprep.subr.bf16.mxu0 %v169
  %233 = vmatpush1.bf16.msra.mxu0 %v168
  %234 = vmatprep.subr.bf16.mxu0 %v171
  %235 = vmatpush1.bf16.msra.mxu0 %v170
  %236 = vmatprep.subr.bf16.mxu0 %v173
  %237 = vmatpush1.bf16.msra.mxu0 %v172
  %238 = vmatprep.subr.bf16.mxu0 %v175
  %239 = vmatpush1.bf16.msra.mxu0 %v174
  %240 = vmatprep.subr.bf16.mxu0 %v177
  %241 = vmatpush1.bf16.msra.mxu0 %v176
  %242 = vmatprep.subr.bf16.mxu0 %v179
  %243 = vmatpush1.bf16.msra.mxu0 %v178
  %244 = vmatprep.subr.bf16.mxu0 %v181
  %245 = vmatpush1.bf16.msra.mxu0 %v180
  %246 = vmatprep.subr.bf16.mxu0 %v183
  %247 = vmatpush1.bf16.msra.mxu0 %v182
  %248 = vmatprep.subr.bf16.mxu0 %v185
  %249 = vmatpush1.bf16.msra.mxu0 %v184
  %250 = vmatprep.subr.bf16.mxu0 %v187
  %251 = vmatpush1.bf16.msra.mxu0 %v186
  %252 = vmatprep.subr.bf16.mxu0 %v189
  %253 = vmatpush1.bf16.msra.mxu0 %v188
  %254 = vmatprep.mubr.bf16.mxu0 %v59
  %255 = vmatmul.mubr.bf16.gmra.mrb[0].mxu0 %v58
  %v256 = vpop.f32.mrb[0].mxu0
  %v257 = vadd.f32 0.0, %v256
  %v258 = vpop.f32.mrb[0].mxu0
  %v259 = vadd.f32 0.0, %v258
  %v260 = vpop.f32.mrb[0].mxu0
  %v261 = vpop.f32.mrb[0].mxu0
  %262 = vdwg.mxu0
  %v263 = vadd.f32 %v20, %v257
  %v264 = vadd.f32 %v21, %v259
  %265 = vst [vmem:[#allocation2] sm:$0xff] %v263
  %266 = vst [vmem:[#allocation2 + $0x8] sm:$0xff] %v264
  // Predicated region
  $region18: #{cspdarknet_tiny_forward.29} parent=0 // pred_check
    %p267 = pneg %p14
  $region19: #{cspdarknet_tiny_forward.29} parent=0 // pred_check_branch
    %269 = sbr.rel (%p267) target = $region21
  $region20: #{cspdarknet_tiny_forward.29} parent=0 // pred_region
    %v270 = vld [vmem:[#allocation2] sm:$0xff]
    %v271 = vld [vmem:[#allocation2 + $0x8] sm:$0xff]
    %v272 = vld [vmem:[%s2] sm:$0x3]
    %v274 = vlaneseq
    %v275 = vshrl.u32 %v274, 7
    %v276 = vsub.s32 0, %v275
    %v277 = vrot.slane %v272, %v276
    %v278 = vlaneseq
    %v279 = vshrl.u32 %v278, 7
    %v280 = vsub.s32 1, %v279
    %v281 = vrot.slane %v272, %v280
    %v284 = vadd.f32 %v270, %v277
    %v285 = vadd.f32 %v271, %v281
    %vm286 = vcmp.gt.f32.partialorder %v284, 0.0
    %vm287 = vcmp.gt.f32.partialorder %v285, 0.0
    %v288 = vmul.f32 %v284, 0.1
    %v289 = vmul.f32 %v285, 0.1
    %v290 = vsel %vm286, %v284, %v288
    %v291 = vsel %vm287, %v285, %v289
    %v292 = vpack.c.bf16 %v290, %v290
    %v293 = vpack.c.bf16 %v291, %v291
    %v296 = vunpack.c.l.b16 %v292
    %v297 = vunpack.c.l.b16 %v293
    %v298 = vpack.c.b16 %v297, %v296
    %300 = vst [vmem:[%s3] sm:$0xff] %v298
  $region21: #{cspdarknet_tiny_forward.29} parent=0 // pred_fallthru
    _
  // Predicated region
  $region22: #{cspdarknet_tiny_forward.29} parent=0 // pred_check
    _
  $region23: #{cspdarknet_tiny_forward.29} parent=0 // pred_check_branch
    %302 = sbr.rel (0) target = $region25
  $region24: #{cspdarknet_tiny_forward.29} parent=0 // pred_region
    _
  $region25: #{cspdarknet_tiny_forward.29} parent=0 // pred_fallthru
    _
  // Predicated region
  $region26: #{cspdarknet_tiny_forward.29} parent=0 // pred_check
    _
  $region27: #{cspdarknet_tiny_forward.29} parent=0 // pred_check_branch
    %304 = sbr.rel (0) target = $region29
  $region28: #{cspdarknet_tiny_forward.29} parent=0 // pred_region
    _
  $region29: #{cspdarknet_tiny_forward.29} parent=0 // pred_fallthru
    _

// kernel: cspdarknet_tiny_forward.30
$region0: #{cspdarknet_tiny_forward.30}
  #allocation0 [shape = 'u32[]', space=smem, size = 0x4, offset = 0x4, fixed_abs, tag = 'smem constant byte address 0x4 - core index']
  #allocation1 [shape = 'u32[144,128]{1,0:T(1,128)}', space=vmem, size = 0x12000, scoped, tag = 'internal scratch']
  #allocation2 [shape = 'f32[8,256]{1,0:T(8,128)}', space=vmem, size = 0x2000, scoped, tag = 'scratch operand']
  %s0 = inlined_call_operand.vmem [shape: bf16[8,4608], index: 0, kind: input, shape index: {}]
  %s1 = inlined_call_operand.vmem [shape: bf16[4608,512], index: 1, kind: input, shape index: {}]
  %s2 = inlined_call_operand.vmem [shape: f32[1,512], index: 2, kind: input, shape index: {}]
  %s3 = inlined_call_operand.vmem [shape: bf16[8,512], index: 3, kind: output, shape index: {}]
  %s4 = sld [smem:[#allocation0]]
  $region91: #{cspdarknet_tiny_forward.30} parent=0
    _
  %s6 = ssub.s32 1, %s4
  %s7 = scalar_select 0, %s6, %s4
  $region1: #{cspdarknet_tiny_forward.30} parent=0
    #allocation3 [shape = 'u8[524288]{0}', space=vmem, size = 0x80000, scoped, tag = 'input window, operand 1']
    loop: start=0, step=1, limit=20
    $region2: #{cspdarknet_tiny_forward.30} parent=1 // loop_pre_header
      _
    $region3: #{cspdarknet_tiny_forward.30} parent=1 // loop_header
      %s9 = sphi 0, %s13
      %p10 = scmp.ge.s32.totalorder %s9, 20
      %s16 = sphi 0, %s35
      %s17 = sphi 0, %s31
      %s18 = sphi 0, %s27
      %s19 = sphi 0, %s16
      %s20 = sphi 0, %s17
      %s21 = sphi 0, %s18
      %s22 = sphi 0, %s19
      %s23 = sphi 0, %s20
      %s24 = sphi 0, %s21
      %s40 = sphi 0, %s42
      %s43 = sphi 0, %s40
      %s44 = sphi 0, %s43
      %s60 = sphi 0, %s44
      %s68 = sphi 0, %s70
      %s71 = sphi 0, %s68
      %s72 = sphi 0, %s71
      %s88 = sphi 0, %s72
      %s94 = sphi 0, %s96
      %s97 = sphi 0, %s94
      %s98 = sphi 0, %s97
      %s114 = sphi 0, %s98
      %s122 = sphi 0, %s124
      %s125 = sphi 0, %s122
      %s126 = sphi 0, %s125
      %s142 = sphi 0, %s126
    $region4: #{cspdarknet_tiny_forward.30} parent=1 // loop_header_branch
      %12 = sbr.rel (%p10) target = $region8
    $region5: #{cspdarknet_tiny_forward.30} parent=1 // loop_body
      %s14 = ssub.s32 %s9, 1
      %s15 = ssub.s32 %s9, 2
      %s25 = sadd.s32 1, %s18
      %p26 = scmp.ge.s32.totalorder %s25, 9
      %s27 = scalar_select %p26, 0, %s25
      %s28 = sadd.s32 1, %s17
      %s29 = scalar_select %p26, %s28, %s17
      %p30 = scmp.ge.s32.totalorder %s29, 2
      %s31 = scalar_select %p30, 0, %s29
      %s32 = sadd.s32 1, %s16
      %s33 = scalar_select %p30, %s32, %s16
      %p34 = scmp.ge.s32.totalorder %s33, 1
      %s35 = scalar_select %p34, 0, %s33
      %s36 = ssub.s32 %s16, %s35
      %s37 = ssub.s32 %s18, %s27
      %s38 = sor.u32 %s36, %s37
      %p39 = scmp.eq.s32.totalorder %s38, 0
      %s41 = sadd.s32 %s40, 1
      %s42 = scalar_select %p39, %s40, %s41
      %p45 = pneg %p39
      %p46 = scmp.eq.s32.totalorder %s9, 17
      %p47 = por %p45, %p46
      %p48 = scmp.ne.s32.totalorder %s40, %s43
      %p49 = scmp.eq.s32.totalorder %s9, 0
      %p50 = por %p48, %p49
      %p51 = scmp.ne.s32.totalorder %s40, %s43
      %p52 = scmp.eq.s32.totalorder %s14, 17
      %p53 = por %p51, %p52
      %p54 = scmp.ne.s32.totalorder %s43, %s44
      %p55 = scmp.eq.s32.totalorder %s14, 0
      %p56 = por %p54, %p55
      %p57 = scmp.ne.s32.totalorder %s43, %s44
      %p58 = scmp.eq.s32.totalorder %s15, 17
      %p59 = por %p57, %p58
      %p61 = scmp.ne.s32.totalorder %s44, %s60
      %p62 = scmp.eq.s32.totalorder %s15, 0
      %p63 = por %p61, %p62
      %s64 = ssub.s32 %s18, %s27
      %s65 = ssub.s32 %s17, %s31
      %s66 = sor.u32 %s64, %s65
      %p67 = scmp.eq.s32.totalorder %s66, 0
      %s69 = sadd.s32 %s68, 1
      %s70 = scalar_select %p67, %s68, %s69
      %p73 = pneg %p67
      %p74 = scmp.eq.s32.totalorder %s9, 17
      %p75 = por %p73, %p74
      %p76 = scmp.ne.s32.totalorder %s68, %s71
      %p77 = scmp.eq.s32.totalorder %s9, 0
      %p78 = por %p76, %p77
      %p79 = scmp.ne.s32.totalorder %s68, %s71
      %p80 = scmp.eq.s32.totalorder %s14, 17
      %p81 = por %p79, %p80
      %p82 = scmp.ne.s32.totalorder %s71, %s72
      %p83 = scmp.eq.s32.totalorder %s14, 0
      %p84 = por %p82, %p83
      %p85 = scmp.ne.s32.totalorder %s71, %s72
      %p86 = scmp.eq.s32.totalorder %s15, 17
      %p87 = por %p85, %p86
      %p89 = scmp.ne.s32.totalorder %s72, %s88
      %p90 = scmp.eq.s32.totalorder %s15, 0
      %p91 = por %p89, %p90
      %s92 = ssub.s32 %s17, %s31
      %p93 = scmp.eq.s32.totalorder %s92, 0
      %s95 = sadd.s32 %s94, 1
      %s96 = scalar_select %p93, %s94, %s95
      %p99 = pneg %p93
      %p100 = scmp.eq.s32.totalorder %s9, 17
      %p101 = por %p99, %p100
      %p102 = scmp.ne.s32.totalorder %s94, %s97
      %p103 = scmp.eq.s32.totalorder %s9, 0
      %p104 = por %p102, %p103
      %p105 = scmp.ne.s32.totalorder %s94, %s97
      %p106 = scmp.eq.s32.totalorder %s14, 17
      %p107 = por %p105, %p106
      %p108 = scmp.ne.s32.totalorder %s97, %s98
      %p109 = scmp.eq.s32.totalorder %s14, 0
      %p110 = por %p108, %p109
      %p111 = scmp.ne.s32.totalorder %s97, %s98
      %p112 = scmp.eq.s32.totalorder %s15, 17
      %p113 = por %p111, %p112
      %p115 = scmp.ne.s32.totalorder %s98, %s114
      %p116 = scmp.eq.s32.totalorder %s15, 0
      %p117 = por %p115, %p116
      %s118 = ssub.s32 %s16, %s35
      %s119 = ssub.s32 %s17, %s31
      %s120 = sor.u32 %s118, %s119
      %p121 = scmp.eq.s32.totalorder %s120, 0
      %s123 = sadd.s32 %s122, 1
      %s124 = scalar_select %p121, %s122, %s123
      %p127 = pneg %p121
      %p128 = scmp.eq.s32.totalorder %s9, 17
      %p129 = por %p127, %p128
      %p130 = scmp.ne.s32.totalorder %s122, %s125
      %p131 = scmp.eq.s32.totalorder %s9, 0
      %p132 = por %p130, %p131
      %p133 = scmp.ne.s32.totalorder %s122, %s125
      %p134 = scmp.eq.s32.totalorder %s14, 17
      %p135 = por %p133, %p134
      %p136 = scmp.ne.s32.totalorder %s125, %s126
      %p137 = scmp.eq.s32.totalorder %s14, 0
      %p138 = por %p136, %p137
      %p139 = scmp.ne.s32.totalorder %s125, %s126
      %p140 = scmp.eq.s32.totalorder %s15, 17
      %p141 = por %p139, %p140
      %p143 = scmp.ne.s32.totalorder %s126, %s142
      %p144 = scmp.eq.s32.totalorder %s15, 0
      %p145 = por %p143, %p144
      %p146 = scmp.le.s32.totalorder 1, %s9
      %p147 = scmp.lt.s32.totalorder %s9, 19
      %p148 = pnand %p146, %p147
      %p149 = pneg %p148
      // Predicated region
      $region9: #{cspdarknet_tiny_forward.30} parent=5 // pred_check
        _
      $region10: #{cspdarknet_tiny_forward.30} parent=5 // pred_check_branch
        %151 = sbr.rel (%p148) target = $region12
      $region11: #{cspdarknet_tiny_forward.30} parent=5 // pred_region
        %s152 = ssub.s32 %s9, 1
      $region12: #{cspdarknet_tiny_forward.30} parent=5 // pred_fallthru
        _
      %p153 = scmp.lt.s32.totalorder %s9, 18
      // Predicated region
      $region13: #{cspdarknet_tiny_forward.30} parent=5 // pred_check
        %p154 = pneg %p153
      $region14: #{cspdarknet_tiny_forward.30} parent=5 // pred_check_branch
        %156 = sbr.rel (%p154) target = $region16
      $region15: #{cspdarknet_tiny_forward.30} parent=5 // pred_region
        // Predicated region
        $region17: #{cspdarknet_tiny_forward.30} parent=15 // pred_check
          %p157 = pneg %p50
        $region18: #{cspdarknet_tiny_forward.30} parent=15 // pred_check_branch
          %159 = sbr.rel (%p157) target = $region20
        $region19: #{cspdarknet_tiny_forward.30} parent=15 // pred_region
          %s160 = smul.u32 4, %s18
          %p161 = scmp.lt.s32.totalorder %s16, 0
          %s162 = scalar_select %p161, %s16, 0
          %p163 = scmp.lt.s32.totalorder %s160, 35
          %s164 = scalar_select %p163, %s160, 35
          %s165 = smul.addr %s162, 36
          %s166 = sadd.s32 %s164, %s165
          %s167 = smul.addr %s166, 4
          %s168 = scalar_lea.vmem %s0, %s167
          %s169 = smul.u32 4, %s18
        $region20: #{cspdarknet_tiny_forward.30} parent=15 // pred_fallthru
          _
        // Predicated region
        $region21: #{cspdarknet_tiny_forward.30} parent=15 // pred_check
          %p170 = pneg %p78
        $region22: #{cspdarknet_tiny_forward.30} parent=15 // pred_check_branch
          %172 = sbr.rel (%p170) target = $region24
        $region23: #{cspdarknet_tiny_forward.30} parent=15 // pred_region
          %s173 = sand.u32 %s68, 1
          %s174 = sand.u32 %s68, 1
          %s175 = smul.addr %s174, 512
          %s176 = scalar_lea.vmem [#allocation3], %s175
          %s177 = smul.u32 64, %s18
          %s178 = smul.u32 2, %s17
          %s179 = smul.addr %s177, 4
          %s180 = sadd.s32 %s178, %s179
          %s181 = smul.addr %s180, 4
          %s182 = scalar_lea.vmem %s1, %s181
          // Predicated region
          $region25: #{cspdarknet_tiny_forward.30} parent=23 // pred_check
            _
          $region26: #{cspdarknet_tiny_forward.30} parent=23 // pred_check_branch
            %184 = sbr.rel (0) target = $region28
          $region27: #{cspdarknet_tiny_forward.30} parent=23 // pred_region
            // Predicated region
            $region29: #{cspdarknet_tiny_forward.30} parent=27 // pred_check
              _
            $region30: #{cspdarknet_tiny_forward.30} parent=27 // pred_check_branch
              %186 = sbr.rel (0) target = $region32
            $region31: #{cspdarknet_tiny_forward.30} parent=27 // pred_region
              // Predicated region
              $region44: #{cspdarknet_tiny_forward.30} parent=31 // pred_check
                _
              $region45: #{cspdarknet_tiny_forward.30} parent=31 // pred_check_branch
                %327 = sbr.rel (0) target = $region47
              $region46: #{cspdarknet_tiny_forward.30} parent=31 // pred_region
                loop: start=0, step=1, limit=1
                $region48: #{cspdarknet_tiny_forward.30} parent=46 // loop_pre_header
                  _
                $region49: #{cspdarknet_tiny_forward.30} parent=46 // loop_header
                  %s329 = sphi 0, %s333
                  %p330 = scmp.ge.s32.totalorder %s329, 1
                  %s334 = sphi %s182, %s182
                  %s335 = sphi %s176, %s176
                $region50: #{cspdarknet_tiny_forward.30} parent=46 // loop_header_branch
                  %332 = sbr.rel (%p330) target = $region54
                $region51: #{cspdarknet_tiny_forward.30} parent=46 // loop_body
                  %v336 = vld [vmem:[%s334] sm:$0xff]
                  %337 = vst [vmem:[%s335] sm:$0xff] %v336
                  %v338 = vld [vmem:[%s334 + $0x10] sm:$0xff]
                  %339 = vst [vmem:[%s335 + $0x8] sm:$0xff] %v338
                  %v340 = vld [vmem:[%s334 + $0x20] sm:$0xff]
                  %341 = vst [vmem:[%s335 + $0x10] sm:$0xff] %v340
                  %v342 = vld [vmem:[%s334 + $0x30] sm:$0xff]
                  %343 = vst [vmem:[%s335 + $0x18] sm:$0xff] %v342
                  %v344 = vld [vmem:[%s334 + $0x40] sm:$0xff]
                  %345 = vst [vmem:[%s335 + $0x20] sm:$0xff] %v344
                  %v346 = vld [vmem:[%s334 + $0x50] sm:$0xff]
                  %347 = vst [vmem:[%s335 + $0x28] sm:$0xff] %v346
                  %v348 = vld [vmem:[%s334 + $0x60] sm:$0xff]
                  %349 = vst [vmem:[%s335 + $0x30] sm:$0xff] %v348
                  %v350 = vld [vmem:[%s334 + $0x70] sm:$0xff]
                  %351 = vst [vmem:[%s335 + $0x38] sm:$0xff] %v350
                  %v352 = vld [vmem:[%s334 + $0x80] sm:$0xff]
                  %353 = vst [vmem:[%s335 + $0x40] sm:$0xff] %v352
                  %v354 = vld [vmem:[%s334 + $0x90] sm:$0xff]
                  %355 = vst [vmem:[%s335 + $0x48] sm:$0xff] %v354
                  %v356 = vld [vmem:[%s334 + $0xa0] sm:$0xff]
                  %357 = vst [vmem:[%s335 + $0x50] sm:$0xff] %v356
                  %v358 = vld [vmem:[%s334 + $0xb0] sm:$0xff]
                  %359 = vst [vmem:[%s335 + $0x58] sm:$0xff] %v358
                  %v360 = vld [vmem:[%s334 + $0xc0] sm:$0xff]
                  %361 = vst [vmem:[%s335 + $0x60] sm:$0xff] %v360
                  %v362 = vld [vmem:[%s334 + $0xd0] sm:$0xff]
                  %363 = vst [vmem:[%s335 + $0x68] sm:$0xff] %v362
                  %v364 = vld [vmem:[%s334 + $0xe0] sm:$0xff]
                  %365 = vst [vmem:[%s335 + $0x70] sm:$0xff] %v364
                  %v366 = vld [vmem:[%s334 + $0xf0] sm:$0xff]
                  %367 = vst [vmem:[%s335 + $0x78] sm:$0xff] %v366
                  %v368 = vld [vmem:[%s334 + $0x100] sm:$0xff]
                  %369 = vst [vmem:[%s335 + $0x80] sm:$0xff] %v368
                  %v370 = vld [vmem:[%s334 + $0x110] sm:$0xff]
                  %371 = vst [vmem:[%s335 + $0x88] sm:$0xff] %v370
                  %v372 = vld [vmem:[%s334 + $0x120] sm:$0xff]
                  %373 = vst [vmem:[%s335 + $0x90] sm:$0xff] %v372
                  %v374 = vld [vmem:[%s334 + $0x130] sm:$0xff]
                  %375 = vst [vmem:[%s335 + $0x98] sm:$0xff] %v374
                  %v376 = vld [vmem:[%s334 + $0x140] sm:$0xff]
                  %377 = vst [vmem:[%s335 + $0xa0] sm:$0xff] %v376
                  %v378 = vld [vmem:[%s334 + $0x150] sm:$0xff]
                  %379 = vst [vmem:[%s335 + $0xa8] sm:$0xff] %v378
                  %v380 = vld [vmem:[%s334 + $0x160] sm:$0xff]
                  %381 = vst [vmem:[%s335 + $0xb0] sm:$0xff] %v380
                  %v382 = vld [vmem:[%s334 + $0x170] sm:$0xff]
                  %383 = vst [vmem:[%s335 + $0xb8] sm:$0xff] %v382
                  %v384 = vld [vmem:[%s334 + $0x180] sm:$0xff]
                  %385 = vst [vmem:[%s335 + $0xc0] sm:$0xff] %v384
                  %v386 = vld [vmem:[%s334 + $0x190] sm:$0xff]
                  %387 = vst [vmem:[%s335 + $0xc8] sm:$0xff] %v386
                  %v388 = vld [vmem:[%s334 + $0x1a0] sm:$0xff]
                  %389 = vst [vmem:[%s335 + $0xd0] sm:$0xff] %v388
                  %v390 = vld [vmem:[%s334 + $0x1b0] sm:$0xff]
                  %391 = vst [vmem:[%s335 + $0xd8] sm:$0xff] %v390
                  %v392 = vld [vmem:[%s334 + $0x1c0] sm:$0xff]
                  %393 = vst [vmem:[%s335 + $0xe0] sm:$0xff] %v392
                  %v394 = vld [vmem:[%s334 + $0x1d0] sm:$0xff]
                  %395 = vst [vmem:[%s335 + $0xe8] sm:$0xff] %v394
                  %v396 = vld [vmem:[%s334 + $0x1e0] sm:$0xff]
                  %397 = vst [vmem:[%s335 + $0xf0] sm:$0xff] %v396
                  %v398 = vld [vmem:[%s334 + $0x1f0] sm:$0xff]
                  %399 = vst [vmem:[%s335 + $0xf8] sm:$0xff] %v398
                  %v400 = vld [vmem:[%s334 + $0x200] sm:$0xff]
                  %401 = vst [vmem:[%s335 + $0x100] sm:$0xff] %v400
                  %v402 = vld [vmem:[%s334 + $0x210] sm:$0xff]
                  %403 = vst [vmem:[%s335 + $0x108] sm:$0xff] %v402
                  %v404 = vld [vmem:[%s334 + $0x220] sm:$0xff]
                  %405 = vst [vmem:[%s335 + $0x110] sm:$0xff] %v404
                  %v406 = vld [vmem:[%s334 + $0x230] sm:$0xff]
                  %407 = vst [vmem:[%s335 + $0x118] sm:$0xff] %v406
                  %v408 = vld [vmem:[%s334 + $0x240] sm:$0xff]
                  %409 = vst [vmem:[%s335 + $0x120] sm:$0xff] %v408
                  %v410 = vld [vmem:[%s334 + $0x250] sm:$0xff]
                  %411 = vst [vmem:[%s335 + $0x128] sm:$0xff] %v410
                  %v412 = vld [vmem:[%s334 + $0x260] sm:$0xff]
                  %413 = vst [vmem:[%s335 + $0x130] sm:$0xff] %v412
                  %v414 = vld [vmem:[%s334 + $0x270] sm:$0xff]
                  %415 = vst [vmem:[%s335 + $0x138] sm:$0xff] %v414
                  %v416 = vld [vmem:[%s334 + $0x280] sm:$0xff]
                  %417 = vst [vmem:[%s335 + $0x140] sm:$0xff] %v416
                  %v418 = vld [vmem:[%s334 + $0x290] sm:$0xff]
                  %419 = vst [vmem:[%s335 + $0x148] sm:$0xff] %v418
                  %v420 = vld [vmem:[%s334 + $0x2a0] sm:$0xff]
                  %421 = vst [vmem:[%s335 + $0x150] sm:$0xff] %v420
                  %v422 = vld [vmem:[%s334 + $0x2b0] sm:$0xff]
                  %423 = vst [vmem:[%s335 + $0x158] sm:$0xff] %v422
                  %v424 = vld [vmem:[%s334 + $0x2c0] sm:$0xff]
                  %425 = vst [vmem:[%s335 + $0x160] sm:$0xff] %v424
                  %v426 = vld [vmem:[%s334 + $0x2d0] sm:$0xff]
                  %427 = vst [vmem:[%s335 + $0x168] sm:$0xff] %v426
                  %v428 = vld [vmem:[%s334 + $0x2e0] sm:$0xff]
                  %429 = vst [vmem:[%s335 + $0x170] sm:$0xff] %v428
                  %v430 = vld [vmem:[%s334 + $0x2f0] sm:$0xff]
                  %431 = vst [vmem:[%s335 + $0x178] sm:$0xff] %v430
                  %v432 = vld [vmem:[%s334 + $0x300] sm:$0xff]
                  %433 = vst [vmem:[%s335 + $0x180] sm:$0xff] %v432
                  %v434 = vld [vmem:[%s334 + $0x310] sm:$0xff]
                  %435 = vst [vmem:[%s335 + $0x188] sm:$0xff] %v434
                  %v436 = vld [vmem:[%s334 + $0x320] sm:$0xff]
                  %437 = vst [vmem:[%s335 + $0x190] sm:$0xff] %v436
                  %v438 = vld [vmem:[%s334 + $0x330] sm:$0xff]
                  %439 = vst [vmem:[%s335 + $0x198] sm:$0xff] %v438
                  %v440 = vld [vmem:[%s334 + $0x340] sm:$0xff]
                  %441 = vst [vmem:[%s335 + $0x1a0] sm:$0xff] %v440
                  %v442 = vld [vmem:[%s334 + $0x350] sm:$0xff]
                  %443 = vst [vmem:[%s335 + $0x1a8] sm:$0xff] %v442
                  %v444 = vld [vmem:[%s334 + $0x360] sm:$0xff]
                  %445 = vst [vmem:[%s335 + $0x1b0] sm:$0xff] %v444
                  %v446 = vld [vmem:[%s334 + $0x370] sm:$0xff]
                  %447 = vst [vmem:[%s335 + $0x1b8] sm:$0xff] %v446
                  %v448 = vld [vmem:[%s334 + $0x380] sm:$0xff]
                  %449 = vst [vmem:[%s335 + $0x1c0] sm:$0xff] %v448
                  %v450 = vld [vmem:[%s334 + $0x390] sm:$0xff]
                  %451 = vst [vmem:[%s335 + $0x1c8] sm:$0xff] %v450
                  %v452 = vld [vmem:[%s334 + $0x3a0] sm:$0xff]
                  %453 = vst [vmem:[%s335 + $0x1d0] sm:$0xff] %v452
                  %v454 = vld [vmem:[%s334 + $0x3b0] sm:$0xff]
                  %455 = vst [vmem:[%s335 + $0x1d8] sm:$0xff] %v454
                  %v456 = vld [vmem:[%s334 + $0x3c0] sm:$0xff]
                  %457 = vst [vmem:[%s335 + $0x1e0] sm:$0xff] %v456
                  %v458 = vld [vmem:[%s334 + $0x3d0] sm:$0xff]
                  %459 = vst [vmem:[%s335 + $0x1e8] sm:$0xff] %v458
                  %v460 = vld [vmem:[%s334 + $0x3e0] sm:$0xff]
                  %461 = vst [vmem:[%s335 + $0x1f0] sm:$0xff] %v460
                  %v462 = vld [vmem:[%s334 + $0x3f0] sm:$0xff]
                  %463 = vst [vmem:[%s335 + $0x1f8] sm:$0xff] %v462
                $region52: #{cspdarknet_tiny_forward.30} parent=46 // loop_footer
                  %s333 = sadd.s32 1, %s329
                $region53: #{cspdarknet_tiny_forward.30} parent=46 // loop_footer_branch
                  %328 = sbr.rel target = $region49
                $region54: #{cspdarknet_tiny_forward.30} parent=46 // loop_exit
                  _
              $region47: #{cspdarknet_tiny_forward.30} parent=31 // pred_fallthru
                _
              // Predicated region
              $region55: #{cspdarknet_tiny_forward.30} parent=31 // pred_check
                _
              $region56: #{cspdarknet_tiny_forward.30} parent=31 // pred_check_branch
                %465 = sbr.rel target = $region58
              $region57: #{cspdarknet_tiny_forward.30} parent=31 // pred_region
                _
              $region58: #{cspdarknet_tiny_forward.30} parent=31 // pred_fallthru
                _
            $region32: #{cspdarknet_tiny_forward.30} parent=27 // pred_fallthru
              _
            // Predicated region
            $region33: #{cspdarknet_tiny_forward.30} parent=27 // pred_check
              _
            $region34: #{cspdarknet_tiny_forward.30} parent=27 // pred_check_branch
              %188 = sbr.rel target = $region36
            $region35: #{cspdarknet_tiny_forward.30} parent=27 // pred_region
              loop: start=0, step=1, limit=1
              $region37: #{cspdarknet_tiny_forward.30} parent=35 // loop_pre_header
                _
              $region38: #{cspdarknet_tiny_forward.30} parent=35 // loop_header
                %s191 = sphi 0, %s195
                %p192 = scmp.ge.s32.totalorder %s191, 1
                %s196 = sphi %s182, %s182
                %s197 = sphi %s176, %s176
              $region39: #{cspdarknet_tiny_forward.30} parent=35 // loop_header_branch
                %194 = sbr.rel (%p192) target = $region43
              $region40: #{cspdarknet_tiny_forward.30} parent=35 // loop_body
                %v198 = vld [vmem:[%s196] sm:$0xff]
                %199 = vst [vmem:[%s197] sm:$0xff] %v198
                %v200 = vld [vmem:[%s196 + $0x10] sm:$0xff]
                %201 = vst [vmem:[%s197 + $0x8] sm:$0xff] %v200
                %v202 = vld [vmem:[%s196 + $0x20] sm:$0xff]
                %203 = vst [vmem:[%s197 + $0x10] sm:$0xff] %v202
                %v204 = vld [vmem:[%s196 + $0x30] sm:$0xff]
                %205 = vst [vmem:[%s197 + $0x18] sm:$0xff] %v204
                %v206 = vld [vmem:[%s196 + $0x40] sm:$0xff]
                %207 = vst [vmem:[%s197 + $0x20] sm:$0xff] %v206
                %v208 = vld [vmem:[%s196 + $0x50] sm:$0xff]
                %209 = vst [vmem:[%s197 + $0x28] sm:$0xff] %v208
                %v210 = vld [vmem:[%s196 + $0x60] sm:$0xff]
                %211 = vst [vmem:[%s197 + $0x30] sm:$0xff] %v210
                %v212 = vld [vmem:[%s196 + $0x70] sm:$0xff]
                %213 = vst [vmem:[%s197 + $0x38] sm:$0xff] %v212
                %v214 = vld [vmem:[%s196 + $0x80] sm:$0xff]
                %215 = vst [vmem:[%s197 + $0x40] sm:$0xff] %v214
                %v216 = vld [vmem:[%s196 + $0x90] sm:$0xff]
                %217 = vst [vmem:[%s197 + $0x48] sm:$0xff] %v216
                %v218 = vld [vmem:[%s196 + $0xa0] sm:$0xff]
                %219 = vst [vmem:[%s197 + $0x50] sm:$0xff] %v218
                %v220 = vld [vmem:[%s196 + $0xb0] sm:$0xff]
                %221 = vst [vmem:[%s197 + $0x58] sm:$0xff] %v220
                %v222 = vld [vmem:[%s196 + $0xc0] sm:$0xff]
                %223 = vst [vmem:[%s197 + $0x60] sm:$0xff] %v222
                %v224 = vld [vmem:[%s196 + $0xd0] sm:$0xff]
                %225 = vst [vmem:[%s197 + $0x68] sm:$0xff] %v224
                %v226 = vld [vmem:[%s196 + $0xe0] sm:$0xff]
                %227 = vst [vmem:[%s197 + $0x70] sm:$0xff] %v226
                %v228 = vld [vmem:[%s196 + $0xf0] sm:$0xff]
                %229 = vst [vmem:[%s197 + $0x78] sm:$0xff] %v228
                %v230 = vld [vmem:[%s196 + $0x100] sm:$0xff]
                %231 = vst [vmem:[%s197 + $0x80] sm:$0xff] %v230
                %v232 = vld [vmem:[%s196 + $0x110] sm:$0xff]
                %233 = vst [vmem:[%s197 + $0x88] sm:$0xff] %v232
                %v234 = vld [vmem:[%s196 + $0x120] sm:$0xff]
                %235 = vst [vmem:[%s197 + $0x90] sm:$0xff] %v234
                %v236 = vld [vmem:[%s196 + $0x130] sm:$0xff]
                %237 = vst [vmem:[%s197 + $0x98] sm:$0xff] %v236
                %v238 = vld [vmem:[%s196 + $0x140] sm:$0xff]
                %239 = vst [vmem:[%s197 + $0xa0] sm:$0xff] %v238
                %v240 = vld [vmem:[%s196 + $0x150] sm:$0xff]
                %241 = vst [vmem:[%s197 + $0xa8] sm:$0xff] %v240
                %v242 = vld [vmem:[%s196 + $0x160] sm:$0xff]
                %243 = vst [vmem:[%s197 + $0xb0] sm:$0xff] %v242
                %v244 = vld [vmem:[%s196 + $0x170] sm:$0xff]
                %245 = vst [vmem:[%s197 + $0xb8] sm:$0xff] %v244
                %v246 = vld [vmem:[%s196 + $0x180] sm:$0xff]
                %247 = vst [vmem:[%s197 + $0xc0] sm:$0xff] %v246
                %v248 = vld [vmem:[%s196 + $0x190] sm:$0xff]
                %249 = vst [vmem:[%s197 + $0xc8] sm:$0xff] %v248
                %v250 = vld [vmem:[%s196 + $0x1a0] sm:$0xff]
                %251 = vst [vmem:[%s197 + $0xd0] sm:$0xff] %v250
                %v252 = vld [vmem:[%s196 + $0x1b0] sm:$0xff]
                %253 = vst [vmem:[%s197 + $0xd8] sm:$0xff] %v252
                %v254 = vld [vmem:[%s196 + $0x1c0] sm:$0xff]
                %255 = vst [vmem:[%s197 + $0xe0] sm:$0xff] %v254
                %v256 = vld [vmem:[%s196 + $0x1d0] sm:$0xff]
                %257 = vst [vmem:[%s197 + $0xe8] sm:$0xff] %v256
                %v258 = vld [vmem:[%s196 + $0x1e0] sm:$0xff]
                %259 = vst [vmem:[%s197 + $0xf0] sm:$0xff] %v258
                %v260 = vld [vmem:[%s196 + $0x1f0] sm:$0xff]
                %261 = vst [vmem:[%s197 + $0xf8] sm:$0xff] %v260
                %v262 = vld [vmem:[%s196 + $0x200] sm:$0xff]
                %263 = vst [vmem:[%s197 + $0x100] sm:$0xff] %v262
                %v264 = vld [vmem:[%s196 + $0x210] sm:$0xff]
                %265 = vst [vmem:[%s197 + $0x108] sm:$0xff] %v264
                %v266 = vld [vmem:[%s196 + $0x220] sm:$0xff]
                %267 = vst [vmem:[%s197 + $0x110] sm:$0xff] %v266
                %v268 = vld [vmem:[%s196 + $0x230] sm:$0xff]
                %269 = vst [vmem:[%s197 + $0x118] sm:$0xff] %v268
                %v270 = vld [vmem:[%s196 + $0x240] sm:$0xff]
                %271 = vst [vmem:[%s197 + $0x120] sm:$0xff] %v270
                %v272 = vld [vmem:[%s196 + $0x250] sm:$0xff]
                %273 = vst [vmem:[%s197 + $0x128] sm:$0xff] %v272
                %v274 = vld [vmem:[%s196 + $0x260] sm:$0xff]
                %275 = vst [vmem:[%s197 + $0x130] sm:$0xff] %v274
                %v276 = vld [vmem:[%s196 + $0x270] sm:$0xff]
                %277 = vst [vmem:[%s197 + $0x138] sm:$0xff] %v276
                %v278 = vld [vmem:[%s196 + $0x280] sm:$0xff]
                %279 = vst [vmem:[%s197 + $0x140] sm:$0xff] %v278
                %v280 = vld [vmem:[%s196 + $0x290] sm:$0xff]
                %281 = vst [vmem:[%s197 + $0x148] sm:$0xff] %v280
                %v282 = vld [vmem:[%s196 + $0x2a0] sm:$0xff]
                %283 = vst [vmem:[%s197 + $0x150] sm:$0xff] %v282
                %v284 = vld [vmem:[%s196 + $0x2b0] sm:$0xff]
                %285 = vst [vmem:[%s197 + $0x158] sm:$0xff] %v284
                %v286 = vld [vmem:[%s196 + $0x2c0] sm:$0xff]
                %287 = vst [vmem:[%s197 + $0x160] sm:$0xff] %v286
                %v288 = vld [vmem:[%s196 + $0x2d0] sm:$0xff]
                %289 = vst [vmem:[%s197 + $0x168] sm:$0xff] %v288
                %v290 = vld [vmem:[%s196 + $0x2e0] sm:$0xff]
                %291 = vst [vmem:[%s197 + $0x170] sm:$0xff] %v290
                %v292 = vld [vmem:[%s196 + $0x2f0] sm:$0xff]
                %293 = vst [vmem:[%s197 + $0x178] sm:$0xff] %v292
                %v294 = vld [vmem:[%s196 + $0x300] sm:$0xff]
                %295 = vst [vmem:[%s197 + $0x180] sm:$0xff] %v294
                %v296 = vld [vmem:[%s196 + $0x310] sm:$0xff]
                %297 = vst [vmem:[%s197 + $0x188] sm:$0xff] %v296
                %v298 = vld [vmem:[%s196 + $0x320] sm:$0xff]
                %299 = vst [vmem:[%s197 + $0x190] sm:$0xff] %v298
                %v300 = vld [vmem:[%s196 + $0x330] sm:$0xff]
                %301 = vst [vmem:[%s197 + $0x198] sm:$0xff] %v300
                %v302 = vld [vmem:[%s196 + $0x340] sm:$0xff]
                %303 = vst [vmem:[%s197 + $0x1a0] sm:$0xff] %v302
                %v304 = vld [vmem:[%s196 + $0x350] sm:$0xff]
                %305 = vst [vmem:[%s197 + $0x1a8] sm:$0xff] %v304
                %v306 = vld [vmem:[%s196 + $0x360] sm:$0xff]
                %307 = vst [vmem:[%s197 + $0x1b0] sm:$0xff] %v306
                %v308 = vld [vmem:[%s196 + $0x370] sm:$0xff]
                %309 = vst [vmem:[%s197 + $0x1b8] sm:$0xff] %v308
                %v310 = vld [vmem:[%s196 + $0x380] sm:$0xff]
                %311 = vst [vmem:[%s197 + $0x1c0] sm:$0xff] %v310
                %v312 = vld [vmem:[%s196 + $0x390] sm:$0xff]
                %313 = vst [vmem:[%s197 + $0x1c8] sm:$0xff] %v312
                %v314 = vld [vmem:[%s196 + $0x3a0] sm:$0xff]
                %315 = vst [vmem:[%s197 + $0x1d0] sm:$0xff] %v314
                %v316 = vld [vmem:[%s196 + $0x3b0] sm:$0xff]
                %317 = vst [vmem:[%s197 + $0x1d8] sm:$0xff] %v316
                %v318 = vld [vmem:[%s196 + $0x3c0] sm:$0xff]
                %319 = vst [vmem:[%s197 + $0x1e0] sm:$0xff] %v318
                %v320 = vld [vmem:[%s196 + $0x3d0] sm:$0xff]
                %321 = vst [vmem:[%s197 + $0x1e8] sm:$0xff] %v320
                %v322 = vld [vmem:[%s196 + $0x3e0] sm:$0xff]
                %323 = vst [vmem:[%s197 + $0x1f0] sm:$0xff] %v322
                %v324 = vld [vmem:[%s196 + $0x3f0] sm:$0xff]
                %325 = vst [vmem:[%s197 + $0x1f8] sm:$0xff] %v324
              $region41: #{cspdarknet_tiny_forward.30} parent=35 // loop_footer
                %s195 = sadd.s32 1, %s191
              $region42: #{cspdarknet_tiny_forward.30} parent=35 // loop_footer_branch
                %190 = sbr.rel target = $region38
              $region43: #{cspdarknet_tiny_forward.30} parent=35 // loop_exit
                _
            $region36: #{cspdarknet_tiny_forward.30} parent=27 // pred_fallthru
              _
          $region28: #{cspdarknet_tiny_forward.30} parent=23 // pred_fallthru
            _
          %466 = vnop
        $region24: #{cspdarknet_tiny_forward.30} parent=15 // pred_fallthru
          _
        // Predicated region
        $region59: #{cspdarknet_tiny_forward.30} parent=15 // pred_check
          %p467 = pneg %p104
        $region60: #{cspdarknet_tiny_forward.30} parent=15 // pred_check_branch
          %469 = sbr.rel (%p467) target = $region62
        $region61: #{cspdarknet_tiny_forward.30} parent=15 // pred_region
          %s470 = smul.u32 2, %s17
          %p471 = scmp.lt.s32.totalorder %s470, 3
          %s472 = scalar_select %p471, %s470, 3
          %s473 = scalar_lea.vmem %s2, %s472
          %s474 = smul.u32 2, %s17
        $region62: #{cspdarknet_tiny_forward.30} parent=15 // pred_fallthru
          _
      $region16: #{cspdarknet_tiny_forward.30} parent=5 // pred_fallthru
        _
      %p475 = scmp.le.s32.totalorder 1, %s9
      %p476 = scmp.lt.s32.totalorder %s9, 19
      %p477 = pnand %p475, %p476
      %p478 = pneg %p477
      // Predicated region
      $region63: #{cspdarknet_tiny_forward.30} parent=5 // pred_check
        _
      $region64: #{cspdarknet_tiny_forward.30} parent=5 // pred_check_branch
        %480 = sbr.rel (%p477) target = $region66
      $region65: #{cspdarknet_tiny_forward.30} parent=5 // pred_region
        %s481 = ssub.s32 %s9, 1
        %s482 = sand.u32 %s71, 1
        %s483 = sand.u32 %s71, 1
        %s484 = smul.addr %s483, 512
        %s485 = scalar_lea.vmem [#allocation3], %s484
        // Predicated region
        $region67: #{cspdarknet_tiny_forward.30} parent=65 // pred_check
          %p486 = pneg %p84
        $region68: #{cspdarknet_tiny_forward.30} parent=65 // pred_check_branch
          %488 = sbr.rel (%p486) target = $region70
        $region69: #{cspdarknet_tiny_forward.30} parent=65 // pred_region
          _
        $region70: #{cspdarknet_tiny_forward.30} parent=65 // pred_fallthru
          _
        %s489 = smul.u32 4, %s21
        %p490 = scmp.lt.s32.totalorder %s19, 0
        %s491 = scalar_select %p490, %s19, 0
        %p492 = scmp.lt.s32.totalorder %s489, 35
        %s493 = scalar_select %p492, %s489, 35
        %s494 = smul.addr %s491, 36
        %s495 = sadd.s32 %s493, %s494
        %s496 = smul.addr %s495, 4
        %s497 = scalar_lea.vmem %s0, %s496
        %p498 = pneg %p56
        %p499 = pneg %p53
        %s500 = sand.u32 %s71, 1
        %s501 = sand.u32 %s71, 1
        %s502 = smul.addr %s501, 512
        %s503 = scalar_lea.vmem [#allocation3], %s502
        %p504 = pneg %p84
        %p505 = pneg %p81
        %s506 = smul.u32 2, %s20
        %p507 = scmp.lt.s32.totalorder %s506, 3
        %s508 = scalar_select %p507, %s506, 3
        %s509 = scalar_lea.vmem %s2, %s508
        %p510 = pneg %p110
        %p511 = pneg %p107
        %p512 = pneg %p138
        %p513 = pneg %p135
        %s514 = smul.u32 2, %s20
        %p515 = scmp.lt.s32.totalorder %s19, 0
        %s516 = scalar_select %p515, %s19, 0
        %p517 = scmp.lt.s32.totalorder %s514, 3
        %s518 = scalar_select %p517, %s514, 3
        %s519 = smul.addr %s516, 4
        %s520 = sadd.s32 %s518, %s519
        %s521 = smul.addr %s520, 4
        %s522 = scalar_lea.vmem %s3, %s521
        %s523 = smul.u32 4, %s21
        %p524 = scmp.lt.s32.totalorder %s19, 0
        %s525 = scalar_select %p524, %s19, 0
        %p526 = scmp.lt.s32.totalorder %s523, 35
        %s527 = scalar_select %p526, %s523, 35
        %s528 = smul.addr %s525, 36
        %s529 = sadd.s32 %s527, %s528
        %s530 = smul.addr %s529, 4
        %s531 = scalar_lea.vmem %s0, %s530
        %s532 = smul.u32 4, %s21
        %s533 = smul.u32 64, %s21
        %s534 = smul.u32 2, %s20
        %s535 = smul.u32 2, %s20
        %p536 = scmp.lt.s32.totalorder %s535, 3
        %s537 = scalar_select %p536, %s535, 3
        %s538 = scalar_lea.vmem %s2, %s537
        %s539 = smul.u32 2, %s20
        %s540 = smul.u32 2, %s20
        %p541 = scmp.lt.s32.totalorder %s19, 0
        %s542 = scalar_select %p541, %s19, 0
        %p543 = scmp.lt.s32.totalorder %s540, 3
        %s544 = scalar_select %p543, %s540, 3
        %s545 = smul.addr %s542, 4
        %s546 = sadd.s32 %s544, %s545
        %s547 = smul.addr %s546, 4
        %s548 = scalar_lea.vmem %s3, %s547
        %s549 = smul.u32 2, %s20
        %p550 = scmp.eq.s32.totalorder %s21, 0
        // Predicated region
        $region71: #{cspdarknet_tiny_forward.30} parent=65 // pred_check
          %p551 = pneg %p550
        $region72: #{cspdarknet_tiny_forward.30} parent=65 // pred_check_branch
          %553 = sbr.rel (%p551) target = $region74
        $region73: #{cspdarknet_tiny_forward.30} parent=65 // pred_region
          %554 = vst [vmem:[#allocation2] sm:$0xff] 0.0
          %555 = vst [vmem:[#allocation2 + $0x8] sm:$0xff] 0.0
        $region74: #{cspdarknet_tiny_forward.30} parent=65 // pred_fallthru
          _
        %v556 = vld [vmem:[#allocation2] sm:$0xff]
        %v557 = vld [vmem:[#allocation2 + $0x8] sm:$0xff]
        %v558 = vld [vmem:[%s531] sm:$0xff]
        %v559 = vld [vmem:[%s531 + $0x8] sm:$0xff]
        %v560 = vld [vmem:[%s485] sm:$0xff]
        %v561 = vld [vmem:[%s485 + $0x8] sm:$0xff]
        %v562 = vld [vmem:[%s485 + $0x10] sm:$0xff]
        %v563 = vld [vmem:[%s485 + $0x18] sm:$0xff]
        %v564 = vld [vmem:[%s485 + $0x20] sm:$0xff]
        %v565 = vld [vmem:[%s485 + $0x28] sm:$0xff]
        %v566 = vld [vmem:[%s485 + $0x30] sm:$0xff]
        %v567 = vld [vmem:[%s485 + $0x38] sm:$0xff]
        %v568 = vld [vmem:[%s485 + $0x40] sm:$0xff]
        %v569 = vld [vmem:[%s485 + $0x48] sm:$0xff]
        %v570 = vld [vmem:[%s485 + $0x50] sm:$0xff]
        %v571 = vld [vmem:[%s485 + $0x58] sm:$0xff]
        %v572 = vld [vmem:[%s485 + $0x60] sm:$0xff]
        %v573 = vld [vmem:[%s485 + $0x68] sm:$0xff]
        %v574 = vld [vmem:[%s485 + $0x70] sm:$0xff]
        %v575 = vld [vmem:[%s485 + $0x78] sm:$0xff]
        %v576 = vld [vmem:[%s485 + $0x80] sm:$0xff]
        %v577 = vld [vmem:[%s485 + $0x88] sm:$0xff]
        %v578 = vld [vmem:[%s485 + $0x90] sm:$0xff]
        %v579 = vld [vmem:[%s485 + $0x98] sm:$0xff]
        %v580 = vld [vmem:[%s485 + $0xa0] sm:$0xff]
        %v581 = vld [vmem:[%s485 + $0xa8] sm:$0xff]
        %v582 = vld [vmem:[%s485 + $0xb0] sm:$0xff]
        %v583 = vld [vmem:[%s485 + $0xb8] sm:$0xff]
        %v584 = vld [vmem:[%s485 + $0xc0] sm:$0xff]
        %v585 = vld [vmem:[%s485 + $0xc8] sm:$0xff]
        %v586 = vld [vmem:[%s485 + $0xd0] sm:$0xff]
        %v587 = vld [vmem:[%s485 + $0xd8] sm:$0xff]
        %v588 = vld [vmem:[%s485 + $0xe0] sm:$0xff]
        %v589 = vld [vmem:[%s485 + $0xe8] sm:$0xff]
        %v590 = vld [vmem:[%s485 + $0xf0] sm:$0xff]
        %v591 = vld [vmem:[%s485 + $0xf8] sm:$0xff]
        %v592 = vld [vmem:[%s485 + $0x100] sm:$0xff]
        %v593 = vld [vmem:[%s485 + $0x108] sm:$0xff]
        %v594 = vld [vmem:[%s485 + $0x110] sm:$0xff]
        %v595 = vld [vmem:[%s485 + $0x118] sm:$0xff]
        %v596 = vld [vmem:[%s485 + $0x120] sm:$0xff]
        %v597 = vld [vmem:[%s485 + $0x128] sm:$0xff]
        %v598 = vld [vmem:[%s485 + $0x130] sm:$0xff]
        %v599 = vld [vmem:[%s485 + $0x138] sm:$0xff]
        %v600 = vld [vmem:[%s485 + $0x140] sm:$0xff]
        %v601 = vld [vmem:[%s485 + $0x148] sm:$0xff]
        %v602 = vld [vmem:[%s485 + $0x150] sm:$0xff]
        %v603 = vld [vmem:[%s485 + $0x158] sm:$0xff]
        %v604 = vld [vmem:[%s485 + $0x160] sm:$0xff]
        %v605 = vld [vmem:[%s485 + $0x168] sm:$0xff]
        %v606 = vld [vmem:[%s485 + $0x170] sm:$0xff]
        %v607 = vld [vmem:[%s485 + $0x178] sm:$0xff]
        %v608 = vld [vmem:[%s485 + $0x180] sm:$0xff]
        %v609 = vld [vmem:[%s485 + $0x188] sm:$0xff]
        %v610 = vld [vmem:[%s485 + $0x190] sm:$0xff]
        %v611 = vld [vmem:[%s485 + $0x198] sm:$0xff]
        %v612 = vld [vmem:[%s485 + $0x1a0] sm:$0xff]
        %v613 = vld [vmem:[%s485 + $0x1a8] sm:$0xff]
        %v614 = vld [vmem:[%s485 + $0x1b0] sm:$0xff]
        %v615 = vld [vmem:[%s485 + $0x1b8] sm:$0xff]
        %v616 = vld [vmem:[%s485 + $0x1c0] sm:$0xff]
        %v617 = vld [vmem:[%s485 + $0x1c8] sm:$0xff]
        %v618 = vld [vmem:[%s485 + $0x1d0] sm:$0xff]
        %v619 = vld [vmem:[%s485 + $0x1d8] sm:$0xff]
        %v620 = vld [vmem:[%s485 + $0x1e0] sm:$0xff]
        %v621 = vld [vmem:[%s485 + $0x1e8] sm:$0xff]
        %v622 = vld [vmem:[%s485 + $0x1f0] sm:$0xff]
        %v623 = vld [vmem:[%s485 + $0x1f8] sm:$0xff]
        %v626 = vunpack.c.l.b16 %v558
        %v627 = vunpack.c.h.b16 %v558
        %v628 = vunpack.c.l.b16 %v559
        %v629 = vunpack.c.h.b16 %v559
        %v630 = vpack.c.b16 %v626, %v626
        %v631 = vpack.c.b16 %v627, %v627
        %v632 = vpack.c.b16 %v628, %v628
        %v633 = vpack.c.b16 %v629, %v629
        %v702 = vunpack.c.l.b16 %v560
        %v703 = vunpack.c.h.b16 %v560
        %v704 = vunpack.c.l.b16 %v561
        %v705 = vunpack.c.h.b16 %v561
        %v706 = vunpack.c.l.b16 %v562
        %v707 = vunpack.c.h.b16 %v562
        %v708 = vunpack.c.l.b16 %v563
        %v709 = vunpack.c.h.b16 %v563
        %v710 = vunpack.c.l.b16 %v564
        %v711 = vunpack.c.h.b16 %v564
        %v712 = vunpack.c.l.b16 %v565
        %v713 = vunpack.c.h.b16 %v565
        %v714 = vunpack.c.l.b16 %v566
        %v715 = vunpack.c.h.b16 %v566
        %v716 = vunpack.c.l.b16 %v567
        %v717 = vunpack.c.h.b16 %v567
        %v718 = vunpack.c.l.b16 %v568
        %v719 = vunpack.c.h.b16 %v568
        %v720 = vunpack.c.l.b16 %v569
        %v721 = vunpack.c.h.b16 %v569
        %v722 = vunpack.c.l.b16 %v570
        %v723 = vunpack.c.h.b16 %v570
        %v724 = vunpack.c.l.b16 %v571
        %v725 = vunpack.c.h.b16 %v571
        %v726 = vunpack.c.l.b16 %v572
        %v727 = vunpack.c.h.b16 %v572
        %v728 = vunpack.c.l.b16 %v573
        %v729 = vunpack.c.h.b16 %v573
        %v730 = vunpack.c.l.b16 %v574
        %v731 = vunpack.c.h.b16 %v574
        %v732 = vunpack.c.l.b16 %v575
        %v733 = vunpack.c.h.b16 %v575
        %v734 = vunpack.c.l.b16 %v576
        %v735 = vunpack.c.h.b16 %v576
        %v736 = vunpack.c.l.b16 %v577
        %v737 = vunpack.c.h.b16 %v577
        %v738 = vunpack.c.l.b16 %v578
        %v739 = vunpack.c.h.b16 %v578
        %v740 = vunpack.c.l.b16 %v579
        %v741 = vunpack.c.h.b16 %v579
        %v742 = vunpack.c.l.b16 %v580
        %v743 = vunpack.c.h.b16 %v580
        %v744 = vunpack.c.l.b16 %v581
        %v745 = vunpack.c.h.b16 %v581
        %v746 = vunpack.c.l.b16 %v582
        %v747 = vunpack.c.h.b16 %v582
        %v748 = vunpack.c.l.b16 %v583
        %v749 = vunpack.c.h.b16 %v583
        %v750 = vunpack.c.l.b16 %v584
        %v751 = vunpack.c.h.b16 %v584
        %v752 = vunpack.c.l.b16 %v585
        %v753 = vunpack.c.h.b16 %v585
        %v754 = vunpack.c.l.b16 %v586
        %v755 = vunpack.c.h.b16 %v586
        %v756 = vunpack.c.l.b16 %v587
        %v757 = vunpack.c.h.b16 %v587
        %v758 = vunpack.c.l.b16 %v588
        %v759 = vunpack.c.h.b16 %v588
        %v760 = vunpack.c.l.b16 %v589
        %v761 = vunpack.c.h.b16 %v589
        %v762 = vunpack.c.l.b16 %v590
        %v763 = vunpack.c.h.b16 %v590
        %v764 = vunpack.c.l.b16 %v591
        %v765 = vunpack.c.h.b16 %v591
        %v766 = vunpack.c.l.b16 %v592
        %v767 = vunpack.c.h.b16 %v592
        %v768 = vunpack.c.l.b16 %v593
        %v769 = vunpack.c.h.b16 %v593
        %v770 = vunpack.c.l.b16 %v594
        %v771 = vunpack.c.h.b16 %v594
        %v772 = vunpack.c.l.b16 %v595
        %v773 = vunpack.c.h.b16 %v595
        %v774 = vunpack.c.l.b16 %v596
        %v775 = vunpack.c.h.b16 %v596
        %v776 = vunpack.c.l.b16 %v597
        %v777 = vunpack.c.h.b16 %v597
        %v778 = vunpack.c.l.b16 %v598
        %v779 = vunpack.c.h.b16 %v598
        %v780 = vunpack.c.l.b16 %v599
        %v781 = vunpack.c.h.b16 %v599
        %v782 = vunpack.c.l.b16 %v600
        %v783 = vunpack.c.h.b16 %v600
        %v784 = vunpack.c.l.b16 %v601
        %v785 = vunpack.c.h.b16 %v601
        %v786 = vunpack.c.l.b16 %v602
        %v787 = vunpack.c.h.b16 %v602
        %v788 = vunpack.c.l.b16 %v603
        %v789 = vunpack.c.h.b16 %v603
        %v790 = vunpack.c.l.b16 %v604
        %v791 = vunpack.c.h.b16 %v604
        %v792 = vunpack.c.l.b16 %v605
        %v793 = vunpack.c.h.b16 %v605
        %v794 = vunpack.c.l.b16 %v606
        %v795 = vunpack.c.h.b16 %v606
        %v796 = vunpack.c.l.b16 %v607
        %v797 = vunpack.c.h.b16 %v607
        %v798 = vunpack.c.l.b16 %v608
        %v799 = vunpack.c.h.b16 %v608
        %v800 = vunpack.c.l.b16 %v609
        %v801 = vunpack.c.h.b16 %v609
        %v802 = vunpack.c.l.b16 %v610
        %v803 = vunpack.c.h.b16 %v610
        %v804 = vunpack.c.l.b16 %v611
        %v805 = vunpack.c.h.b16 %v611
        %v806 = vunpack.c.l.b16 %v612
        %v807 = vunpack.c.h.b16 %v612
        %v808 = vunpack.c.l.b16 %v613
        %v809 = vunpack.c.h.b16 %v613
        %v810 = vunpack.c.l.b16 %v614
        %v811 = vunpack.c.h.b16 %v614
        %v812 = vunpack.c.l.b16 %v615
        %v813 = vunpack.c.h.b16 %v615
        %v814 = vunpack.c.l.b16 %v616
        %v815 = vunpack.c.h.b16 %v616
        %v816 = vunpack.c.l.b16 %v617
        %v817 = vunpack.c.h.b16 %v617
        %v818 = vunpack.c.l.b16 %v618
        %v819 = vunpack.c.h.b16 %v618
        %v820 = vunpack.c.l.b16 %v619
        %v821 = vunpack.c.h.b16 %v619
        %v822 = vunpack.c.l.b16 %v620
        %v823 = vunpack.c.h.b16 %v620
        %v824 = vunpack.c.l.b16 %v621
        %v825 = vunpack.c.h.b16 %v621
        %v826 = vunpack.c.l.b16 %v622
        %v827 = vunpack.c.h.b16 %v622
        %v828 = vunpack.c.l.b16 %v623
        %v829 = vunpack.c.h.b16 %v623
        %v830 = vpack.c.b16 %v704, %v702
        %v831 = vpack.c.b16 %v705, %v703
        %v832 = vpack.c.b16 %v708, %v706
        %v833 = vpack.c.b16 %v709, %v707
        %v834 = vpack.c.b16 %v712, %v710
        %v835 = vpack.c.b16 %v713, %v711
        %v836 = vpack.c.b16 %v716, %v714
        %v837 = vpack.c.b16 %v717, %v715
        %v838 = vpack.c.b16 %v720, %v718
        %v839 = vpack.c.b16 %v721, %v719
        %v840 = vpack.c.b16 %v724, %v722
        %v841 = vpack.c.b16 %v725, %v723
        %v842 = vpack.c.b16 %v728, %v726
        %v843 = vpack.c.b16 %v729, %v727
        %v844 = vpack.c.b16 %v732, %v730
        %v845 = vpack.c.b16 %v733, %v731
        %v846 = vpack.c.b16 %v736, %v734
        %v847 = vpack.c.b16 %v737, %v735
        %v848 = vpack.c.b16 %v740, %v738
        %v849 = vpack.c.b16 %v741, %v739
        %v850 = vpack.c.b16 %v744, %v742
        %v851 = vpack.c.b16 %v745, %v743
        %v852 = vpack.c.b16 %v748, %v746
        %v853 = vpack.c.b16 %v749, %v747
        %v854 = vpack.c.b16 %v752, %v750
        %v855 = vpack.c.b16 %v753, %v751
        %v856 = vpack.c.b16 %v756, %v754
        %v857 = vpack.c.b16 %v757, %v755
        %v858 = vpack.c.b16 %v760, %v758
        %v859 = vpack.c.b16 %v761, %v759
        %v860 = vpack.c.b16 %v764, %v762
        %v861 = vpack.c.b16 %v765, %v763
        %v862 = vpack.c.b16 %v768, %v766
        %v863 = vpack.c.b16 %v769, %v767
        %v864 = vpack.c.b16 %v772, %v770
        %v865 = vpack.c.b16 %v773, %v771
        %v866 = vpack.c.b16 %v776, %v774
        %v867 = vpack.c.b16 %v777, %v775
        %v868 = vpack.c.b16 %v780, %v778
        %v869 = vpack.c.b16 %v781, %v779
        %v870 = vpack.c.b16 %v784, %v782
        %v871 = vpack.c.b16 %v785, %v783
        %v872 = vpack.c.b16 %v788, %v786
        %v873 = vpack.c.b16 %v789, %v787
        %v874 = vpack.c.b16 %v792, %v790
        %v875 = vpack.c.b16 %v793, %v791
        %v876 = vpack.c.b16 %v796, %v794
        %v877 = vpack.c.b16 %v797, %v795
        %v878 = vpack.c.b16 %v800, %v798
        %v879 = vpack.c.b16 %v801, %v799
        %v880 = vpack.c.b16 %v804, %v802
        %v881 = vpack.c.b16 %v805, %v803
        %v882 = vpack.c.b16 %v808, %v806
        %v883 = vpack.c.b16 %v809, %v807
        %v884 = vpack.c.b16 %v812, %v810
        %v885 = vpack.c.b16 %v813, %v811
        %v886 = vpack.c.b16 %v816, %v814
        %v887 = vpack.c.b16 %v817, %v815
        %v888 = vpack.c.b16 %v820, %v818
        %v889 = vpack.c.b16 %v821, %v819
        %v890 = vpack.c.b16 %v824, %v822
        %v891 = vpack.c.b16 %v825, %v823
        %v892 = vpack.c.b16 %v828, %v826
        %v893 = vpack.c.b16 %v829, %v827
        %958 = vmatprep.subr.bf16.mxu0 %v831
        %959 = vmatpush1.bf16.msra.mxu0 %v830
        %960 = vmatprep.subr.bf16.mxu0 %v833
        %961 = vmatpush1.bf16.msra.mxu0 %v832
        %962 = vmatprep.subr.bf16.mxu0 %v835
        %963 = vmatpush1.bf16.msra.mxu0 %v834
        %964 = vmatprep.subr.bf16.mxu0 %v837
        %965 = vmatpush1.bf16.msra.mxu0 %v836
        %966 = vmatprep.subr.bf16.mxu0 %v839
        %967 = vmatpush1.bf16.msra.mxu0 %v838
        %968 = vmatprep.subr.bf16.mxu0 %v841
        %969 = vmatpush1.bf16.msra.mxu0 %v840
        %970 = vmatprep.subr.bf16.mxu0 %v843
        %971 = vmatpush1.bf16.msra.mxu0 %v842
        %972 = vmatprep.subr.bf16.mxu0 %v845
        %973 = vmatpush1.bf16.msra.mxu0 %v844
        %974 = vmatprep.subr.bf16.mxu0 %v847
        %975 = vmatpush1.bf16.msra.mxu0 %v846
        %976 = vmatprep.subr.bf16.mxu0 %v849
        %977 = vmatpush1.bf16.msra.mxu0 %v848
        %978 = vmatprep.subr.bf16.mxu0 %v851
        %979 = vmatpush1.bf16.msra.mxu0 %v850
        %980 = vmatprep.subr.bf16.mxu0 %v853
        %981 = vmatpush1.bf16.msra.mxu0 %v852
        %982 = vmatprep.subr.bf16.mxu0 %v855
        %983 = vmatpush1.bf16.msra.mxu0 %v854
        %984 = vmatprep.subr.bf16.mxu0 %v857
        %985 = vmatpush1.bf16.msra.mxu0 %v856
        %986 = vmatprep.subr.bf16.mxu0 %v859
        %987 = vmatpush1.bf16.msra.mxu0 %v858
        %988 = vmatprep.subr.bf16.mxu0 %v861
        %989 = vmatpush1.bf16.msra.mxu0 %v860
        %990 = vmatprep.mubr.bf16.mxu0 %v631
        %991 = vmatmul.mubr.bf16.gmra.mrb[0].mxu0 %v630
        %v992 = vpop.f32.mrb[0].mxu0
        %v993 = vadd.f32 0.0, %v992
        %v994 = vpop.f32.mrb[0].mxu0
        %v995 = vadd.f32 0.0, %v994
        %v996 = vpop.f32.mrb[0].mxu0
        %v997 = vpop.f32.mrb[0].mxu0
        %998 = vdwg.mxu0
        %999 = vmatprep.subr.bf16.mxu0 %v863
        %1000 = vmatpush1.bf16.msra.mxu0 %v862
        %1001 = vmatprep.subr.bf16.mxu0 %v865
        %1002 = vmatpush1.bf16.msra.mxu0 %v864
        %1003 = vmatprep.subr.bf16.mxu0 %v867
        %1004 = vmatpush1.bf16.msra.mxu0 %v866
        %1005 = vmatprep.subr.bf16.mxu0 %v869
        %1006 = vmatpush1.bf16.msra.mxu0 %v868
        %1007 = vmatprep.subr.bf16.mxu0 %v871
        %1008 = vmatpush1.bf16.msra.mxu0 %v870
        %1009 = vmatprep.subr.bf16.mxu0 %v873
        %1010 = vmatpush1.bf16.msra.mxu0 %v872
        %1011 = vmatprep.subr.bf16.mxu0 %v875
        %1012 = vmatpush1.bf16.msra.mxu0 %v874
        %1013 = vmatprep.subr.bf16.mxu0 %v877
        %1014 = vmatpush1.bf16.msra.mxu0 %v876
        %1015 = vmatprep.subr.bf16.mxu0 %v879
        %1016 = vmatpush1.bf16.msra.mxu0 %v878
        %1017 = vmatprep.subr.bf16.mxu0 %v881
        %1018 = vmatpush1.bf16.msra.mxu0 %v880
        %1019 = vmatprep.subr.bf16.mxu0 %v883
        %1020 = vmatpush1.bf16.msra.mxu0 %v882
        %1021 = vmatprep.subr.bf16.mxu0 %v885
        %1022 = vmatpush1.bf16.msra.mxu0 %v884
        %1023 = vmatprep.subr.bf16.mxu0 %v887
        %1024 = vmatpush1.bf16.msra.mxu0 %v886
        %1025 = vmatprep.subr.bf16.mxu0 %v889
        %1026 = vmatpush1.bf16.msra.mxu0 %v888
        %1027 = vmatprep.subr.bf16.mxu0 %v891
        %1028 = vmatpush1.bf16.msra.mxu0 %v890
        %1029 = vmatprep.subr.bf16.mxu0 %v893
        %1030 = vmatpush1.bf16.msra.mxu0 %v892
        %1031 = vmatprep.mubr.bf16.mxu0 %v633
        %1032 = vmatmul.mubr.bf16.gmra.mrb[0].mxu0 %v632
        %v1033 = vpop.f32.mrb[0].mxu0
        %v1034 = vadd.f32 %v993, %v1033
        %v1035 = vpop.f32.mrb[0].mxu0
        %v1036 = vadd.f32 %v995, %v1035
        %v1037 = vpop.f32.mrb[0].mxu0
        %v1038 = vpop.f32.mrb[0].mxu0
        %1039 = vdwg.mxu0
        %v1040 = vadd.f32 %v556, %v1034
        %v1041 = vadd.f32 %v557, %v1036
        %1042 = vst [vmem:[#allocation2] sm:$0xff] %v1040
        %1043 = vst [vmem:[#allocation2 + $0x8] sm:$0xff] %v1041
        %p1044 = scmp.eq.s32.totalorder %s21, 8
        // Predicated region
        $region75: #{cspdarknet_tiny_forward.30} parent=65 // pred_check
          %p1045 = pneg %p1044
        $region76: #{cspdarknet_tiny_forward.30} parent=65 // pred_check_branch
          %1047 = sbr.rel (%p1045) target = $region78
        $region77: #{cspdarknet_tiny_forward.30} parent=65 // pred_region
          %v1048 = vld [vmem:[#allocation2] sm:$0xff]
          %v1049 = vld [vmem:[#allocation2 + $0x8] sm:$0xff]
          %v1050 = vld [vmem:[%s538] sm:$0x3]
          %v1052 = vlaneseq
          %v1053 = vshrl.u32 %v1052, 7
          %v1054 = vsub.s32 0, %v1053
          %v1055 = vrot.slane %v1050, %v1054
          %v1056 = vlaneseq
          %v1057 = vshrl.u32 %v1056, 7
          %v1058 = vsub.s32 1, %v1057
          %v1059 = vrot.slane %v1050, %v1058
          %v1062 = vadd.f32 %v1048, %v1055
          %v1063 = vadd.f32 %v1049, %v1059
          %vm1064 = vcmp.gt.f32.partialorder %v1062, 0.0
          %vm1065 = vcmp.gt.f32.partialorder %v1063, 0.0
          %v1066 = vmul.f32 %v1062, 0.1
          %v1067 = vmul.f32 %v1063, 0.1
          %v1068 = vsel %vm1064, %v1062, %v1066
          %v1069 = vsel %vm1065, %v1063, %v1067
          %v1070 = vpack.c.bf16 %v1068, %v1068
          %v1071 = vpack.c.bf16 %v1069, %v1069
          %v1074 = vunpack.c.l.b16 %v1070
          %v1075 = vunpack.c.l.b16 %v1071
          %v1076 = vpack.c.b16 %v1075, %v1074
          %1078 = vst [vmem:[%s548] sm:$0xff] %v1076
        $region78: #{cspdarknet_tiny_forward.30} parent=65 // pred_fallthru
          _
        %s1079 = smul.u32 2, %s20
        %p1080 = scmp.lt.s32.totalorder %s19, 0
        %s1081 = scalar_select %p1080, %s19, 0
        %p1082 = scmp.lt.s32.totalorder %s1079, 3
        %s1083 = scalar_select %p1082, %s1079, 3
        %s1084 = smul.addr %s1081, 4
        %s1085 = sadd.s32 %s1083, %s1084
        %s1086 = smul.addr %s1085, 4
        %s1087 = scalar_lea.vmem %s3, %s1086
        // Predicated region
        $region79: #{cspdarknet_tiny_forward.30} parent=65 // pred_check
          %p1088 = pneg %p135
        $region80: #{cspdarknet_tiny_forward.30} parent=65 // pred_check_branch
          %1090 = sbr.rel (%p1088) target = $region82
        $region81: #{cspdarknet_tiny_forward.30} parent=65 // pred_region
          %s1091 = smul.u32 2, %s20
        $region82: #{cspdarknet_tiny_forward.30} parent=65 // pred_fallthru
          _
      $region66: #{cspdarknet_tiny_forward.30} parent=5 // pred_fallthru
        _
      %p1092 = scmp.le.s32.totalorder 2, %s9
      // Predicated region
      $region83: #{cspdarknet_tiny_forward.30} parent=5 // pred_check
        %p1093 = pneg %p1092
      $region84: #{cspdarknet_tiny_forward.30} parent=5 // pred_check_branch
        %1095 = sbr.rel (%p1093) target = $region86
      $region85: #{cspdarknet_tiny_forward.30} parent=5 // pred_region
        %s1096 = ssub.s32 %s9, 2
        // Predicated region
        $region87: #{cspdarknet_tiny_forward.30} parent=85 // pred_check
          %p1097 = pneg %p141
        $region88: #{cspdarknet_tiny_forward.30} parent=85 // pred_check_branch
          %1099 = sbr.rel (%p1097) target = $region90
        $region89: #{cspdarknet_tiny_forward.30} parent=85 // pred_region
          %s1100 = smul.u32 2, %s23
          %p1101 = scmp.lt.s32.totalorder %s22, 0
          %s1102 = scalar_select %p1101, %s22, 0
          %p1103 = scmp.lt.s32.totalorder %s1100, 3
          %s1104 = scalar_select %p1103, %s1100, 3
          %s1105 = smul.addr %s1102, 4
          %s1106 = sadd.s32 %s1104, %s1105
          %s1107 = smul.addr %s1106, 4
          %s1108 = scalar_lea.vmem %s3, %s1107
        $region90: #{cspdarknet_tiny_forward.30} parent=85 // pred_fallthru
          _
      $region86: #{cspdarknet_tiny_forward.30} parent=5 // pred_fallthru
        _
    $region6: #{cspdarknet_tiny_forward.30} parent=1 // loop_footer
      %s13 = sadd.s32 1, %s9
    $region7: #{cspdarknet_tiny_forward.30} parent=1 // loop_footer_branch
      %8 = sbr.rel target = $region3
    $region8: #{cspdarknet_tiny_forward.30} parent=1 // loop_exit
      _

// kernel: cspdarknet_tiny_forward.31
$region0: #{cspdarknet_tiny_forward.31}
  #allocation0 [shape = 'u32[]', space=smem, size = 0x4, offset = 0x4, fixed_abs, tag = 'smem constant byte address 0x4 - core index']
  #allocation1 [shape = 'u32[144,128]{1,0:T(1,128)}', space=vmem, size = 0x12000, scoped, tag = 'internal scratch']
  #allocation2 [shape = 'f32[8,1000]{1,0:T(8,128)}', space=vmem, size = 0x8000, scoped, tag = 'scratch operand']
  %s0 = inlined_call_operand.vmem [shape: bf16[8,512], index: 0, kind: input, shape index: {}]
  %s1 = inlined_call_operand.vmem [shape: bf16[512,1000], index: 1, kind: input, shape index: {}]
  %s2 = inlined_call_operand.vmem [shape: f32[1,1000], index: 2, kind: input, shape index: {}]
  %s3 = inlined_call_operand.vmem [shape: f32[8,1000], index: 3, kind: output, shape index: {}]
  %s4 = sld [smem:[#allocation0]]
  $region30: #{cspdarknet_tiny_forward.31} parent=0
    _
  %s6 = ssub.s32 1, %s4
  %s7 = scalar_select 0, %s6, %s4
  // Predicated region
  $region2: #{cspdarknet_tiny_forward.31} parent=0 // pred_check
    _
  $region3: #{cspdarknet_tiny_forward.31} parent=0 // pred_check_branch
    %9 = sbr.rel (0) target = $region5
  $region4: #{cspdarknet_tiny_forward.31} parent=0 // pred_region
    _
  $region5: #{cspdarknet_tiny_forward.31} parent=0 // pred_fallthru
    _
  // Predicated region
  $region6: #{cspdarknet_tiny_forward.31} parent=0 // pred_check
    _
  $region7: #{cspdarknet_tiny_forward.31} parent=0 // pred_check_branch
    %11 = sbr.rel (0) target = $region9
  $region8: #{cspdarknet_tiny_forward.31} parent=0 // pred_region
    _
  $region9: #{cspdarknet_tiny_forward.31} parent=0 // pred_fallthru
    _
  // Predicated region
  $region10: #{cspdarknet_tiny_forward.31} parent=0 // pred_check
    _
  $region11: #{cspdarknet_tiny_forward.31} parent=0 // pred_check_branch
    %13 = sbr.rel (0) target = $region13
  $region12: #{cspdarknet_tiny_forward.31} parent=0 // pred_region
    _
  $region13: #{cspdarknet_tiny_forward.31} parent=0 // pred_fallthru
    _
  %p14 = scmp.eq.s32.totalorder 0, 0
  // Predicated region
  $region14: #{cspdarknet_tiny_forward.31} parent=0 // pred_check
    %p15 = pneg %p14
  $region15: #{cspdarknet_tiny_forward.31} parent=0 // pred_check_branch
    %17 = sbr.rel (%p15) target = $region17
  $region16: #{cspdarknet_tiny_forward.31} parent=0 // pred_region
    %18 = vst [vmem:[#allocation2] sm:$0xff] 0.0
    %19 = vst [vmem:[#allocation2 + $0x8] sm:$0xff] 0.0
    %20 = vst [vmem:[#allocation2 + $0x10] sm:$0xff] 0.0
    %21 = vst [vmem:[#allocation2 + $0x18] sm:$0xff] 0.0
    %22 = vst [vmem:[#allocation2 + $0x20] sm:$0xff] 0.0
    %23 = vst [vmem:[#allocation2 + $0x28] sm:$0xff] 0.0
    %24 = vst [vmem:[#allocation2 + $0x30] sm:$0xff] 0.0
    %vm25 = vcmask 850944
    %26 = vst.msk [vmem:[#allocation2 + $0x38] sm:$0xff] %vm25, 0.0
  $region17: #{cspdarknet_tiny_forward.31} parent=0 // pred_fallthru
    _
  %v27 = vld [vmem:[#allocation2] sm:$0xff]
  %v28 = vld [vmem:[#allocation2 + $0x8] sm:$0xff]
  %v29 = vld [vmem:[#allocation2 + $0x10] sm:$0xff]
  %v30 = vld [vmem:[#allocation2 + $0x18] sm:$0xff]
  %v31 = vld [vmem:[#allocation2 + $0x20] sm:$0xff]
  %v32 = vld [vmem:[#allocation2 + $0x28] sm:$0xff]
  %v33 = vld [vmem:[#allocation2 + $0x30] sm:$0xff]
  %v34 = vld [vmem:[#allocation2 + $0x38] sm:$0xff]
  %v35 = vld [vmem:[%s0] sm:$0xff]
  %v36 = vld [vmem:[%s0 + $0x8] sm:$0xff]
  %v37 = vld [vmem:[%s1] sm:$0xff]
  %v38 = vld [vmem:[%s1 + $0x8] sm:$0xff]
  %v39 = vld [vmem:[%s1 + $0x10] sm:$0xff]
  %v40 = vld [vmem:[%s1 + $0x18] sm:$0xff]
  %v41 = vld [vmem:[%s1 + $0x20] sm:$0xff]
  %v42 = vld [vmem:[%s1 + $0x28] sm:$0xff]
  %v43 = vld [vmem:[%s1 + $0x30] sm:$0xff]
  %v44 = vld [vmem:[%s1 + $0x38] sm:$0xff]
  %v45 = vld [vmem:[%s1 + $0x40] sm:$0xff]
  %v46 = vld [vmem:[%s1 + $0x48] sm:$0xff]
  %v47 = vld [vmem:[%s1 + $0x50] sm:$0xff]
  %v48 = vld [vmem:[%s1 + $0x58] sm:$0xff]
  %v49 = vld [vmem:[%s1 + $0x60] sm:$0xff]
  %v50 = vld [vmem:[%s1 + $0x68] sm:$0xff]
  %v51 = vld [vmem:[%s1 + $0x70] sm:$0xff]
  %v52 = vld [vmem:[%s1 + $0x78] sm:$0xff]
  %v53 = vld [vmem:[%s1 + $0x80] sm:$0xff]
  %v54 = vld [vmem:[%s1 + $0x88] sm:$0xff]
  %v55 = vld [vmem:[%s1 + $0x90] sm:$0xff]
  %v56 = vld [vmem:[%s1 + $0x98] sm:$0xff]
  %v57 = vld [vmem:[%s1 + $0xa0] sm:$0xff]
  %v58 = vld [vmem:[%s1 + $0xa8] sm:$0xff]
  %v59 = vld [vmem:[%s1 + $0xb0] sm:$0xff]
  %v60 = vld [vmem:[%s1 + $0xb8] sm:$0xff]
  %v61 = vld [vmem:[%s1 + $0xc0] sm:$0xff]
  %v62 = vld [vmem:[%s1 + $0xc8] sm:$0xff]
  %v63 = vld [vmem:[%s1 + $0xd0] sm:$0xff]
  %v64 = vld [vmem:[%s1 + $0xd8] sm:$0xff]
  %v65 = vld [vmem:[%s1 + $0xe0] sm:$0xff]
  %v66 = vld [vmem:[%s1 + $0xe8] sm:$0xff]
  %v67 = vld [vmem:[%s1 + $0xf0] sm:$0xff]
  %v68 = vld [vmem:[%s1 + $0xf8] sm:$0xff]
  %v69 = vld [vmem:[%s1 + $0x100] sm:$0xff]
  %v70 = vld [vmem:[%s1 + $0x108] sm:$0xff]
  %v71 = vld [vmem:[%s1 + $0x110] sm:$0xff]
  %v72 = vld [vmem:[%s1 + $0x118] sm:$0xff]
  %v73 = vld [vmem:[%s1 + $0x120] sm:$0xff]
  %v74 = vld [vmem:[%s1 + $0x128] sm:$0xff]
  %v75 = vld [vmem:[%s1 + $0x130] sm:$0xff]
  %v76 = vld [vmem:[%s1 + $0x138] sm:$0xff]
  %v77 = vld [vmem:[%s1 + $0x140] sm:$0xff]
  %v78 = vld [vmem:[%s1 + $0x148] sm:$0xff]
  %v79 = vld [vmem:[%s1 + $0x150] sm:$0xff]
  %v80 = vld [vmem:[%s1 + $0x158] sm:$0xff]
  %v81 = vld [vmem:[%s1 + $0x160] sm:$0xff]
  %v82 = vld [vmem:[%s1 + $0x168] sm:$0xff]
  %v83 = vld [vmem:[%s1 + $0x170] sm:$0xff]
  %v84 = vld [vmem:[%s1 + $0x178] sm:$0xff]
  %v85 = vld [vmem:[%s1 + $0x180] sm:$0xff]
  %v86 = vld [vmem:[%s1 + $0x188] sm:$0xff]
  %v87 = vld [vmem:[%s1 + $0x190] sm:$0xff]
  %v88 = vld [vmem:[%s1 + $0x198] sm:$0xff]
  %v89 = vld [vmem:[%s1 + $0x1a0] sm:$0xff]
  %v90 = vld [vmem:[%s1 + $0x1a8] sm:$0xff]
  %v91 = vld [vmem:[%s1 + $0x1b0] sm:$0xff]
  %v92 = vld [vmem:[%s1 + $0x1b8] sm:$0xff]
  %v93 = vld [vmem:[%s1 + $0x1c0] sm:$0xff]
  %v94 = vld [vmem:[%s1 + $0x1c8] sm:$0xff]
  %v95 = vld [vmem:[%s1 + $0x1d0] sm:$0xff]
  %v96 = vld [vmem:[%s1 + $0x1d8] sm:$0xff]
  %v97 = vld [vmem:[%s1 + $0x1e0] sm:$0xff]
  %v98 = vld [vmem:[%s1 + $0x1e8] sm:$0xff]
  %v99 = vld [vmem:[%s1 + $0x1f0] sm:$0xff]
  %v100 = vld [vmem:[%s1 + $0x1f8] sm:$0xff]
  %v101 = vld [vmem:[%s1 + $0x200] sm:$0xff]
  %v102 = vld [vmem:[%s1 + $0x208] sm:$0xff]
  %v103 = vld [vmem:[%s1 + $0x210] sm:$0xff]
  %v104 = vld [vmem:[%s1 + $0x218] sm:$0xff]
  %v105 = vld [vmem:[%s1 + $0x220] sm:$0xff]
  %v106 = vld [vmem:[%s1 + $0x228] sm:$0xff]
  %v107 = vld [vmem:[%s1 + $0x230] sm:$0xff]
  %v108 = vld [vmem:[%s1 + $0x238] sm:$0xff]
  %v109 = vld [vmem:[%s1 + $0x240] sm:$0xff]
  %v110 = vld [vmem:[%s1 + $0x248] sm:$0xff]
  %v111 = vld [vmem:[%s1 + $0x250] sm:$0xff]
  %v112 = vld [vmem:[%s1 + $0x258] sm:$0xff]
  %v113 = vld [vmem:[%s1 + $0x260] sm:$0xff]
  %v114 = vld [vmem:[%s1 + $0x268] sm:$0xff]
  %v115 = vld [vmem:[%s1 + $0x270] sm:$0xff]
  %v116 = vld [vmem:[%s1 + $0x278] sm:$0xff]
  %v117 = vld [vmem:[%s1 + $0x280] sm:$0xff]
  %v118 = vld [vmem:[%s1 + $0x288] sm:$0xff]
  %v119 = vld [vmem:[%s1 + $0x290] sm:$0xff]
  %v120 = vld [vmem:[%s1 + $0x298] sm:$0xff]
  %v121 = vld [vmem:[%s1 + $0x2a0] sm:$0xff]
  %v122 = vld [vmem:[%s1 + $0x2a8] sm:$0xff]
  %v123 = vld [vmem:[%s1 + $0x2b0] sm:$0xff]
  %v124 = vld [vmem:[%s1 + $0x2b8] sm:$0xff]
  %v125 = vld [vmem:[%s1 + $0x2c0] sm:$0xff]
  %v126 = vld [vmem:[%s1 + $0x2c8] sm:$0xff]
  %v127 = vld [vmem:[%s1 + $0x2d0] sm:$0xff]
  %v128 = vld [vmem:[%s1 + $0x2d8] sm:$0xff]
  %v129 = vld [vmem:[%s1 + $0x2e0] sm:$0xff]
  %v130 = vld [vmem:[%s1 + $0x2e8] sm:$0xff]
  %v131 = vld [vmem:[%s1 + $0x2f0] sm:$0xff]
  %v132 = vld [vmem:[%s1 + $0x2f8] sm:$0xff]
  %v133 = vld [vmem:[%s1 + $0x300] sm:$0xff]
  %v134 = vld [vmem:[%s1 + $0x308] sm:$0xff]
  %v135 = vld [vmem:[%s1 + $0x310] sm:$0xff]
  %v136 = vld [vmem:[%s1 + $0x318] sm:$0xff]
  %v137 = vld [vmem:[%s1 + $0x320] sm:$0xff]
  %v138 = vld [vmem:[%s1 + $0x328] sm:$0xff]
  %v139 = vld [vmem:[%s1 + $0x330] sm:$0xff]
  %v140 = vld [vmem:[%s1 + $0x338] sm:$0xff]
  %v141 = vld [vmem:[%s1 + $0x340] sm:$0xff]
  %v142 = vld [vmem:[%s1 + $0x348] sm:$0xff]
  %v143 = vld [vmem:[%s1 + $0x350] sm:$0xff]
  %v144 = vld [vmem:[%s1 + $0x358] sm:$0xff]
  %v145 = vld [vmem:[%s1 + $0x360] sm:$0xff]
  %v146 = vld [vmem:[%s1 + $0x368] sm:$0xff]
  %v147 = vld [vmem:[%s1 + $0x370] sm:$0xff]
  %v148 = vld [vmem:[%s1 + $0x378] sm:$0xff]
  %v149 = vld [vmem:[%s1 + $0x380] sm:$0xff]
  %v150 = vld [vmem:[%s1 + $0x388] sm:$0xff]
  %v151 = vld [vmem:[%s1 + $0x390] sm:$0xff]
  %v152 = vld [vmem:[%s1 + $0x398] sm:$0xff]
  %v153 = vld [vmem:[%s1 + $0x3a0] sm:$0xff]
  %v154 = vld [vmem:[%s1 + $0x3a8] sm:$0xff]
  %v155 = vld [vmem:[%s1 + $0x3b0] sm:$0xff]
  %v156 = vld [vmem:[%s1 + $0x3b8] sm:$0xff]
  %v157 = vld [vmem:[%s1 + $0x3c0] sm:$0xff]
  %v158 = vld [vmem:[%s1 + $0x3c8] sm:$0xff]
  %v159 = vld [vmem:[%s1 + $0x3d0] sm:$0xff]
  %v160 = vld [vmem:[%s1 + $0x3d8] sm:$0xff]
  %v161 = vld [vmem:[%s1 + $0x3e0] sm:$0xff]
  %v162 = vld [vmem:[%s1 + $0x3e8] sm:$0xff]
  %v163 = vld [vmem:[%s1 + $0x3f0] sm:$0xff]
  %v164 = vld [vmem:[%s1 + $0x3f8] sm:$0xff]
  %v165 = vld [vmem:[%s1 + $0x400] sm:$0xff]
  %v166 = vld [vmem:[%s1 + $0x408] sm:$0xff]
  %v167 = vld [vmem:[%s1 + $0x410] sm:$0xff]
  %v168 = vld [vmem:[%s1 + $0x418] sm:$0xff]
  %v169 = vld [vmem:[%s1 + $0x420] sm:$0xff]
  %v170 = vld [vmem:[%s1 + $0x428] sm:$0xff]
  %v171 = vld [vmem:[%s1 + $0x430] sm:$0xff]
  %v172 = vld [vmem:[%s1 + $0x438] sm:$0xff]
  %v173 = vld [vmem:[%s1 + $0x440] sm:$0xff]
  %v174 = vld [vmem:[%s1 + $0x448] sm:$0xff]
  %v175 = vld [vmem:[%s1 + $0x450] sm:$0xff]
  %v176 = vld [vmem:[%s1 + $0x458] sm:$0xff]
  %v177 = vld [vmem:[%s1 + $0x460] sm:$0xff]
  %v178 = vld [vmem:[%s1 + $0x468] sm:$0xff]
  %v179 = vld [vmem:[%s1 + $0x470] sm:$0xff]
  %v180 = vld [vmem:[%s1 + $0x478] sm:$0xff]
  %v181 = vld [vmem:[%s1 + $0x480] sm:$0xff]
  %v182 = vld [vmem:[%s1 + $0x488] sm:$0xff]
  %v183 = vld [vmem:[%s1 + $0x490] sm:$0xff]
  %v184 = vld [vmem:[%s1 + $0x498] sm:$0xff]
  %v185 = vld [vmem:[%s1 + $0x4a0] sm:$0xff]
  %v186 = vld [vmem:[%s1 + $0x4a8] sm:$0xff]
  %v187 = vld [vmem:[%s1 + $0x4b0] sm:$0xff]
  %v188 = vld [vmem:[%s1 + $0x4b8] sm:$0xff]
  %v189 = vld [vmem:[%s1 + $0x4c0] sm:$0xff]
  %v190 = vld [vmem:[%s1 + $0x4c8] sm:$0xff]
  %v191 = vld [vmem:[%s1 + $0x4d0] sm:$0xff]
  %v192 = vld [vmem:[%s1 + $0x4d8] sm:$0xff]
  %v193 = vld [vmem:[%s1 + $0x4e0] sm:$0xff]
  %v194 = vld [vmem:[%s1 + $0x4e8] sm:$0xff]
  %v195 = vld [vmem:[%s1 + $0x4f0] sm:$0xff]
  %v196 = vld [vmem:[%s1 + $0x4f8] sm:$0xff]
  %v197 = vld [vmem:[%s1 + $0x500] sm:$0xff]
  %v198 = vld [vmem:[%s1 + $0x508] sm:$0xff]
  %v199 = vld [vmem:[%s1 + $0x510] sm:$0xff]
  %v200 = vld [vmem:[%s1 + $0x518] sm:$0xff]
  %v201 = vld [vmem:[%s1 + $0x520] sm:$0xff]
  %v202 = vld [vmem:[%s1 + $0x528] sm:$0xff]
  %v203 = vld [vmem:[%s1 + $0x530] sm:$0xff]
  %v204 = vld [vmem:[%s1 + $0x538] sm:$0xff]
  %v205 = vld [vmem:[%s1 + $0x540] sm:$0xff]
  %v206 = vld [vmem:[%s1 + $0x548] sm:$0xff]
  %v207 = vld [vmem:[%s1 + $0x550] sm:$0xff]
  %v208 = vld [vmem:[%s1 + $0x558] sm:$0xff]
  %v209 = vld [vmem:[%s1 + $0x560] sm:$0xff]
  %v210 = vld [vmem:[%s1 + $0x568] sm:$0xff]
  %v211 = vld [vmem:[%s1 + $0x570] sm:$0xff]
  %v212 = vld [vmem:[%s1 + $0x578] sm:$0xff]
  %v213 = vld [vmem:[%s1 + $0x580] sm:$0xff]
  %v214 = vld [vmem:[%s1 + $0x588] sm:$0xff]
  %v215 = vld [vmem:[%s1 + $0x590] sm:$0xff]
  %v216 = vld [vmem:[%s1 + $0x598] sm:$0xff]
  %v217 = vld [vmem:[%s1 + $0x5a0] sm:$0xff]
  %v218 = vld [vmem:[%s1 + $0x5a8] sm:$0xff]
  %v219 = vld [vmem:[%s1 + $0x5b0] sm:$0xff]
  %v220 = vld [vmem:[%s1 + $0x5b8] sm:$0xff]
  %v221 = vld [vmem:[%s1 + $0x5c0] sm:$0xff]
  %v222 = vld [vmem:[%s1 + $0x5c8] sm:$0xff]
  %v223 = vld [vmem:[%s1 + $0x5d0] sm:$0xff]
  %v224 = vld [vmem:[%s1 + $0x5d8] sm:$0xff]
  %v225 = vld [vmem:[%s1 + $0x5e0] sm:$0xff]
  %v226 = vld [vmem:[%s1 + $0x5e8] sm:$0xff]
  %v227 = vld [vmem:[%s1 + $0x5f0] sm:$0xff]
  %v228 = vld [vmem:[%s1 + $0x5f8] sm:$0xff]
  %v229 = vld [vmem:[%s1 + $0x600] sm:$0xff]
  %v230 = vld [vmem:[%s1 + $0x608] sm:$0xff]
  %v231 = vld [vmem:[%s1 + $0x610] sm:$0xff]
  %v232 = vld [vmem:[%s1 + $0x618] sm:$0xff]
  %v233 = vld [vmem:[%s1 + $0x620] sm:$0xff]
  %v234 = vld [vmem:[%s1 + $0x628] sm:$0xff]
  %v235 = vld [vmem:[%s1 + $0x630] sm:$0xff]
  %v236 = vld [vmem:[%s1 + $0x638] sm:$0xff]
  %v237 = vld [vmem:[%s1 + $0x640] sm:$0xff]
  %v238 = vld [vmem:[%s1 + $0x648] sm:$0xff]
  %v239 = vld [vmem:[%s1 + $0x650] sm:$0xff]
  %v240 = vld [vmem:[%s1 + $0x658] sm:$0xff]
  %v241 = vld [vmem:[%s1 + $0x660] sm:$0xff]
  %v242 = vld [vmem:[%s1 + $0x668] sm:$0xff]
  %v243 = vld [vmem:[%s1 + $0x670] sm:$0xff]
  %v244 = vld [vmem:[%s1 + $0x678] sm:$0xff]
  %v245 = vld [vmem:[%s1 + $0x680] sm:$0xff]
  %v246 = vld [vmem:[%s1 + $0x688] sm:$0xff]
  %v247 = vld [vmem:[%s1 + $0x690] sm:$0xff]
  %v248 = vld [vmem:[%s1 + $0x698] sm:$0xff]
  %v249 = vld [vmem:[%s1 + $0x6a0] sm:$0xff]
  %v250 = vld [vmem:[%s1 + $0x6a8] sm:$0xff]
  %v251 = vld [vmem:[%s1 + $0x6b0] sm:$0xff]
  %v252 = vld [vmem:[%s1 + $0x6b8] sm:$0xff]
  %v253 = vld [vmem:[%s1 + $0x6c0] sm:$0xff]
  %v254 = vld [vmem:[%s1 + $0x6c8] sm:$0xff]
  %v255 = vld [vmem:[%s1 + $0x6d0] sm:$0xff]
  %v256 = vld [vmem:[%s1 + $0x6d8] sm:$0xff]
  %v257 = vld [vmem:[%s1 + $0x6e0] sm:$0xff]
  %v258 = vld [vmem:[%s1 + $0x6e8] sm:$0xff]
  %v259 = vld [vmem:[%s1 + $0x6f0] sm:$0xff]
  %v260 = vld [vmem:[%s1 + $0x6f8] sm:$0xff]
  %v261 = vld [vmem:[%s1 + $0x700] sm:$0xff]
  %v262 = vld [vmem:[%s1 + $0x708] sm:$0xff]
  %v263 = vld [vmem:[%s1 + $0x710] sm:$0xff]
  %v264 = vld [vmem:[%s1 + $0x718] sm:$0xff]
  %v265 = vld [vmem:[%s1 + $0x720] sm:$0xff]
  %v266 = vld [vmem:[%s1 + $0x728] sm:$0xff]
  %v267 = vld [vmem:[%s1 + $0x730] sm:$0xff]
  %v268 = vld [vmem:[%s1 + $0x738] sm:$0xff]
  %v269 = vld [vmem:[%s1 + $0x740] sm:$0xff]
  %v270 = vld [vmem:[%s1 + $0x748] sm:$0xff]
  %v271 = vld [vmem:[%s1 + $0x750] sm:$0xff]
  %v272 = vld [vmem:[%s1 + $0x758] sm:$0xff]
  %v273 = vld [vmem:[%s1 + $0x760] sm:$0xff]
  %v274 = vld [vmem:[%s1 + $0x768] sm:$0xff]
  %v275 = vld [vmem:[%s1 + $0x770] sm:$0xff]
  %v276 = vld [vmem:[%s1 + $0x778] sm:$0xff]
  %v277 = vld [vmem:[%s1 + $0x780] sm:$0xff]
  %v278 = vld [vmem:[%s1 + $0x788] sm:$0xff]
  %v279 = vld [vmem:[%s1 + $0x790] sm:$0xff]
  %v280 = vld [vmem:[%s1 + $0x798] sm:$0xff]
  %v281 = vld [vmem:[%s1 + $0x7a0] sm:$0xff]
  %v282 = vld [vmem:[%s1 + $0x7a8] sm:$0xff]
  %v283 = vld [vmem:[%s1 + $0x7b0] sm:$0xff]
  %v284 = vld [vmem:[%s1 + $0x7b8] sm:$0xff]
  %v285 = vld [vmem:[%s1 + $0x7c0] sm:$0xff]
  %v286 = vld [vmem:[%s1 + $0x7c8] sm:$0xff]
  %v287 = vld [vmem:[%s1 + $0x7d0] sm:$0xff]
  %v288 = vld [vmem:[%s1 + $0x7d8] sm:$0xff]
  %v289 = vld [vmem:[%s1 + $0x7e0] sm:$0xff]
  %v290 = vld [vmem:[%s1 + $0x7e8] sm:$0xff]
  %v291 = vld [vmem:[%s1 + $0x7f0] sm:$0xff]
  %v292 = vld [vmem:[%s1 + $0x7f8] sm:$0xff]
  %v295 = vunpack.c.l.b16 %v35
  %v296 = vunpack.c.h.b16 %v35
  %v297 = vunpack.c.l.b16 %v36
  %v298 = vunpack.c.h.b16 %v36
  %v299 = vpack.c.b16 %v295, %v295
  %v300 = vpack.c.b16 %v296, %v296
  %v301 = vpack.c.b16 %v297, %v297
  %v302 = vpack.c.b16 %v298, %v298
  %v563 = vunpack.c.l.b16 %v37
  %v564 = vunpack.c.h.b16 %v37
  %v565 = vunpack.c.l.b16 %v38
  %v566 = vunpack.c.h.b16 %v38
  %v567 = vunpack.c.l.b16 %v39
  %v568 = vunpack.c.h.b16 %v39
  %v569 = vunpack.c.l.b16 %v40
  %v570 = vunpack.c.h.b16 %v40
  %v571 = vunpack.c.l.b16 %v41
  %v572 = vunpack.c.h.b16 %v41
  %v573 = vunpack.c.l.b16 %v42
  %v574 = vunpack.c.h.b16 %v42
  %v575 = vunpack.c.l.b16 %v43
  %v576 = vunpack.c.h.b16 %v43
  %v577 = vunpack.c.l.b16 %v44
  %v578 = vunpack.c.h.b16 %v44
  %v579 = vunpack.c.l.b16 %v45
  %v580 = vunpack.c.h.b16 %v45
  %v581 = vunpack.c.l.b16 %v46
  %v582 = vunpack.c.h.b16 %v46
  %v583 = vunpack.c.l.b16 %v47
  %v584 = vunpack.c.h.b16 %v47
  %v585 = vunpack.c.l.b16 %v48
  %v586 = vunpack.c.h.b16 %v48
  %v587 = vunpack.c.l.b16 %v49
  %v588 = vunpack.c.h.b16 %v49
  %v589 = vunpack.c.l.b16 %v50
  %v590 = vunpack.c.h.b16 %v50
  %v591 = vunpack.c.l.b16 %v51
  %v592 = vunpack.c.h.b16 %v51
  %v593 = vunpack.c.l.b16 %v52
  %v594 = vunpack.c.h.b16 %v52
  %v595 = vunpack.c.l.b16 %v53
  %v596 = vunpack.c.h.b16 %v53
  %v597 = vunpack.c.l.b16 %v54
  %v598 = vunpack.c.h.b16 %v54
  %v599 = vunpack.c.l.b16 %v55
  %v600 = vunpack.c.h.b16 %v55
  %v601 = vunpack.c.l.b16 %v56
  %v602 = vunpack.c.h.b16 %v56
  %v603 = vunpack.c.l.b16 %v57
  %v604 = vunpack.c.h.b16 %v57
  %v605 = vunpack.c.l.b16 %v58
  %v606 = vunpack.c.h.b16 %v58
  %v607 = vunpack.c.l.b16 %v59
  %v608 = vunpack.c.h.b16 %v59
  %v609 = vunpack.c.l.b16 %v60
  %v610 = vunpack.c.h.b16 %v60
  %v611 = vunpack.c.l.b16 %v61
  %v612 = vunpack.c.h.b16 %v61
  %v613 = vunpack.c.l.b16 %v62
  %v614 = vunpack.c.h.b16 %v62
  %v615 = vunpack.c.l.b16 %v63
  %v616 = vunpack.c.h.b16 %v63
  %v617 = vunpack.c.l.b16 %v64
  %v618 = vunpack.c.h.b16 %v64
  %v619 = vunpack.c.l.b16 %v65
  %v620 = vunpack.c.h.b16 %v65
  %v621 = vunpack.c.l.b16 %v66
  %v622 = vunpack.c.h.b16 %v66
  %v623 = vunpack.c.l.b16 %v67
  %v624 = vunpack.c.h.b16 %v67
  %v625 = vunpack.c.l.b16 %v68
  %v626 = vunpack.c.h.b16 %v68
  %v627 = vunpack.c.l.b16 %v69
  %v628 = vunpack.c.h.b16 %v69
  %v629 = vunpack.c.l.b16 %v70
  %v630 = vunpack.c.h.b16 %v70
  %v631 = vunpack.c.l.b16 %v71
  %v632 = vunpack.c.h.b16 %v71
  %v633 = vunpack.c.l.b16 %v72
  %v634 = vunpack.c.h.b16 %v72
  %v635 = vunpack.c.l.b16 %v73
  %v636 = vunpack.c.h.b16 %v73
  %v637 = vunpack.c.l.b16 %v74
  %v638 = vunpack.c.h.b16 %v74
  %v639 = vunpack.c.l.b16 %v75
  %v640 = vunpack.c.h.b16 %v75
  %v641 = vunpack.c.l.b16 %v76
  %v642 = vunpack.c.h.b16 %v76
  %v643 = vunpack.c.l.b16 %v77
  %v644 = vunpack.c.h.b16 %v77
  %v645 = vunpack.c.l.b16 %v78
  %v646 = vunpack.c.h.b16 %v78
  %v647 = vunpack.c.l.b16 %v79
  %v648 = vunpack.c.h.b16 %v79
  %v649 = vunpack.c.l.b16 %v80
  %v650 = vunpack.c.h.b16 %v80
  %v651 = vunpack.c.l.b16 %v81
  %v652 = vunpack.c.h.b16 %v81
  %v653 = vunpack.c.l.b16 %v82
  %v654 = vunpack.c.h.b16 %v82
  %v655 = vunpack.c.l.b16 %v83
  %v656 = vunpack.c.h.b16 %v83
  %v657 = vunpack.c.l.b16 %v84
  %v658 = vunpack.c.h.b16 %v84
  %v659 = vunpack.c.l.b16 %v85
  %v660 = vunpack.c.h.b16 %v85
  %v661 = vunpack.c.l.b16 %v86
  %v662 = vunpack.c.h.b16 %v86
  %v663 = vunpack.c.l.b16 %v87
  %v664 = vunpack.c.h.b16 %v87
  %v665 = vunpack.c.l.b16 %v88
  %v666 = vunpack.c.h.b16 %v88
  %v667 = vunpack.c.l.b16 %v89
  %v668 = vunpack.c.h.b16 %v89
  %v669 = vunpack.c.l.b16 %v90
  %v670 = vunpack.c.h.b16 %v90
  %v671 = vunpack.c.l.b16 %v91
  %v672 = vunpack.c.h.b16 %v91
  %v673 = vunpack.c.l.b16 %v92
  %v674 = vunpack.c.h.b16 %v92
  %v675 = vunpack.c.l.b16 %v93
  %v676 = vunpack.c.h.b16 %v93
  %v677 = vunpack.c.l.b16 %v94
  %v678 = vunpack.c.h.b16 %v94
  %v679 = vunpack.c.l.b16 %v95
  %v680 = vunpack.c.h.b16 %v95
  %v681 = vunpack.c.l.b16 %v96
  %v682 = vunpack.c.h.b16 %v96
  %v683 = vunpack.c.l.b16 %v97
  %v684 = vunpack.c.h.b16 %v97
  %v685 = vunpack.c.l.b16 %v98
  %v686 = vunpack.c.h.b16 %v98
  %v687 = vunpack.c.l.b16 %v99
  %v688 = vunpack.c.h.b16 %v99
  %v689 = vunpack.c.l.b16 %v100
  %v690 = vunpack.c.h.b16 %v100
  %v691 = vunpack.c.l.b16 %v101
  %v692 = vunpack.c.h.b16 %v101
  %v693 = vunpack.c.l.b16 %v102
  %v694 = vunpack.c.h.b16 %v102
  %v695 = vunpack.c.l.b16 %v103
  %v696 = vunpack.c.h.b16 %v103
  %v697 = vunpack.c.l.b16 %v104
  %v698 = vunpack.c.h.b16 %v104
  %v699 = vunpack.c.l.b16 %v105
  %v700 = vunpack.c.h.b16 %v105
  %v701 = vunpack.c.l.b16 %v106
  %v702 = vunpack.c.h.b16 %v106
  %v703 = vunpack.c.l.b16 %v107
  %v704 = vunpack.c.h.b16 %v107
  %v705 = vunpack.c.l.b16 %v108
  %v706 = vunpack.c.h.b16 %v108
  %v707 = vunpack.c.l.b16 %v109
  %v708 = vunpack.c.h.b16 %v109
  %v709 = vunpack.c.l.b16 %v110
  %v710 = vunpack.c.h.b16 %v110
  %v711 = vunpack.c.l.b16 %v111
  %v712 = vunpack.c.h.b16 %v111
  %v713 = vunpack.c.l.b16 %v112
  %v714 = vunpack.c.h.b16 %v112
  %v715 = vunpack.c.l.b16 %v113
  %v716 = vunpack.c.h.b16 %v113
  %v717 = vunpack.c.l.b16 %v114
  %v718 = vunpack.c.h.b16 %v114
  %v719 = vunpack.c.l.b16 %v115
  %v720 = vunpack.c.h.b16 %v115
  %v721 = vunpack.c.l.b16 %v116
  %v722 = vunpack.c.h.b16 %v116
  %v723 = vunpack.c.l.b16 %v117
  %v724 = vunpack.c.h.b16 %v117
  %v725 = vunpack.c.l.b16 %v118
  %v726 = vunpack.c.h.b16 %v118
  %v727 = vunpack.c.l.b16 %v119
  %v728 = vunpack.c.h.b16 %v119
  %v729 = vunpack.c.l.b16 %v120
  %v730 = vunpack.c.h.b16 %v120
  %v731 = vunpack.c.l.b16 %v121
  %v732 = vunpack.c.h.b16 %v121
  %v733 = vunpack.c.l.b16 %v122
  %v734 = vunpack.c.h.b16 %v122
  %v735 = vunpack.c.l.b16 %v123
  %v736 = vunpack.c.h.b16 %v123
  %v737 = vunpack.c.l.b16 %v124
  %v738 = vunpack.c.h.b16 %v124
  %v739 = vunpack.c.l.b16 %v125
  %v740 = vunpack.c.h.b16 %v125
  %v741 = vunpack.c.l.b16 %v126
  %v742 = vunpack.c.h.b16 %v126
  %v743 = vunpack.c.l.b16 %v127
  %v744 = vunpack.c.h.b16 %v127
  %v745 = vunpack.c.l.b16 %v128
  %v746 = vunpack.c.h.b16 %v128
  %v747 = vunpack.c.l.b16 %v129
  %v748 = vunpack.c.h.b16 %v129
  %v749 = vunpack.c.l.b16 %v130
  %v750 = vunpack.c.h.b16 %v130
  %v751 = vunpack.c.l.b16 %v131
  %v752 = vunpack.c.h.b16 %v131
  %v753 = vunpack.c.l.b16 %v132
  %v754 = vunpack.c.h.b16 %v132
  %v755 = vunpack.c.l.b16 %v133
  %v756 = vunpack.c.h.b16 %v133
  %v757 = vunpack.c.l.b16 %v134
  %v758 = vunpack.c.h.b16 %v134
  %v759 = vunpack.c.l.b16 %v135
  %v760 = vunpack.c.h.b16 %v135
  %v761 = vunpack.c.l.b16 %v136
  %v762 = vunpack.c.h.b16 %v136
  %v763 = vunpack.c.l.b16 %v137
  %v764 = vunpack.c.h.b16 %v137
  %v765 = vunpack.c.l.b16 %v138
  %v766 = vunpack.c.h.b16 %v138
  %v767 = vunpack.c.l.b16 %v139
  %v768 = vunpack.c.h.b16 %v139
  %v769 = vunpack.c.l.b16 %v140
  %v770 = vunpack.c.h.b16 %v140
  %v771 = vunpack.c.l.b16 %v141
  %v772 = vunpack.c.h.b16 %v141
  %v773 = vunpack.c.l.b16 %v142
  %v774 = vunpack.c.h.b16 %v142
  %v775 = vunpack.c.l.b16 %v143
  %v776 = vunpack.c.h.b16 %v143
  %v777 = vunpack.c.l.b16 %v144
  %v778 = vunpack.c.h.b16 %v144
  %v779 = vunpack.c.l.b16 %v145
  %v780 = vunpack.c.h.b16 %v145
  %v781 = vunpack.c.l.b16 %v146
  %v782 = vunpack.c.h.b16 %v146
  %v783 = vunpack.c.l.b16 %v147
  %v784 = vunpack.c.h.b16 %v147
  %v785 = vunpack.c.l.b16 %v148
  %v786 = vunpack.c.h.b16 %v148
  %v787 = vunpack.c.l.b16 %v149
  %v788 = vunpack.c.h.b16 %v149
  %v789 = vunpack.c.l.b16 %v150
  %v790 = vunpack.c.h.b16 %v150
  %v791 = vunpack.c.l.b16 %v151
  %v792 = vunpack.c.h.b16 %v151
  %v793 = vunpack.c.l.b16 %v152
  %v794 = vunpack.c.h.b16 %v152
  %v795 = vunpack.c.l.b16 %v153
  %v796 = vunpack.c.h.b16 %v153
  %v797 = vunpack.c.l.b16 %v154
  %v798 = vunpack.c.h.b16 %v154
  %v799 = vunpack.c.l.b16 %v155
  %v800 = vunpack.c.h.b16 %v155
  %v801 = vunpack.c.l.b16 %v156
  %v802 = vunpack.c.h.b16 %v156
  %v803 = vunpack.c.l.b16 %v157
  %v804 = vunpack.c.h.b16 %v157
  %v805 = vunpack.c.l.b16 %v158
  %v806 = vunpack.c.h.b16 %v158
  %v807 = vunpack.c.l.b16 %v159
  %v808 = vunpack.c.h.b16 %v159
  %v809 = vunpack.c.l.b16 %v160
  %v810 = vunpack.c.h.b16 %v160
  %v811 = vunpack.c.l.b16 %v161
  %v812 = vunpack.c.h.b16 %v161
  %v813 = vunpack.c.l.b16 %v162
  %v814 = vunpack.c.h.b16 %v162
  %v815 = vunpack.c.l.b16 %v163
  %v816 = vunpack.c.h.b16 %v163
  %v817 = vunpack.c.l.b16 %v164
  %v818 = vunpack.c.h.b16 %v164
  %v819 = vunpack.c.l.b16 %v165
  %v820 = vunpack.c.h.b16 %v165
  %v821 = vunpack.c.l.b16 %v166
  %v822 = vunpack.c.h.b16 %v166
  %v823 = vunpack.c.l.b16 %v167
  %v824 = vunpack.c.h.b16 %v167
  %v825 = vunpack.c.l.b16 %v168
  %v826 = vunpack.c.h.b16 %v168
  %v827 = vunpack.c.l.b16 %v169
  %v828 = vunpack.c.h.b16 %v169
  %v829 = vunpack.c.l.b16 %v170
  %v830 = vunpack.c.h.b16 %v170
  %v831 = vunpack.c.l.b16 %v171
  %v832 = vunpack.c.h.b16 %v171
  %v833 = vunpack.c.l.b16 %v172
  %v834 = vunpack.c.h.b16 %v172
  %v835 = vunpack.c.l.b16 %v173
  %v836 = vunpack.c.h.b16 %v173
  %v837 = vunpack.c.l.b16 %v174
  %v838 = vunpack.c.h.b16 %v174
  %v839 = vunpack.c.l.b16 %v175
  %v840 = vunpack.c.h.b16 %v175
  %v841 = vunpack.c.l.b16 %v176
  %v842 = vunpack.c.h.b16 %v176
  %v843 = vunpack.c.l.b16 %v177
  %v844 = vunpack.c.h.b16 %v177
  %v845 = vunpack.c.l.b16 %v178
  %v846 = vunpack.c.h.b16 %v178
  %v847 = vunpack.c.l.b16 %v179
  %v848 = vunpack.c.h.b16 %v179
  %v849 = vunpack.c.l.b16 %v180
  %v850 = vunpack.c.h.b16 %v180
  %v851 = vunpack.c.l.b16 %v181
  %v852 = vunpack.c.h.b16 %v181
  %v853 = vunpack.c.l.b16 %v182
  %v854 = vunpack.c.h.b16 %v182
  %v855 = vunpack.c.l.b16 %v183
  %v856 = vunpack.c.h.b16 %v183
  %v857 = vunpack.c.l.b16 %v184
  %v858 = vunpack.c.h.b16 %v184
  %v859 = vunpack.c.l.b16 %v185
  %v860 = vunpack.c.h.b16 %v185
  %v861 = vunpack.c.l.b16 %v186
  %v862 = vunpack.c.h.b16 %v186
  %v863 = vunpack.c.l.b16 %v187
  %v864 = vunpack.c.h.b16 %v187
  %v865 = vunpack.c.l.b16 %v188
  %v866 = vunpack.c.h.b16 %v188
  %v867 = vunpack.c.l.b16 %v189
  %v868 = vunpack.c.h.b16 %v189
  %v869 = vunpack.c.l.b16 %v190
  %v870 = vunpack.c.h.b16 %v190
  %v871 = vunpack.c.l.b16 %v191
  %v872 = vunpack.c.h.b16 %v191
  %v873 = vunpack.c.l.b16 %v192
  %v874 = vunpack.c.h.b16 %v192
  %v875 = vunpack.c.l.b16 %v193
  %v876 = vunpack.c.h.b16 %v193
  %v877 = vunpack.c.l.b16 %v194
  %v878 = vunpack.c.h.b16 %v194
  %v879 = vunpack.c.l.b16 %v195
  %v880 = vunpack.c.h.b16 %v195
  %v881 = vunpack.c.l.b16 %v196
  %v882 = vunpack.c.h.b16 %v196
  %v883 = vunpack.c.l.b16 %v197
  %v884 = vunpack.c.h.b16 %v197
  %v885 = vunpack.c.l.b16 %v198
  %v886 = vunpack.c.h.b16 %v198
  %v887 = vunpack.c.l.b16 %v199
  %v888 = vunpack.c.h.b16 %v199
  %v889 = vunpack.c.l.b16 %v200
  %v890 = vunpack.c.h.b16 %v200
  %v891 = vunpack.c.l.b16 %v201
  %v892 = vunpack.c.h.b16 %v201
  %v893 = vunpack.c.l.b16 %v202
  %v894 = vunpack.c.h.b16 %v202
  %v895 = vunpack.c.l.b16 %v203
  %v896 = vunpack.c.h.b16 %v203
  %v897 = vunpack.c.l.b16 %v204
  %v898 = vunpack.c.h.b16 %v204
  %v899 = vunpack.c.l.b16 %v205
  %v900 = vunpack.c.h.b16 %v205
  %v901 = vunpack.c.l.b16 %v206
  %v902 = vunpack.c.h.b16 %v206
  %v903 = vunpack.c.l.b16 %v207
  %v904 = vunpack.c.h.b16 %v207
  %v905 = vunpack.c.l.b16 %v208
  %v906 = vunpack.c.h.b16 %v208
  %v907 = vunpack.c.l.b16 %v209
  %v908 = vunpack.c.h.b16 %v209
  %v909 = vunpack.c.l.b16 %v210
  %v910 = vunpack.c.h.b16 %v210
  %v911 = vunpack.c.l.b16 %v211
  %v912 = vunpack.c.h.b16 %v211
  %v913 = vunpack.c.l.b16 %v212
  %v914 = vunpack.c.h.b16 %v212
  %v915 = vunpack.c.l.b16 %v213
  %v916 = vunpack.c.h.b16 %v213
  %v917 = vunpack.c.l.b16 %v214
  %v918 = vunpack.c.h.b16 %v214
  %v919 = vunpack.c.l.b16 %v215
  %v920 = vunpack.c.h.b16 %v215
  %v921 = vunpack.c.l.b16 %v216
  %v922 = vunpack.c.h.b16 %v216
  %v923 = vunpack.c.l.b16 %v217
  %v924 = vunpack.c.h.b16 %v217
  %v925 = vunpack.c.l.b16 %v218
  %v926 = vunpack.c.h.b16 %v218
  %v927 = vunpack.c.l.b16 %v219
  %v928 = vunpack.c.h.b16 %v219
  %v929 = vunpack.c.l.b16 %v220
  %v930 = vunpack.c.h.b16 %v220
  %v931 = vunpack.c.l.b16 %v221
  %v932 = vunpack.c.h.b16 %v221
  %v933 = vunpack.c.l.b16 %v222
  %v934 = vunpack.c.h.b16 %v222
  %v935 = vunpack.c.l.b16 %v223
  %v936 = vunpack.c.h.b16 %v223
  %v937 = vunpack.c.l.b16 %v224
  %v938 = vunpack.c.h.b16 %v224
  %v939 = vunpack.c.l.b16 %v225
  %v940 = vunpack.c.h.b16 %v225
  %v941 = vunpack.c.l.b16 %v226
  %v942 = vunpack.c.h.b16 %v226
  %v943 = vunpack.c.l.b16 %v227
  %v944 = vunpack.c.h.b16 %v227
  %v945 = vunpack.c.l.b16 %v228
  %v946 = vunpack.c.h.b16 %v228
  %v947 = vunpack.c.l.b16 %v229
  %v948 = vunpack.c.h.b16 %v229
  %v949 = vunpack.c.l.b16 %v230
  %v950 = vunpack.c.h.b16 %v230
  %v951 = vunpack.c.l.b16 %v231
  %v952 = vunpack.c.h.b16 %v231
  %v953 = vunpack.c.l.b16 %v232
  %v954 = vunpack.c.h.b16 %v232
  %v955 = vunpack.c.l.b16 %v233
  %v956 = vunpack.c.h.b16 %v233
  %v957 = vunpack.c.l.b16 %v234
  %v958 = vunpack.c.h.b16 %v234
  %v959 = vunpack.c.l.b16 %v235
  %v960 = vunpack.c.h.b16 %v235
  %v961 = vunpack.c.l.b16 %v236
  %v962 = vunpack.c.h.b16 %v236
  %v963 = vunpack.c.l.b16 %v237
  %v964 = vunpack.c.h.b16 %v237
  %v965 = vunpack.c.l.b16 %v238
  %v966 = vunpack.c.h.b16 %v238
  %v967 = vunpack.c.l.b16 %v239
  %v968 = vunpack.c.h.b16 %v239
  %v969 = vunpack.c.l.b16 %v240
  %v970 = vunpack.c.h.b16 %v240
  %v971 = vunpack.c.l.b16 %v241
  %v972 = vunpack.c.h.b16 %v241
  %v973 = vunpack.c.l.b16 %v242
  %v974 = vunpack.c.h.b16 %v242
  %v975 = vunpack.c.l.b16 %v243
  %v976 = vunpack.c.h.b16 %v243
  %v977 = vunpack.c.l.b16 %v244
  %v978 = vunpack.c.h.b16 %v244
  %v979 = vunpack.c.l.b16 %v245
  %v980 = vunpack.c.h.b16 %v245
  %v981 = vunpack.c.l.b16 %v246
  %v982 = vunpack.c.h.b16 %v246
  %v983 = vunpack.c.l.b16 %v247
  %v984 = vunpack.c.h.b16 %v247
  %v985 = vunpack.c.l.b16 %v248
  %v986 = vunpack.c.h.b16 %v248
  %v987 = vunpack.c.l.b16 %v249
  %v988 = vunpack.c.h.b16 %v249
  %v989 = vunpack.c.l.b16 %v250
  %v990 = vunpack.c.h.b16 %v250
  %v991 = vunpack.c.l.b16 %v251
  %v992 = vunpack.c.h.b16 %v251
  %v993 = vunpack.c.l.b16 %v252
  %v994 = vunpack.c.h.b16 %v252
  %v995 = vunpack.c.l.b16 %v253
  %v996 = vunpack.c.h.b16 %v253
  %v997 = vunpack.c.l.b16 %v254
  %v998 = vunpack.c.h.b16 %v254
  %v999 = vunpack.c.l.b16 %v255
  %v1000 = vunpack.c.h.b16 %v255
  %v1001 = vunpack.c.l.b16 %v256
  %v1002 = vunpack.c.h.b16 %v256
  %v1003 = vunpack.c.l.b16 %v257
  %v1004 = vunpack.c.h.b16 %v257
  %v1005 = vunpack.c.l.b16 %v258
  %v1006 = vunpack.c.h.b16 %v258
  %v1007 = vunpack.c.l.b16 %v259
  %v1008 = vunpack.c.h.b16 %v259
  %v1009 = vunpack.c.l.b16 %v260
  %v1010 = vunpack.c.h.b16 %v260
  %v1011 = vunpack.c.l.b16 %v261
  %v1012 = vunpack.c.h.b16 %v261
  %v1013 = vunpack.c.l.b16 %v262
  %v1014 = vunpack.c.h.b16 %v262
  %v1015 = vunpack.c.l.b16 %v263
  %v1016 = vunpack.c.h.b16 %v263
  %v1017 = vunpack.c.l.b16 %v264
  %v1018 = vunpack.c.h.b16 %v264
  %v1019 = vunpack.c.l.b16 %v265
  %v1020 = vunpack.c.h.b16 %v265
  %v1021 = vunpack.c.l.b16 %v266
  %v1022 = vunpack.c.h.b16 %v266
  %v1023 = vunpack.c.l.b16 %v267
  %v1024 = vunpack.c.h.b16 %v267
  %v1025 = vunpack.c.l.b16 %v268
  %v1026 = vunpack.c.h.b16 %v268
  %v1027 = vunpack.c.l.b16 %v269
  %v1028 = vunpack.c.h.b16 %v269
  %v1029 = vunpack.c.l.b16 %v270
  %v1030 = vunpack.c.h.b16 %v270
  %v1031 = vunpack.c.l.b16 %v271
  %v1032 = vunpack.c.h.b16 %v271
  %v1033 = vunpack.c.l.b16 %v272
  %v1034 = vunpack.c.h.b16 %v272
  %v1035 = vunpack.c.l.b16 %v273
  %v1036 = vunpack.c.h.b16 %v273
  %v1037 = vunpack.c.l.b16 %v274
  %v1038 = vunpack.c.h.b16 %v274
  %v1039 = vunpack.c.l.b16 %v275
  %v1040 = vunpack.c.h.b16 %v275
  %v1041 = vunpack.c.l.b16 %v276
  %v1042 = vunpack.c.h.b16 %v276
  %v1043 = vunpack.c.l.b16 %v277
  %v1044 = vunpack.c.h.b16 %v277
  %v1045 = vunpack.c.l.b16 %v278
  %v1046 = vunpack.c.h.b16 %v278
  %v1047 = vunpack.c.l.b16 %v279
  %v1048 = vunpack.c.h.b16 %v279
  %v1049 = vunpack.c.l.b16 %v280
  %v1050 = vunpack.c.h.b16 %v280
  %v1051 = vunpack.c.l.b16 %v281
  %v1052 = vunpack.c.h.b16 %v281
  %v1053 = vunpack.c.l.b16 %v282
  %v1054 = vunpack.c.h.b16 %v282
  %v1055 = vunpack.c.l.b16 %v283
  %v1056 = vunpack.c.h.b16 %v283
  %v1057 = vunpack.c.l.b16 %v284
  %v1058 = vunpack.c.h.b16 %v284
  %v1059 = vunpack.c.l.b16 %v285
  %v1060 = vunpack.c.h.b16 %v285
  %v1061 = vunpack.c.l.b16 %v286
  %v1062 = vunpack.c.h.b16 %v286
  %v1063 = vunpack.c.l.b16 %v287
  %v1064 = vunpack.c.h.b16 %v287
  %v1065 = vunpack.c.l.b16 %v288
  %v1066 = vunpack.c.h.b16 %v288
  %v1067 = vunpack.c.l.b16 %v289
  %v1068 = vunpack.c.h.b16 %v289
  %v1069 = vunpack.c.l.b16 %v290
  %v1070 = vunpack.c.h.b16 %v290
  %v1071 = vunpack.c.l.b16 %v291
  %v1072 = vunpack.c.h.b16 %v291
  %v1073 = vunpack.c.l.b16 %v292
  %v1074 = vunpack.c.h.b16 %v292
  %v1075 = vpack.c.b16 %v571, %v563
  %v1076 = vpack.c.b16 %v572, %v564
  %v1077 = vpack.c.b16 %v573, %v565
  %v1078 = vpack.c.b16 %v574, %v566
  %v1079 = vpack.c.b16 %v575, %v567
  %v1080 = vpack.c.b16 %v576, %v568
  %v1081 = vpack.c.b16 %v577, %v569
  %v1082 = vpack.c.b16 %v578, %v570
  %v1083 = vpack.c.b16 %v587, %v579
  %v1084 = vpack.c.b16 %v588, %v580
  %v1085 = vpack.c.b16 %v589, %v581
  %v1086 = vpack.c.b16 %v590, %v582
  %v1087 = vpack.c.b16 %v591, %v583
  %v1088 = vpack.c.b16 %v592, %v584
  %v1089 = vpack.c.b16 %v593, %v585
  %v1090 = vpack.c.b16 %v594, %v586
  %v1091 = vpack.c.b16 %v603, %v595
  %v1092 = vpack.c.b16 %v604, %v596
  %v1093 = vpack.c.b16 %v605, %v597
  %v1094 = vpack.c.b16 %v606, %v598
  %v1095 = vpack.c.b16 %v607, %v599
  %v1096 = vpack.c.b16 %v608, %v600
  %v1097 = vpack.c.b16 %v609, %v601
  %v1098 = vpack.c.b16 %v610, %v602
  %v1099 = vpack.c.b16 %v619, %v611
  %v1100 = vpack.c.b16 %v620, %v612
  %v1101 = vpack.c.b16 %v621, %v613
  %v1102 = vpack.c.b16 %v622, %v614
  %v1103 = vpack.c.b16 %v623, %v615
  %v1104 = vpack.c.b16 %v624, %v616
  %v1105 = vpack.c.b16 %v625, %v617
  %v1106 = vpack.c.b16 %v626, %v618
  %v1107 = vpack.c.b16 %v635, %v627
  %v1108 = vpack.c.b16 %v636, %v628
  %v1109 = vpack.c.b16 %v637, %v629
  %v1110 = vpack.c.b16 %v638, %v630
  %v1111 = vpack.c.b16 %v639, %v631
  %v1112 = vpack.c.b16 %v640, %v632
  %v1113 = vpack.c.b16 %v641, %v633
  %v1114 = vpack.c.b16 %v642, %v634
  %v1115 = vpack.c.b16 %v651, %v643
  %v1116 = vpack.c.b16 %v652, %v644
  %v1117 = vpack.c.b16 %v653, %v645
  %v1118 = vpack.c.b16 %v654, %v646
  %v1119 = vpack.c.b16 %v655, %v647
  %v1120 = vpack.c.b16 %v656, %v648
  %v1121 = vpack.c.b16 %v657, %v649
  %v1122 = vpack.c.b16 %v658, %v650
  %v1123 = vpack.c.b16 %v667, %v659
  %v1124 = vpack.c.b16 %v668, %v660
  %v1125 = vpack.c.b16 %v669, %v661
  %v1126 = vpack.c.b16 %v670, %v662
  %v1127 = vpack.c.b16 %v671, %v663
  %v1128 = vpack.c.b16 %v672, %v664
  %v1129 = vpack.c.b16 %v673, %v665
  %v1130 = vpack.c.b16 %v674, %v666
  %v1131 = vpack.c.b16 %v683, %v675
  %v1132 = vpack.c.b16 %v684, %v676
  %v1133 = vpack.c.b16 %v685, %v677
  %v1134 = vpack.c.b16 %v686, %v678
  %v1135 = vpack.c.b16 %v687, %v679
  %v1136 = vpack.c.b16 %v688, %v680
  %v1137 = vpack.c.b16 %v689, %v681
  %v1138 = vpack.c.b16 %v690, %v682
  %v1139 = vpack.c.b16 %v699, %v691
  %v1140 = vpack.c.b16 %v700, %v692
  %v1141 = vpack.c.b16 %v701, %v693
  %v1142 = vpack.c.b16 %v702, %v694
  %v1143 = vpack.c.b16 %v703, %v695
  %v1144 = vpack.c.b16 %v704, %v696
  %v1145 = vpack.c.b16 %v705, %v697
  %v1146 = vpack.c.b16 %v706, %v698
  %v1147 = vpack.c.b16 %v715, %v707
  %v1148 = vpack.c.b16 %v716, %v708
  %v1149 = vpack.c.b16 %v717, %v709
  %v1150 = vpack.c.b16 %v718, %v710
  %v1151 = vpack.c.b16 %v719, %v711
  %v1152 = vpack.c.b16 %v720, %v712
  %v1153 = vpack.c.b16 %v721, %v713
  %v1154 = vpack.c.b16 %v722, %v714
  %v1155 = vpack.c.b16 %v731, %v723
  %v1156 = vpack.c.b16 %v732, %v724
  %v1157 = vpack.c.b16 %v733, %v725
  %v1158 = vpack.c.b16 %v734, %v726
  %v1159 = vpack.c.b16 %v735, %v727
  %v1160 = vpack.c.b16 %v736, %v728
  %v1161 = vpack.c.b16 %v737, %v729
  %v1162 = vpack.c.b16 %v738, %v730
  %v1163 = vpack.c.b16 %v747, %v739
  %v1164 = vpack.c.b16 %v748, %v740
  %v1165 = vpack.c.b16 %v749, %v741
  %v1166 = vpack.c.b16 %v750, %v742
  %v1167 = vpack.c.b16 %v751, %v743
  %v1168 = vpack.c.b16 %v752, %v744
  %v1169 = vpack.c.b16 %v753, %v745
  %v1170 = vpack.c.b16 %v754, %v746
  %v1171 = vpack.c.b16 %v763, %v755
  %v1172 = vpack.c.b16 %v764, %v756
  %v1173 = vpack.c.b16 %v765, %v757
  %v1174 = vpack.c.b16 %v766, %v758
  %v1175 = vpack.c.b16 %v767, %v759
  %v1176 = vpack.c.b16 %v768, %v760
  %v1177 = vpack.c.b16 %v769, %v761
  %v1178 = vpack.c.b16 %v770, %v762
  %v1179 = vpack.c.b16 %v779, %v771
  %v1180 = vpack.c.b16 %v780, %v772
  %v1181 = vpack.c.b16 %v781, %v773
  %v1182 = vpack.c.b16 %v782, %v774
  %v1183 = vpack.c.b16 %v783, %v775
  %v1184 = vpack.c.b16 %v784, %v776
  %v1185 = vpack.c.b16 %v785, %v777
  %v1186 = vpack.c.b16 %v786, %v778
  %v1187 = vpack.c.b16 %v795, %v787
  %v1188 = vpack.c.b16 %v796, %v788
  %v1189 = vpack.c.b16 %v797, %v789
  %v1190 = vpack.c.b16 %v798, %v790
  %v1191 = vpack.c.b16 %v799, %v791
  %v1192 = vpack.c.b16 %v800, %v792
  %v1193 = vpack.c.b16 %v801, %v793
  %v1194 = vpack.c.b16 %v802, %v794
  %v1195 = vpack.c.b16 %v811, %v803
  %v1196 = vpack.c.b16 %v812, %v804
  %v1197 = vpack.c.b16 %v813, %v805
  %v1198 = vpack.c.b16 %v814, %v806
  %v1199 = vpack.c.b16 %v815, %v807
  %v1200 = vpack.c.b16 %v816, %v808
  %v1201 = vpack.c.b16 %v817, %v809
  %v1202 = vpack.c.b16 %v818, %v810
  %v1203 = vpack.c.b16 %v827, %v819
  %v1204 = vpack.c.b16 %v828, %v820
  %v1205 = vpack.c.b16 %v829, %v821
  %v1206 = vpack.c.b16 %v830, %v822
  %v1207 = vpack.c.b16 %v831, %v823
  %v1208 = vpack.c.b16 %v832, %v824
  %v1209 = vpack.c.b16 %v833, %v825
  %v1210 = vpack.c.b16 %v834, %v826
  %v1211 = vpack.c.b16 %v843, %v835
  %v1212 = vpack.c.b16 %v844, %v836
  %v1213 = vpack.c.b16 %v845, %v837
  %v1214 = vpack.c.b16 %v846, %v838
  %v1215 = vpack.c.b16 %v847, %v839
  %v1216 = vpack.c.b16 %v848, %v840
  %v1217 = vpack.c.b16 %v849, %v841
  %v1218 = vpack.c.b16 %v850, %v842
  %v1219 = vpack.c.b16 %v859, %v851
  %v1220 = vpack.c.b16 %v860, %v852
  %v1221 = vpack.c.b16 %v861, %v853
  %v1222 = vpack.c.b16 %v862, %v854
  %v1223 = vpack.c.b16 %v863, %v855
  %v1224 = vpack.c.b16 %v864, %v856
  %v1225 = vpack.c.b16 %v865, %v857
  %v1226 = vpack.c.b16 %v866, %v858
  %v1227 = vpack.c.b16 %v875, %v867
  %v1228 = vpack.c.b16 %v876, %v868
  %v1229 = vpack.c.b16 %v877, %v869
  %v1230 = vpack.c.b16 %v878, %v870
  %v1231 = vpack.c.b16 %v879, %v871
  %v1232 = vpack.c.b16 %v880, %v872
  %v1233 = vpack.c.b16 %v881, %v873
  %v1234 = vpack.c.b16 %v882, %v874
  %v1235 = vpack.c.b16 %v891, %v883
  %v1236 = vpack.c.b16 %v892, %v884
  %v1237 = vpack.c.b16 %v893, %v885
  %v1238 = vpack.c.b16 %v894, %v886
  %v1239 = vpack.c.b16 %v895, %v887
  %v1240 = vpack.c.b16 %v896, %v888
  %v1241 = vpack.c.b16 %v897, %v889
  %v1242 = vpack.c.b16 %v898, %v890
  %v1243 = vpack.c.b16 %v907, %v899
  %v1244 = vpack.c.b16 %v908, %v900
  %v1245 = vpack.c.b16 %v909, %v901
  %v1246 = vpack.c.b16 %v910, %v902
  %v1247 = vpack.c.b16 %v911, %v903
  %v1248 = vpack.c.b16 %v912, %v904
  %v1249 = vpack.c.b16 %v913, %v905
  %v1250 = vpack.c.b16 %v914, %v906
  %v1251 = vpack.c.b16 %v923, %v915
  %v1252 = vpack.c.b16 %v924, %v916
  %v1253 = vpack.c.b16 %v925, %v917
  %v1254 = vpack.c.b16 %v926, %v918
  %v1255 = vpack.c.b16 %v927, %v919
  %v1256 = vpack.c.b16 %v928, %v920
  %v1257 = vpack.c.b16 %v929, %v921
  %v1258 = vpack.c.b16 %v930, %v922
  %v1259 = vpack.c.b16 %v939, %v931
  %v1260 = vpack.c.b16 %v940, %v932
  %v1261 = vpack.c.b16 %v941, %v933
  %v1262 = vpack.c.b16 %v942, %v934
  %v1263 = vpack.c.b16 %v943, %v935
  %v1264 = vpack.c.b16 %v944, %v936
  %v1265 = vpack.c.b16 %v945, %v937
  %v1266 = vpack.c.b16 %v946, %v938
  %v1267 = vpack.c.b16 %v955, %v947
  %v1268 = vpack.c.b16 %v956, %v948
  %v1269 = vpack.c.b16 %v957, %v949
  %v1270 = vpack.c.b16 %v958, %v950
  %v1271 = vpack.c.b16 %v959, %v951
  %v1272 = vpack.c.b16 %v960, %v952
  %v1273 = vpack.c.b16 %v961, %v953
  %v1274 = vpack.c.b16 %v962, %v954
  %v1275 = vpack.c.b16 %v971, %v963
  %v1276 = vpack.c.b16 %v972, %v964
  %v1277 = vpack.c.b16 %v973, %v965
  %v1278 = vpack.c.b16 %v974, %v966
  %v1279 = vpack.c.b16 %v975, %v967
  %v1280 = vpack.c.b16 %v976, %v968
  %v1281 = vpack.c.b16 %v977, %v969
  %v1282 = vpack.c.b16 %v978, %v970
  %v1283 = vpack.c.b16 %v987, %v979
  %v1284 = vpack.c.b16 %v988, %v980
  %v1285 = vpack.c.b16 %v989, %v981
  %v1286 = vpack.c.b16 %v990, %v982
  %v1287 = vpack.c.b16 %v991, %v983
  %v1288 = vpack.c.b16 %v992, %v984
  %v1289 = vpack.c.b16 %v993, %v985
  %v1290 = vpack.c.b16 %v994, %v986
  %v1291 = vpack.c.b16 %v1003, %v995
  %v1292 = vpack.c.b16 %v1004, %v996
  %v1293 = vpack.c.b16 %v1005, %v997
  %v1294 = vpack.c.b16 %v1006, %v998
  %v1295 = vpack.c.b16 %v1007, %v999
  %v1296 = vpack.c.b16 %v1008, %v1000
  %v1297 = vpack.c.b16 %v1009, %v1001
  %v1298 = vpack.c.b16 %v1010, %v1002
  %v1299 = vpack.c.b16 %v1019, %v1011
  %v1300 = vpack.c.b16 %v1020, %v1012
  %v1301 = vpack.c.b16 %v1021, %v1013
  %v1302 = vpack.c.b16 %v1022, %v1014
  %v1303 = vpack.c.b16 %v1023, %v1015
  %v1304 = vpack.c.b16 %v1024, %v1016
  %v1305 = vpack.c.b16 %v1025, %v1017
  %v1306 = vpack.c.b16 %v1026, %v1018
  %v1307 = vpack.c.b16 %v1035, %v1027
  %v1308 = vpack.c.b16 %v1036, %v1028
  %v1309 = vpack.c.b16 %v1037, %v1029
  %v1310 = vpack.c.b16 %v1038, %v1030
  %v1311 = vpack.c.b16 %v1039, %v1031
  %v1312 = vpack.c.b16 %v1040, %v1032
  %v1313 = vpack.c.b16 %v1041, %v1033
  %v1314 = vpack.c.b16 %v1042, %v1034
  %v1315 = vpack.c.b16 %v1051, %v1043
  %v1316 = vpack.c.b16 %v1052, %v1044
  %v1317 = vpack.c.b16 %v1053, %v1045
  %v1318 = vpack.c.b16 %v1054, %v1046
  %v1319 = vpack.c.b16 %v1055, %v1047
  %v1320 = vpack.c.b16 %v1056, %v1048
  %v1321 = vpack.c.b16 %v1057, %v1049
  %v1322 = vpack.c.b16 %v1058, %v1050
  %v1323 = vpack.c.b16 %v1067, %v1059
  %v1324 = vpack.c.b16 %v1068, %v1060
  %v1325 = vpack.c.b16 %v1069, %v1061
  %v1326 = vpack.c.b16 %v1070, %v1062
  %v1327 = vpack.c.b16 %v1071, %v1063
  %v1328 = vpack.c.b16 %v1072, %v1064
  %v1329 = vpack.c.b16 %v1073, %v1065
  %v1330 = vpack.c.b16 %v1074, %v1066
  %1587 = vmatprep.subr.bf16.mxu0 %v1076
  %1588 = vmatpush1.bf16.msra.mxu0 %v1075
  %1589 = vmatprep.subr.bf16.mxu0 %v1084
  %1590 = vmatpush1.bf16.msra.mxu0 %v1083
  %1591 = vmatprep.subr.bf16.mxu0 %v1092
  %1592 = vmatpush1.bf16.msra.mxu0 %v1091
  %1593 = vmatprep.subr.bf16.mxu0 %v1100
  %1594 = vmatpush1.bf16.msra.mxu0 %v1099
  %1595 = vmatprep.subr.bf16.mxu0 %v1108
  %1596 = vmatpush1.bf16.msra.mxu0 %v1107
  %1597 = vmatprep.subr.bf16.mxu0 %v1116
  %1598 = vmatpush1.bf16.msra.mxu0 %v1115
  %1599 = vmatprep.subr.bf16.mxu0 %v1124
  %1600 = vmatpush1.bf16.msra.mxu0 %v1123
  %1601 = vmatprep.subr.bf16.mxu0 %v1132
  %1602 = vmatpush1.bf16.msra.mxu0 %v1131
  %1603 = vmatprep.subr.bf16.mxu0 %v1140
  %1604 = vmatpush1.bf16.msra.mxu0 %v1139
  %1605 = vmatprep.subr.bf16.mxu0 %v1148
  %1606 = vmatpush1.bf16.msra.mxu0 %v1147
  %1607 = vmatprep.subr.bf16.mxu0 %v1156
  %1608 = vmatpush1.bf16.msra.mxu0 %v1155
  %1609 = vmatprep.subr.bf16.mxu0 %v1164
  %1610 = vmatpush1.bf16.msra.mxu0 %v1163
  %1611 = vmatprep.subr.bf16.mxu0 %v1172
  %1612 = vmatpush1.bf16.msra.mxu0 %v1171
  %1613 = vmatprep.subr.bf16.mxu0 %v1180
  %1614 = vmatpush1.bf16.msra.mxu0 %v1179
  %1615 = vmatprep.subr.bf16.mxu0 %v1188
  %1616 = vmatpush1.bf16.msra.mxu0 %v1187
  %1617 = vmatprep.subr.bf16.mxu0 %v1196
  %1618 = vmatpush1.bf16.msra.mxu0 %v1195
  %1619 = vmatprep.mubr.bf16.mxu0 %v300
  %1620 = vmatmul.mubr.bf16.gmra.mrb[0].mxu0 %v299
  %v1621 = vpop.f32.mrb[0].mxu0
  %v1622 = vadd.f32 0.0, %v1621
  %v1623 = vpop.f32.mrb[0].mxu0
  %v1624 = vadd.f32 0.0, %v1623
  %v1625 = vpop.f32.mrb[0].mxu0
  %v1626 = vpop.f32.mrb[0].mxu0
  %1627 = vdwg.mxu0
  %1628 = vmatprep.subr.bf16.mxu0 %v1204
  %1629 = vmatpush1.bf16.msra.mxu0 %v1203
  %1630 = vmatprep.subr.bf16.mxu0 %v1212
  %1631 = vmatpush1.bf16.msra.mxu0 %v1211
  %1632 = vmatprep.subr.bf16.mxu0 %v1220
  %1633 = vmatpush1.bf16.msra.mxu0 %v1219
  %1634 = vmatprep.subr.bf16.mxu0 %v1228
  %1635 = vmatpush1.bf16.msra.mxu0 %v1227
  %1636 = vmatprep.subr.bf16.mxu0 %v1236
  %1637 = vmatpush1.bf16.msra.mxu0 %v1235
  %1638 = vmatprep.subr.bf16.mxu0 %v1244
  %1639 = vmatpush1.bf16.msra.mxu0 %v1243
  %1640 = vmatprep.subr.bf16.mxu0 %v1252
  %1641 = vmatpush1.bf16.msra.mxu0 %v1251
  %1642 = vmatprep.subr.bf16.mxu0 %v1260
  %1643 = vmatpush1.bf16.msra.mxu0 %v1259
  %1644 = vmatprep.subr.bf16.mxu0 %v1268
  %1645 = vmatpush1.bf16.msra.mxu0 %v1267
  %1646 = vmatprep.subr.bf16.mxu0 %v1276
  %1647 = vmatpush1.bf16.msra.mxu0 %v1275
  %1648 = vmatprep.subr.bf16.mxu0 %v1284
  %1649 = vmatpush1.bf16.msra.mxu0 %v1283
  %1650 = vmatprep.subr.bf16.mxu0 %v1292
  %1651 = vmatpush1.bf16.msra.mxu0 %v1291
  %1652 = vmatprep.subr.bf16.mxu0 %v1300
  %1653 = vmatpush1.bf16.msra.mxu0 %v1299
  %1654 = vmatprep.subr.bf16.mxu0 %v1308
  %1655 = vmatpush1.bf16.msra.mxu0 %v1307
  %1656 = vmatprep.subr.bf16.mxu0 %v1316
  %1657 = vmatpush1.bf16.msra.mxu0 %v1315
  %1658 = vmatprep.subr.bf16.mxu0 %v1324
  %1659 = vmatpush1.bf16.msra.mxu0 %v1323
  %1660 = vmatprep.mubr.bf16.mxu0 %v302
  %1661 = vmatmul.mubr.bf16.gmra.mrb[0].mxu0 %v301
  %v1662 = vpop.f32.mrb[0].mxu0
  %v1663 = vadd.f32 %v1622, %v1662
  %v1664 = vpop.f32.mrb[0].mxu0
  %v1665 = vadd.f32 %v1624, %v1664
  %v1666 = vpop.f32.mrb[0].mxu0
  %v1667 = vpop.f32.mrb[0].mxu0
  %1668 = vdwg.mxu0
  %1669 = vmatprep.subr.bf16.mxu0 %v1078
  %1670 = vmatpush1.bf16.msra.mxu0 %v1077
  %1671 = vmatprep.subr.bf16.mxu0 %v1086
  %1672 = vmatpush1.bf16.msra.mxu0 %v1085
  %1673 = vmatprep.subr.bf16.mxu0 %v1094
  %1674 = vmatpush1.bf16.msra.mxu0 %v1093
  %1675 = vmatprep.subr.bf16.mxu0 %v1102
  %1676 = vmatpush1.bf16.msra.mxu0 %v1101
  %1677 = vmatprep.subr.bf16.mxu0 %v1110
  %1678 = vmatpush1.bf16.msra.mxu0 %v1109
  %1679 = vmatprep.subr.bf16.mxu0 %v1118
  %1680 = vmatpush1.bf16.msra.mxu0 %v1117
  %1681 = vmatprep.subr.bf16.mxu0 %v1126
  %1682 = vmatpush1.bf16.msra.mxu0 %v1125
  %1683 = vmatprep.subr.bf16.mxu0 %v1134
  %1684 = vmatpush1.bf16.msra.mxu0 %v1133
  %1685 = vmatprep.subr.bf16.mxu0 %v1142
  %1686 = vmatpush1.bf16.msra.mxu0 %v1141
  %1687 = vmatprep.subr.bf16.mxu0 %v1150
  %1688 = vmatpush1.bf16.msra.mxu0 %v1149
  %1689 = vmatprep.subr.bf16.mxu0 %v1158
  %1690 = vmatpush1.bf16.msra.mxu0 %v1157
  %1691 = vmatprep.subr.bf16.mxu0 %v1166
  %1692 = vmatpush1.bf16.msra.mxu0 %v1165
  %1693 = vmatprep.subr.bf16.mxu0 %v1174
  %1694 = vmatpush1.bf16.msra.mxu0 %v1173
  %1695 = vmatprep.subr.bf16.mxu0 %v1182
  %1696 = vmatpush1.bf16.msra.mxu0 %v1181
  %1697 = vmatprep.subr.bf16.mxu0 %v1190
  %1698 = vmatpush1.bf16.msra.mxu0 %v1189
  %1699 = vmatprep.subr.bf16.mxu0 %v1198
  %1700 = vmatpush1.bf16.msra.mxu0 %v1197
  %1701 = vmatprep.mubr.bf16.mxu0 %v300
  %1702 = vmatmul.mubr.bf16.gmra.mrb[0].mxu0 %v299
  %v1703 = vpop.f32.mrb[0].mxu0
  %v1704 = vadd.f32 0.0, %v1703
  %v1705 = vpop.f32.mrb[0].mxu0
  %v1706 = vadd.f32 0.0, %v1705
  %v1707 = vpop.f32.mrb[0].mxu0
  %v1708 = vpop.f32.mrb[0].mxu0
  %1709 = vdwg.mxu0
  %1710 = vmatprep.subr.bf16.mxu0 %v1206
  %1711 = vmatpush1.bf16.msra.mxu0 %v1205
  %1712 = vmatprep.subr.bf16.mxu0 %v1214
  %1713 = vmatpush1.bf16.msra.mxu0 %v1213
  %1714 = vmatprep.subr.bf16.mxu0 %v1222
  %1715 = vmatpush1.bf16.msra.mxu0 %v1221
  %1716 = vmatprep.subr.bf16.mxu0 %v1230
  %1717 = vmatpush1.bf16.msra.mxu0 %v1229
  %1718 = vmatprep.subr.bf16.mxu0 %v1238
  %1719 = vmatpush1.bf16.msra.mxu0 %v1237
  %1720 = vmatprep.subr.bf16.mxu0 %v1246
  %1721 = vmatpush1.bf16.msra.mxu0 %v1245
  %1722 = vmatprep.subr.bf16.mxu0 %v1254
  %1723 = vmatpush1.bf16.msra.mxu0 %v1253
  %1724 = vmatprep.subr.bf16.mxu0 %v1262
  %1725 = vmatpush1.bf16.msra.mxu0 %v1261
  %1726 = vmatprep.subr.bf16.mxu0 %v1270
  %1727 = vmatpush1.bf16.msra.mxu0 %v1269
  %1728 = vmatprep.subr.bf16.mxu0 %v1278
  %1729 = vmatpush1.bf16.msra.mxu0 %v1277
  %1730 = vmatprep.subr.bf16.mxu0 %v1286
  %1731 = vmatpush1.bf16.msra.mxu0 %v1285
  %1732 = vmatprep.subr.bf16.mxu0 %v1294
  %1733 = vmatpush1.bf16.msra.mxu0 %v1293
  %1734 = vmatprep.subr.bf16.mxu0 %v1302
  %1735 = vmatpush1.bf16.msra.mxu0 %v1301
  %1736 = vmatprep.subr.bf16.mxu0 %v1310
  %1737 = vmatpush1.bf16.msra.mxu0 %v1309
  %1738 = vmatprep.subr.bf16.mxu0 %v1318
  %1739 = vmatpush1.bf16.msra.mxu0 %v1317
  %1740 = vmatprep.subr.bf16.mxu0 %v1326
  %1741 = vmatpush1.bf16.msra.mxu0 %v1325
  %1742 = vmatprep.mubr.bf16.mxu0 %v302
  %1743 = vmatmul.mubr.bf16.gmra.mrb[0].mxu0 %v301
  %v1744 = vpop.f32.mrb[0].mxu0
  %v1745 = vadd.f32 %v1704, %v1744
  %v1746 = vpop.f32.mrb[0].mxu0
  %v1747 = vadd.f32 %v1706, %v1746
  %v1748 = vpop.f32.mrb[0].mxu0
  %v1749 = vpop.f32.mrb[0].mxu0
  %1750 = vdwg.mxu0
  %1751 = vmatprep.subr.bf16.mxu0 %v1080
  %1752 = vmatpush1.bf16.msra.mxu0 %v1079
  %1753 = vmatprep.subr.bf16.mxu0 %v1088
  %1754 = vmatpush1.bf16.msra.mxu0 %v1087
  %1755 = vmatprep.subr.bf16.mxu0 %v1096
  %1756 = vmatpush1.bf16.msra.mxu0 %v1095
  %1757 = vmatprep.subr.bf16.mxu0 %v1104
  %1758 = vmatpush1.bf16.msra.mxu0 %v1103
  %1759 = vmatprep.subr.bf16.mxu0 %v1112
  %1760 = vmatpush1.bf16.msra.mxu0 %v1111
  %1761 = vmatprep.subr.bf16.mxu0 %v1120
  %1762 = vmatpush1.bf16.msra.mxu0 %v1119
  %1763 = vmatprep.subr.bf16.mxu0 %v1128
  %1764 = vmatpush1.bf16.msra.mxu0 %v1127
  %1765 = vmatprep.subr.bf16.mxu0 %v1136
  %1766 = vmatpush1.bf16.msra.mxu0 %v1135
  %1767 = vmatprep.subr.bf16.mxu0 %v1144
  %1768 = vmatpush1.bf16.msra.mxu0 %v1143
  %1769 = vmatprep.subr.bf16.mxu0 %v1152
  %1770 = vmatpush1.bf16.msra.mxu0 %v1151
  %1771 = vmatprep.subr.bf16.mxu0 %v1160
  %1772 = vmatpush1.bf16.msra.mxu0 %v1159
  %1773 = vmatprep.subr.bf16.mxu0 %v1168
  %1774 = vmatpush1.bf16.msra.mxu0 %v1167
  %1775 = vmatprep.subr.bf16.mxu0 %v1176
  %1776 = vmatpush1.bf16.msra.mxu0 %v1175
  %1777 = vmatprep.subr.bf16.mxu0 %v1184
  %1778 = vmatpush1.bf16.msra.mxu0 %v1183
  %1779 = vmatprep.subr.bf16.mxu0 %v1192
  %1780 = vmatpush1.bf16.msra.mxu0 %v1191
  %1781 = vmatprep.subr.bf16.mxu0 %v1200
  %1782 = vmatpush1.bf16.msra.mxu0 %v1199
  %1783 = vmatprep.mubr.bf16.mxu0 %v300
  %1784 = vmatmul.mubr.bf16.gmra.mrb[0].mxu0 %v299
  %v1785 = vpop.f32.mrb[0].mxu0
  %v1786 = vadd.f32 0.0, %v1785
  %v1787 = vpop.f32.mrb[0].mxu0
  %v1788 = vadd.f32 0.0, %v1787
  %v1789 = vpop.f32.mrb[0].mxu0
  %v1790 = vpop.f32.mrb[0].mxu0
  %1791 = vdwg.mxu0
  %1792 = vmatprep.subr.bf16.mxu0 %v1208
  %1793 = vmatpush1.bf16.msra.mxu0 %v1207
  %1794 = vmatprep.subr.bf16.mxu0 %v1216
  %1795 = vmatpush1.bf16.msra.mxu0 %v1215
  %1796 = vmatprep.subr.bf16.mxu0 %v1224
  %1797 = vmatpush1.bf16.msra.mxu0 %v1223
  %1798 = vmatprep.subr.bf16.mxu0 %v1232
  %1799 = vmatpush1.bf16.msra.mxu0 %v1231
  %1800 = vmatprep.subr.bf16.mxu0 %v1240
  %1801 = vmatpush1.bf16.msra.mxu0 %v1239
  %1802 = vmatprep.subr.bf16.mxu0 %v1248
  %1803 = vmatpush1.bf16.msra.mxu0 %v1247
  %1804 = vmatprep.subr.bf16.mxu0 %v1256
  %1805 = vmatpush1.bf16.msra.mxu0 %v1255
  %1806 = vmatprep.subr.bf16.mxu0 %v1264
  %1807 = vmatpush1.bf16.msra.mxu0 %v1263
  %1808 = vmatprep.subr.bf16.mxu0 %v1272
  %1809 = vmatpush1.bf16.msra.mxu0 %v1271
  %1810 = vmatprep.subr.bf16.mxu0 %v1280
  %1811 = vmatpush1.bf16.msra.mxu0 %v1279
  %1812 = vmatprep.subr.bf16.mxu0 %v1288
  %1813 = vmatpush1.bf16.msra.mxu0 %v1287
  %1814 = vmatprep.subr.bf16.mxu0 %v1296
  %1815 = vmatpush1.bf16.msra.mxu0 %v1295
  %1816 = vmatprep.subr.bf16.mxu0 %v1304
  %1817 = vmatpush1.bf16.msra.mxu0 %v1303
  %1818 = vmatprep.subr.bf16.mxu0 %v1312
  %1819 = vmatpush1.bf16.msra.mxu0 %v1311
  %1820 = vmatprep.subr.bf16.mxu0 %v1320
  %1821 = vmatpush1.bf16.msra.mxu0 %v1319
  %1822 = vmatprep.subr.bf16.mxu0 %v1328
  %1823 = vmatpush1.bf16.msra.mxu0 %v1327
  %1824 = vmatprep.mubr.bf16.mxu0 %v302
  %1825 = vmatmul.mubr.bf16.gmra.mrb[0].mxu0 %v301
  %v1826 = vpop.f32.mrb[0].mxu0
  %v1827 = vadd.f32 %v1786, %v1826
  %v1828 = vpop.f32.mrb[0].mxu0
  %v1829 = vadd.f32 %v1788, %v1828
  %v1830 = vpop.f32.mrb[0].mxu0
  %v1831 = vpop.f32.mrb[0].mxu0
  %1832 = vdwg.mxu0
  %1833 = vmatprep.subr.bf16.mxu0 %v1082
  %1834 = vmatpush1.bf16.msra.mxu0 %v1081
  %1835 = vmatprep.subr.bf16.mxu0 %v1090
  %1836 = vmatpush1.bf16.msra.mxu0 %v1089
  %1837 = vmatprep.subr.bf16.mxu0 %v1098
  %1838 = vmatpush1.bf16.msra.mxu0 %v1097
  %1839 = vmatprep.subr.bf16.mxu0 %v1106
  %1840 = vmatpush1.bf16.msra.mxu0 %v1105
  %1841 = vmatprep.subr.bf16.mxu0 %v1114
  %1842 = vmatpush1.bf16.msra.mxu0 %v1113
  %1843 = vmatprep.subr.bf16.mxu0 %v1122
  %1844 = vmatpush1.bf16.msra.mxu0 %v1121
  %1845 = vmatprep.subr.bf16.mxu0 %v1130
  %1846 = vmatpush1.bf16.msra.mxu0 %v1129
  %1847 = vmatprep.subr.bf16.mxu0 %v1138
  %1848 = vmatpush1.bf16.msra.mxu0 %v1137
  %1849 = vmatprep.subr.bf16.mxu0 %v1146
  %1850 = vmatpush1.bf16.msra.mxu0 %v1145
  %1851 = vmatprep.subr.bf16.mxu0 %v1154
  %1852 = vmatpush1.bf16.msra.mxu0 %v1153
  %1853 = vmatprep.subr.bf16.mxu0 %v1162
  %1854 = vmatpush1.bf16.msra.mxu0 %v1161
  %1855 = vmatprep.subr.bf16.mxu0 %v1170
  %1856 = vmatpush1.bf16.msra.mxu0 %v1169
  %1857 = vmatprep.subr.bf16.mxu0 %v1178
  %1858 = vmatpush1.bf16.msra.mxu0 %v1177
  %1859 = vmatprep.subr.bf16.mxu0 %v1186
  %1860 = vmatpush1.bf16.msra.mxu0 %v1185
  %1861 = vmatprep.subr.bf16.mxu0 %v1194
  %1862 = vmatpush1.bf16.msra.mxu0 %v1193
  %1863 = vmatprep.subr.bf16.mxu0 %v1202
  %1864 = vmatpush1.bf16.msra.mxu0 %v1201
  %1865 = vmatprep.mubr.bf16.mxu0 %v300
  %1866 = vmatmul.mubr.bf16.gmra.mrb[0].mxu0 %v299
  %v1867 = vpop.f32.mrb[0].mxu0
  %v1868 = vadd.f32 0.0, %v1867
  %v1869 = vpop.f32.mrb[0].mxu0
  %v1870 = vadd.f32 0.0, %v1869
  %v1871 = vpop.f32.mrb[0].mxu0
  %v1872 = vpop.f32.mrb[0].mxu0
  %1873 = vdwg.mxu0
  %1874 = vmatprep.subr.bf16.mxu0 %v1210
  %1875 = vmatpush1.bf16.msra.mxu0 %v1209
  %1876 = vmatprep.subr.bf16.mxu0 %v1218
  %1877 = vmatpush1.bf16.msra.mxu0 %v1217
  %1878 = vmatprep.subr.bf16.mxu0 %v1226
  %1879 = vmatpush1.bf16.msra.mxu0 %v1225
  %1880 = vmatprep.subr.bf16.mxu0 %v1234
  %1881 = vmatpush1.bf16.msra.mxu0 %v1233
  %1882 = vmatprep.subr.bf16.mxu0 %v1242
  %1883 = vmatpush1.bf16.msra.mxu0 %v1241
  %1884 = vmatprep.subr.bf16.mxu0 %v1250
  %1885 = vmatpush1.bf16.msra.mxu0 %v1249
  %1886 = vmatprep.subr.bf16.mxu0 %v1258
  %1887 = vmatpush1.bf16.msra.mxu0 %v1257
  %1888 = vmatprep.subr.bf16.mxu0 %v1266
  %1889 = vmatpush1.bf16.msra.mxu0 %v1265
  %1890 = vmatprep.subr.bf16.mxu0 %v1274
  %1891 = vmatpush1.bf16.msra.mxu0 %v1273
  %1892 = vmatprep.subr.bf16.mxu0 %v1282
  %1893 = vmatpush1.bf16.msra.mxu0 %v1281
  %1894 = vmatprep.subr.bf16.mxu0 %v1290
  %1895 = vmatpush1.bf16.msra.mxu0 %v1289
  %1896 = vmatprep.subr.bf16.mxu0 %v1298
  %1897 = vmatpush1.bf16.msra.mxu0 %v1297
  %1898 = vmatprep.subr.bf16.mxu0 %v1306
  %1899 = vmatpush1.bf16.msra.mxu0 %v1305
  %1900 = vmatprep.subr.bf16.mxu0 %v1314
  %1901 = vmatpush1.bf16.msra.mxu0 %v1313
  %1902 = vmatprep.subr.bf16.mxu0 %v1322
  %1903 = vmatpush1.bf16.msra.mxu0 %v1321
  %1904 = vmatprep.subr.bf16.mxu0 %v1330
  %1905 = vmatpush1.bf16.msra.mxu0 %v1329
  %1906 = vmatprep.mubr.bf16.mxu0 %v302
  %1907 = vmatmul.mubr.bf16.gmra.mrb[0].mxu0 %v301
  %v1908 = vpop.f32.mrb[0].mxu0
  %v1909 = vadd.f32 %v1868, %v1908
  %v1910 = vpop.f32.mrb[0].mxu0
  %v1911 = vadd.f32 %v1870, %v1910
  %v1912 = vpop.f32.mrb[0].mxu0
  %v1913 = vpop.f32.mrb[0].mxu0
  %1914 = vdwg.mxu0
  %v1915 = vadd.f32 %v27, %v1663
  %v1916 = vadd.f32 %v28, %v1665
  %v1917 = vadd.f32 %v29, %v1745
  %v1918 = vadd.f32 %v30, %v1747
  %v1919 = vadd.f32 %v31, %v1827
  %v1920 = vadd.f32 %v32, %v1829
  %v1921 = vadd.f32 %v33, %v1909
  %v1922 = vadd.f32 %v34, %v1911
  %1923 = vst [vmem:[#allocation2] sm:$0xff] %v1915
  %1924 = vst [vmem:[#allocation2 + $0x8] sm:$0xff] %v1916
  %1925 = vst [vmem:[#allocation2 + $0x10] sm:$0xff] %v1917
  %1926 = vst [vmem:[#allocation2 + $0x18] sm:$0xff] %v1918
  %1927 = vst [vmem:[#allocation2 + $0x20] sm:$0xff] %v1919
  %1928 = vst [vmem:[#allocation2 + $0x28] sm:$0xff] %v1920
  %1929 = vst [vmem:[#allocation2 + $0x30] sm:$0xff] %v1921
  %vm1930 = vcmask 850944
  %1931 = vst.msk [vmem:[#allocation2 + $0x38] sm:$0xff] %vm1930, %v1922
  // Predicated region
  $region18: #{cspdarknet_tiny_forward.31} parent=0 // pred_check
    %p1932 = pneg %p14
  $region19: #{cspdarknet_tiny_forward.31} parent=0 // pred_check_branch
    %1934 = sbr.rel (%p1932) target = $region21
  $region20: #{cspdarknet_tiny_forward.31} parent=0 // pred_region
    %v1935 = vld [vmem:[#allocation2] sm:$0xff]
    %v1936 = vld [vmem:[#allocation2 + $0x8] sm:$0xff]
    %v1937 = vld [vmem:[#allocation2 + $0x10] sm:$0xff]
    %v1938 = vld [vmem:[#allocation2 + $0x18] sm:$0xff]
    %v1939 = vld [vmem:[#allocation2 + $0x20] sm:$0xff]
    %v1940 = vld [vmem:[#allocation2 + $0x28] sm:$0xff]
    %v1941 = vld [vmem:[#allocation2 + $0x30] sm:$0xff]
    %v1942 = vld [vmem:[#allocation2 + $0x38] sm:$0xff]
    %v1943 = vld [vmem:[%s2] sm:$0xff]
    %v1945 = vlaneseq
    %v1946 = vshrl.u32 %v1945, 7
    %v1947 = vsub.s32 0, %v1946
    %v1948 = vrot.slane %v1943, %v1947
    %v1949 = vlaneseq
    %v1950 = vshrl.u32 %v1949, 7
    %v1951 = vsub.s32 1, %v1950
    %v1952 = vrot.slane %v1943, %v1951
    %v1953 = vlaneseq
    %v1954 = vshrl.u32 %v1953, 7
    %v1955 = vsub.s32 2, %v1954
    %v1956 = vrot.slane %v1943, %v1955
    %v1957 = vlaneseq
    %v1958 = vshrl.u32 %v1957, 7
    %v1959 = vsub.s32 3, %v1958
    %v1960 = vrot.slane %v1943, %v1959
    %v1961 = vlaneseq
    %v1962 = vshrl.u32 %v1961, 7
    %v1963 = vsub.s32 4, %v1962
    %v1964 = vrot.slane %v1943, %v1963
    %v1965 = vlaneseq
    %v1966 = vshrl.u32 %v1965, 7
    %v1967 = vsub.s32 5, %v1966
    %v1968 = vrot.slane %v1943, %v1967
    %v1969 = vlaneseq
    %v1970 = vshrl.u32 %v1969, 7
    %v1971 = vsub.s32 6, %v1970
    %v1972 = vrot.slane %v1943, %v1971
    %v1973 = vlaneseq
    %v1974 = vshrl.u32 %v1973, 7
    %v1975 = vsub.s32 7, %v1974
    %v1976 = vrot.slane %v1943, %v1975
    %v1985 = vadd.f32 %v1935, %v1948
    %v1986 = vadd.f32 %v1936, %v1952
    %v1987 = vadd.f32 %v1937, %v1956
    %v1988 = vadd.f32 %v1938, %v1960
    %v1989 = vadd.f32 %v1939, %v1964
    %v1990 = vadd.f32 %v1940, %v1968
    %v1991 = vadd.f32 %v1941, %v1972
    %v1992 = vadd.f32 %v1942, %v1976
    %1993 = vst [vmem:[%s3] sm:$0xff] %v1985
    %1994 = vst [vmem:[%s3 + $0x8] sm:$0xff] %v1986
    %1995 = vst [vmem:[%s3 + $0x10] sm:$0xff] %v1987
    %1996 = vst [vmem:[%s3 + $0x18] sm:$0xff] %v1988
    %1997 = vst [vmem:[%s3 + $0x20] sm:$0xff] %v1989
    %1998 = vst [vmem:[%s3 + $0x28] sm:$0xff] %v1990
    %1999 = vst [vmem:[%s3 + $0x30] sm:$0xff] %v1991
    %2000 = vst.msk [vmem:[%s3 + $0x38] sm:$0xff] %vm1930, %v1992
  $region21: #{cspdarknet_tiny_forward.31} parent=0 // pred_fallthru
    _
  // Predicated region
  $region22: #{cspdarknet_tiny_forward.31} parent=0 // pred_check
    _
  $region23: #{cspdarknet_tiny_forward.31} parent=0 // pred_check_branch
    %2002 = sbr.rel (0) target = $region25
  $region24: #{cspdarknet_tiny_forward.31} parent=0 // pred_region
    _
  $region25: #{cspdarknet_tiny_forward.31} parent=0 // pred_fallthru
    _
  // Predicated region
  $region26: #{cspdarknet_tiny_forward.31} parent=0 // pred_check
    _
  $region27: #{cspdarknet_tiny_forward.31} parent=0 // pred_check_branch
    %2004 = sbr.rel (0) target = $region29
  $region28: #{cspdarknet_tiny_forward.31} parent=0 // pred_region
    _
  $region29: #{cspdarknet_tiny_forward.31} parent=0 // pred_fallthru
    _

</llo_original>
